<compile_context>
chip_gen: v7x
topology: tpu7x:2x2x1
jax: 0.10.0
libtpu: 0.0.40
codegen_flags: <defaults>
</compile_context>

<pallas_src>
import math
import functools

import jax
import jax.numpy as jnp
from jax import lax
from jax.experimental import pallas as pl
from jax.experimental.pallas import tpu as pltpu


# ---------------------------------------------------------------------------
# Row-wise sparsemax on a (R, S) block.
#   Phase 1: bisection on tau (root of f(tau) = sum(relu(z - tau)) - 1, which
#            lies in [max(z) - 1, max(z)]).  The per-row sum is computed on the
#            MXU via a ones-matmul so the XLU/VPU stay free.
#   Phase 2: exact f32 Newton / support-refit steps:
#            tau <- (sum_{z > tau} z - 1) / |{z > tau}|.
#            f is convex piecewise-linear, so a Newton step from either side
#            lands on or left of the root and then converges monotonically.
# ---------------------------------------------------------------------------
def _sparsemax_rows(z, *, n_bisect, n_newton, mxu_dtype):
    S = z.shape[-1]
    ones = jnp.ones((S, 1), mxu_dtype)          # hoisted out of the loop body

    z_max = jnp.max(z, axis=-1, keepdims=True)
    lo = z_max - 1.0
    hi = z_max

    def bisect_body(_, carry):
        lo, hi = carry
        mid = 0.5 * (lo + hi)
        s = jnp.dot(jnp.maximum(z - mid, 0.0).astype(mxu_dtype), ones,
                    preferred_element_type=jnp.float32)       # (R, 1) row sums
        ge = s >= 1.0
        return jnp.where(ge, mid, lo), jnp.where(ge, hi, mid)

    lo, hi = lax.fori_loop(0, n_bisect, bisect_body, (lo, hi))
    tau = 0.5 * (lo + hi)

    def newton_body(_, tau):
        support = (z > tau).astype(z.dtype)
        k_sup = jnp.maximum(jnp.sum(support, axis=-1, keepdims=True), 1.0)
        s_sup = jnp.sum(support * z, axis=-1, keepdims=True)
        return (s_sup - 1.0) / k_sup

    tau = lax.fori_loop(0, n_newton, newton_body, tau)
    return jnp.maximum(z - tau, 0.0)


# ---------------------------------------------------------------------------
# Fused multi-layer TransformerEncoder kernel.
# Grid = (B, L): batch is "parallel", layers are "arbitrary"; the activation
# lives in the resident `out` VMEM block across the layer axis.
# ---------------------------------------------------------------------------
def encoder_kernel(src_ref,
                   wqkv_ref, bqkv_ref, wfc_ref, bfc_ref,
                   w1_ref, b1_ref, w2_ref, b2_ref,
                   g1_ref, be1_ref, g2_ref, be2_ref,
                   out_ref, attn_ref,
                   *, nhead, d_k, n_bisect, n_newton, mxu_dtype):
    f32 = jnp.float32
    l_idx = pl.program_id(1)

    # Layer 0 reads the external input; later layers read the resident output.
    @pl.when(l_idx == 0)
    def _():
        out_ref[0] = src_ref[0]

    x = out_ref[0]                                      # (S, D) f32
    S, D = x.shape
    H = nhead

    def layer_norm(v, g, b):
        mu = jnp.mean(v, axis=-1, keepdims=True)
        var = jnp.mean((v - mu) ** 2, axis=-1, keepdims=True)
        return (v - mu) * lax.rsqrt(var + 1e-5) * g + b

    x_c = x.astype(mxu_dtype)

    # --- fused Q/K/V projection: one (S, D) @ (D, 3D) lane-dense matmul -----
    # (1/sqrt(d_k) is already folded into the Q columns in the wrapper.)
    qkv = jnp.dot(x_c, wqkv_ref[0].astype(mxu_dtype),
                  preferred_element_type=f32) + bqkv_ref[0]          # (S, 3D)

    def split_heads(start):
        cols = lax.slice_in_dim(qkv, start, start + D, axis=1)       # (S, D)
        return jnp.stack(
            [lax.slice_in_dim(cols, h * d_k, (h + 1) * d_k, axis=1)
             for h in range(H)], axis=0)                              # (H, S, d_k)

    q = split_heads(0)
    k = split_heads(D)
    v = split_heads(2 * D)

    # --- sparsemax attention (all heads at once) ----------------------------
    logits = lax.dot_general(q.astype(mxu_dtype), k.astype(mxu_dtype),
                             (((2,), (2,)), ((0,), (0,))),
                             preferred_element_type=f32)             # (H, S, S)

    p = _sparsemax_rows(logits.reshape(H * S, S),
                        n_bisect=n_bisect, n_newton=n_newton,
                        mxu_dtype=mxu_dtype).reshape(H, S, S)        # f32
    p_c = p.astype(mxu_dtype)
    attn_ref[0, 0] = p_c.astype(attn_ref.dtype)

    ctx = lax.dot_general(p_c, v.astype(mxu_dtype),
                          (((2,), (1,)), ((0,), (0,))),
                          preferred_element_type=f32)                # (H, S, d_k)

    # Output projection as a sum over heads: (H,S,d_k)@(H,d_k,D) -> (H,S,D).
    proj = lax.dot_general(ctx.astype(mxu_dtype), wfc_ref[0].astype(mxu_dtype),
                           (((2,), (1,)), ((0,), (0,))),
                           preferred_element_type=f32)               # (H, S, D)
    attn_out = jnp.sum(proj, axis=0) + bfc_ref[0]                    # (S, D)

    x1 = layer_norm(x + attn_out, g1_ref[0], be1_ref[0])   # dropout == identity

    # --- feed-forward --------------------------------------------------------
    hidden = jnp.maximum(
        jnp.dot(x1.astype(mxu_dtype), w1_ref[0].astype(mxu_dtype),
                preferred_element_type=f32) + b1_ref[0], 0.0)        # ReLU
    ff = jnp.dot(hidden.astype(mxu_dtype), w2_ref[0].astype(mxu_dtype),
                 preferred_element_type=f32) + b2_ref[0]
    out_ref[0] = layer_norm(x1 + ff, g2_ref[0], be2_ref[0])


def transformer_encoder_pallas(src, layer_params, nhead,
                               attn_dtype=jnp.bfloat16,
                               mxu_dtype=jnp.bfloat16):
    B, S, D = src.shape
    L = len(layer_params)
    d_k = D // nhead
    scale = 1.0 / math.sqrt(d_k)

    def stack(fn):
        return jnp.stack([fn(p) for p in layer_params], axis=0)

    # Fused QKV weights with the attention scale folded into the Q columns
    # (free in the wrapper; saves scaling the (H,S,S) logits in-kernel).
    wqkv = stack(lambda p: jnp.concatenate(
        [p["wq"] * scale, p["wk"], p["wv"]], axis=1))                # (L, D, 3D)
    bqkv = stack(lambda p: jnp.concatenate(
        [p["bq"] * scale, p["bk"], p["bv"]], axis=1))                # (L, 1, 3D)
    wfc = stack(lambda p: p["wfc"].reshape(nhead, d_k, D))           # (L, H, d_k, D)
    bfc = stack(lambda p: p["bfc"])                                  # (L, 1, D)
    w1 = stack(lambda p: p["w1"]); b1 = stack(lambda p: p["b1"])
    w2 = stack(lambda p: p["w2"]); b2 = stack(lambda p: p["b2"])
    g1 = stack(lambda p: p["g1"]); be1 = stack(lambda p: p["be1"])
    g2 = stack(lambda p: p["g2"]); be2 = stack(lambda p: p["be2"])

    weights = [wqkv, bqkv, wfc, bfc, w1, b1, w2, b2, g1, be1, g2, be2]

    def w_spec(arr):
        blk = (1,) + arr.shape[1:]
        nd = arr.ndim
        return pl.BlockSpec(blk, lambda b, l, _nd=nd: (l,) + (0,) * (_nd - 1))

    kernel = functools.partial(encoder_kernel, nhead=nhead, d_k=d_k,
                               n_bisect=12, n_newton=3, mxu_dtype=mxu_dtype)

    out, attn = pl.pallas_call(
        kernel,
        out_shape=(jax.ShapeDtypeStruct((B, S, D), jnp.float32),
                   jax.ShapeDtypeStruct((B, L, nhead, S, S), attn_dtype)),
        grid_spec=pltpu.PrefetchScalarGridSpec(
            num_scalar_prefetch=0,
            grid=(B, L),
            in_specs=[pl.BlockSpec((1, S, D), lambda b, l: (b, 0, 0))]
                     + [w_spec(a) for a in weights],
            out_specs=[pl.BlockSpec((1, S, D), lambda b, l: (b, 0, 0)),
                       pl.BlockSpec((1, 1, nhead, S, S),
                                    lambda b, l: (b, l, 0, 0, 0))]),
        compiler_params=pltpu.CompilerParams(
            dimension_semantics=("parallel", "arbitrary"),
            vmem_limit_bytes=32 * 1024 * 1024),
    )(src, *weights)

    attentions = [attn[:, i] for i in range(L)]
    return out, attentions


# ---------------------------------------------------------------------------
# Deterministic parameter init (PyTorch-Linear-style uniform bounds).
# ---------------------------------------------------------------------------
def init_layer_params(key, d_model, nhead, dim_feedforward):
    def lin(k, fan_in, fan_out):
        bound = 1.0 / math.sqrt(fan_in)
        kw, kb = jax.random.split(k)
        w = jax.random.uniform(kw, (fan_in, fan_out), jnp.float32, -bound, bound)
        b = jax.random.uniform(kb, (1, fan_out), jnp.float32, -bound, bound)
        return w, b

    ks = jax.random.split(key, 6)
    p = {}
    p["wq"], p["bq"] = lin(ks[0], d_model, d_model)
    p["wk"], p["bk"] = lin(ks[1], d_model, d_model)
    p["wv"], p["bv"] = lin(ks[2], d_model, d_model)
    p["wfc"], p["bfc"] = lin(ks[3], d_model, d_model)
    p["w1"], p["b1"] = lin(ks[4], d_model, dim_feedforward)
    p["w2"], p["b2"] = lin(ks[5], dim_feedforward, d_model)
    p["g1"] = jnp.ones((1, d_model), jnp.float32)
    p["be1"] = jnp.zeros((1, d_model), jnp.float32)
    p["g2"] = jnp.ones((1, d_model), jnp.float32)
    p["be2"] = jnp.zeros((1, d_model), jnp.float32)
    return p


# ---------------------------------------------------------------------------
# Pure-JAX reference (sort-based sparsemax, f32) for a sanity check.
# ---------------------------------------------------------------------------
def _sparsemax_ref(z):
    n = z.shape[-1]
    zs = jnp.flip(jnp.sort(z, axis=-1), axis=-1)
    cs = jnp.cumsum(zs, axis=-1)
    ar = jnp.arange(1, n + 1, dtype=z.dtype)
    support = (1.0 + ar * zs) > cs
    kz = jnp.sum(support, axis=-1, keepdims=True)
    tau = (jnp.take_along_axis(cs, kz.astype(jnp.int32) - 1, axis=-1) - 1.0) / kz
    return jnp.maximum(z - tau, 0.0)


def _encoder_layer_ref(src, p, nhead):
    B, S, D = src.shape
    d_k = D // nhead

    def ln(x, g, b):
        mu = x.mean(-1, keepdims=True)
        var = ((x - mu) ** 2).mean(-1, keepdims=True)
        return (x - mu) / jnp.sqrt(var + 1e-5) * g + b

    q = (src @ p["wq"] + p["bq"]).reshape(B, S, nhead, d_k).transpose(0, 2, 1, 3)
    k = (src @ p["wk"] + p["bk"]).reshape(B, S, nhead, d_k).transpose(0, 2, 1, 3)
    v = (src @ p["wv"] + p["bv"]).reshape(B, S, nhead, d_k).transpose(0, 2, 1, 3)
    logits = jnp.einsum("bhqd,bhkd->bhqk", q, k) / math.sqrt(d_k)
    attn = _sparsemax_ref(logits)
    av = jnp.einsum("bhqk,bhkd->bhqd", attn, v).transpose(0, 2, 1, 3).reshape(B, S, D)
    attn_out = av @ p["wfc"] + p["bfc"]
    x1 = ln(src + attn_out, p["g1"], p["be1"])
    ff = jnp.maximum(x1 @ p["w1"] + p["b1"], 0.0) @ p["w2"] + p["b2"]
    return ln(x1 + ff, p["g2"], p["be2"]), attn


if __name__ == "__main__":
    # Lane-dense small config: d_model = seq = 128 (multiple of 128), 4 heads.
    B, S, D, H, FF, NUM_LAYERS = 2, 128, 128, 4, 256, 2

    root = jax.random.PRNGKey(0)
    k_src, *k_layers = jax.random.split(root, NUM_LAYERS + 1)
    src = jax.random.normal(k_src, (B, S, D), jnp.float32)
    layer_params = [init_layer_params(k, D, H, FF) for k in k_layers]

    out, attentions = transformer_encoder_pallas(src, layer_params, H)
    out = jax.block_until_ready(out)
    attentions = [jax.block_until_ready(a) for a in attentions]

    # reference check (f32 everywhere; kernel uses bf16 MXU operands + bf16 attn maps)
    ref = src
    ref_attns = []
    for p in layer_params:
        ref, a = _encoder_layer_ref(ref, p, H)
        ref_attns.append(a)

    assert out.shape == (B, S, D)
    assert all(a.shape == (B, H, S, S) for a in attentions)
    assert bool(jnp.all(jnp.isfinite(out)))
    err_out = float(jnp.max(jnp.abs(out - ref)))
    err_attn = float(jnp.max(jnp.abs(
        attentions[-1].astype(jnp.float32) - ref_attns[-1])))
    assert err_out < 1.5e-1, f"output mismatch {err_out}"
    assert err_attn < 7e-2, f"attention mismatch {err_attn}"

    print("KERNEL_OK")
</pallas_src>

<mosaic_0001>
module attributes {stable_mosaic.version = 11 : i64} {
  func.func @encoder_kernel(%arg0: i32, %arg1: i32, %arg2: memref<1x128x128xf32, #tpu.memory_space<vmem>>, %arg3: memref<1x128x384xf32, #tpu.memory_space<vmem>>, %arg4: memref<1x1x384xf32, #tpu.memory_space<vmem>>, %arg5: memref<1x4x32x128xf32, #tpu.memory_space<vmem>>, %arg6: memref<1x1x128xf32, #tpu.memory_space<vmem>>, %arg7: memref<1x128x256xf32, #tpu.memory_space<vmem>>, %arg8: memref<1x1x256xf32, #tpu.memory_space<vmem>>, %arg9: memref<1x256x128xf32, #tpu.memory_space<vmem>>, %arg10: memref<1x1x128xf32, #tpu.memory_space<vmem>>, %arg11: memref<1x1x128xf32, #tpu.memory_space<vmem>>, %arg12: memref<1x1x128xf32, #tpu.memory_space<vmem>>, %arg13: memref<1x1x128xf32, #tpu.memory_space<vmem>>, %arg14: memref<1x1x128xf32, #tpu.memory_space<vmem>>, %arg15: memref<1x128x128xf32, #tpu.memory_space<vmem>>, %arg16: memref<1x1x4x128x128xbf16, #tpu.memory_space<vmem>>) attributes {dimension_semantics = [#tpu.dimension_semantics<parallel>, #tpu.dimension_semantics<arbitrary>], iteration_bounds = array<i64: 2, 2>, scalar_prefetch = 0 : i64, scratch_operands = 0 : i64, tpu.core_type = #tpu.core_type<tc>, window_params = [{transform_indices = @transform_0, window_bounds = array<i64: 1, 128, 128>}, {transform_indices = @transform_1, window_bounds = array<i64: 1, 128, 384>}, {transform_indices = @transform_2, window_bounds = array<i64: 1, 1, 384>}, {transform_indices = @transform_3, window_bounds = array<i64: 1, 4, 32, 128>}, {transform_indices = @transform_4, window_bounds = array<i64: 1, 1, 128>}, {transform_indices = @transform_5, window_bounds = array<i64: 1, 128, 256>}, {transform_indices = @transform_6, window_bounds = array<i64: 1, 1, 256>}, {transform_indices = @transform_7, window_bounds = array<i64: 1, 256, 128>}, {transform_indices = @transform_8, window_bounds = array<i64: 1, 1, 128>}, {transform_indices = @transform_9, window_bounds = array<i64: 1, 1, 128>}, {transform_indices = @transform_10, window_bounds = array<i64: 1, 1, 128>}, {transform_indices = @transform_11, window_bounds = array<i64: 1, 1, 128>}, {transform_indices = @transform_12, window_bounds = array<i64: 1, 1, 128>}, {transform_indices = @transform_13, window_bounds = array<i64: 1, 128, 128>}, {transform_indices = @transform_14, window_bounds = array<i64: 1, 1, 4, 128, 128>}]} {
    %c0_i32 = arith.constant 0 : i32
    %0 = arith.cmpi eq, %arg1, %c0_i32 : i32
    %1 = arith.extui %0 : i1 to i32
    %c0_i32_0 = arith.constant 0 : i32
    %2 = arith.cmpi ne, %1, %c0_i32_0 : i32
    scf.if %2 {
      %c0_73 = arith.constant 0 : index
      %c0_74 = arith.constant 0 : index
      %c0_75 = arith.constant 0 : index
      %158 = vector.load %arg2[%c0_73, %c0_74, %c0_75] : memref<1x128x128xf32, #tpu.memory_space<vmem>>, vector<1x128x128xf32>
      %159 = vector.shape_cast %158 : vector<1x128x128xf32> to vector<128x128xf32>
      %c0_76 = arith.constant 0 : index
      %c0_77 = arith.constant 0 : index
      %c0_78 = arith.constant 0 : index
      %160 = vector.load %arg15[%c0_76, %c0_77, %c0_78] : memref<1x128x128xf32, #tpu.memory_space<vmem>>, vector<1x128x128xf32>
      %161 = vector.shape_cast %160 : vector<1x128x128xf32> to vector<128x128xf32>
      %162 = vector.shape_cast %159 : vector<128x128xf32> to vector<1x128x128xf32>
      tpu.vector_store %arg15[%c0_76, %c0_77, %c0_78], %162 {strides = array<i32>} : memref<1x128x128xf32, #tpu.memory_space<vmem>>, vector<1x128x128xf32>,
    } else {
    }
    %c0 = arith.constant 0 : index
    %c0_1 = arith.constant 0 : index
    %c0_2 = arith.constant 0 : index
    %3 = vector.load %arg15[%c0, %c0_1, %c0_2] : memref<1x128x128xf32, #tpu.memory_space<vmem>>, vector<1x128x128xf32>
    %4 = vector.shape_cast %3 : vector<1x128x128xf32> to vector<128x128xf32>
    %5 = arith.truncf %4 : vector<128x128xf32> to vector<128x128xbf16>
    %c0_3 = arith.constant 0 : index
    %c0_4 = arith.constant 0 : index
    %c0_5 = arith.constant 0 : index
    %6 = vector.load %arg3[%c0_3, %c0_4, %c0_5] : memref<1x128x384xf32, #tpu.memory_space<vmem>>, vector<1x128x384xf32>
    %7 = vector.shape_cast %6 : vector<1x128x384xf32> to vector<128x384xf32>
    %8 = arith.truncf %7 : vector<128x384xf32> to vector<128x384xbf16>
    %cst = arith.constant dense<0.000000e+00> : vector<128x384xf32>
    %9 = tpu.matmul %5, %8, %cst {dimension_numbers = #tpu.dot_dimension_numbers<[1], [0], [0], [1], [0, 0, 1, 1], [], []>} : vector<128x128xbf16>, vector<128x384xbf16>, vector<128x384xf32> -> vector<128x384xf32>
    %c0_6 = arith.constant 0 : index
    %c0_7 = arith.constant 0 : index
    %c0_8 = arith.constant 0 : index
    %10 = vector.load %arg4[%c0_6, %c0_7, %c0_8] : memref<1x1x384xf32, #tpu.memory_space<vmem>>, vector<1x1x384xf32>
    %11 = vector.shape_cast %10 : vector<1x1x384xf32> to vector<1x384xf32>
    %12 = vector.broadcast %11 : vector<1x384xf32> to vector<128x384xf32>
    %13 = arith.addf %9, %12 : vector<128x384xf32>
    %14 = vector.extract_strided_slice %13 {offsets = [0, 0], sizes = [128, 128], strides = [1, 1]} : vector<128x384xf32> to vector<128x128xf32>
    %15 = vector.extract_strided_slice %14 {offsets = [0, 0], sizes = [128, 32], strides = [1, 1]} : vector<128x128xf32> to vector<128x32xf32>
    %16 = vector.extract_strided_slice %14 {offsets = [0, 32], sizes = [128, 32], strides = [1, 1]} : vector<128x128xf32> to vector<128x32xf32>
    %17 = vector.extract_strided_slice %14 {offsets = [0, 64], sizes = [128, 32], strides = [1, 1]} : vector<128x128xf32> to vector<128x32xf32>
    %18 = vector.extract_strided_slice %14 {offsets = [0, 96], sizes = [128, 32], strides = [1, 1]} : vector<128x128xf32> to vector<128x32xf32>
    %19 = vector.shape_cast %15 : vector<128x32xf32> to vector<1x128x32xf32>
    %20 = vector.shape_cast %16 : vector<128x32xf32> to vector<1x128x32xf32>
    %21 = vector.shape_cast %17 : vector<128x32xf32> to vector<1x128x32xf32>
    %22 = vector.shape_cast %18 : vector<128x32xf32> to vector<1x128x32xf32>
    %23 = tpu.concatenate %19, %20, %21, %22 in 0 : vector<1x128x32xf32>, vector<1x128x32xf32>, vector<1x128x32xf32>, vector<1x128x32xf32> -> vector<4x128x32xf32>
    %24 = vector.extract_strided_slice %13 {offsets = [0, 128], sizes = [128, 128], strides = [1, 1]} : vector<128x384xf32> to vector<128x128xf32>
    %25 = vector.extract_strided_slice %24 {offsets = [0, 0], sizes = [128, 32], strides = [1, 1]} : vector<128x128xf32> to vector<128x32xf32>
    %26 = vector.extract_strided_slice %24 {offsets = [0, 32], sizes = [128, 32], strides = [1, 1]} : vector<128x128xf32> to vector<128x32xf32>
    %27 = vector.extract_strided_slice %24 {offsets = [0, 64], sizes = [128, 32], strides = [1, 1]} : vector<128x128xf32> to vector<128x32xf32>
    %28 = vector.extract_strided_slice %24 {offsets = [0, 96], sizes = [128, 32], strides = [1, 1]} : vector<128x128xf32> to vector<128x32xf32>
    %29 = vector.shape_cast %25 : vector<128x32xf32> to vector<1x128x32xf32>
    %30 = vector.shape_cast %26 : vector<128x32xf32> to vector<1x128x32xf32>
    %31 = vector.shape_cast %27 : vector<128x32xf32> to vector<1x128x32xf32>
    %32 = vector.shape_cast %28 : vector<128x32xf32> to vector<1x128x32xf32>
    %33 = tpu.concatenate %29, %30, %31, %32 in 0 : vector<1x128x32xf32>, vector<1x128x32xf32>, vector<1x128x32xf32>, vector<1x128x32xf32> -> vector<4x128x32xf32>
    %34 = vector.extract_strided_slice %13 {offsets = [0, 256], sizes = [128, 128], strides = [1, 1]} : vector<128x384xf32> to vector<128x128xf32>
    %35 = vector.extract_strided_slice %34 {offsets = [0, 0], sizes = [128, 32], strides = [1, 1]} : vector<128x128xf32> to vector<128x32xf32>
    %36 = vector.extract_strided_slice %34 {offsets = [0, 32], sizes = [128, 32], strides = [1, 1]} : vector<128x128xf32> to vector<128x32xf32>
    %37 = vector.extract_strided_slice %34 {offsets = [0, 64], sizes = [128, 32], strides = [1, 1]} : vector<128x128xf32> to vector<128x32xf32>
    %38 = vector.extract_strided_slice %34 {offsets = [0, 96], sizes = [128, 32], strides = [1, 1]} : vector<128x128xf32> to vector<128x32xf32>
    %39 = vector.shape_cast %35 : vector<128x32xf32> to vector<1x128x32xf32>
    %40 = vector.shape_cast %36 : vector<128x32xf32> to vector<1x128x32xf32>
    %41 = vector.shape_cast %37 : vector<128x32xf32> to vector<1x128x32xf32>
    %42 = vector.shape_cast %38 : vector<128x32xf32> to vector<1x128x32xf32>
    %43 = tpu.concatenate %39, %40, %41, %42 in 0 : vector<1x128x32xf32>, vector<1x128x32xf32>, vector<1x128x32xf32>, vector<1x128x32xf32> -> vector<4x128x32xf32>
    %44 = arith.truncf %23 : vector<4x128x32xf32> to vector<4x128x32xbf16>
    %45 = arith.truncf %33 : vector<4x128x32xf32> to vector<4x128x32xbf16>
    %cst_9 = arith.constant dense<0.000000e+00> : vector<4x128x128xf32>
    %46 = tpu.matmul %44, %45, %cst_9 {dimension_numbers = #tpu.dot_dimension_numbers<[2], [2], [1], [1], [0, 0, 0, 1, 1, 1], [0], [0]>} : vector<4x128x32xbf16>, vector<4x128x32xbf16>, vector<4x128x128xf32> -> vector<4x128x128xf32>
    %47 = vector.shape_cast %46 : vector<4x128x128xf32> to vector<512x128xf32>
    %cst_10 = arith.constant 1.000000e+00 : bf16
    %48 = vector.broadcast %cst_10 : bf16 to vector<128x1xbf16>
    %cst_11 = arith.constant dense<0xFF800000> : vector<512xf32>
    %49 = vector.multi_reduction <maximumf>, %47, %cst_11 [1] : vector<512x128xf32> to vector<512xf32>
    %50 = vector.shape_cast %49 : vector<512xf32> to vector<512x1xf32>
    %cst_12 = arith.constant 1.000000e+00 : f32
    %51 = vector.broadcast %cst_12 : f32 to vector<512x1xf32>
    %52 = arith.subf %50, %51 : vector<512x1xf32>
    %c0_i32_13 = arith.constant 0 : i32
    %c12_i32 = arith.constant 12 : i32
    %53 = arith.addi %c0_i32_13, %c12_i32 : i32
    %c1_i32 = arith.constant 1 : i32
    %54:2 = scf.for %arg17 = %c0_i32_13 to %53 step %c1_i32 iter_args(%arg18 = %52, %arg19 = %50) -> (vector<512x1xf32>, vector<512x1xf32>)  : i32 {
      %158 = arith.addf %arg18, %arg19 : vector<512x1xf32>
      %cst_73 = arith.constant 5.000000e-01 : f32
      %159 = vector.broadcast %cst_73 : f32 to vector<512x1xf32>
      %160 = arith.mulf %159, %158 : vector<512x1xf32>
      %161 = vector.broadcast %160 : vector<512x1xf32> to vector<512x128xf32>
      %162 = arith.subf %47, %161 : vector<512x128xf32>
      %cst_74 = arith.constant 0.000000e+00 : f32
      %163 = vector.broadcast %cst_74 : f32 to vector<512x128xf32>
      %164 = arith.maximumf %162, %163 : vector<512x128xf32>
      %165 = arith.truncf %164 : vector<512x128xf32> to vector<512x128xbf16>
      %cst_75 = arith.constant dense<0.000000e+00> : vector<512x1xf32>
      %166 = tpu.matmul %165, %48, %cst_75 {dimension_numbers = #tpu.dot_dimension_numbers<[1], [0], [0], [1], [0, 0, 1, 1], [], []>} : vector<512x128xbf16>, vector<128x1xbf16>, vector<512x1xf32> -> vector<512x1xf32>
      %cst_76 = arith.constant 1.000000e+00 : f32
      %167 = vector.broadcast %cst_76 : f32 to vector<512x1xf32>
      %168 = arith.cmpf oge, %166, %167 : vector<512x1xf32>
      %169 = arith.select %168, %160, %arg18 : vector<512x1xi1>, vector<512x1xf32>
      %170 = arith.select %168, %arg19, %160 : vector<512x1xi1>, vector<512x1xf32>
      scf.yield %169, %170 : vector<512x1xf32>, vector<512x1xf32>
    }
    %55 = arith.addf %54#0, %54#1 : vector<512x1xf32>
    %cst_14 = arith.constant 5.000000e-01 : f32
    %56 = vector.broadcast %cst_14 : f32 to vector<512x1xf32>
    %57 = arith.mulf %56, %55 : vector<512x1xf32>
    %c0_i32_15 = arith.constant 0 : i32
    %c3_i32 = arith.constant 3 : i32
    %58 = arith.addi %c0_i32_15, %c3_i32 : i32
    %c1_i32_16 = arith.constant 1 : i32
    %59 = scf.for %arg17 = %c0_i32_15 to %58 step %c1_i32_16 iter_args(%arg18 = %57) -> (vector<512x1xf32>)  : i32 {
      %158 = vector.broadcast %arg18 : vector<512x1xf32> to vector<512x128xf32>
      %159 = arith.cmpf ogt, %47, %158 : vector<512x128xf32>
      %160 = arith.extui %159 : vector<512x128xi1> to vector<512x128xi32>
      %161 = arith.sitofp %160 : vector<512x128xi32> to vector<512x128xf32>
      %cst_73 = arith.constant dense<0.000000e+00> : vector<512xf32>
      %162 = vector.multi_reduction <add>, %161, %cst_73 [1] : vector<512x128xf32> to vector<512xf32>
      %163 = vector.shape_cast %162 : vector<512xf32> to vector<512x1xf32>
      %cst_74 = arith.constant 1.000000e+00 : f32
      %164 = vector.broadcast %cst_74 : f32 to vector<512x1xf32>
      %165 = arith.maximumf %163, %164 : vector<512x1xf32>
      %166 = arith.mulf %161, %47 : vector<512x128xf32>
      %cst_75 = arith.constant dense<0.000000e+00> : vector<512xf32>
      %167 = vector.multi_reduction <add>, %166, %cst_75 [1] : vector<512x128xf32> to vector<512xf32>
      %168 = vector.shape_cast %167 : vector<512xf32> to vector<512x1xf32>
      %cst_76 = arith.constant 1.000000e+00 : f32
      %169 = vector.broadcast %cst_76 : f32 to vector<512x1xf32>
      %170 = arith.subf %168, %169 : vector<512x1xf32>
      %171 = arith.divf %170, %165 : vector<512x1xf32>
      scf.yield %171 : vector<512x1xf32>
    }
    %60 = vector.broadcast %59 : vector<512x1xf32> to vector<512x128xf32>
    %61 = arith.subf %47, %60 : vector<512x128xf32>
    %cst_17 = arith.constant 0.000000e+00 : f32
    %62 = vector.broadcast %cst_17 : f32 to vector<512x128xf32>
    %63 = arith.maximumf %61, %62 : vector<512x128xf32>
    %64 = vector.shape_cast %63 : vector<512x128xf32> to vector<4x128x128xf32>
    %65 = arith.truncf %64 : vector<4x128x128xf32> to vector<4x128x128xbf16>
    %c0_18 = arith.constant 0 : index
    %c0_19 = arith.constant 0 : index
    %c0_20 = arith.constant 0 : index
    %c0_21 = arith.constant 0 : index
    %c0_22 = arith.constant 0 : index
    %66 = vector.load %arg16[%c0_18, %c0_19, %c0_20, %c0_21, %c0_22] : memref<1x1x4x128x128xbf16, #tpu.memory_space<vmem>>, vector<1x1x4x128x128xbf16>
    %67 = vector.shape_cast %66 : vector<1x1x4x128x128xbf16> to vector<4x128x128xbf16>
    %68 = vector.shape_cast %65 : vector<4x128x128xbf16> to vector<1x1x4x128x128xbf16>
    tpu.vector_store %arg16[%c0_18, %c0_19, %c0_20, %c0_21, %c0_22], %68 {strides = array<i32>} : memref<1x1x4x128x128xbf16, #tpu.memory_space<vmem>>, vector<1x1x4x128x128xbf16>,
    %69 = arith.truncf %43 : vector<4x128x32xf32> to vector<4x128x32xbf16>
    %cst_23 = arith.constant dense<0.000000e+00> : vector<4x128x32xf32>
    %70 = tpu.matmul %65, %69, %cst_23 {dimension_numbers = #tpu.dot_dimension_numbers<[2], [1], [1], [2], [0, 0, 0, 1, 1, 2], [0], [0]>} : vector<4x128x128xbf16>, vector<4x128x32xbf16>, vector<4x128x32xf32> -> vector<4x128x32xf32>
    %71 = arith.truncf %70 : vector<4x128x32xf32> to vector<4x128x32xbf16>
    %c0_24 = arith.constant 0 : index
    %c0_25 = arith.constant 0 : index
    %c0_26 = arith.constant 0 : index
    %c0_27 = arith.constant 0 : index
    %72 = vector.load %arg5[%c0_24, %c0_25, %c0_26, %c0_27] : memref<1x4x32x128xf32, #tpu.memory_space<vmem>>, vector<1x4x32x128xf32>
    %73 = vector.shape_cast %72 : vector<1x4x32x128xf32> to vector<4x32x128xf32>
    %74 = arith.truncf %73 : vector<4x32x128xf32> to vector<4x32x128xbf16>
    %cst_28 = arith.constant dense<0.000000e+00> : vector<4x128x128xf32>
    %75 = tpu.matmul %71, %74, %cst_28 {dimension_numbers = #tpu.dot_dimension_numbers<[2], [1], [1], [2], [0, 0, 0, 1, 1, 2], [0], [0]>} : vector<4x128x32xbf16>, vector<4x32x128xbf16>, vector<4x128x128xf32> -> vector<4x128x128xf32>
    %cst_29 = arith.constant dense<0.000000e+00> : vector<128x128xf32>
    %76 = vector.multi_reduction <add>, %75, %cst_29 [0] : vector<4x128x128xf32> to vector<128x128xf32>
    %c0_30 = arith.constant 0 : index
    %c0_31 = arith.constant 0 : index
    %c0_32 = arith.constant 0 : index
    %77 = vector.load %arg6[%c0_30, %c0_31, %c0_32] : memref<1x1x128xf32, #tpu.memory_space<vmem>>, vector<1x1x128xf32>
    %78 = vector.shape_cast %77 : vector<1x1x128xf32> to vector<1x128xf32>
    %79 = vector.broadcast %78 : vector<1x128xf32> to vector<128x128xf32>
    %80 = arith.addf %76, %79 : vector<128x128xf32>
    %81 = arith.addf %4, %80 : vector<128x128xf32>
    %c0_33 = arith.constant 0 : index
    %c0_34 = arith.constant 0 : index
    %c0_35 = arith.constant 0 : index
    %82 = vector.load %arg11[%c0_33, %c0_34, %c0_35] : memref<1x1x128xf32, #tpu.memory_space<vmem>>, vector<1x1x128xf32>
    %83 = vector.shape_cast %82 : vector<1x1x128xf32> to vector<1x128xf32>
    %c0_36 = arith.constant 0 : index
    %c0_37 = arith.constant 0 : index
    %c0_38 = arith.constant 0 : index
    %84 = vector.load %arg12[%c0_36, %c0_37, %c0_38] : memref<1x1x128xf32, #tpu.memory_space<vmem>>, vector<1x1x128xf32>
    %85 = vector.shape_cast %84 : vector<1x1x128xf32> to vector<1x128xf32>
    %cst_39 = arith.constant dense<0.000000e+00> : vector<128xf32>
    %86 = vector.multi_reduction <add>, %81, %cst_39 [1] : vector<128x128xf32> to vector<128xf32>
    %87 = vector.shape_cast %86 : vector<128xf32> to vector<128x1xf32>
    %cst_40 = arith.constant 1.280000e+02 : f32
    %88 = vector.broadcast %cst_40 : f32 to vector<128x1xf32>
    %89 = arith.divf %87, %88 : vector<128x1xf32>
    %90 = vector.broadcast %89 : vector<128x1xf32> to vector<128x128xf32>
    %91 = arith.subf %81, %90 : vector<128x128xf32>
    %92 = arith.mulf %91, %91 : vector<128x128xf32>
    %cst_41 = arith.constant dense<0.000000e+00> : vector<128xf32>
    %93 = vector.multi_reduction <add>, %92, %cst_41 [1] : vector<128x128xf32> to vector<128xf32>
    %94 = vector.shape_cast %93 : vector<128xf32> to vector<128x1xf32>
    %cst_42 = arith.constant 1.280000e+02 : f32
    %95 = vector.broadcast %cst_42 : f32 to vector<128x1xf32>
    %96 = arith.divf %94, %95 : vector<128x1xf32>
    %97 = vector.broadcast %89 : vector<128x1xf32> to vector<128x128xf32>
    %98 = arith.subf %81, %97 : vector<128x128xf32>
    %cst_43 = arith.constant 9.99999974E-6 : f32
    %99 = vector.broadcast %cst_43 : f32 to vector<128x1xf32>
    %100 = arith.addf %96, %99 : vector<128x1xf32>
    %101 = math.rsqrt %100 : vector<128x1xf32>
    %102 = vector.broadcast %101 : vector<128x1xf32> to vector<128x128xf32>
    %103 = arith.mulf %98, %102 : vector<128x128xf32>
    %104 = vector.broadcast %83 : vector<1x128xf32> to vector<128x128xf32>
    %105 = arith.mulf %103, %104 : vector<128x128xf32>
    %106 = vector.broadcast %85 : vector<1x128xf32> to vector<128x128xf32>
    %107 = arith.addf %105, %106 : vector<128x128xf32>
    %108 = arith.truncf %107 : vector<128x128xf32> to vector<128x128xbf16>
    %c0_44 = arith.constant 0 : index
    %c0_45 = arith.constant 0 : index
    %c0_46 = arith.constant 0 : index
    %109 = vector.load %arg7[%c0_44, %c0_45, %c0_46] : memref<1x128x256xf32, #tpu.memory_space<vmem>>, vector<1x128x256xf32>
    %110 = vector.shape_cast %109 : vector<1x128x256xf32> to vector<128x256xf32>
    %111 = arith.truncf %110 : vector<128x256xf32> to vector<128x256xbf16>
    %cst_47 = arith.constant dense<0.000000e+00> : vector<128x256xf32>
    %112 = tpu.matmul %108, %111, %cst_47 {dimension_numbers = #tpu.dot_dimension_numbers<[1], [0], [0], [1], [0, 0, 1, 1], [], []>} : vector<128x128xbf16>, vector<128x256xbf16>, vector<128x256xf32> -> vector<128x256xf32>
    %c0_48 = arith.constant 0 : index
    %c0_49 = arith.constant 0 : index
    %c0_50 = arith.constant 0 : index
    %113 = vector.load %arg8[%c0_48, %c0_49, %c0_50] : memref<1x1x256xf32, #tpu.memory_space<vmem>>, vector<1x1x256xf32>
    %114 = vector.shape_cast %113 : vector<1x1x256xf32> to vector<1x256xf32>
    %115 = vector.broadcast %114 : vector<1x256xf32> to vector<128x256xf32>
    %116 = arith.addf %112, %115 : vector<128x256xf32>
    %cst_51 = arith.constant 0.000000e+00 : f32
    %117 = vector.broadcast %cst_51 : f32 to vector<128x256xf32>
    %118 = arith.maximumf %116, %117 : vector<128x256xf32>
    %119 = arith.truncf %118 : vector<128x256xf32> to vector<128x256xbf16>
    %c0_52 = arith.constant 0 : index
    %c0_53 = arith.constant 0 : index
    %c0_54 = arith.constant 0 : index
    %120 = vector.load %arg9[%c0_52, %c0_53, %c0_54] : memref<1x256x128xf32, #tpu.memory_space<vmem>>, vector<1x256x128xf32>
    %121 = vector.shape_cast %120 : vector<1x256x128xf32> to vector<256x128xf32>
    %122 = arith.truncf %121 : vector<256x128xf32> to vector<256x128xbf16>
    %cst_55 = arith.constant dense<0.000000e+00> : vector<128x128xf32>
    %123 = tpu.matmul %119, %122, %cst_55 {dimension_numbers = #tpu.dot_dimension_numbers<[1], [0], [0], [1], [0, 0, 1, 1], [], []>} : vector<128x256xbf16>, vector<256x128xbf16>, vector<128x128xf32> -> vector<128x128xf32>
    %c0_56 = arith.constant 0 : index
    %c0_57 = arith.constant 0 : index
    %c0_58 = arith.constant 0 : index
    %124 = vector.load %arg10[%c0_56, %c0_57, %c0_58] : memref<1x1x128xf32, #tpu.memory_space<vmem>>, vector<1x1x128xf32>
    %125 = vector.shape_cast %124 : vector<1x1x128xf32> to vector<1x128xf32>
    %126 = vector.broadcast %125 : vector<1x128xf32> to vector<128x128xf32>
    %127 = arith.addf %123, %126 : vector<128x128xf32>
    %128 = arith.addf %107, %127 : vector<128x128xf32>
    %c0_59 = arith.constant 0 : index
    %c0_60 = arith.constant 0 : index
    %c0_61 = arith.constant 0 : index
    %129 = vector.load %arg13[%c0_59, %c0_60, %c0_61] : memref<1x1x128xf32, #tpu.memory_space<vmem>>, vector<1x1x128xf32>
    %130 = vector.shape_cast %129 : vector<1x1x128xf32> to vector<1x128xf32>
    %c0_62 = arith.constant 0 : index
    %c0_63 = arith.constant 0 : index
    %c0_64 = arith.constant 0 : index
    %131 = vector.load %arg14[%c0_62, %c0_63, %c0_64] : memref<1x1x128xf32, #tpu.memory_space<vmem>>, vector<1x1x128xf32>
    %132 = vector.shape_cast %131 : vector<1x1x128xf32> to vector<1x128xf32>
    %cst_65 = arith.constant dense<0.000000e+00> : vector<128xf32>
    %133 = vector.multi_reduction <add>, %128, %cst_65 [1] : vector<128x128xf32> to vector<128xf32>
    %134 = vector.shape_cast %133 : vector<128xf32> to vector<128x1xf32>
    %cst_66 = arith.constant 1.280000e+02 : f32
    %135 = vector.broadcast %cst_66 : f32 to vector<128x1xf32>
    %136 = arith.divf %134, %135 : vector<128x1xf32>
    %137 = vector.broadcast %136 : vector<128x1xf32> to vector<128x128xf32>
    %138 = arith.subf %128, %137 : vector<128x128xf32>
    %139 = arith.mulf %138, %138 : vector<128x128xf32>
    %cst_67 = arith.constant dense<0.000000e+00> : vector<128xf32>
    %140 = vector.multi_reduction <add>, %139, %cst_67 [1] : vector<128x128xf32> to vector<128xf32>
    %141 = vector.shape_cast %140 : vector<128xf32> to vector<128x1xf32>
    %cst_68 = arith.constant 1.280000e+02 : f32
    %142 = vector.broadcast %cst_68 : f32 to vector<128x1xf32>
    %143 = arith.divf %141, %142 : vector<128x1xf32>
    %144 = vector.broadcast %136 : vector<128x1xf32> to vector<128x128xf32>
    %145 = arith.subf %128, %144 : vector<128x128xf32>
    %cst_69 = arith.constant 9.99999974E-6 : f32
    %146 = vector.broadcast %cst_69 : f32 to vector<128x1xf32>
    %147 = arith.addf %143, %146 : vector<128x1xf32>
    %148 = math.rsqrt %147 : vector<128x1xf32>
    %149 = vector.broadcast %148 : vector<128x1xf32> to vector<128x128xf32>
    %150 = arith.mulf %145, %149 : vector<128x128xf32>
    %151 = vector.broadcast %130 : vector<1x128xf32> to vector<128x128xf32>
    %152 = arith.mulf %150, %151 : vector<128x128xf32>
    %153 = vector.broadcast %132 : vector<1x128xf32> to vector<128x128xf32>
    %154 = arith.addf %152, %153 : vector<128x128xf32>
    %c0_70 = arith.constant 0 : index
    %c0_71 = arith.constant 0 : index
    %c0_72 = arith.constant 0 : index
    %155 = vector.load %arg15[%c0_70, %c0_71, %c0_72] : memref<1x128x128xf32, #tpu.memory_space<vmem>>, vector<1x128x128xf32>
    %156 = vector.shape_cast %155 : vector<1x128x128xf32> to vector<128x128xf32>
    %157 = vector.shape_cast %154 : vector<128x128xf32> to vector<1x128x128xf32>
    tpu.vector_store %arg15[%c0_70, %c0_71, %c0_72], %157 {strides = array<i32>} : memref<1x128x128xf32, #tpu.memory_space<vmem>>, vector<1x128x128xf32>,
    return
  }
  func.func @transform_0(%arg0: i32, %arg1: i32) -> (i32, i32, i32) {
    %c0_i32 = arith.constant 0 : i32
    %c0_i32_0 = arith.constant 0 : i32
    %c0_i32_1 = arith.constant 0 : i32
    return %arg0, %c0_i32, %c0_i32_0 : i32, i32, i32
  }
  func.func @transform_1(%arg0: i32, %arg1: i32) -> (i32, i32, i32) {
    %c0_i32 = arith.constant 0 : i32
    %c0_i32_0 = arith.constant 0 : i32
    %c0_i32_1 = arith.constant 0 : i32
    return %arg1, %c0_i32, %c0_i32_0 : i32, i32, i32
  }
  func.func @transform_2(%arg0: i32, %arg1: i32) -> (i32, i32, i32) {
    %c0_i32 = arith.constant 0 : i32
    %c0_i32_0 = arith.constant 0 : i32
    %c0_i32_1 = arith.constant 0 : i32
    return %arg1, %c0_i32, %c0_i32_0 : i32, i32, i32
  }
  func.func @transform_3(%arg0: i32, %arg1: i32) -> (i32, i32, i32, i32) {
    %c0_i32 = arith.constant 0 : i32
    %c0_i32_0 = arith.constant 0 : i32
    %c0_i32_1 = arith.constant 0 : i32
    %c0_i32_2 = arith.constant 0 : i32
    return %arg1, %c0_i32, %c0_i32_0, %c0_i32_1 : i32, i32, i32, i32
  }
  func.func @transform_4(%arg0: i32, %arg1: i32) -> (i32, i32, i32) {
    %c0_i32 = arith.constant 0 : i32
    %c0_i32_0 = arith.constant 0 : i32
    %c0_i32_1 = arith.constant 0 : i32
    return %arg1, %c0_i32, %c0_i32_0 : i32, i32, i32
  }
  func.func @transform_5(%arg0: i32, %arg1: i32) -> (i32, i32, i32) {
    %c0_i32 = arith.constant 0 : i32
    %c0_i32_0 = arith.constant 0 : i32
    %c0_i32_1 = arith.constant 0 : i32
    return %arg1, %c0_i32, %c0_i32_0 : i32, i32, i32
  }
  func.func @transform_6(%arg0: i32, %arg1: i32) -> (i32, i32, i32) {
    %c0_i32 = arith.constant 0 : i32
    %c0_i32_0 = arith.constant 0 : i32
    %c0_i32_1 = arith.constant 0 : i32
    return %arg1, %c0_i32, %c0_i32_0 : i32, i32, i32
  }
  func.func @transform_7(%arg0: i32, %arg1: i32) -> (i32, i32, i32) {
    %c0_i32 = arith.constant 0 : i32
    %c0_i32_0 = arith.constant 0 : i32
    %c0_i32_1 = arith.constant 0 : i32
    return %arg1, %c0_i32, %c0_i32_0 : i32, i32, i32
  }
  func.func @transform_8(%arg0: i32, %arg1: i32) -> (i32, i32, i32) {
    %c0_i32 = arith.constant 0 : i32
    %c0_i32_0 = arith.constant 0 : i32
    %c0_i32_1 = arith.constant 0 : i32
    return %arg1, %c0_i32, %c0_i32_0 : i32, i32, i32
  }
  func.func @transform_9(%arg0: i32, %arg1: i32) -> (i32, i32, i32) {
    %c0_i32 = arith.constant 0 : i32
    %c0_i32_0 = arith.constant 0 : i32
    %c0_i32_1 = arith.constant 0 : i32
    return %arg1, %c0_i32, %c0_i32_0 : i32, i32, i32
  }
  func.func @transform_10(%arg0: i32, %arg1: i32) -> (i32, i32, i32) {
    %c0_i32 = arith.constant 0 : i32
    %c0_i32_0 = arith.constant 0 : i32
    %c0_i32_1 = arith.constant 0 : i32
    return %arg1, %c0_i32, %c0_i32_0 : i32, i32, i32
  }
  func.func @transform_11(%arg0: i32, %arg1: i32) -> (i32, i32, i32) {
    %c0_i32 = arith.constant 0 : i32
    %c0_i32_0 = arith.constant 0 : i32
    %c0_i32_1 = arith.constant 0 : i32
    return %arg1, %c0_i32, %c0_i32_0 : i32, i32, i32
  }
  func.func @transform_12(%arg0: i32, %arg1: i32) -> (i32, i32, i32) {
    %c0_i32 = arith.constant 0 : i32
    %c0_i32_0 = arith.constant 0 : i32
    %c0_i32_1 = arith.constant 0 : i32
    return %arg1, %c0_i32, %c0_i32_0 : i32, i32, i32
  }
  func.func @transform_13(%arg0: i32, %arg1: i32) -> (i32, i32, i32) {
    %c0_i32 = arith.constant 0 : i32
    %c0_i32_0 = arith.constant 0 : i32
    %c0_i32_1 = arith.constant 0 : i32
    return %arg0, %c0_i32, %c0_i32_0 : i32, i32, i32
  }
  func.func @transform_14(%arg0: i32, %arg1: i32) -> (i32, i32, i32, i32, i32) {
    %c0_i32 = arith.constant 0 : i32
    %c0_i32_0 = arith.constant 0 : i32
    %c0_i32_1 = arith.constant 0 : i32
    %c0_i32_2 = arith.constant 0 : i32
    return %arg0, %arg1, %c0_i32, %c0_i32_0, %c0_i32_1 : i32, i32, i32, i32, i32
  }
}

</mosaic_0001>

<llo_original>
// kernel: tpu_custom_call.1
$region0: #{tpu_custom_call.1}
  #allocation0 [shape = 'u32[]', space=smem, size = 0x4, offset = 0x4, fixed_abs, tag = 'smem constant byte address 0x4 - core index']
  #allocation1 [shape = 'u32[144,128]{1,0:T(1,128)}', space=vmem, size = 0x12000, scoped, tag = 'internal scratch']
  %s0 = inlined_call_operand.hbm [shape: f32[2,128,128], index: 0, kind: input, shape index: {}]
  %s1 = inlined_call_operand.hbm [shape: f32[2,128,384], index: 1, kind: input, shape index: {}]
  %s2 = inlined_call_operand.vmem [shape: f32[2,1,384], index: 2, kind: input, shape index: {}]
  %s3 = inlined_call_operand.hbm [shape: f32[2,4,32,128], index: 3, kind: input, shape index: {}]
  %s4 = inlined_call_operand.vmem [shape: f32[2,1,128], index: 4, kind: input, shape index: {}]
  %s5 = inlined_call_operand.hbm [shape: f32[2,128,256], index: 5, kind: input, shape index: {}]
  %s6 = inlined_call_operand.vmem [shape: f32[2,1,256], index: 6, kind: input, shape index: {}]
  %s7 = inlined_call_operand.hbm [shape: f32[2,256,128], index: 7, kind: input, shape index: {}]
  %s8 = inlined_call_operand.vmem [shape: f32[2,1,128], index: 8, kind: input, shape index: {}]
  %s9 = inlined_call_operand.vmem [shape: f32[2,1,128], index: 9, kind: input, shape index: {}]
  %s10 = inlined_call_operand.vmem [shape: f32[2,1,128], index: 10, kind: input, shape index: {}]
  %s11 = inlined_call_operand.vmem [shape: f32[2,1,128], index: 11, kind: input, shape index: {}]
  %s12 = inlined_call_operand.vmem [shape: f32[2,1,128], index: 12, kind: input, shape index: {}]
  %s13 = inlined_call_operand.hbm [shape: f32[2,128,128], index: 13, kind: output, shape index: {0}]
  %s14 = inlined_call_operand.hbm [shape: bf16[2,2,4,128,128], index: 14, kind: output, shape index: {1}]
  %15 = xla_tuple %s13, %s14
  %s16 = sld [smem:[#allocation0]]
  $region131: #{tpu_custom_call.1} parent=0
    _
  %s18 = ssub.s32 1, %s16
  %s19 = scalar_select 0, %s18, %s16
  $region1: #{tpu_custom_call.1} parent=0
    #allocation2 [shape = 'u8[131072]{0}', space=vmem, size = 0x20000, scoped, tag = 'input window, operand 0']
    #allocation3 [shape = 's32[2]{0}', space=sflag, size = 0x8, scoped, tag = 'scoped memory for tpu_custom_call.1']
    #allocation4 [shape = 's32[2]{0}', space=sflag, size = 0x8, scoped, tag = 'scoped memory for tpu_custom_call.1']
    #allocation5 [shape = 'u8[393216]{0}', space=vmem, size = 0x60000, scoped, tag = 'input window, operand 1']
    #allocation6 [shape = 's32[2]{0}', space=sflag, size = 0x8, scoped, tag = 'scoped memory for tpu_custom_call.1']
    #allocation7 [shape = 'u8[131072]{0}', space=vmem, size = 0x20000, scoped, tag = 'input window, operand 3']
    #allocation8 [shape = 'u8[262144]{0}', space=vmem, size = 0x40000, scoped, tag = 'input window, operand 5']
    #allocation9 [shape = 's32[2]{0}', space=sflag, size = 0x8, scoped, tag = 'scoped memory for tpu_custom_call.1']
    #allocation10 [shape = 'u8[262144]{0}', space=vmem, size = 0x40000, scoped, tag = 'input window, operand 7']
    #allocation11 [shape = 'u8[131072]{0}', space=vmem, size = 0x20000, scoped, tag = 'output window, operand 0']
    #allocation12 [shape = 'u8[262144]{0}', space=vmem, size = 0x40000, scoped, tag = 'output window, operand 1']
    #allocation13 [shape = 's32[2]{0}', space=sflag, size = 0x8, scoped, tag = 'scoped memory for tpu_custom_call.1']
    %20 = vsyncpa [#allocation3], 0
    %s21 = scalar_lea.sflag [#allocation3], 1
    %22 = vsyncpa %s21, 0
    %23 = vsyncpa [#allocation6], 0
    %s24 = scalar_lea.sflag [#allocation6], 1
    %25 = vsyncpa %s24, 0
    %26 = vsyncpa [#allocation9], 0
    %s27 = scalar_lea.sflag [#allocation9], 1
    %28 = vsyncpa %s27, 0
    %29 = vsyncpa [#allocation4], 0
    %s30 = scalar_lea.sflag [#allocation4], 1
    %31 = vsyncpa %s30, 0
    %32 = vsyncpa [#allocation13], 0
    %s33 = scalar_lea.sflag [#allocation13], 1
    %34 = vsyncpa %s33, 0
    loop: start=0, step=1, limit=6
    $region2: #{tpu_custom_call.1} parent=1 // loop_pre_header
      _
    $region3: #{tpu_custom_call.1} parent=1 // loop_header
      %s36 = sphi 0, %s40
      %p37 = scmp.ge.s32.totalorder %s36, 6
      %s43 = sphi 0, %s55
      %s44 = sphi 0, %s51
      %s45 = sphi 0, %s43
      %s46 = sphi 0, %s44
      %s47 = sphi 0, %s45
      %s48 = sphi 0, %s46
      %s58 = sphi 0, %s60
      %s61 = sphi 0, %s58
      %s62 = sphi 0, %s61
      %s78 = sphi 0, %s62
      %s84 = sphi 0, %s86
      %s87 = sphi 0, %s84
      %s88 = sphi 0, %s87
      %s104 = sphi 0, %s88
      %s110 = sphi 0, %s112
      %s113 = sphi 0, %s110
      %s114 = sphi 0, %s113
      %s130 = sphi 0, %s114
      %s136 = sphi 0, %s138
      %s139 = sphi 0, %s136
      %s140 = sphi 0, %s139
      %s156 = sphi 0, %s140
      %s162 = sphi 0, %s164
      %s165 = sphi 0, %s162
      %s166 = sphi 0, %s165
      %s182 = sphi 0, %s166
      %s188 = sphi 0, %s190
      %s191 = sphi 0, %s188
      %s192 = sphi 0, %s191
      %s208 = sphi 0, %s192
      %s214 = sphi 0, %s216
      %s217 = sphi 0, %s214
      %s218 = sphi 0, %s217
      %s234 = sphi 0, %s218
      %s240 = sphi 0, %s242
      %s243 = sphi 0, %s240
      %s244 = sphi 0, %s243
      %s260 = sphi 0, %s244
      %s266 = sphi 0, %s268
      %s269 = sphi 0, %s266
      %s270 = sphi 0, %s269
      %s286 = sphi 0, %s270
      %s292 = sphi 0, %s294
      %s295 = sphi 0, %s292
      %s296 = sphi 0, %s295
      %s312 = sphi 0, %s296
      %s318 = sphi 0, %s320
      %s321 = sphi 0, %s318
      %s322 = sphi 0, %s321
      %s338 = sphi 0, %s322
      %s344 = sphi 0, %s346
      %s347 = sphi 0, %s344
      %s348 = sphi 0, %s347
      %s364 = sphi 0, %s348
      %s370 = sphi 0, %s372
      %s373 = sphi 0, %s370
      %s374 = sphi 0, %s373
      %s390 = sphi 0, %s374
      %s396 = sphi 0, %s398
      %s399 = sphi 0, %s396
      %s400 = sphi 0, %s399
      %s416 = sphi 0, %s400
      %s424 = sphi 0, %s426
      %s427 = sphi 0, %s424
      %s428 = sphi 0, %s427
      %s444 = sphi 0, %s428
    $region4: #{tpu_custom_call.1} parent=1 // loop_header_branch
      %39 = sbr.rel (%p37) target = $region8
    $region5: #{tpu_custom_call.1} parent=1 // loop_body
      %s41 = ssub.s32 %s36, 1
      %s42 = ssub.s32 %s36, 2
      %s49 = sadd.s32 1, %s44
      %p50 = scmp.ge.s32.totalorder %s49, 2
      %s51 = scalar_select %p50, 0, %s49
      %s52 = sadd.s32 1, %s43
      %s53 = scalar_select %p50, %s52, %s43
      %p54 = scmp.ge.s32.totalorder %s53, 2
      %s55 = scalar_select %p54, 0, %s53
      %s56 = ssub.s32 %s43, %s55
      %p57 = scmp.eq.s32.totalorder %s56, 0
      %s59 = sadd.s32 %s58, 1
      %s60 = scalar_select %p57, %s58, %s59
      %p63 = pneg %p57
      %p64 = scmp.eq.s32.totalorder %s36, 3
      %p65 = por %p63, %p64
      %p66 = scmp.ne.s32.totalorder %s58, %s61
      %p67 = scmp.eq.s32.totalorder %s36, 0
      %p68 = por %p66, %p67
      %p69 = scmp.ne.s32.totalorder %s58, %s61
      %p70 = scmp.eq.s32.totalorder %s41, 3
      %p71 = por %p69, %p70
      %p72 = scmp.ne.s32.totalorder %s61, %s62
      %p73 = scmp.eq.s32.totalorder %s41, 0
      %p74 = por %p72, %p73
      %p75 = scmp.ne.s32.totalorder %s61, %s62
      %p76 = scmp.eq.s32.totalorder %s42, 3
      %p77 = por %p75, %p76
      %p79 = scmp.ne.s32.totalorder %s62, %s78
      %p80 = scmp.eq.s32.totalorder %s42, 0
      %p81 = por %p79, %p80
      %s82 = ssub.s32 %s44, %s51
      %p83 = scmp.eq.s32.totalorder %s82, 0
      %s85 = sadd.s32 %s84, 1
      %s86 = scalar_select %p83, %s84, %s85
      %p89 = pneg %p83
      %p90 = scmp.eq.s32.totalorder %s36, 3
      %p91 = por %p89, %p90
      %p92 = scmp.ne.s32.totalorder %s84, %s87
      %p93 = scmp.eq.s32.totalorder %s36, 0
      %p94 = por %p92, %p93
      %p95 = scmp.ne.s32.totalorder %s84, %s87
      %p96 = scmp.eq.s32.totalorder %s41, 3
      %p97 = por %p95, %p96
      %p98 = scmp.ne.s32.totalorder %s87, %s88
      %p99 = scmp.eq.s32.totalorder %s41, 0
      %p100 = por %p98, %p99
      %p101 = scmp.ne.s32.totalorder %s87, %s88
      %p102 = scmp.eq.s32.totalorder %s42, 3
      %p103 = por %p101, %p102
      %p105 = scmp.ne.s32.totalorder %s88, %s104
      %p106 = scmp.eq.s32.totalorder %s42, 0
      %p107 = por %p105, %p106
      %s108 = ssub.s32 %s44, %s51
      %p109 = scmp.eq.s32.totalorder %s108, 0
      %s111 = sadd.s32 %s110, 1
      %s112 = scalar_select %p109, %s110, %s111
      %p115 = pneg %p109
      %p116 = scmp.eq.s32.totalorder %s36, 3
      %p117 = por %p115, %p116
      %p118 = scmp.ne.s32.totalorder %s110, %s113
      %p119 = scmp.eq.s32.totalorder %s36, 0
      %p120 = por %p118, %p119
      %p121 = scmp.ne.s32.totalorder %s110, %s113
      %p122 = scmp.eq.s32.totalorder %s41, 3
      %p123 = por %p121, %p122
      %p124 = scmp.ne.s32.totalorder %s113, %s114
      %p125 = scmp.eq.s32.totalorder %s41, 0
      %p126 = por %p124, %p125
      %p127 = scmp.ne.s32.totalorder %s113, %s114
      %p128 = scmp.eq.s32.totalorder %s42, 3
      %p129 = por %p127, %p128
      %p131 = scmp.ne.s32.totalorder %s114, %s130
      %p132 = scmp.eq.s32.totalorder %s42, 0
      %p133 = por %p131, %p132
      %s134 = ssub.s32 %s44, %s51
      %p135 = scmp.eq.s32.totalorder %s134, 0
      %s137 = sadd.s32 %s136, 1
      %s138 = scalar_select %p135, %s136, %s137
      %p141 = pneg %p135
      %p142 = scmp.eq.s32.totalorder %s36, 3
      %p143 = por %p141, %p142
      %p144 = scmp.ne.s32.totalorder %s136, %s139
      %p145 = scmp.eq.s32.totalorder %s36, 0
      %p146 = por %p144, %p145
      %p147 = scmp.ne.s32.totalorder %s136, %s139
      %p148 = scmp.eq.s32.totalorder %s41, 3
      %p149 = por %p147, %p148
      %p150 = scmp.ne.s32.totalorder %s139, %s140
      %p151 = scmp.eq.s32.totalorder %s41, 0
      %p152 = por %p150, %p151
      %p153 = scmp.ne.s32.totalorder %s139, %s140
      %p154 = scmp.eq.s32.totalorder %s42, 3
      %p155 = por %p153, %p154
      %p157 = scmp.ne.s32.totalorder %s140, %s156
      %p158 = scmp.eq.s32.totalorder %s42, 0
      %p159 = por %p157, %p158
      %s160 = ssub.s32 %s44, %s51
      %p161 = scmp.eq.s32.totalorder %s160, 0
      %s163 = sadd.s32 %s162, 1
      %s164 = scalar_select %p161, %s162, %s163
      %p167 = pneg %p161
      %p168 = scmp.eq.s32.totalorder %s36, 3
      %p169 = por %p167, %p168
      %p170 = scmp.ne.s32.totalorder %s162, %s165
      %p171 = scmp.eq.s32.totalorder %s36, 0
      %p172 = por %p170, %p171
      %p173 = scmp.ne.s32.totalorder %s162, %s165
      %p174 = scmp.eq.s32.totalorder %s41, 3
      %p175 = por %p173, %p174
      %p176 = scmp.ne.s32.totalorder %s165, %s166
      %p177 = scmp.eq.s32.totalorder %s41, 0
      %p178 = por %p176, %p177
      %p179 = scmp.ne.s32.totalorder %s165, %s166
      %p180 = scmp.eq.s32.totalorder %s42, 3
      %p181 = por %p179, %p180
      %p183 = scmp.ne.s32.totalorder %s166, %s182
      %p184 = scmp.eq.s32.totalorder %s42, 0
      %p185 = por %p183, %p184
      %s186 = ssub.s32 %s44, %s51
      %p187 = scmp.eq.s32.totalorder %s186, 0
      %s189 = sadd.s32 %s188, 1
      %s190 = scalar_select %p187, %s188, %s189
      %p193 = pneg %p187
      %p194 = scmp.eq.s32.totalorder %s36, 3
      %p195 = por %p193, %p194
      %p196 = scmp.ne.s32.totalorder %s188, %s191
      %p197 = scmp.eq.s32.totalorder %s36, 0
      %p198 = por %p196, %p197
      %p199 = scmp.ne.s32.totalorder %s188, %s191
      %p200 = scmp.eq.s32.totalorder %s41, 3
      %p201 = por %p199, %p200
      %p202 = scmp.ne.s32.totalorder %s191, %s192
      %p203 = scmp.eq.s32.totalorder %s41, 0
      %p204 = por %p202, %p203
      %p205 = scmp.ne.s32.totalorder %s191, %s192
      %p206 = scmp.eq.s32.totalorder %s42, 3
      %p207 = por %p205, %p206
      %p209 = scmp.ne.s32.totalorder %s192, %s208
      %p210 = scmp.eq.s32.totalorder %s42, 0
      %p211 = por %p209, %p210
      %s212 = ssub.s32 %s44, %s51
      %p213 = scmp.eq.s32.totalorder %s212, 0
      %s215 = sadd.s32 %s214, 1
      %s216 = scalar_select %p213, %s214, %s215
      %p219 = pneg %p213
      %p220 = scmp.eq.s32.totalorder %s36, 3
      %p221 = por %p219, %p220
      %p222 = scmp.ne.s32.totalorder %s214, %s217
      %p223 = scmp.eq.s32.totalorder %s36, 0
      %p224 = por %p222, %p223
      %p225 = scmp.ne.s32.totalorder %s214, %s217
      %p226 = scmp.eq.s32.totalorder %s41, 3
      %p227 = por %p225, %p226
      %p228 = scmp.ne.s32.totalorder %s217, %s218
      %p229 = scmp.eq.s32.totalorder %s41, 0
      %p230 = por %p228, %p229
      %p231 = scmp.ne.s32.totalorder %s217, %s218
      %p232 = scmp.eq.s32.totalorder %s42, 3
      %p233 = por %p231, %p232
      %p235 = scmp.ne.s32.totalorder %s218, %s234
      %p236 = scmp.eq.s32.totalorder %s42, 0
      %p237 = por %p235, %p236
      %s238 = ssub.s32 %s44, %s51
      %p239 = scmp.eq.s32.totalorder %s238, 0
      %s241 = sadd.s32 %s240, 1
      %s242 = scalar_select %p239, %s240, %s241
      %p245 = pneg %p239
      %p246 = scmp.eq.s32.totalorder %s36, 3
      %p247 = por %p245, %p246
      %p248 = scmp.ne.s32.totalorder %s240, %s243
      %p249 = scmp.eq.s32.totalorder %s36, 0
      %p250 = por %p248, %p249
      %p251 = scmp.ne.s32.totalorder %s240, %s243
      %p252 = scmp.eq.s32.totalorder %s41, 3
      %p253 = por %p251, %p252
      %p254 = scmp.ne.s32.totalorder %s243, %s244
      %p255 = scmp.eq.s32.totalorder %s41, 0
      %p256 = por %p254, %p255
      %p257 = scmp.ne.s32.totalorder %s243, %s244
      %p258 = scmp.eq.s32.totalorder %s42, 3
      %p259 = por %p257, %p258
      %p261 = scmp.ne.s32.totalorder %s244, %s260
      %p262 = scmp.eq.s32.totalorder %s42, 0
      %p263 = por %p261, %p262
      %s264 = ssub.s32 %s44, %s51
      %p265 = scmp.eq.s32.totalorder %s264, 0
      %s267 = sadd.s32 %s266, 1
      %s268 = scalar_select %p265, %s266, %s267
      %p271 = pneg %p265
      %p272 = scmp.eq.s32.totalorder %s36, 3
      %p273 = por %p271, %p272
      %p274 = scmp.ne.s32.totalorder %s266, %s269
      %p275 = scmp.eq.s32.totalorder %s36, 0
      %p276 = por %p274, %p275
      %p277 = scmp.ne.s32.totalorder %s266, %s269
      %p278 = scmp.eq.s32.totalorder %s41, 3
      %p279 = por %p277, %p278
      %p280 = scmp.ne.s32.totalorder %s269, %s270
      %p281 = scmp.eq.s32.totalorder %s41, 0
      %p282 = por %p280, %p281
      %p283 = scmp.ne.s32.totalorder %s269, %s270
      %p284 = scmp.eq.s32.totalorder %s42, 3
      %p285 = por %p283, %p284
      %p287 = scmp.ne.s32.totalorder %s270, %s286
      %p288 = scmp.eq.s32.totalorder %s42, 0
      %p289 = por %p287, %p288
      %s290 = ssub.s32 %s44, %s51
      %p291 = scmp.eq.s32.totalorder %s290, 0
      %s293 = sadd.s32 %s292, 1
      %s294 = scalar_select %p291, %s292, %s293
      %p297 = pneg %p291
      %p298 = scmp.eq.s32.totalorder %s36, 3
      %p299 = por %p297, %p298
      %p300 = scmp.ne.s32.totalorder %s292, %s295
      %p301 = scmp.eq.s32.totalorder %s36, 0
      %p302 = por %p300, %p301
      %p303 = scmp.ne.s32.totalorder %s292, %s295
      %p304 = scmp.eq.s32.totalorder %s41, 3
      %p305 = por %p303, %p304
      %p306 = scmp.ne.s32.totalorder %s295, %s296
      %p307 = scmp.eq.s32.totalorder %s41, 0
      %p308 = por %p306, %p307
      %p309 = scmp.ne.s32.totalorder %s295, %s296
      %p310 = scmp.eq.s32.totalorder %s42, 3
      %p311 = por %p309, %p310
      %p313 = scmp.ne.s32.totalorder %s296, %s312
      %p314 = scmp.eq.s32.totalorder %s42, 0
      %p315 = por %p313, %p314
      %s316 = ssub.s32 %s44, %s51
      %p317 = scmp.eq.s32.totalorder %s316, 0
      %s319 = sadd.s32 %s318, 1
      %s320 = scalar_select %p317, %s318, %s319
      %p323 = pneg %p317
      %p324 = scmp.eq.s32.totalorder %s36, 3
      %p325 = por %p323, %p324
      %p326 = scmp.ne.s32.totalorder %s318, %s321
      %p327 = scmp.eq.s32.totalorder %s36, 0
      %p328 = por %p326, %p327
      %p329 = scmp.ne.s32.totalorder %s318, %s321
      %p330 = scmp.eq.s32.totalorder %s41, 3
      %p331 = por %p329, %p330
      %p332 = scmp.ne.s32.totalorder %s321, %s322
      %p333 = scmp.eq.s32.totalorder %s41, 0
      %p334 = por %p332, %p333
      %p335 = scmp.ne.s32.totalorder %s321, %s322
      %p336 = scmp.eq.s32.totalorder %s42, 3
      %p337 = por %p335, %p336
      %p339 = scmp.ne.s32.totalorder %s322, %s338
      %p340 = scmp.eq.s32.totalorder %s42, 0
      %p341 = por %p339, %p340
      %s342 = ssub.s32 %s44, %s51
      %p343 = scmp.eq.s32.totalorder %s342, 0
      %s345 = sadd.s32 %s344, 1
      %s346 = scalar_select %p343, %s344, %s345
      %p349 = pneg %p343
      %p350 = scmp.eq.s32.totalorder %s36, 3
      %p351 = por %p349, %p350
      %p352 = scmp.ne.s32.totalorder %s344, %s347
      %p353 = scmp.eq.s32.totalorder %s36, 0
      %p354 = por %p352, %p353
      %p355 = scmp.ne.s32.totalorder %s344, %s347
      %p356 = scmp.eq.s32.totalorder %s41, 3
      %p357 = por %p355, %p356
      %p358 = scmp.ne.s32.totalorder %s347, %s348
      %p359 = scmp.eq.s32.totalorder %s41, 0
      %p360 = por %p358, %p359
      %p361 = scmp.ne.s32.totalorder %s347, %s348
      %p362 = scmp.eq.s32.totalorder %s42, 3
      %p363 = por %p361, %p362
      %p365 = scmp.ne.s32.totalorder %s348, %s364
      %p366 = scmp.eq.s32.totalorder %s42, 0
      %p367 = por %p365, %p366
      %s368 = ssub.s32 %s44, %s51
      %p369 = scmp.eq.s32.totalorder %s368, 0
      %s371 = sadd.s32 %s370, 1
      %s372 = scalar_select %p369, %s370, %s371
      %p375 = pneg %p369
      %p376 = scmp.eq.s32.totalorder %s36, 3
      %p377 = por %p375, %p376
      %p378 = scmp.ne.s32.totalorder %s370, %s373
      %p379 = scmp.eq.s32.totalorder %s36, 0
      %p380 = por %p378, %p379
      %p381 = scmp.ne.s32.totalorder %s370, %s373
      %p382 = scmp.eq.s32.totalorder %s41, 3
      %p383 = por %p381, %p382
      %p384 = scmp.ne.s32.totalorder %s373, %s374
      %p385 = scmp.eq.s32.totalorder %s41, 0
      %p386 = por %p384, %p385
      %p387 = scmp.ne.s32.totalorder %s373, %s374
      %p388 = scmp.eq.s32.totalorder %s42, 3
      %p389 = por %p387, %p388
      %p391 = scmp.ne.s32.totalorder %s374, %s390
      %p392 = scmp.eq.s32.totalorder %s42, 0
      %p393 = por %p391, %p392
      %s394 = ssub.s32 %s43, %s55
      %p395 = scmp.eq.s32.totalorder %s394, 0
      %s397 = sadd.s32 %s396, 1
      %s398 = scalar_select %p395, %s396, %s397
      %p401 = pneg %p395
      %p402 = scmp.eq.s32.totalorder %s36, 3
      %p403 = por %p401, %p402
      %p404 = scmp.ne.s32.totalorder %s396, %s399
      %p405 = scmp.eq.s32.totalorder %s36, 0
      %p406 = por %p404, %p405
      %p407 = scmp.ne.s32.totalorder %s396, %s399
      %p408 = scmp.eq.s32.totalorder %s41, 3
      %p409 = por %p407, %p408
      %p410 = scmp.ne.s32.totalorder %s399, %s400
      %p411 = scmp.eq.s32.totalorder %s41, 0
      %p412 = por %p410, %p411
      %p413 = scmp.ne.s32.totalorder %s399, %s400
      %p414 = scmp.eq.s32.totalorder %s42, 3
      %p415 = por %p413, %p414
      %p417 = scmp.ne.s32.totalorder %s400, %s416
      %p418 = scmp.eq.s32.totalorder %s42, 0
      %p419 = por %p417, %p418
      %s420 = ssub.s32 %s43, %s55
      %s421 = ssub.s32 %s44, %s51
      %s422 = sor.u32 %s420, %s421
      %p423 = scmp.eq.s32.totalorder %s422, 0
      %s425 = sadd.s32 %s424, 1
      %s426 = scalar_select %p423, %s424, %s425
      %p429 = pneg %p423
      %p430 = scmp.eq.s32.totalorder %s36, 3
      %p431 = por %p429, %p430
      %p432 = scmp.ne.s32.totalorder %s424, %s427
      %p433 = scmp.eq.s32.totalorder %s36, 0
      %p434 = por %p432, %p433
      %p435 = scmp.ne.s32.totalorder %s424, %s427
      %p436 = scmp.eq.s32.totalorder %s41, 3
      %p437 = por %p435, %p436
      %p438 = scmp.ne.s32.totalorder %s427, %s428
      %p439 = scmp.eq.s32.totalorder %s41, 0
      %p440 = por %p438, %p439
      %p441 = scmp.ne.s32.totalorder %s427, %s428
      %p442 = scmp.eq.s32.totalorder %s42, 3
      %p443 = por %p441, %p442
      %p445 = scmp.ne.s32.totalorder %s428, %s444
      %p446 = scmp.eq.s32.totalorder %s42, 0
      %p447 = por %p445, %p446
      %p448 = scmp.le.s32.totalorder 1, %s36
      %p449 = scmp.lt.s32.totalorder %s36, 5
      %p450 = pnand %p448, %p449
      %p451 = pneg %p450
      // Predicated region
      $region9: #{tpu_custom_call.1} parent=5 // pred_check
        _
      $region10: #{tpu_custom_call.1} parent=5 // pred_check_branch
        %453 = sbr.rel (%p450) target = $region12
      $region11: #{tpu_custom_call.1} parent=5 // pred_region
        %s454 = ssub.s32 %s36, 1
      $region12: #{tpu_custom_call.1} parent=5 // pred_fallthru
        _
      %p455 = scmp.lt.s32.totalorder %s36, 4
      // Predicated region
      $region13: #{tpu_custom_call.1} parent=5 // pred_check
        %p456 = pneg %p455
      $region14: #{tpu_custom_call.1} parent=5 // pred_check_branch
        %458 = sbr.rel (%p456) target = $region16
      $region15: #{tpu_custom_call.1} parent=5 // pred_region
        // Predicated region
        $region17: #{tpu_custom_call.1} parent=15 // pred_check
          %p459 = pneg %p68
        $region18: #{tpu_custom_call.1} parent=15 // pred_check_branch
          %461 = sbr.rel (%p459) target = $region20
        $region19: #{tpu_custom_call.1} parent=15 // pred_region
          %s462 = sand.u32 %s58, 1
          %s463 = scalar_lea.sflag [#allocation3], %s462
          %s464 = sand.u32 %s58, 1
          %s465 = smul.addr %s464, 128
          %s466 = scalar_lea.vmem [#allocation2], %s465
          %s468 = ssub.s32 2048, 2048
          %469 = vsyncadd %s463, %s468
          %s470 = smul.addr %s43, 16
          %s471 = smul.addr %s470, 128
          %s472 = scalar_lea.hbm %s0, %s471
          %s473 = sshll.u32 %s466, 4
          %s474 = int_to_ptr.vmem [resolvable:$true] %s473
          %479 = dma.hbm_to_vmem [thread:$0]  %s472, 2048, %s474, %s463, 128, 128, 8
        $region20: #{tpu_custom_call.1} parent=15 // pred_fallthru
          _
        // Predicated region
        $region21: #{tpu_custom_call.1} parent=15 // pred_check
          %p480 = pneg %p94
        $region22: #{tpu_custom_call.1} parent=15 // pred_check_branch
          %482 = sbr.rel (%p480) target = $region24
        $region23: #{tpu_custom_call.1} parent=15 // pred_region
          %s483 = sand.u32 %s36, 1
          %s484 = scalar_lea.sflag [#allocation6], %s483
          %s485 = sand.u32 %s84, 1
          %s486 = smul.addr %s485, 384
          %s487 = scalar_lea.vmem [#allocation5], %s486
          %s489 = ssub.s32 6144, 6144
          %490 = vsyncadd %s484, %s489
          %s491 = smul.addr %s44, 48
          %s492 = smul.addr %s491, 128
          %s493 = scalar_lea.hbm %s1, %s492
          %s494 = sshll.u32 %s487, 4
          %s495 = int_to_ptr.vmem [resolvable:$true] %s494
          %500 = dma.hbm_to_vmem [thread:$0]  %s493, 6144, %s495, %s484, 384, 384, 24
        $region24: #{tpu_custom_call.1} parent=15 // pred_fallthru
          _
        // Predicated region
        $region25: #{tpu_custom_call.1} parent=15 // pred_check
          %p501 = pneg %p120
        $region26: #{tpu_custom_call.1} parent=15 // pred_check_branch
          %503 = sbr.rel (%p501) target = $region28
        $region27: #{tpu_custom_call.1} parent=15 // pred_region
          %p504 = scmp.lt.s32.totalorder %s44, 1
          %s505 = scalar_select %p504, %s44, 1
          %s506 = smul.addr %s505, 3
          %s507 = scalar_lea.vmem %s2, %s506
        $region28: #{tpu_custom_call.1} parent=15 // pred_fallthru
          _
        // Predicated region
        $region29: #{tpu_custom_call.1} parent=15 // pred_check
          %p508 = pneg %p146
        $region30: #{tpu_custom_call.1} parent=15 // pred_check_branch
          %510 = sbr.rel (%p508) target = $region32
        $region31: #{tpu_custom_call.1} parent=15 // pred_region
          %s511 = sand.u32 %s36, 1
          %s512 = scalar_lea.sflag [#allocation6], %s511
          %s513 = sand.u32 %s136, 1
          %s514 = smul.addr %s513, 128
          %s515 = scalar_lea.vmem [#allocation7], %s514
          %s517 = ssub.s32 2048, 2048
          %518 = vsyncadd %s512, %s517
          %s519 = smul.addr %s44, 16
          %s520 = smul.addr %s519, 128
          %s521 = scalar_lea.hbm %s3, %s520
          %s522 = sshll.u32 %s515, 4
          %s523 = int_to_ptr.vmem [resolvable:$true] %s522
          %528 = dma.hbm_to_vmem [thread:$0]  %s521, 2048, %s523, %s512, 128, 128, 8
        $region32: #{tpu_custom_call.1} parent=15 // pred_fallthru
          _
        // Predicated region
        $region33: #{tpu_custom_call.1} parent=15 // pred_check
          %p529 = pneg %p172
        $region34: #{tpu_custom_call.1} parent=15 // pred_check_branch
          %531 = sbr.rel (%p529) target = $region36
        $region35: #{tpu_custom_call.1} parent=15 // pred_region
          %p532 = scmp.lt.s32.totalorder %s44, 1
          %s533 = scalar_select %p532, %s44, 1
          %s534 = scalar_lea.vmem %s4, %s533
        $region36: #{tpu_custom_call.1} parent=15 // pred_fallthru
          _
        // Predicated region
        $region37: #{tpu_custom_call.1} parent=15 // pred_check
          %p535 = pneg %p198
        $region38: #{tpu_custom_call.1} parent=15 // pred_check_branch
          %537 = sbr.rel (%p535) target = $region40
        $region39: #{tpu_custom_call.1} parent=15 // pred_region
          %s538 = sand.u32 %s36, 1
          %s539 = scalar_lea.sflag [#allocation9], %s538
          %s540 = sand.u32 %s188, 1
          %s541 = smul.addr %s540, 256
          %s542 = scalar_lea.vmem [#allocation8], %s541
          %s544 = ssub.s32 4096, 4096
          %545 = vsyncadd %s539, %s544
          %s546 = smul.addr %s44, 32
          %s547 = smul.addr %s546, 128
          %s548 = scalar_lea.hbm %s5, %s547
          %s549 = sshll.u32 %s542, 4
          %s550 = int_to_ptr.vmem [resolvable:$true] %s549
          %555 = dma.hbm_to_vmem [thread:$0]  %s548, 4096, %s550, %s539, 256, 256, 16
        $region40: #{tpu_custom_call.1} parent=15 // pred_fallthru
          _
        // Predicated region
        $region41: #{tpu_custom_call.1} parent=15 // pred_check
          %p556 = pneg %p224
        $region42: #{tpu_custom_call.1} parent=15 // pred_check_branch
          %558 = sbr.rel (%p556) target = $region44
        $region43: #{tpu_custom_call.1} parent=15 // pred_region
          %p559 = scmp.lt.s32.totalorder %s44, 1
          %s560 = scalar_select %p559, %s44, 1
          %s561 = smul.addr %s560, 2
          %s562 = scalar_lea.vmem %s6, %s561
        $region44: #{tpu_custom_call.1} parent=15 // pred_fallthru
          _
        // Predicated region
        $region45: #{tpu_custom_call.1} parent=15 // pred_check
          %p563 = pneg %p250
        $region46: #{tpu_custom_call.1} parent=15 // pred_check_branch
          %565 = sbr.rel (%p563) target = $region48
        $region47: #{tpu_custom_call.1} parent=15 // pred_region
          %s566 = sand.u32 %s36, 1
          %s567 = scalar_lea.sflag [#allocation9], %s566
          %s568 = sand.u32 %s240, 1
          %s569 = smul.addr %s568, 256
          %s570 = scalar_lea.vmem [#allocation10], %s569
          %s572 = ssub.s32 4096, 4096
          %573 = vsyncadd %s567, %s572
          %s574 = smul.addr %s44, 32
          %s575 = smul.addr %s574, 128
          %s576 = scalar_lea.hbm %s7, %s575
          %s577 = sshll.u32 %s570, 4
          %s578 = int_to_ptr.vmem [resolvable:$true] %s577
          %583 = dma.hbm_to_vmem [thread:$0]  %s576, 4096, %s578, %s567, 128, 128, 8
        $region48: #{tpu_custom_call.1} parent=15 // pred_fallthru
          _
        // Predicated region
        $region49: #{tpu_custom_call.1} parent=15 // pred_check
          %p584 = pneg %p276
        $region50: #{tpu_custom_call.1} parent=15 // pred_check_branch
          %586 = sbr.rel (%p584) target = $region52
        $region51: #{tpu_custom_call.1} parent=15 // pred_region
          %p587 = scmp.lt.s32.totalorder %s44, 1
          %s588 = scalar_select %p587, %s44, 1
          %s589 = scalar_lea.vmem %s8, %s588
        $region52: #{tpu_custom_call.1} parent=15 // pred_fallthru
          _
        // Predicated region
        $region53: #{tpu_custom_call.1} parent=15 // pred_check
          %p590 = pneg %p302
        $region54: #{tpu_custom_call.1} parent=15 // pred_check_branch
          %592 = sbr.rel (%p590) target = $region56
        $region55: #{tpu_custom_call.1} parent=15 // pred_region
          %p593 = scmp.lt.s32.totalorder %s44, 1
          %s594 = scalar_select %p593, %s44, 1
          %s595 = scalar_lea.vmem %s9, %s594
        $region56: #{tpu_custom_call.1} parent=15 // pred_fallthru
          _
        // Predicated region
        $region57: #{tpu_custom_call.1} parent=15 // pred_check
          %p596 = pneg %p328
        $region58: #{tpu_custom_call.1} parent=15 // pred_check_branch
          %598 = sbr.rel (%p596) target = $region60
        $region59: #{tpu_custom_call.1} parent=15 // pred_region
          %p599 = scmp.lt.s32.totalorder %s44, 1
          %s600 = scalar_select %p599, %s44, 1
          %s601 = scalar_lea.vmem %s10, %s600
        $region60: #{tpu_custom_call.1} parent=15 // pred_fallthru
          _
        // Predicated region
        $region61: #{tpu_custom_call.1} parent=15 // pred_check
          %p602 = pneg %p354
        $region62: #{tpu_custom_call.1} parent=15 // pred_check_branch
          %604 = sbr.rel (%p602) target = $region64
        $region63: #{tpu_custom_call.1} parent=15 // pred_region
          %p605 = scmp.lt.s32.totalorder %s44, 1
          %s606 = scalar_select %p605, %s44, 1
          %s607 = scalar_lea.vmem %s11, %s606
        $region64: #{tpu_custom_call.1} parent=15 // pred_fallthru
          _
        // Predicated region
        $region65: #{tpu_custom_call.1} parent=15 // pred_check
          %p608 = pneg %p380
        $region66: #{tpu_custom_call.1} parent=15 // pred_check_branch
          %610 = sbr.rel (%p608) target = $region68
        $region67: #{tpu_custom_call.1} parent=15 // pred_region
          %p611 = scmp.lt.s32.totalorder %s44, 1
          %s612 = scalar_select %p611, %s44, 1
          %s613 = scalar_lea.vmem %s12, %s612
        $region68: #{tpu_custom_call.1} parent=15 // pred_fallthru
          _
      $region16: #{tpu_custom_call.1} parent=5 // pred_fallthru
        _
      %p614 = scmp.le.s32.totalorder 1, %s36
      %p615 = scmp.lt.s32.totalorder %s36, 5
      %p616 = pnand %p614, %p615
      %p617 = pneg %p616
      // Predicated region
      $region69: #{tpu_custom_call.1} parent=5 // pred_check
        _
      $region70: #{tpu_custom_call.1} parent=5 // pred_check_branch
        %619 = sbr.rel (%p616) target = $region72
      $region71: #{tpu_custom_call.1} parent=5 // pred_region
        %s620 = ssub.s32 %s36, 1
        %s621 = sand.u32 %s61, 1
        %s622 = scalar_lea.sflag [#allocation3], %s621
        %s623 = sand.u32 %s61, 1
        %s624 = smul.addr %s623, 128
        %s625 = scalar_lea.vmem [#allocation2], %s624
        // Predicated region
        $region73: #{tpu_custom_call.1} parent=71 // pred_check
          %p626 = pneg %p74
        $region74: #{tpu_custom_call.1} parent=71 // pred_check_branch
          %628 = sbr.rel (%p626) target = $region76
        $region75: #{tpu_custom_call.1} parent=71 // pred_region
          %629 = dma.done %s622, 2048
        $region76: #{tpu_custom_call.1} parent=71 // pred_fallthru
          _
        %s630 = sand.u32 %s41, 1
        %s631 = scalar_lea.sflag [#allocation6], %s630
        %s632 = sand.u32 %s87, 1
        %s633 = smul.addr %s632, 384
        %s634 = scalar_lea.vmem [#allocation5], %s633
        // Predicated region
        $region77: #{tpu_custom_call.1} parent=71 // pred_check
          %p635 = pneg %p100
        $region78: #{tpu_custom_call.1} parent=71 // pred_check_branch
          %637 = sbr.rel (%p635) target = $region80
        $region79: #{tpu_custom_call.1} parent=71 // pred_region
          %638 = dma.done %s631, 6144
        $region80: #{tpu_custom_call.1} parent=71 // pred_fallthru
          _
        %s639 = sand.u32 %s41, 1
        %s640 = scalar_lea.sflag [#allocation6], %s639
        %s641 = sand.u32 %s139, 1
        %s642 = smul.addr %s641, 128
        %s643 = scalar_lea.vmem [#allocation7], %s642
        // Predicated region
        $region81: #{tpu_custom_call.1} parent=71 // pred_check
          %p644 = pneg %p152
        $region82: #{tpu_custom_call.1} parent=71 // pred_check_branch
          %646 = sbr.rel (%p644) target = $region84
        $region83: #{tpu_custom_call.1} parent=71 // pred_region
          %647 = dma.done %s640, 2048
        $region84: #{tpu_custom_call.1} parent=71 // pred_fallthru
          _
        %s648 = sand.u32 %s41, 1
        %s649 = scalar_lea.sflag [#allocation9], %s648
        %s650 = sand.u32 %s191, 1
        %s651 = smul.addr %s650, 256
        %s652 = scalar_lea.vmem [#allocation8], %s651
        // Predicated region
        $region85: #{tpu_custom_call.1} parent=71 // pred_check
          %p653 = pneg %p204
        $region86: #{tpu_custom_call.1} parent=71 // pred_check_branch
          %655 = sbr.rel (%p653) target = $region88
        $region87: #{tpu_custom_call.1} parent=71 // pred_region
          %656 = dma.done %s649, 4096
        $region88: #{tpu_custom_call.1} parent=71 // pred_fallthru
          _
        %s657 = sand.u32 %s41, 1
        %s658 = scalar_lea.sflag [#allocation9], %s657
        %s659 = sand.u32 %s243, 1
        %s660 = smul.addr %s659, 256
        %s661 = scalar_lea.vmem [#allocation10], %s660
        // Predicated region
        $region89: #{tpu_custom_call.1} parent=71 // pred_check
          %p662 = pneg %p256
        $region90: #{tpu_custom_call.1} parent=71 // pred_check_branch
          %664 = sbr.rel (%p662) target = $region92
        $region91: #{tpu_custom_call.1} parent=71 // pred_region
          %665 = dma.done %s658, 4096
        $region92: #{tpu_custom_call.1} parent=71 // pred_fallthru
          _
        %s666 = sand.u32 %s61, 1
        %s667 = scalar_lea.sflag [#allocation3], %s666
        %s668 = sand.u32 %s61, 1
        %s669 = smul.addr %s668, 128
        %s670 = scalar_lea.vmem [#allocation2], %s669
        %p671 = pneg %p74
        %p672 = pneg %p71
        %s673 = sand.u32 %s41, 1
        %s674 = scalar_lea.sflag [#allocation6], %s673
        %s675 = sand.u32 %s87, 1
        %s676 = smul.addr %s675, 384
        %s677 = scalar_lea.vmem [#allocation5], %s676
        %p678 = pneg %p100
        %p679 = pneg %p97
        %p680 = scmp.lt.s32.totalorder %s46, 1
        %s681 = scalar_select %p680, %s46, 1
        %s682 = smul.addr %s681, 3
        %s683 = scalar_lea.vmem %s2, %s682
        %p684 = pneg %p126
        %p685 = pneg %p123
        %s686 = sand.u32 %s41, 1
        %s687 = scalar_lea.sflag [#allocation6], %s686
        %s688 = sand.u32 %s139, 1
        %s689 = smul.addr %s688, 128
        %s690 = scalar_lea.vmem [#allocation7], %s689
        %p691 = pneg %p152
        %p692 = pneg %p149
        %p693 = scmp.lt.s32.totalorder %s46, 1
        %s694 = scalar_select %p693, %s46, 1
        %s695 = scalar_lea.vmem %s4, %s694
        %p696 = pneg %p178
        %p697 = pneg %p175
        %s698 = sand.u32 %s41, 1
        %s699 = scalar_lea.sflag [#allocation9], %s698
        %s700 = sand.u32 %s191, 1
        %s701 = smul.addr %s700, 256
        %s702 = scalar_lea.vmem [#allocation8], %s701
        %p703 = pneg %p204
        %p704 = pneg %p201
        %p705 = scmp.lt.s32.totalorder %s46, 1
        %s706 = scalar_select %p705, %s46, 1
        %s707 = smul.addr %s706, 2
        %s708 = scalar_lea.vmem %s6, %s707
        %p709 = pneg %p230
        %p710 = pneg %p227
        %s711 = sand.u32 %s41, 1
        %s712 = scalar_lea.sflag [#allocation9], %s711
        %s713 = sand.u32 %s243, 1
        %s714 = smul.addr %s713, 256
        %s715 = scalar_lea.vmem [#allocation10], %s714
        %p716 = pneg %p256
        %p717 = pneg %p253
        %p718 = scmp.lt.s32.totalorder %s46, 1
        %s719 = scalar_select %p718, %s46, 1
        %s720 = scalar_lea.vmem %s8, %s719
        %p721 = pneg %p282
        %p722 = pneg %p279
        %p723 = scmp.lt.s32.totalorder %s46, 1
        %s724 = scalar_select %p723, %s46, 1
        %s725 = scalar_lea.vmem %s9, %s724
        %p726 = pneg %p308
        %p727 = pneg %p305
        %p728 = scmp.lt.s32.totalorder %s46, 1
        %s729 = scalar_select %p728, %s46, 1
        %s730 = scalar_lea.vmem %s10, %s729
        %p731 = pneg %p334
        %p732 = pneg %p331
        %p733 = scmp.lt.s32.totalorder %s46, 1
        %s734 = scalar_select %p733, %s46, 1
        %s735 = scalar_lea.vmem %s11, %s734
        %p736 = pneg %p360
        %p737 = pneg %p357
        %p738 = scmp.lt.s32.totalorder %s46, 1
        %s739 = scalar_select %p738, %s46, 1
        %s740 = scalar_lea.vmem %s12, %s739
        %p741 = pneg %p386
        %p742 = pneg %p383
        %p743 = pneg %p412
        %p744 = pneg %p409
        %s745 = sand.u32 %s399, 1
        %s746 = scalar_lea.sflag [#allocation4], %s745
        %s747 = sand.u32 %s399, 1
        %s748 = smul.addr %s747, 128
        %s749 = scalar_lea.vmem [#allocation11], %s748
        %p750 = pneg %p440
        %p751 = pneg %p437
        %s752 = sand.u32 %s427, 1
        %s753 = scalar_lea.sflag [#allocation13], %s752
        %s754 = sand.u32 %s427, 1
        %s755 = smul.addr %s754, 256
        %s756 = scalar_lea.vmem [#allocation12], %s755
        %p757 = scmp.lt.s32.totalorder %s46, 1
        %s758 = scalar_select %p757, %s46, 1
        %s759 = smul.addr %s758, 3
        %s760 = scalar_lea.vmem %s2, %s759
        %p761 = scmp.lt.s32.totalorder %s46, 1
        %s762 = scalar_select %p761, %s46, 1
        %s763 = scalar_lea.vmem %s4, %s762
        %p764 = scmp.lt.s32.totalorder %s46, 1
        %s765 = scalar_select %p764, %s46, 1
        %s766 = smul.addr %s765, 2
        %s767 = scalar_lea.vmem %s6, %s766
        %p768 = scmp.lt.s32.totalorder %s46, 1
        %s769 = scalar_select %p768, %s46, 1
        %s770 = scalar_lea.vmem %s8, %s769
        %p771 = scmp.lt.s32.totalorder %s46, 1
        %s772 = scalar_select %p771, %s46, 1
        %s773 = scalar_lea.vmem %s9, %s772
        %p774 = scmp.lt.s32.totalorder %s46, 1
        %s775 = scalar_select %p774, %s46, 1
        %s776 = scalar_lea.vmem %s10, %s775
        %p777 = scmp.lt.s32.totalorder %s46, 1
        %s778 = scalar_select %p777, %s46, 1
        %s779 = scalar_lea.vmem %s11, %s778
        %p780 = scmp.lt.s32.totalorder %s46, 1
        %s781 = scalar_select %p780, %s46, 1
        %s782 = scalar_lea.vmem %s12, %s781
        %p785 = scmp.eq.s32.totalorder %s46, 0
        // Predicated region
        $region93: #{tpu_custom_call.1} parent=71 // pred_check
          %p786 = pneg %p785
        $region94: #{tpu_custom_call.1} parent=71 // pred_check_branch
          %788 = sbr.rel (%p786) target = $region96
        $region95: #{tpu_custom_call.1} parent=71 // pred_region
          %v789 = vld [vmem:[%s625] sm:$0xff]
          %v790 = vld [vmem:[%s625 + $0x8] sm:$0xff]
          %v791 = vld [vmem:[%s625 + $0x10] sm:$0xff]
          %v792 = vld [vmem:[%s625 + $0x18] sm:$0xff]
          %v793 = vld [vmem:[%s625 + $0x20] sm:$0xff]
          %v794 = vld [vmem:[%s625 + $0x28] sm:$0xff]
          %v795 = vld [vmem:[%s625 + $0x30] sm:$0xff]
          %v796 = vld [vmem:[%s625 + $0x38] sm:$0xff]
          %v797 = vld [vmem:[%s625 + $0x40] sm:$0xff]
          %v798 = vld [vmem:[%s625 + $0x48] sm:$0xff]
          %v799 = vld [vmem:[%s625 + $0x50] sm:$0xff]
          %v800 = vld [vmem:[%s625 + $0x58] sm:$0xff]
          %v801 = vld [vmem:[%s625 + $0x60] sm:$0xff]
          %v802 = vld [vmem:[%s625 + $0x68] sm:$0xff]
          %v803 = vld [vmem:[%s625 + $0x70] sm:$0xff]
          %v804 = vld [vmem:[%s625 + $0x78] sm:$0xff]
          %805 = vst [vmem:[%s749] sm:$0xff] %v789
          %806 = vst [vmem:[%s749 + $0x8] sm:$0xff] %v790
          %807 = vst [vmem:[%s749 + $0x10] sm:$0xff] %v791
          %808 = vst [vmem:[%s749 + $0x18] sm:$0xff] %v792
          %809 = vst [vmem:[%s749 + $0x20] sm:$0xff] %v793
          %810 = vst [vmem:[%s749 + $0x28] sm:$0xff] %v794
          %811 = vst [vmem:[%s749 + $0x30] sm:$0xff] %v795
          %812 = vst [vmem:[%s749 + $0x38] sm:$0xff] %v796
          %813 = vst [vmem:[%s749 + $0x40] sm:$0xff] %v797
          %814 = vst [vmem:[%s749 + $0x48] sm:$0xff] %v798
          %815 = vst [vmem:[%s749 + $0x50] sm:$0xff] %v799
          %816 = vst [vmem:[%s749 + $0x58] sm:$0xff] %v800
          %817 = vst [vmem:[%s749 + $0x60] sm:$0xff] %v801
          %818 = vst [vmem:[%s749 + $0x68] sm:$0xff] %v802
          %819 = vst [vmem:[%s749 + $0x70] sm:$0xff] %v803
          %820 = vst [vmem:[%s749 + $0x78] sm:$0xff] %v804
        $region96: #{tpu_custom_call.1} parent=71 // pred_fallthru
          _
        %v821 = vld [vmem:[%s749] sm:$0xff]
        %v822 = vld [vmem:[%s749 + $0x8] sm:$0xff]
        %v823 = vld [vmem:[%s749 + $0x10] sm:$0xff]
        %v824 = vld [vmem:[%s749 + $0x18] sm:$0xff]
        %v825 = vld [vmem:[%s749 + $0x20] sm:$0xff]
        %v826 = vld [vmem:[%s749 + $0x28] sm:$0xff]
        %v827 = vld [vmem:[%s749 + $0x30] sm:$0xff]
        %v828 = vld [vmem:[%s749 + $0x38] sm:$0xff]
        %v829 = vld [vmem:[%s749 + $0x40] sm:$0xff]
        %v830 = vld [vmem:[%s749 + $0x48] sm:$0xff]
        %v831 = vld [vmem:[%s749 + $0x50] sm:$0xff]
        %v832 = vld [vmem:[%s749 + $0x58] sm:$0xff]
        %v833 = vld [vmem:[%s749 + $0x60] sm:$0xff]
        %v834 = vld [vmem:[%s749 + $0x68] sm:$0xff]
        %v835 = vld [vmem:[%s749 + $0x70] sm:$0xff]
        %v836 = vld [vmem:[%s749 + $0x78] sm:$0xff]
        %v837 = vpack.c.bf16 %v822, %v821
        %v838 = vpack.c.bf16 %v824, %v823
        %v839 = vpack.c.bf16 %v826, %v825
        %v840 = vpack.c.bf16 %v828, %v827
        %v841 = vpack.c.bf16 %v830, %v829
        %v842 = vpack.c.bf16 %v832, %v831
        %v843 = vpack.c.bf16 %v834, %v833
        %v844 = vpack.c.bf16 %v836, %v835
        %v845 = vld [vmem:[%s634] sm:$0xff]
        %v846 = vld [vmem:[%s634 + $0x8] sm:$0xff]
        %v847 = vld [vmem:[%s634 + $0x10] sm:$0xff]
        %v848 = vld [vmem:[%s634 + $0x18] sm:$0xff]
        %v849 = vld [vmem:[%s634 + $0x20] sm:$0xff]
        %v850 = vld [vmem:[%s634 + $0x28] sm:$0xff]
        %v851 = vld [vmem:[%s634 + $0x30] sm:$0xff]
        %v852 = vld [vmem:[%s634 + $0x38] sm:$0xff]
        %v853 = vld [vmem:[%s634 + $0x40] sm:$0xff]
        %v854 = vld [vmem:[%s634 + $0x48] sm:$0xff]
        %v855 = vld [vmem:[%s634 + $0x50] sm:$0xff]
        %v856 = vld [vmem:[%s634 + $0x58] sm:$0xff]
        %v857 = vld [vmem:[%s634 + $0x60] sm:$0xff]
        %v858 = vld [vmem:[%s634 + $0x68] sm:$0xff]
        %v859 = vld [vmem:[%s634 + $0x70] sm:$0xff]
        %v860 = vld [vmem:[%s634 + $0x78] sm:$0xff]
        %v861 = vld [vmem:[%s634 + $0x80] sm:$0xff]
        %v862 = vld [vmem:[%s634 + $0x88] sm:$0xff]
        %v863 = vld [vmem:[%s634 + $0x90] sm:$0xff]
        %v864 = vld [vmem:[%s634 + $0x98] sm:$0xff]
        %v865 = vld [vmem:[%s634 + $0xa0] sm:$0xff]
        %v866 = vld [vmem:[%s634 + $0xa8] sm:$0xff]
        %v867 = vld [vmem:[%s634 + $0xb0] sm:$0xff]
        %v868 = vld [vmem:[%s634 + $0xb8] sm:$0xff]
        %v869 = vld [vmem:[%s634 + $0xc0] sm:$0xff]
        %v870 = vld [vmem:[%s634 + $0xc8] sm:$0xff]
        %v871 = vld [vmem:[%s634 + $0xd0] sm:$0xff]
        %v872 = vld [vmem:[%s634 + $0xd8] sm:$0xff]
        %v873 = vld [vmem:[%s634 + $0xe0] sm:$0xff]
        %v874 = vld [vmem:[%s634 + $0xe8] sm:$0xff]
        %v875 = vld [vmem:[%s634 + $0xf0] sm:$0xff]
        %v876 = vld [vmem:[%s634 + $0xf8] sm:$0xff]
        %v877 = vld [vmem:[%s634 + $0x100] sm:$0xff]
        %v878 = vld [vmem:[%s634 + $0x108] sm:$0xff]
        %v879 = vld [vmem:[%s634 + $0x110] sm:$0xff]
        %v880 = vld [vmem:[%s634 + $0x118] sm:$0xff]
        %v881 = vld [vmem:[%s634 + $0x120] sm:$0xff]
        %v882 = vld [vmem:[%s634 + $0x128] sm:$0xff]
        %v883 = vld [vmem:[%s634 + $0x130] sm:$0xff]
        %v884 = vld [vmem:[%s634 + $0x138] sm:$0xff]
        %v885 = vld [vmem:[%s634 + $0x140] sm:$0xff]
        %v886 = vld [vmem:[%s634 + $0x148] sm:$0xff]
        %v887 = vld [vmem:[%s634 + $0x150] sm:$0xff]
        %v888 = vld [vmem:[%s634 + $0x158] sm:$0xff]
        %v889 = vld [vmem:[%s634 + $0x160] sm:$0xff]
        %v890 = vld [vmem:[%s634 + $0x168] sm:$0xff]
        %v891 = vld [vmem:[%s634 + $0x170] sm:$0xff]
        %v892 = vld [vmem:[%s634 + $0x178] sm:$0xff]
        %v893 = vpack.c.bf16 %v848, %v845
        %v894 = vpack.c.bf16 %v849, %v846
        %v895 = vpack.c.bf16 %v850, %v847
        %v896 = vpack.c.bf16 %v854, %v851
        %v897 = vpack.c.bf16 %v855, %v852
        %v898 = vpack.c.bf16 %v856, %v853
        %v899 = vpack.c.bf16 %v860, %v857
        %v900 = vpack.c.bf16 %v861, %v858
        %v901 = vpack.c.bf16 %v862, %v859
        %v902 = vpack.c.bf16 %v866, %v863
        %v903 = vpack.c.bf16 %v867, %v864
        %v904 = vpack.c.bf16 %v868, %v865
        %v905 = vpack.c.bf16 %v872, %v869
        %v906 = vpack.c.bf16 %v873, %v870
        %v907 = vpack.c.bf16 %v874, %v871
        %v908 = vpack.c.bf16 %v878, %v875
        %v909 = vpack.c.bf16 %v879, %v876
        %v910 = vpack.c.bf16 %v880, %v877
        %v911 = vpack.c.bf16 %v884, %v881
        %v912 = vpack.c.bf16 %v885, %v882
        %v913 = vpack.c.bf16 %v886, %v883
        %v914 = vpack.c.bf16 %v890, %v887
        %v915 = vpack.c.bf16 %v891, %v888
        %v916 = vpack.c.bf16 %v892, %v889
        %v917 = vld [vmem:[%s760] sm:$0x7]
        %v919 = vlaneseq
        %v920 = vshrl.u32 %v919, 7
        %v921 = vsub.s32 0, %v920
        %v922 = vrot.slane %v917, %v921
        %v923 = vlaneseq
        %v924 = vshrl.u32 %v923, 7
        %v925 = vsub.s32 1, %v924
        %v926 = vrot.slane %v917, %v925
        %v927 = vlaneseq
        %v928 = vshrl.u32 %v927, 7
        %v929 = vsub.s32 2, %v928
        %v930 = vrot.slane %v917, %v929
        %934 = vmatprep.subr.bf16.mxu0 %v894
        %935 = vmatpush1.bf16.msra.mxu0 %v893
        %936 = vmatprep.subr.bf16.mxu0 %v897
        %937 = vmatpush1.bf16.msra.mxu0 %v896
        %938 = vmatprep.subr.bf16.mxu0 %v900
        %939 = vmatpush1.bf16.msra.mxu0 %v899
        %940 = vmatprep.subr.bf16.mxu0 %v903
        %941 = vmatpush1.bf16.msra.mxu0 %v902
        %942 = vmatprep.subr.bf16.mxu0 %v906
        %943 = vmatpush1.bf16.msra.mxu0 %v905
        %944 = vmatprep.subr.bf16.mxu0 %v909
        %945 = vmatpush1.bf16.msra.mxu0 %v908
        %946 = vmatprep.subr.bf16.mxu0 %v912
        %947 = vmatpush1.bf16.msra.mxu0 %v911
        %948 = vmatprep.subr.bf16.mxu0 %v915
        %949 = vmatpush1.bf16.msra.mxu0 %v914
        %950 = vmatprep.subr.bf16.mxu0 0
        %951 = vmatpush1.bf16.msra.mxu0 0
        %952 = vmatprep.subr.bf16.mxu0 0
        %953 = vmatpush1.bf16.msra.mxu0 0
        %954 = vmatprep.subr.bf16.mxu0 0
        %955 = vmatpush1.bf16.msra.mxu0 0
        %956 = vmatprep.subr.bf16.mxu0 0
        %957 = vmatpush1.bf16.msra.mxu0 0
        %958 = vmatprep.subr.bf16.mxu0 0
        %959 = vmatpush1.bf16.msra.mxu0 0
        %960 = vmatprep.subr.bf16.mxu0 0
        %961 = vmatpush1.bf16.msra.mxu0 0
        %962 = vmatprep.subr.bf16.mxu0 0
        %963 = vmatpush1.bf16.msra.mxu0 0
        %964 = vmatprep.subr.bf16.mxu0 0
        %965 = vmatpush1.bf16.msra.mxu0 0
        %966 = vmatprep.mubr.bf16.mxu0 0
        %967 = vmatmul.mubr.bf16.gmra.mrb[0].mxu0 %v837
        %v968 = vpop.f32.mrb[0].mxu0
        %v969 = vadd.f32 %v922, %v968
        %v970 = vpop.f32.mrb[0].mxu0
        %v971 = vadd.f32 %v926, %v970
        %v972 = vpop.f32.mrb[0].mxu0
        %v973 = vadd.f32 %v922, %v972
        %v974 = vpop.f32.mrb[0].mxu0
        %v975 = vadd.f32 %v926, %v974
        %976 = vmatprep.mubr.bf16.mxu0 0
        %977 = vmatmul.mubr.bf16.gmra.mrb[0].mxu0 %v838
        %v978 = vpop.f32.mrb[0].mxu0
        %v979 = vadd.f32 %v922, %v978
        %v980 = vpop.f32.mrb[0].mxu0
        %v981 = vadd.f32 %v926, %v980
        %v982 = vpop.f32.mrb[0].mxu0
        %v983 = vadd.f32 %v922, %v982
        %v984 = vpop.f32.mrb[0].mxu0
        %v985 = vadd.f32 %v926, %v984
        %986 = vmatprep.mubr.bf16.mxu0 0
        %987 = vmatmul.mubr.bf16.gmra.mrb[0].mxu0 %v839
        %v988 = vpop.f32.mrb[0].mxu0
        %v989 = vadd.f32 %v922, %v988
        %v990 = vpop.f32.mrb[0].mxu0
        %v991 = vadd.f32 %v926, %v990
        %v992 = vpop.f32.mrb[0].mxu0
        %v993 = vadd.f32 %v922, %v992
        %v994 = vpop.f32.mrb[0].mxu0
        %v995 = vadd.f32 %v926, %v994
        %996 = vmatprep.mubr.bf16.mxu0 0
        %997 = vmatmul.mubr.bf16.gmra.mrb[0].mxu0 %v840
        %v998 = vpop.f32.mrb[0].mxu0
        %v999 = vadd.f32 %v922, %v998
        %v1000 = vpop.f32.mrb[0].mxu0
        %v1001 = vadd.f32 %v926, %v1000
        %v1002 = vpop.f32.mrb[0].mxu0
        %v1003 = vadd.f32 %v922, %v1002
        %v1004 = vpop.f32.mrb[0].mxu0
        %v1005 = vadd.f32 %v926, %v1004
        %1006 = vmatprep.mubr.bf16.mxu0 0
        %1007 = vmatmul.mubr.bf16.gmra.mrb[0].mxu0 %v841
        %v1008 = vpop.f32.mrb[0].mxu0
        %v1009 = vadd.f32 %v922, %v1008
        %v1010 = vpop.f32.mrb[0].mxu0
        %v1011 = vadd.f32 %v926, %v1010
        %v1012 = vpop.f32.mrb[0].mxu0
        %v1013 = vadd.f32 %v922, %v1012
        %v1014 = vpop.f32.mrb[0].mxu0
        %v1015 = vadd.f32 %v926, %v1014
        %1016 = vmatprep.mubr.bf16.mxu0 0
        %1017 = vmatmul.mubr.bf16.gmra.mrb[0].mxu0 %v842
        %v1018 = vpop.f32.mrb[0].mxu0
        %v1019 = vadd.f32 %v922, %v1018
        %v1020 = vpop.f32.mrb[0].mxu0
        %v1021 = vadd.f32 %v926, %v1020
        %v1022 = vpop.f32.mrb[0].mxu0
        %v1023 = vadd.f32 %v922, %v1022
        %v1024 = vpop.f32.mrb[0].mxu0
        %v1025 = vadd.f32 %v926, %v1024
        %1026 = vmatprep.mubr.bf16.mxu0 0
        %1027 = vmatmul.mubr.bf16.gmra.mrb[0].mxu0 %v843
        %v1028 = vpop.f32.mrb[0].mxu0
        %v1029 = vadd.f32 %v922, %v1028
        %v1030 = vpop.f32.mrb[0].mxu0
        %v1031 = vadd.f32 %v926, %v1030
        %v1032 = vpop.f32.mrb[0].mxu0
        %v1033 = vadd.f32 %v922, %v1032
        %v1034 = vpop.f32.mrb[0].mxu0
        %v1035 = vadd.f32 %v926, %v1034
        %1036 = vmatprep.mubr.bf16.mxu0 0
        %1037 = vmatmul.mubr.bf16.gmra.mrb[0].mxu0 %v844
        %v1038 = vpop.f32.mrb[0].mxu0
        %v1039 = vadd.f32 %v922, %v1038
        %v1040 = vpop.f32.mrb[0].mxu0
        %v1041 = vadd.f32 %v926, %v1040
        %v1042 = vpop.f32.mrb[0].mxu0
        %v1043 = vadd.f32 %v922, %v1042
        %v1044 = vpop.f32.mrb[0].mxu0
        %v1045 = vadd.f32 %v926, %v1044
        %1046 = vdwg.mxu0
        %1047 = vmatprep.subr.bf16.mxu0 0
        %1048 = vmatpush1.bf16.msra.mxu0 %v895
        %1049 = vmatprep.subr.bf16.mxu0 0
        %1050 = vmatpush1.bf16.msra.mxu0 %v898
        %1051 = vmatprep.subr.bf16.mxu0 0
        %1052 = vmatpush1.bf16.msra.mxu0 %v901
        %1053 = vmatprep.subr.bf16.mxu0 0
        %1054 = vmatpush1.bf16.msra.mxu0 %v904
        %1055 = vmatprep.subr.bf16.mxu0 0
        %1056 = vmatpush1.bf16.msra.mxu0 %v907
        %1057 = vmatprep.subr.bf16.mxu0 0
        %1058 = vmatpush1.bf16.msra.mxu0 %v910
        %1059 = vmatprep.subr.bf16.mxu0 0
        %1060 = vmatpush1.bf16.msra.mxu0 %v913
        %1061 = vmatprep.subr.bf16.mxu0 0
        %1062 = vmatpush1.bf16.msra.mxu0 %v916
        %1063 = vmatprep.subr.bf16.mxu0 0
        %1064 = vmatpush1.bf16.msra.mxu0 0
        %1065 = vmatprep.subr.bf16.mxu0 0
        %1066 = vmatpush1.bf16.msra.mxu0 0
        %1067 = vmatprep.subr.bf16.mxu0 0
        %1068 = vmatpush1.bf16.msra.mxu0 0
        %1069 = vmatprep.subr.bf16.mxu0 0
        %1070 = vmatpush1.bf16.msra.mxu0 0
        %1071 = vmatprep.subr.bf16.mxu0 0
        %1072 = vmatpush1.bf16.msra.mxu0 0
        %1073 = vmatprep.subr.bf16.mxu0 0
        %1074 = vmatpush1.bf16.msra.mxu0 0
        %1075 = vmatprep.subr.bf16.mxu0 0
        %1076 = vmatpush1.bf16.msra.mxu0 0
        %1077 = vmatprep.subr.bf16.mxu0 0
        %1078 = vmatpush1.bf16.msra.mxu0 0
        %1079 = vmatprep.mubr.bf16.mxu0 0
        %1080 = vmatmul.mubr.bf16.gmra.mrb[0].mxu0 %v837
        %v1081 = vpop.f32.mrb[0].mxu0
        %v1082 = vadd.f32 %v930, %v1081
        %v1083 = vpop.f32.mrb[0].mxu0
        %v1084 = vpop.f32.mrb[0].mxu0
        %v1085 = vadd.f32 %v930, %v1084
        %v1086 = vpop.f32.mrb[0].mxu0
        %1087 = vmatprep.mubr.bf16.mxu0 0
        %1088 = vmatmul.mubr.bf16.gmra.mrb[0].mxu0 %v838
        %v1089 = vpop.f32.mrb[0].mxu0
        %v1090 = vadd.f32 %v930, %v1089
        %v1091 = vpop.f32.mrb[0].mxu0
        %v1092 = vpop.f32.mrb[0].mxu0
        %v1093 = vadd.f32 %v930, %v1092
        %v1094 = vpop.f32.mrb[0].mxu0
        %1095 = vmatprep.mubr.bf16.mxu0 0
        %1096 = vmatmul.mubr.bf16.gmra.mrb[0].mxu0 %v839
        %v1097 = vpop.f32.mrb[0].mxu0
        %v1098 = vadd.f32 %v930, %v1097
        %v1099 = vpop.f32.mrb[0].mxu0
        %v1100 = vpop.f32.mrb[0].mxu0
        %v1101 = vadd.f32 %v930, %v1100
        %v1102 = vpop.f32.mrb[0].mxu0
        %1103 = vmatprep.mubr.bf16.mxu0 0
        %1104 = vmatmul.mubr.bf16.gmra.mrb[0].mxu0 %v840
        %v1105 = vpop.f32.mrb[0].mxu0
        %v1106 = vadd.f32 %v930, %v1105
        %v1107 = vpop.f32.mrb[0].mxu0
        %v1108 = vpop.f32.mrb[0].mxu0
        %v1109 = vadd.f32 %v930, %v1108
        %v1110 = vpop.f32.mrb[0].mxu0
        %1111 = vmatprep.mubr.bf16.mxu0 0
        %1112 = vmatmul.mubr.bf16.gmra.mrb[0].mxu0 %v841
        %v1113 = vpop.f32.mrb[0].mxu0
        %v1114 = vadd.f32 %v930, %v1113
        %v1115 = vpop.f32.mrb[0].mxu0
        %v1116 = vpop.f32.mrb[0].mxu0
        %v1117 = vadd.f32 %v930, %v1116
        %v1118 = vpop.f32.mrb[0].mxu0
        %1119 = vmatprep.mubr.bf16.mxu0 0
        %1120 = vmatmul.mubr.bf16.gmra.mrb[0].mxu0 %v842
        %v1121 = vpop.f32.mrb[0].mxu0
        %v1122 = vadd.f32 %v930, %v1121
        %v1123 = vpop.f32.mrb[0].mxu0
        %v1124 = vpop.f32.mrb[0].mxu0
        %v1125 = vadd.f32 %v930, %v1124
        %v1126 = vpop.f32.mrb[0].mxu0
        %1127 = vmatprep.mubr.bf16.mxu0 0
        %1128 = vmatmul.mubr.bf16.gmra.mrb[0].mxu0 %v843
        %v1129 = vpop.f32.mrb[0].mxu0
        %v1130 = vadd.f32 %v930, %v1129
        %v1131 = vpop.f32.mrb[0].mxu0
        %v1132 = vpop.f32.mrb[0].mxu0
        %v1133 = vadd.f32 %v930, %v1132
        %v1134 = vpop.f32.mrb[0].mxu0
        %1135 = vmatprep.mubr.bf16.mxu0 0
        %1136 = vmatmul.mubr.bf16.gmra.mrb[0].mxu0 %v844
        %v1137 = vpop.f32.mrb[0].mxu0
        %v1138 = vadd.f32 %v930, %v1137
        %v1139 = vpop.f32.mrb[0].mxu0
        %v1140 = vpop.f32.mrb[0].mxu0
        %v1141 = vadd.f32 %v930, %v1140
        %v1142 = vpop.f32.mrb[0].mxu0
        %1143 = vdwg.mxu0
        %1160 = vrot.lane.b32.xlu0 %v969, 96
        %v1161 = vpop.permute.xlu0 %1160
        %1162 = vrot.lane.b32.xlu0 %v973, 96
        %v1163 = vpop.permute.xlu0 %1162
        %1164 = vrot.lane.b32.xlu0 %v979, 96
        %v1165 = vpop.permute.xlu0 %1164
        %1166 = vrot.lane.b32.xlu0 %v983, 96
        %v1167 = vpop.permute.xlu0 %1166
        %1168 = vrot.lane.b32.xlu0 %v989, 96
        %v1169 = vpop.permute.xlu0 %1168
        %1170 = vrot.lane.b32.xlu0 %v993, 96
        %v1171 = vpop.permute.xlu0 %1170
        %1172 = vrot.lane.b32.xlu0 %v999, 96
        %v1173 = vpop.permute.xlu0 %1172
        %1174 = vrot.lane.b32.xlu0 %v1003, 96
        %v1175 = vpop.permute.xlu0 %1174
        %1176 = vrot.lane.b32.xlu0 %v1009, 96
        %v1177 = vpop.permute.xlu0 %1176
        %1178 = vrot.lane.b32.xlu0 %v1013, 96
        %v1179 = vpop.permute.xlu0 %1178
        %1180 = vrot.lane.b32.xlu0 %v1019, 96
        %v1181 = vpop.permute.xlu0 %1180
        %1182 = vrot.lane.b32.xlu0 %v1023, 96
        %v1183 = vpop.permute.xlu0 %1182
        %1184 = vrot.lane.b32.xlu0 %v1029, 96
        %v1185 = vpop.permute.xlu0 %1184
        %1186 = vrot.lane.b32.xlu0 %v1033, 96
        %v1187 = vpop.permute.xlu0 %1186
        %1188 = vrot.lane.b32.xlu0 %v1039, 96
        %v1189 = vpop.permute.xlu0 %1188
        %1190 = vrot.lane.b32.xlu0 %v1043, 96
        %v1191 = vpop.permute.xlu0 %1190
        %1208 = vrot.lane.b32.xlu0 %v969, 64
        %v1209 = vpop.permute.xlu0 %1208
        %1210 = vrot.lane.b32.xlu0 %v973, 64
        %v1211 = vpop.permute.xlu0 %1210
        %1212 = vrot.lane.b32.xlu0 %v979, 64
        %v1213 = vpop.permute.xlu0 %1212
        %1214 = vrot.lane.b32.xlu0 %v983, 64
        %v1215 = vpop.permute.xlu0 %1214
        %1216 = vrot.lane.b32.xlu0 %v989, 64
        %v1217 = vpop.permute.xlu0 %1216
        %1218 = vrot.lane.b32.xlu0 %v993, 64
        %v1219 = vpop.permute.xlu0 %1218
        %1220 = vrot.lane.b32.xlu0 %v999, 64
        %v1221 = vpop.permute.xlu0 %1220
        %1222 = vrot.lane.b32.xlu0 %v1003, 64
        %v1223 = vpop.permute.xlu0 %1222
        %1224 = vrot.lane.b32.xlu0 %v1009, 64
        %v1225 = vpop.permute.xlu0 %1224
        %1226 = vrot.lane.b32.xlu0 %v1013, 64
        %v1227 = vpop.permute.xlu0 %1226
        %1228 = vrot.lane.b32.xlu0 %v1019, 64
        %v1229 = vpop.permute.xlu0 %1228
        %1230 = vrot.lane.b32.xlu0 %v1023, 64
        %v1231 = vpop.permute.xlu0 %1230
        %1232 = vrot.lane.b32.xlu0 %v1029, 64
        %v1233 = vpop.permute.xlu0 %1232
        %1234 = vrot.lane.b32.xlu0 %v1033, 64
        %v1235 = vpop.permute.xlu0 %1234
        %1236 = vrot.lane.b32.xlu0 %v1039, 64
        %v1237 = vpop.permute.xlu0 %1236
        %1238 = vrot.lane.b32.xlu0 %v1043, 64
        %v1239 = vpop.permute.xlu0 %1238
        %1256 = vrot.lane.b32.xlu0 %v969, 32
        %v1257 = vpop.permute.xlu0 %1256
        %1258 = vrot.lane.b32.xlu0 %v973, 32
        %v1259 = vpop.permute.xlu0 %1258
        %1260 = vrot.lane.b32.xlu0 %v979, 32
        %v1261 = vpop.permute.xlu0 %1260
        %1262 = vrot.lane.b32.xlu0 %v983, 32
        %v1263 = vpop.permute.xlu0 %1262
        %1264 = vrot.lane.b32.xlu0 %v989, 32
        %v1265 = vpop.permute.xlu0 %1264
        %1266 = vrot.lane.b32.xlu0 %v993, 32
        %v1267 = vpop.permute.xlu0 %1266
        %1268 = vrot.lane.b32.xlu0 %v999, 32
        %v1269 = vpop.permute.xlu0 %1268
        %1270 = vrot.lane.b32.xlu0 %v1003, 32
        %v1271 = vpop.permute.xlu0 %1270
        %1272 = vrot.lane.b32.xlu0 %v1009, 32
        %v1273 = vpop.permute.xlu0 %1272
        %1274 = vrot.lane.b32.xlu0 %v1013, 32
        %v1275 = vpop.permute.xlu0 %1274
        %1276 = vrot.lane.b32.xlu0 %v1019, 32
        %v1277 = vpop.permute.xlu0 %1276
        %1278 = vrot.lane.b32.xlu0 %v1023, 32
        %v1279 = vpop.permute.xlu0 %1278
        %1280 = vrot.lane.b32.xlu0 %v1029, 32
        %v1281 = vpop.permute.xlu0 %1280
        %1282 = vrot.lane.b32.xlu0 %v1033, 32
        %v1283 = vpop.permute.xlu0 %1282
        %1284 = vrot.lane.b32.xlu0 %v1039, 32
        %v1285 = vpop.permute.xlu0 %1284
        %1286 = vrot.lane.b32.xlu0 %v1043, 32
        %v1287 = vpop.permute.xlu0 %1286
        %1320 = vrot.lane.b32.xlu0 %v971, 96
        %v1321 = vpop.permute.xlu0 %1320
        %1322 = vrot.lane.b32.xlu0 %v975, 96
        %v1323 = vpop.permute.xlu0 %1322
        %1324 = vrot.lane.b32.xlu0 %v981, 96
        %v1325 = vpop.permute.xlu0 %1324
        %1326 = vrot.lane.b32.xlu0 %v985, 96
        %v1327 = vpop.permute.xlu0 %1326
        %1328 = vrot.lane.b32.xlu0 %v991, 96
        %v1329 = vpop.permute.xlu0 %1328
        %1330 = vrot.lane.b32.xlu0 %v995, 96
        %v1331 = vpop.permute.xlu0 %1330
        %1332 = vrot.lane.b32.xlu0 %v1001, 96
        %v1333 = vpop.permute.xlu0 %1332
        %1334 = vrot.lane.b32.xlu0 %v1005, 96
        %v1335 = vpop.permute.xlu0 %1334
        %1336 = vrot.lane.b32.xlu0 %v1011, 96
        %v1337 = vpop.permute.xlu0 %1336
        %1338 = vrot.lane.b32.xlu0 %v1015, 96
        %v1339 = vpop.permute.xlu0 %1338
        %1340 = vrot.lane.b32.xlu0 %v1021, 96
        %v1341 = vpop.permute.xlu0 %1340
        %1342 = vrot.lane.b32.xlu0 %v1025, 96
        %v1343 = vpop.permute.xlu0 %1342
        %1344 = vrot.lane.b32.xlu0 %v1031, 96
        %v1345 = vpop.permute.xlu0 %1344
        %1346 = vrot.lane.b32.xlu0 %v1035, 96
        %v1347 = vpop.permute.xlu0 %1346
        %1348 = vrot.lane.b32.xlu0 %v1041, 96
        %v1349 = vpop.permute.xlu0 %1348
        %1350 = vrot.lane.b32.xlu0 %v1045, 96
        %v1351 = vpop.permute.xlu0 %1350
        %1368 = vrot.lane.b32.xlu0 %v971, 64
        %v1369 = vpop.permute.xlu0 %1368
        %1370 = vrot.lane.b32.xlu0 %v975, 64
        %v1371 = vpop.permute.xlu0 %1370
        %1372 = vrot.lane.b32.xlu0 %v981, 64
        %v1373 = vpop.permute.xlu0 %1372
        %1374 = vrot.lane.b32.xlu0 %v985, 64
        %v1375 = vpop.permute.xlu0 %1374
        %1376 = vrot.lane.b32.xlu0 %v991, 64
        %v1377 = vpop.permute.xlu0 %1376
        %1378 = vrot.lane.b32.xlu0 %v995, 64
        %v1379 = vpop.permute.xlu0 %1378
        %1380 = vrot.lane.b32.xlu0 %v1001, 64
        %v1381 = vpop.permute.xlu0 %1380
        %1382 = vrot.lane.b32.xlu0 %v1005, 64
        %v1383 = vpop.permute.xlu0 %1382
        %1384 = vrot.lane.b32.xlu0 %v1011, 64
        %v1385 = vpop.permute.xlu0 %1384
        %1386 = vrot.lane.b32.xlu0 %v1015, 64
        %v1387 = vpop.permute.xlu0 %1386
        %1388 = vrot.lane.b32.xlu0 %v1021, 64
        %v1389 = vpop.permute.xlu0 %1388
        %1390 = vrot.lane.b32.xlu0 %v1025, 64
        %v1391 = vpop.permute.xlu0 %1390
        %1392 = vrot.lane.b32.xlu0 %v1031, 64
        %v1393 = vpop.permute.xlu0 %1392
        %1394 = vrot.lane.b32.xlu0 %v1035, 64
        %v1395 = vpop.permute.xlu0 %1394
        %1396 = vrot.lane.b32.xlu0 %v1041, 64
        %v1397 = vpop.permute.xlu0 %1396
        %1398 = vrot.lane.b32.xlu0 %v1045, 64
        %v1399 = vpop.permute.xlu0 %1398
        %1416 = vrot.lane.b32.xlu0 %v971, 32
        %v1417 = vpop.permute.xlu0 %1416
        %1418 = vrot.lane.b32.xlu0 %v975, 32
        %v1419 = vpop.permute.xlu0 %1418
        %1420 = vrot.lane.b32.xlu0 %v981, 32
        %v1421 = vpop.permute.xlu0 %1420
        %1422 = vrot.lane.b32.xlu0 %v985, 32
        %v1423 = vpop.permute.xlu0 %1422
        %1424 = vrot.lane.b32.xlu0 %v991, 32
        %v1425 = vpop.permute.xlu0 %1424
        %1426 = vrot.lane.b32.xlu0 %v995, 32
        %v1427 = vpop.permute.xlu0 %1426
        %1428 = vrot.lane.b32.xlu0 %v1001, 32
        %v1429 = vpop.permute.xlu0 %1428
        %1430 = vrot.lane.b32.xlu0 %v1005, 32
        %v1431 = vpop.permute.xlu0 %1430
        %1432 = vrot.lane.b32.xlu0 %v1011, 32
        %v1433 = vpop.permute.xlu0 %1432
        %1434 = vrot.lane.b32.xlu0 %v1015, 32
        %v1435 = vpop.permute.xlu0 %1434
        %1436 = vrot.lane.b32.xlu0 %v1021, 32
        %v1437 = vpop.permute.xlu0 %1436
        %1438 = vrot.lane.b32.xlu0 %v1025, 32
        %v1439 = vpop.permute.xlu0 %1438
        %1440 = vrot.lane.b32.xlu0 %v1031, 32
        %v1441 = vpop.permute.xlu0 %1440
        %1442 = vrot.lane.b32.xlu0 %v1035, 32
        %v1443 = vpop.permute.xlu0 %1442
        %1444 = vrot.lane.b32.xlu0 %v1041, 32
        %v1445 = vpop.permute.xlu0 %1444
        %1446 = vrot.lane.b32.xlu0 %v1045, 32
        %v1447 = vpop.permute.xlu0 %1446
        %1480 = vrot.lane.b32.xlu0 %v1082, 96
        %v1481 = vpop.permute.xlu0 %1480
        %1482 = vrot.lane.b32.xlu0 %v1085, 96
        %v1483 = vpop.permute.xlu0 %1482
        %1484 = vrot.lane.b32.xlu0 %v1090, 96
        %v1485 = vpop.permute.xlu0 %1484
        %1486 = vrot.lane.b32.xlu0 %v1093, 96
        %v1487 = vpop.permute.xlu0 %1486
        %1488 = vrot.lane.b32.xlu0 %v1098, 96
        %v1489 = vpop.permute.xlu0 %1488
        %1490 = vrot.lane.b32.xlu0 %v1101, 96
        %v1491 = vpop.permute.xlu0 %1490
        %1492 = vrot.lane.b32.xlu0 %v1106, 96
        %v1493 = vpop.permute.xlu0 %1492
        %1494 = vrot.lane.b32.xlu0 %v1109, 96
        %v1495 = vpop.permute.xlu0 %1494
        %1496 = vrot.lane.b32.xlu0 %v1114, 96
        %v1497 = vpop.permute.xlu0 %1496
        %1498 = vrot.lane.b32.xlu0 %v1117, 96
        %v1499 = vpop.permute.xlu0 %1498
        %1500 = vrot.lane.b32.xlu0 %v1122, 96
        %v1501 = vpop.permute.xlu0 %1500
        %1502 = vrot.lane.b32.xlu0 %v1125, 96
        %v1503 = vpop.permute.xlu0 %1502
        %1504 = vrot.lane.b32.xlu0 %v1130, 96
        %v1505 = vpop.permute.xlu0 %1504
        %1506 = vrot.lane.b32.xlu0 %v1133, 96
        %v1507 = vpop.permute.xlu0 %1506
        %1508 = vrot.lane.b32.xlu0 %v1138, 96
        %v1509 = vpop.permute.xlu0 %1508
        %1510 = vrot.lane.b32.xlu0 %v1141, 96
        %v1511 = vpop.permute.xlu0 %1510
        %1528 = vrot.lane.b32.xlu0 %v1082, 64
        %v1529 = vpop.permute.xlu0 %1528
        %1530 = vrot.lane.b32.xlu0 %v1085, 64
        %v1531 = vpop.permute.xlu0 %1530
        %1532 = vrot.lane.b32.xlu0 %v1090, 64
        %v1533 = vpop.permute.xlu0 %1532
        %1534 = vrot.lane.b32.xlu0 %v1093, 64
        %v1535 = vpop.permute.xlu0 %1534
        %1536 = vrot.lane.b32.xlu0 %v1098, 64
        %v1537 = vpop.permute.xlu0 %1536
        %1538 = vrot.lane.b32.xlu0 %v1101, 64
        %v1539 = vpop.permute.xlu0 %1538
        %1540 = vrot.lane.b32.xlu0 %v1106, 64
        %v1541 = vpop.permute.xlu0 %1540
        %1542 = vrot.lane.b32.xlu0 %v1109, 64
        %v1543 = vpop.permute.xlu0 %1542
        %1544 = vrot.lane.b32.xlu0 %v1114, 64
        %v1545 = vpop.permute.xlu0 %1544
        %1546 = vrot.lane.b32.xlu0 %v1117, 64
        %v1547 = vpop.permute.xlu0 %1546
        %1548 = vrot.lane.b32.xlu0 %v1122, 64
        %v1549 = vpop.permute.xlu0 %1548
        %1550 = vrot.lane.b32.xlu0 %v1125, 64
        %v1551 = vpop.permute.xlu0 %1550
        %1552 = vrot.lane.b32.xlu0 %v1130, 64
        %v1553 = vpop.permute.xlu0 %1552
        %1554 = vrot.lane.b32.xlu0 %v1133, 64
        %v1555 = vpop.permute.xlu0 %1554
        %1556 = vrot.lane.b32.xlu0 %v1138, 64
        %v1557 = vpop.permute.xlu0 %1556
        %1558 = vrot.lane.b32.xlu0 %v1141, 64
        %v1559 = vpop.permute.xlu0 %1558
        %1576 = vrot.lane.b32.xlu0 %v1082, 32
        %v1577 = vpop.permute.xlu0 %1576
        %1578 = vrot.lane.b32.xlu0 %v1085, 32
        %v1579 = vpop.permute.xlu0 %1578
        %1580 = vrot.lane.b32.xlu0 %v1090, 32
        %v1581 = vpop.permute.xlu0 %1580
        %1582 = vrot.lane.b32.xlu0 %v1093, 32
        %v1583 = vpop.permute.xlu0 %1582
        %1584 = vrot.lane.b32.xlu0 %v1098, 32
        %v1585 = vpop.permute.xlu0 %1584
        %1586 = vrot.lane.b32.xlu0 %v1101, 32
        %v1587 = vpop.permute.xlu0 %1586
        %1588 = vrot.lane.b32.xlu0 %v1106, 32
        %v1589 = vpop.permute.xlu0 %1588
        %1590 = vrot.lane.b32.xlu0 %v1109, 32
        %v1591 = vpop.permute.xlu0 %1590
        %1592 = vrot.lane.b32.xlu0 %v1114, 32
        %v1593 = vpop.permute.xlu0 %1592
        %1594 = vrot.lane.b32.xlu0 %v1117, 32
        %v1595 = vpop.permute.xlu0 %1594
        %1596 = vrot.lane.b32.xlu0 %v1122, 32
        %v1597 = vpop.permute.xlu0 %1596
        %1598 = vrot.lane.b32.xlu0 %v1125, 32
        %v1599 = vpop.permute.xlu0 %1598
        %1600 = vrot.lane.b32.xlu0 %v1130, 32
        %v1601 = vpop.permute.xlu0 %1600
        %1602 = vrot.lane.b32.xlu0 %v1133, 32
        %v1603 = vpop.permute.xlu0 %1602
        %1604 = vrot.lane.b32.xlu0 %v1138, 32
        %v1605 = vpop.permute.xlu0 %1604
        %1606 = vrot.lane.b32.xlu0 %v1141, 32
        %v1607 = vpop.permute.xlu0 %1606
        %v1624 = vpack.c.bf16 %v973, %v969
        %v1625 = vpack.c.bf16 %v983, %v979
        %v1626 = vpack.c.bf16 %v993, %v989
        %v1627 = vpack.c.bf16 %v1003, %v999
        %v1628 = vpack.c.bf16 %v1013, %v1009
        %v1629 = vpack.c.bf16 %v1023, %v1019
        %v1630 = vpack.c.bf16 %v1033, %v1029
        %v1631 = vpack.c.bf16 %v1043, %v1039
        %v1632 = vpack.c.bf16 %v1163, %v1161
        %v1633 = vpack.c.bf16 %v1167, %v1165
        %v1634 = vpack.c.bf16 %v1171, %v1169
        %v1635 = vpack.c.bf16 %v1175, %v1173
        %v1636 = vpack.c.bf16 %v1179, %v1177
        %v1637 = vpack.c.bf16 %v1183, %v1181
        %v1638 = vpack.c.bf16 %v1187, %v1185
        %v1639 = vpack.c.bf16 %v1191, %v1189
        %v1640 = vpack.c.bf16 %v1211, %v1209
        %v1641 = vpack.c.bf16 %v1215, %v1213
        %v1642 = vpack.c.bf16 %v1219, %v1217
        %v1643 = vpack.c.bf16 %v1223, %v1221
        %v1644 = vpack.c.bf16 %v1227, %v1225
        %v1645 = vpack.c.bf16 %v1231, %v1229
        %v1646 = vpack.c.bf16 %v1235, %v1233
        %v1647 = vpack.c.bf16 %v1239, %v1237
        %v1648 = vpack.c.bf16 %v1259, %v1257
        %v1649 = vpack.c.bf16 %v1263, %v1261
        %v1650 = vpack.c.bf16 %v1267, %v1265
        %v1651 = vpack.c.bf16 %v1271, %v1269
        %v1652 = vpack.c.bf16 %v1275, %v1273
        %v1653 = vpack.c.bf16 %v1279, %v1277
        %v1654 = vpack.c.bf16 %v1283, %v1281
        %v1655 = vpack.c.bf16 %v1287, %v1285
        %v1656 = vpack.c.bf16 %v975, %v971
        %v1657 = vpack.c.bf16 %v985, %v981
        %v1658 = vpack.c.bf16 %v995, %v991
        %v1659 = vpack.c.bf16 %v1005, %v1001
        %v1660 = vpack.c.bf16 %v1015, %v1011
        %v1661 = vpack.c.bf16 %v1025, %v1021
        %v1662 = vpack.c.bf16 %v1035, %v1031
        %v1663 = vpack.c.bf16 %v1045, %v1041
        %v1664 = vpack.c.bf16 %v1323, %v1321
        %v1665 = vpack.c.bf16 %v1327, %v1325
        %v1666 = vpack.c.bf16 %v1331, %v1329
        %v1667 = vpack.c.bf16 %v1335, %v1333
        %v1668 = vpack.c.bf16 %v1339, %v1337
        %v1669 = vpack.c.bf16 %v1343, %v1341
        %v1670 = vpack.c.bf16 %v1347, %v1345
        %v1671 = vpack.c.bf16 %v1351, %v1349
        %v1672 = vpack.c.bf16 %v1371, %v1369
        %v1673 = vpack.c.bf16 %v1375, %v1373
        %v1674 = vpack.c.bf16 %v1379, %v1377
        %v1675 = vpack.c.bf16 %v1383, %v1381
        %v1676 = vpack.c.bf16 %v1387, %v1385
        %v1677 = vpack.c.bf16 %v1391, %v1389
        %v1678 = vpack.c.bf16 %v1395, %v1393
        %v1679 = vpack.c.bf16 %v1399, %v1397
        %v1680 = vpack.c.bf16 %v1419, %v1417
        %v1681 = vpack.c.bf16 %v1423, %v1421
        %v1682 = vpack.c.bf16 %v1427, %v1425
        %v1683 = vpack.c.bf16 %v1431, %v1429
        %v1684 = vpack.c.bf16 %v1435, %v1433
        %v1685 = vpack.c.bf16 %v1439, %v1437
        %v1686 = vpack.c.bf16 %v1443, %v1441
        %v1687 = vpack.c.bf16 %v1447, %v1445
        %vm1688 = vcmask 261120
        %v1690 = vsel %vm1688, %v1624, 0
        %v1693 = vsel %vm1688, %v1625, 0
        %v1696 = vsel %vm1688, %v1626, 0
        %v1699 = vsel %vm1688, %v1627, 0
        %v1702 = vsel %vm1688, %v1628, 0
        %v1705 = vsel %vm1688, %v1629, 0
        %v1708 = vsel %vm1688, %v1630, 0
        %v1711 = vsel %vm1688, %v1631, 0
        %v1714 = vsel %vm1688, %v1656, 0
        %v1717 = vsel %vm1688, %v1657, 0
        %v1720 = vsel %vm1688, %v1658, 0
        %v1723 = vsel %vm1688, %v1659, 0
        %v1726 = vsel %vm1688, %v1660, 0
        %v1729 = vsel %vm1688, %v1661, 0
        %v1732 = vsel %vm1688, %v1662, 0
        %v1735 = vsel %vm1688, %v1663, 0
        %1737 = vmatprep.subr.bf16.mxu0 0
        %1738 = vmatpush1.bf16.xpose.msra.mxu0 %v1714
        %1739 = vmatprep.subr.bf16.mxu0 0
        %1740 = vmatpush1.bf16.xpose.msra.mxu0 %v1717
        %1741 = vmatprep.subr.bf16.mxu0 0
        %1742 = vmatpush1.bf16.xpose.msra.mxu0 %v1720
        %1743 = vmatprep.subr.bf16.mxu0 0
        %1744 = vmatpush1.bf16.xpose.msra.mxu0 %v1723
        %1745 = vmatprep.subr.bf16.mxu0 0
        %1746 = vmatpush1.bf16.xpose.msra.mxu0 %v1726
        %1747 = vmatprep.subr.bf16.mxu0 0
        %1748 = vmatpush1.bf16.xpose.msra.mxu0 %v1729
        %1749 = vmatprep.subr.bf16.mxu0 0
        %1750 = vmatpush1.bf16.xpose.msra.mxu0 %v1732
        %1751 = vmatprep.subr.bf16.mxu0 0
        %1752 = vmatpush1.bf16.xpose.msra.mxu0 %v1735
        %1753 = vmatprep.subr.bf16.mxu0 0
        %1754 = vmatpush1.bf16.xpose.msra.mxu0 0
        %1755 = vmatprep.subr.bf16.mxu0 0
        %1756 = vmatpush1.bf16.xpose.msra.mxu0 0
        %1757 = vmatprep.subr.bf16.mxu0 0
        %1758 = vmatpush1.bf16.xpose.msra.mxu0 0
        %1759 = vmatprep.subr.bf16.mxu0 0
        %1760 = vmatpush1.bf16.xpose.msra.mxu0 0
        %1761 = vmatprep.subr.bf16.mxu0 0
        %1762 = vmatpush1.bf16.xpose.msra.mxu0 0
        %1763 = vmatprep.subr.bf16.mxu0 0
        %1764 = vmatpush1.bf16.xpose.msra.mxu0 0
        %1765 = vmatprep.subr.bf16.mxu0 0
        %1766 = vmatpush1.bf16.xpose.msra.mxu0 0
        %1767 = vmatprep.subr.bf16.mxu0 0
        %1768 = vmatpush1.bf16.xpose.msra.mxu0 0
        %1769 = vmatprep.mubr.bf16.mxu0 0
        %1770 = vmatmul.mubr.bf16.gmra.mrb[0].mxu0 %v1690
        %v1771 = vpop.f32.mrb[0].mxu0
        %v1772 = vadd.f32 0.0, %v1771
        %v1773 = vpop.f32.mrb[0].mxu0
        %v1774 = vpop.f32.mrb[0].mxu0
        %v1775 = vadd.f32 0.0, %v1774
        %v1776 = vpop.f32.mrb[0].mxu0
        %1777 = vmatprep.mubr.bf16.mxu0 0
        %1778 = vmatmul.mubr.bf16.gmra.mrb[0].mxu0 %v1693
        %v1779 = vpop.f32.mrb[0].mxu0
        %v1780 = vadd.f32 0.0, %v1779
        %v1781 = vpop.f32.mrb[0].mxu0
        %v1782 = vpop.f32.mrb[0].mxu0
        %v1783 = vadd.f32 0.0, %v1782
        %v1784 = vpop.f32.mrb[0].mxu0
        %1785 = vmatprep.mubr.bf16.mxu0 0
        %1786 = vmatmul.mubr.bf16.gmra.mrb[0].mxu0 %v1696
        %v1787 = vpop.f32.mrb[0].mxu0
        %v1788 = vadd.f32 0.0, %v1787
        %v1789 = vpop.f32.mrb[0].mxu0
        %v1790 = vpop.f32.mrb[0].mxu0
        %v1791 = vadd.f32 0.0, %v1790
        %v1792 = vpop.f32.mrb[0].mxu0
        %1793 = vmatprep.mubr.bf16.mxu0 0
        %1794 = vmatmul.mubr.bf16.gmra.mrb[0].mxu0 %v1699
        %v1795 = vpop.f32.mrb[0].mxu0
        %v1796 = vadd.f32 0.0, %v1795
        %v1797 = vpop.f32.mrb[0].mxu0
        %v1798 = vpop.f32.mrb[0].mxu0
        %v1799 = vadd.f32 0.0, %v1798
        %v1800 = vpop.f32.mrb[0].mxu0
        %1801 = vmatprep.mubr.bf16.mxu0 0
        %1802 = vmatmul.mubr.bf16.gmra.mrb[0].mxu0 %v1702
        %v1803 = vpop.f32.mrb[0].mxu0
        %v1804 = vadd.f32 0.0, %v1803
        %v1805 = vpop.f32.mrb[0].mxu0
        %v1806 = vpop.f32.mrb[0].mxu0
        %v1807 = vadd.f32 0.0, %v1806
        %v1808 = vpop.f32.mrb[0].mxu0
        %1809 = vmatprep.mubr.bf16.mxu0 0
        %1810 = vmatmul.mubr.bf16.gmra.mrb[0].mxu0 %v1705
        %v1811 = vpop.f32.mrb[0].mxu0
        %v1812 = vadd.f32 0.0, %v1811
        %v1813 = vpop.f32.mrb[0].mxu0
        %v1814 = vpop.f32.mrb[0].mxu0
        %v1815 = vadd.f32 0.0, %v1814
        %v1816 = vpop.f32.mrb[0].mxu0
        %1817 = vmatprep.mubr.bf16.mxu0 0
        %1818 = vmatmul.mubr.bf16.gmra.mrb[0].mxu0 %v1708
        %v1819 = vpop.f32.mrb[0].mxu0
        %v1820 = vadd.f32 0.0, %v1819
        %v1821 = vpop.f32.mrb[0].mxu0
        %v1822 = vpop.f32.mrb[0].mxu0
        %v1823 = vadd.f32 0.0, %v1822
        %v1824 = vpop.f32.mrb[0].mxu0
        %1825 = vmatprep.mubr.bf16.mxu0 0
        %1826 = vmatmul.mubr.bf16.gmra.mrb[0].mxu0 %v1711
        %v1827 = vpop.f32.mrb[0].mxu0
        %v1828 = vadd.f32 0.0, %v1827
        %v1829 = vpop.f32.mrb[0].mxu0
        %v1830 = vpop.f32.mrb[0].mxu0
        %v1831 = vadd.f32 0.0, %v1830
        %v1832 = vpop.f32.mrb[0].mxu0
        %1833 = vdwg.mxu0
        %v1835 = vsel %vm1688, %v1632, 0
        %v1838 = vsel %vm1688, %v1633, 0
        %v1841 = vsel %vm1688, %v1634, 0
        %v1844 = vsel %vm1688, %v1635, 0
        %v1847 = vsel %vm1688, %v1636, 0
        %v1850 = vsel %vm1688, %v1637, 0
        %v1853 = vsel %vm1688, %v1638, 0
        %v1856 = vsel %vm1688, %v1639, 0
        %v1859 = vsel %vm1688, %v1664, 0
        %v1862 = vsel %vm1688, %v1665, 0
        %v1865 = vsel %vm1688, %v1666, 0
        %v1868 = vsel %vm1688, %v1667, 0
        %v1871 = vsel %vm1688, %v1668, 0
        %v1874 = vsel %vm1688, %v1669, 0
        %v1877 = vsel %vm1688, %v1670, 0
        %v1880 = vsel %vm1688, %v1671, 0
        %1882 = vmatprep.subr.bf16.mxu0 0
        %1883 = vmatpush1.bf16.xpose.msra.mxu0 %v1859
        %1884 = vmatprep.subr.bf16.mxu0 0
        %1885 = vmatpush1.bf16.xpose.msra.mxu0 %v1862
        %1886 = vmatprep.subr.bf16.mxu0 0
        %1887 = vmatpush1.bf16.xpose.msra.mxu0 %v1865
        %1888 = vmatprep.subr.bf16.mxu0 0
        %1889 = vmatpush1.bf16.xpose.msra.mxu0 %v1868
        %1890 = vmatprep.subr.bf16.mxu0 0
        %1891 = vmatpush1.bf16.xpose.msra.mxu0 %v1871
        %1892 = vmatprep.subr.bf16.mxu0 0
        %1893 = vmatpush1.bf16.xpose.msra.mxu0 %v1874
        %1894 = vmatprep.subr.bf16.mxu0 0
        %1895 = vmatpush1.bf16.xpose.msra.mxu0 %v1877
        %1896 = vmatprep.subr.bf16.mxu0 0
        %1897 = vmatpush1.bf16.xpose.msra.mxu0 %v1880
        %1898 = vmatprep.subr.bf16.mxu0 0
        %1899 = vmatpush1.bf16.xpose.msra.mxu0 0
        %1900 = vmatprep.subr.bf16.mxu0 0
        %1901 = vmatpush1.bf16.xpose.msra.mxu0 0
        %1902 = vmatprep.subr.bf16.mxu0 0
        %1903 = vmatpush1.bf16.xpose.msra.mxu0 0
        %1904 = vmatprep.subr.bf16.mxu0 0
        %1905 = vmatpush1.bf16.xpose.msra.mxu0 0
        %1906 = vmatprep.subr.bf16.mxu0 0
        %1907 = vmatpush1.bf16.xpose.msra.mxu0 0
        %1908 = vmatprep.subr.bf16.mxu0 0
        %1909 = vmatpush1.bf16.xpose.msra.mxu0 0
        %1910 = vmatprep.subr.bf16.mxu0 0
        %1911 = vmatpush1.bf16.xpose.msra.mxu0 0
        %1912 = vmatprep.subr.bf16.mxu0 0
        %1913 = vmatpush1.bf16.xpose.msra.mxu0 0
        %1914 = vmatprep.mubr.bf16.mxu0 0
        %1915 = vmatmul.mubr.bf16.gmra.mrb[0].mxu0 %v1835
        %v1916 = vpop.f32.mrb[0].mxu0
        %v1917 = vadd.f32 0.0, %v1916
        %v1918 = vpop.f32.mrb[0].mxu0
        %v1919 = vpop.f32.mrb[0].mxu0
        %v1920 = vadd.f32 0.0, %v1919
        %v1921 = vpop.f32.mrb[0].mxu0
        %1922 = vmatprep.mubr.bf16.mxu0 0
        %1923 = vmatmul.mubr.bf16.gmra.mrb[0].mxu0 %v1838
        %v1924 = vpop.f32.mrb[0].mxu0
        %v1925 = vadd.f32 0.0, %v1924
        %v1926 = vpop.f32.mrb[0].mxu0
        %v1927 = vpop.f32.mrb[0].mxu0
        %v1928 = vadd.f32 0.0, %v1927
        %v1929 = vpop.f32.mrb[0].mxu0
        %1930 = vmatprep.mubr.bf16.mxu0 0
        %1931 = vmatmul.mubr.bf16.gmra.mrb[0].mxu0 %v1841
        %v1932 = vpop.f32.mrb[0].mxu0
        %v1933 = vadd.f32 0.0, %v1932
        %v1934 = vpop.f32.mrb[0].mxu0
        %v1935 = vpop.f32.mrb[0].mxu0
        %v1936 = vadd.f32 0.0, %v1935
        %v1937 = vpop.f32.mrb[0].mxu0
        %1938 = vmatprep.mubr.bf16.mxu0 0
        %1939 = vmatmul.mubr.bf16.gmra.mrb[0].mxu0 %v1844
        %v1940 = vpop.f32.mrb[0].mxu0
        %v1941 = vadd.f32 0.0, %v1940
        %v1942 = vpop.f32.mrb[0].mxu0
        %v1943 = vpop.f32.mrb[0].mxu0
        %v1944 = vadd.f32 0.0, %v1943
        %v1945 = vpop.f32.mrb[0].mxu0
        %1946 = vmatprep.mubr.bf16.mxu0 0
        %1947 = vmatmul.mubr.bf16.gmra.mrb[0].mxu0 %v1847
        %v1948 = vpop.f32.mrb[0].mxu0
        %v1949 = vadd.f32 0.0, %v1948
        %v1950 = vpop.f32.mrb[0].mxu0
        %v1951 = vpop.f32.mrb[0].mxu0
        %v1952 = vadd.f32 0.0, %v1951
        %v1953 = vpop.f32.mrb[0].mxu0
        %1954 = vmatprep.mubr.bf16.mxu0 0
        %1955 = vmatmul.mubr.bf16.gmra.mrb[0].mxu0 %v1850
        %v1956 = vpop.f32.mrb[0].mxu0
        %v1957 = vadd.f32 0.0, %v1956
        %v1958 = vpop.f32.mrb[0].mxu0
        %v1959 = vpop.f32.mrb[0].mxu0
        %v1960 = vadd.f32 0.0, %v1959
        %v1961 = vpop.f32.mrb[0].mxu0
        %1962 = vmatprep.mubr.bf16.mxu0 0
        %1963 = vmatmul.mubr.bf16.gmra.mrb[0].mxu0 %v1853
        %v1964 = vpop.f32.mrb[0].mxu0
        %v1965 = vadd.f32 0.0, %v1964
        %v1966 = vpop.f32.mrb[0].mxu0
        %v1967 = vpop.f32.mrb[0].mxu0
        %v1968 = vadd.f32 0.0, %v1967
        %v1969 = vpop.f32.mrb[0].mxu0
        %1970 = vmatprep.mubr.bf16.mxu0 0
        %1971 = vmatmul.mubr.bf16.gmra.mrb[0].mxu0 %v1856
        %v1972 = vpop.f32.mrb[0].mxu0
        %v1973 = vadd.f32 0.0, %v1972
        %v1974 = vpop.f32.mrb[0].mxu0
        %v1975 = vpop.f32.mrb[0].mxu0
        %v1976 = vadd.f32 0.0, %v1975
        %v1977 = vpop.f32.mrb[0].mxu0
        %1978 = vdwg.mxu0
        %v1980 = vsel %vm1688, %v1640, 0
        %v1983 = vsel %vm1688, %v1641, 0
        %v1986 = vsel %vm1688, %v1642, 0
        %v1989 = vsel %vm1688, %v1643, 0
        %v1992 = vsel %vm1688, %v1644, 0
        %v1995 = vsel %vm1688, %v1645, 0
        %v1998 = vsel %vm1688, %v1646, 0
        %v2001 = vsel %vm1688, %v1647, 0
        %v2004 = vsel %vm1688, %v1672, 0
        %v2007 = vsel %vm1688, %v1673, 0
        %v2010 = vsel %vm1688, %v1674, 0
        %v2013 = vsel %vm1688, %v1675, 0
        %v2016 = vsel %vm1688, %v1676, 0
        %v2019 = vsel %vm1688, %v1677, 0
        %v2022 = vsel %vm1688, %v1678, 0
        %v2025 = vsel %vm1688, %v1679, 0
        %2027 = vmatprep.subr.bf16.mxu0 0
        %2028 = vmatpush1.bf16.xpose.msra.mxu0 %v2004
        %2029 = vmatprep.subr.bf16.mxu0 0
        %2030 = vmatpush1.bf16.xpose.msra.mxu0 %v2007
        %2031 = vmatprep.subr.bf16.mxu0 0
        %2032 = vmatpush1.bf16.xpose.msra.mxu0 %v2010
        %2033 = vmatprep.subr.bf16.mxu0 0
        %2034 = vmatpush1.bf16.xpose.msra.mxu0 %v2013
        %2035 = vmatprep.subr.bf16.mxu0 0
        %2036 = vmatpush1.bf16.xpose.msra.mxu0 %v2016
        %2037 = vmatprep.subr.bf16.mxu0 0
        %2038 = vmatpush1.bf16.xpose.msra.mxu0 %v2019
        %2039 = vmatprep.subr.bf16.mxu0 0
        %2040 = vmatpush1.bf16.xpose.msra.mxu0 %v2022
        %2041 = vmatprep.subr.bf16.mxu0 0
        %2042 = vmatpush1.bf16.xpose.msra.mxu0 %v2025
        %2043 = vmatprep.subr.bf16.mxu0 0
        %2044 = vmatpush1.bf16.xpose.msra.mxu0 0
        %2045 = vmatprep.subr.bf16.mxu0 0
        %2046 = vmatpush1.bf16.xpose.msra.mxu0 0
        %2047 = vmatprep.subr.bf16.mxu0 0
        %2048 = vmatpush1.bf16.xpose.msra.mxu0 0
        %2049 = vmatprep.subr.bf16.mxu0 0
        %2050 = vmatpush1.bf16.xpose.msra.mxu0 0
        %2051 = vmatprep.subr.bf16.mxu0 0
        %2052 = vmatpush1.bf16.xpose.msra.mxu0 0
        %2053 = vmatprep.subr.bf16.mxu0 0
        %2054 = vmatpush1.bf16.xpose.msra.mxu0 0
        %2055 = vmatprep.subr.bf16.mxu0 0
        %2056 = vmatpush1.bf16.xpose.msra.mxu0 0
        %2057 = vmatprep.subr.bf16.mxu0 0
        %2058 = vmatpush1.bf16.xpose.msra.mxu0 0
        %2059 = vmatprep.mubr.bf16.mxu0 0
        %2060 = vmatmul.mubr.bf16.gmra.mrb[0].mxu0 %v1980
        %v2061 = vpop.f32.mrb[0].mxu0
        %v2062 = vadd.f32 0.0, %v2061
        %v2063 = vpop.f32.mrb[0].mxu0
        %v2064 = vpop.f32.mrb[0].mxu0
        %v2065 = vadd.f32 0.0, %v2064
        %v2066 = vpop.f32.mrb[0].mxu0
        %2067 = vmatprep.mubr.bf16.mxu0 0
        %2068 = vmatmul.mubr.bf16.gmra.mrb[0].mxu0 %v1983
        %v2069 = vpop.f32.mrb[0].mxu0
        %v2070 = vadd.f32 0.0, %v2069
        %v2071 = vpop.f32.mrb[0].mxu0
        %v2072 = vpop.f32.mrb[0].mxu0
        %v2073 = vadd.f32 0.0, %v2072
        %v2074 = vpop.f32.mrb[0].mxu0
        %2075 = vmatprep.mubr.bf16.mxu0 0
        %2076 = vmatmul.mubr.bf16.gmra.mrb[0].mxu0 %v1986
        %v2077 = vpop.f32.mrb[0].mxu0
        %v2078 = vadd.f32 0.0, %v2077
        %v2079 = vpop.f32.mrb[0].mxu0
        %v2080 = vpop.f32.mrb[0].mxu0
        %v2081 = vadd.f32 0.0, %v2080
        %v2082 = vpop.f32.mrb[0].mxu0
        %2083 = vmatprep.mubr.bf16.mxu0 0
        %2084 = vmatmul.mubr.bf16.gmra.mrb[0].mxu0 %v1989
        %v2085 = vpop.f32.mrb[0].mxu0
        %v2086 = vadd.f32 0.0, %v2085
        %v2087 = vpop.f32.mrb[0].mxu0
        %v2088 = vpop.f32.mrb[0].mxu0
        %v2089 = vadd.f32 0.0, %v2088
        %v2090 = vpop.f32.mrb[0].mxu0
        %2091 = vmatprep.mubr.bf16.mxu0 0
        %2092 = vmatmul.mubr.bf16.gmra.mrb[0].mxu0 %v1992
        %v2093 = vpop.f32.mrb[0].mxu0
        %v2094 = vadd.f32 0.0, %v2093
        %v2095 = vpop.f32.mrb[0].mxu0
        %v2096 = vpop.f32.mrb[0].mxu0
        %v2097 = vadd.f32 0.0, %v2096
        %v2098 = vpop.f32.mrb[0].mxu0
        %2099 = vmatprep.mubr.bf16.mxu0 0
        %2100 = vmatmul.mubr.bf16.gmra.mrb[0].mxu0 %v1995
        %v2101 = vpop.f32.mrb[0].mxu0
        %v2102 = vadd.f32 0.0, %v2101
        %v2103 = vpop.f32.mrb[0].mxu0
        %v2104 = vpop.f32.mrb[0].mxu0
        %v2105 = vadd.f32 0.0, %v2104
        %v2106 = vpop.f32.mrb[0].mxu0
        %2107 = vmatprep.mubr.bf16.mxu0 0
        %2108 = vmatmul.mubr.bf16.gmra.mrb[0].mxu0 %v1998
        %v2109 = vpop.f32.mrb[0].mxu0
        %v2110 = vadd.f32 0.0, %v2109
        %v2111 = vpop.f32.mrb[0].mxu0
        %v2112 = vpop.f32.mrb[0].mxu0
        %v2113 = vadd.f32 0.0, %v2112
        %v2114 = vpop.f32.mrb[0].mxu0
        %2115 = vmatprep.mubr.bf16.mxu0 0
        %2116 = vmatmul.mubr.bf16.gmra.mrb[0].mxu0 %v2001
        %v2117 = vpop.f32.mrb[0].mxu0
        %v2118 = vadd.f32 0.0, %v2117
        %v2119 = vpop.f32.mrb[0].mxu0
        %v2120 = vpop.f32.mrb[0].mxu0
        %v2121 = vadd.f32 0.0, %v2120
        %v2122 = vpop.f32.mrb[0].mxu0
        %2123 = vdwg.mxu0
        %v2125 = vsel %vm1688, %v1648, 0
        %v2128 = vsel %vm1688, %v1649, 0
        %v2131 = vsel %vm1688, %v1650, 0
        %v2134 = vsel %vm1688, %v1651, 0
        %v2137 = vsel %vm1688, %v1652, 0
        %v2140 = vsel %vm1688, %v1653, 0
        %v2143 = vsel %vm1688, %v1654, 0
        %v2146 = vsel %vm1688, %v1655, 0
        %v2149 = vsel %vm1688, %v1680, 0
        %v2152 = vsel %vm1688, %v1681, 0
        %v2155 = vsel %vm1688, %v1682, 0
        %v2158 = vsel %vm1688, %v1683, 0
        %v2161 = vsel %vm1688, %v1684, 0
        %v2164 = vsel %vm1688, %v1685, 0
        %v2167 = vsel %vm1688, %v1686, 0
        %v2170 = vsel %vm1688, %v1687, 0
        %2172 = vmatprep.subr.bf16.mxu0 0
        %2173 = vmatpush1.bf16.xpose.msra.mxu0 %v2149
        %2174 = vmatprep.subr.bf16.mxu0 0
        %2175 = vmatpush1.bf16.xpose.msra.mxu0 %v2152
        %2176 = vmatprep.subr.bf16.mxu0 0
        %2177 = vmatpush1.bf16.xpose.msra.mxu0 %v2155
        %2178 = vmatprep.subr.bf16.mxu0 0
        %2179 = vmatpush1.bf16.xpose.msra.mxu0 %v2158
        %2180 = vmatprep.subr.bf16.mxu0 0
        %2181 = vmatpush1.bf16.xpose.msra.mxu0 %v2161
        %2182 = vmatprep.subr.bf16.mxu0 0
        %2183 = vmatpush1.bf16.xpose.msra.mxu0 %v2164
        %2184 = vmatprep.subr.bf16.mxu0 0
        %2185 = vmatpush1.bf16.xpose.msra.mxu0 %v2167
        %2186 = vmatprep.subr.bf16.mxu0 0
        %2187 = vmatpush1.bf16.xpose.msra.mxu0 %v2170
        %2188 = vmatprep.subr.bf16.mxu0 0
        %2189 = vmatpush1.bf16.xpose.msra.mxu0 0
        %2190 = vmatprep.subr.bf16.mxu0 0
        %2191 = vmatpush1.bf16.xpose.msra.mxu0 0
        %2192 = vmatprep.subr.bf16.mxu0 0
        %2193 = vmatpush1.bf16.xpose.msra.mxu0 0
        %2194 = vmatprep.subr.bf16.mxu0 0
        %2195 = vmatpush1.bf16.xpose.msra.mxu0 0
        %2196 = vmatprep.subr.bf16.mxu0 0
        %2197 = vmatpush1.bf16.xpose.msra.mxu0 0
        %2198 = vmatprep.subr.bf16.mxu0 0
        %2199 = vmatpush1.bf16.xpose.msra.mxu0 0
        %2200 = vmatprep.subr.bf16.mxu0 0
        %2201 = vmatpush1.bf16.xpose.msra.mxu0 0
        %2202 = vmatprep.subr.bf16.mxu0 0
        %2203 = vmatpush1.bf16.xpose.msra.mxu0 0
        %2204 = vmatprep.mubr.bf16.mxu0 0
        %2205 = vmatmul.mubr.bf16.gmra.mrb[0].mxu0 %v2125
        %v2206 = vpop.f32.mrb[0].mxu0
        %v2207 = vadd.f32 0.0, %v2206
        %v2208 = vpop.f32.mrb[0].mxu0
        %v2209 = vpop.f32.mrb[0].mxu0
        %v2210 = vadd.f32 0.0, %v2209
        %v2211 = vpop.f32.mrb[0].mxu0
        %2212 = vmatprep.mubr.bf16.mxu0 0
        %2213 = vmatmul.mubr.bf16.gmra.mrb[0].mxu0 %v2128
        %v2214 = vpop.f32.mrb[0].mxu0
        %v2215 = vadd.f32 0.0, %v2214
        %v2216 = vpop.f32.mrb[0].mxu0
        %v2217 = vpop.f32.mrb[0].mxu0
        %v2218 = vadd.f32 0.0, %v2217
        %v2219 = vpop.f32.mrb[0].mxu0
        %2220 = vmatprep.mubr.bf16.mxu0 0
        %2221 = vmatmul.mubr.bf16.gmra.mrb[0].mxu0 %v2131
        %v2222 = vpop.f32.mrb[0].mxu0
        %v2223 = vadd.f32 0.0, %v2222
        %v2224 = vpop.f32.mrb[0].mxu0
        %v2225 = vpop.f32.mrb[0].mxu0
        %v2226 = vadd.f32 0.0, %v2225
        %v2227 = vpop.f32.mrb[0].mxu0
        %2228 = vmatprep.mubr.bf16.mxu0 0
        %2229 = vmatmul.mubr.bf16.gmra.mrb[0].mxu0 %v2134
        %v2230 = vpop.f32.mrb[0].mxu0
        %v2231 = vadd.f32 0.0, %v2230
        %v2232 = vpop.f32.mrb[0].mxu0
        %v2233 = vpop.f32.mrb[0].mxu0
        %v2234 = vadd.f32 0.0, %v2233
        %v2235 = vpop.f32.mrb[0].mxu0
        %2236 = vmatprep.mubr.bf16.mxu0 0
        %2237 = vmatmul.mubr.bf16.gmra.mrb[0].mxu0 %v2137
        %v2238 = vpop.f32.mrb[0].mxu0
        %v2239 = vadd.f32 0.0, %v2238
        %v2240 = vpop.f32.mrb[0].mxu0
        %v2241 = vpop.f32.mrb[0].mxu0
        %v2242 = vadd.f32 0.0, %v2241
        %v2243 = vpop.f32.mrb[0].mxu0
        %2244 = vmatprep.mubr.bf16.mxu0 0
        %2245 = vmatmul.mubr.bf16.gmra.mrb[0].mxu0 %v2140
        %v2246 = vpop.f32.mrb[0].mxu0
        %v2247 = vadd.f32 0.0, %v2246
        %v2248 = vpop.f32.mrb[0].mxu0
        %v2249 = vpop.f32.mrb[0].mxu0
        %v2250 = vadd.f32 0.0, %v2249
        %v2251 = vpop.f32.mrb[0].mxu0
        %2252 = vmatprep.mubr.bf16.mxu0 0
        %2253 = vmatmul.mubr.bf16.gmra.mrb[0].mxu0 %v2143
        %v2254 = vpop.f32.mrb[0].mxu0
        %v2255 = vadd.f32 0.0, %v2254
        %v2256 = vpop.f32.mrb[0].mxu0
        %v2257 = vpop.f32.mrb[0].mxu0
        %v2258 = vadd.f32 0.0, %v2257
        %v2259 = vpop.f32.mrb[0].mxu0
        %2260 = vmatprep.mubr.bf16.mxu0 0
        %2261 = vmatmul.mubr.bf16.gmra.mrb[0].mxu0 %v2146
        %v2262 = vpop.f32.mrb[0].mxu0
        %v2263 = vadd.f32 0.0, %v2262
        %v2264 = vpop.f32.mrb[0].mxu0
        %v2265 = vpop.f32.mrb[0].mxu0
        %v2266 = vadd.f32 0.0, %v2265
        %v2267 = vpop.f32.mrb[0].mxu0
        %2268 = vdwg.mxu0
        %2269 = vmax.xlane.f32.xlu0 %v1772
        %v2270 = vpop.xlane.xlu0 %2269
        %2271 = vmax.xlane.f32.xlu0 %v1775
        %v2272 = vpop.xlane.xlu0 %2271
        %2273 = vmax.xlane.f32.xlu0 %v1780
        %v2274 = vpop.xlane.xlu0 %2273
        %2275 = vmax.xlane.f32.xlu0 %v1783
        %v2276 = vpop.xlane.xlu0 %2275
        %2277 = vmax.xlane.f32.xlu0 %v1788
        %v2278 = vpop.xlane.xlu0 %2277
        %2279 = vmax.xlane.f32.xlu0 %v1791
        %v2280 = vpop.xlane.xlu0 %2279
        %2281 = vmax.xlane.f32.xlu0 %v1796
        %v2282 = vpop.xlane.xlu0 %2281
        %2283 = vmax.xlane.f32.xlu0 %v1799
        %v2284 = vpop.xlane.xlu0 %2283
        %2285 = vmax.xlane.f32.xlu0 %v1804
        %v2286 = vpop.xlane.xlu0 %2285
        %2287 = vmax.xlane.f32.xlu0 %v1807
        %v2288 = vpop.xlane.xlu0 %2287
        %2289 = vmax.xlane.f32.xlu0 %v1812
        %v2290 = vpop.xlane.xlu0 %2289
        %2291 = vmax.xlane.f32.xlu0 %v1815
        %v2292 = vpop.xlane.xlu0 %2291
        %2293 = vmax.xlane.f32.xlu0 %v1820
        %v2294 = vpop.xlane.xlu0 %2293
        %2295 = vmax.xlane.f32.xlu0 %v1823
        %v2296 = vpop.xlane.xlu0 %2295
        %2297 = vmax.xlane.f32.xlu0 %v1828
        %v2298 = vpop.xlane.xlu0 %2297
        %2299 = vmax.xlane.f32.xlu0 %v1831
        %v2300 = vpop.xlane.xlu0 %2299
        %2301 = vmax.xlane.f32.xlu0 %v1917
        %v2302 = vpop.xlane.xlu0 %2301
        %2303 = vmax.xlane.f32.xlu0 %v1920
        %v2304 = vpop.xlane.xlu0 %2303
        %2305 = vmax.xlane.f32.xlu0 %v1925
        %v2306 = vpop.xlane.xlu0 %2305
        %2307 = vmax.xlane.f32.xlu0 %v1928
        %v2308 = vpop.xlane.xlu0 %2307
        %2309 = vmax.xlane.f32.xlu0 %v1933
        %v2310 = vpop.xlane.xlu0 %2309
        %2311 = vmax.xlane.f32.xlu0 %v1936
        %v2312 = vpop.xlane.xlu0 %2311
        %2313 = vmax.xlane.f32.xlu0 %v1941
        %v2314 = vpop.xlane.xlu0 %2313
        %2315 = vmax.xlane.f32.xlu0 %v1944
        %v2316 = vpop.xlane.xlu0 %2315
        %2317 = vmax.xlane.f32.xlu0 %v1949
        %v2318 = vpop.xlane.xlu0 %2317
        %2319 = vmax.xlane.f32.xlu0 %v1952
        %v2320 = vpop.xlane.xlu0 %2319
        %2321 = vmax.xlane.f32.xlu0 %v1957
        %v2322 = vpop.xlane.xlu0 %2321
        %2323 = vmax.xlane.f32.xlu0 %v1960
        %v2324 = vpop.xlane.xlu0 %2323
        %2325 = vmax.xlane.f32.xlu0 %v1965
        %v2326 = vpop.xlane.xlu0 %2325
        %2327 = vmax.xlane.f32.xlu0 %v1968
        %v2328 = vpop.xlane.xlu0 %2327
        %2329 = vmax.xlane.f32.xlu0 %v1973
        %v2330 = vpop.xlane.xlu0 %2329
        %2331 = vmax.xlane.f32.xlu0 %v1976
        %v2332 = vpop.xlane.xlu0 %2331
        %2333 = vmax.xlane.f32.xlu0 %v2062
        %v2334 = vpop.xlane.xlu0 %2333
        %2335 = vmax.xlane.f32.xlu0 %v2065
        %v2336 = vpop.xlane.xlu0 %2335
        %2337 = vmax.xlane.f32.xlu0 %v2070
        %v2338 = vpop.xlane.xlu0 %2337
        %2339 = vmax.xlane.f32.xlu0 %v2073
        %v2340 = vpop.xlane.xlu0 %2339
        %2341 = vmax.xlane.f32.xlu0 %v2078
        %v2342 = vpop.xlane.xlu0 %2341
        %2343 = vmax.xlane.f32.xlu0 %v2081
        %v2344 = vpop.xlane.xlu0 %2343
        %2345 = vmax.xlane.f32.xlu0 %v2086
        %v2346 = vpop.xlane.xlu0 %2345
        %2347 = vmax.xlane.f32.xlu0 %v2089
        %v2348 = vpop.xlane.xlu0 %2347
        %2349 = vmax.xlane.f32.xlu0 %v2094
        %v2350 = vpop.xlane.xlu0 %2349
        %2351 = vmax.xlane.f32.xlu0 %v2097
        %v2352 = vpop.xlane.xlu0 %2351
        %2353 = vmax.xlane.f32.xlu0 %v2102
        %v2354 = vpop.xlane.xlu0 %2353
        %2355 = vmax.xlane.f32.xlu0 %v2105
        %v2356 = vpop.xlane.xlu0 %2355
        %2357 = vmax.xlane.f32.xlu0 %v2110
        %v2358 = vpop.xlane.xlu0 %2357
        %2359 = vmax.xlane.f32.xlu0 %v2113
        %v2360 = vpop.xlane.xlu0 %2359
        %2361 = vmax.xlane.f32.xlu0 %v2118
        %v2362 = vpop.xlane.xlu0 %2361
        %2363 = vmax.xlane.f32.xlu0 %v2121
        %v2364 = vpop.xlane.xlu0 %2363
        %2365 = vmax.xlane.f32.xlu0 %v2207
        %v2366 = vpop.xlane.xlu0 %2365
        %2367 = vmax.xlane.f32.xlu0 %v2210
        %v2368 = vpop.xlane.xlu0 %2367
        %2369 = vmax.xlane.f32.xlu0 %v2215
        %v2370 = vpop.xlane.xlu0 %2369
        %2371 = vmax.xlane.f32.xlu0 %v2218
        %v2372 = vpop.xlane.xlu0 %2371
        %2373 = vmax.xlane.f32.xlu0 %v2223
        %v2374 = vpop.xlane.xlu0 %2373
        %2375 = vmax.xlane.f32.xlu0 %v2226
        %v2376 = vpop.xlane.xlu0 %2375
        %2377 = vmax.xlane.f32.xlu0 %v2231
        %v2378 = vpop.xlane.xlu0 %2377
        %2379 = vmax.xlane.f32.xlu0 %v2234
        %v2380 = vpop.xlane.xlu0 %2379
        %2381 = vmax.xlane.f32.xlu0 %v2239
        %v2382 = vpop.xlane.xlu0 %2381
        %2383 = vmax.xlane.f32.xlu0 %v2242
        %v2384 = vpop.xlane.xlu0 %2383
        %2385 = vmax.xlane.f32.xlu0 %v2247
        %v2386 = vpop.xlane.xlu0 %2385
        %2387 = vmax.xlane.f32.xlu0 %v2250
        %v2388 = vpop.xlane.xlu0 %2387
        %2389 = vmax.xlane.f32.xlu0 %v2255
        %v2390 = vpop.xlane.xlu0 %2389
        %2391 = vmax.xlane.f32.xlu0 %v2258
        %v2392 = vpop.xlane.xlu0 %2391
        %2393 = vmax.xlane.f32.xlu0 %v2263
        %v2394 = vpop.xlane.xlu0 %2393
        %2395 = vmax.xlane.f32.xlu0 %v2266
        %v2396 = vpop.xlane.xlu0 %2395
        %v2397 = vsub.f32 %v2270, 1.0
        %v2398 = vsub.f32 %v2272, 1.0
        %v2399 = vsub.f32 %v2274, 1.0
        %v2400 = vsub.f32 %v2276, 1.0
        %v2401 = vsub.f32 %v2278, 1.0
        %v2402 = vsub.f32 %v2280, 1.0
        %v2403 = vsub.f32 %v2282, 1.0
        %v2404 = vsub.f32 %v2284, 1.0
        %v2405 = vsub.f32 %v2286, 1.0
        %v2406 = vsub.f32 %v2288, 1.0
        %v2407 = vsub.f32 %v2290, 1.0
        %v2408 = vsub.f32 %v2292, 1.0
        %v2409 = vsub.f32 %v2294, 1.0
        %v2410 = vsub.f32 %v2296, 1.0
        %v2411 = vsub.f32 %v2298, 1.0
        %v2412 = vsub.f32 %v2300, 1.0
        %v2413 = vsub.f32 %v2302, 1.0
        %v2414 = vsub.f32 %v2304, 1.0
        %v2415 = vsub.f32 %v2306, 1.0
        %v2416 = vsub.f32 %v2308, 1.0
        %v2417 = vsub.f32 %v2310, 1.0
        %v2418 = vsub.f32 %v2312, 1.0
        %v2419 = vsub.f32 %v2314, 1.0
        %v2420 = vsub.f32 %v2316, 1.0
        %v2421 = vsub.f32 %v2318, 1.0
        %v2422 = vsub.f32 %v2320, 1.0
        %v2423 = vsub.f32 %v2322, 1.0
        %v2424 = vsub.f32 %v2324, 1.0
        %v2425 = vsub.f32 %v2326, 1.0
        %v2426 = vsub.f32 %v2328, 1.0
        %v2427 = vsub.f32 %v2330, 1.0
        %v2428 = vsub.f32 %v2332, 1.0
        %v2429 = vsub.f32 %v2334, 1.0
        %v2430 = vsub.f32 %v2336, 1.0
        %v2431 = vsub.f32 %v2338, 1.0
        %v2432 = vsub.f32 %v2340, 1.0
        %v2433 = vsub.f32 %v2342, 1.0
        %v2434 = vsub.f32 %v2344, 1.0
        %v2435 = vsub.f32 %v2346, 1.0
        %v2436 = vsub.f32 %v2348, 1.0
        %v2437 = vsub.f32 %v2350, 1.0
        %v2438 = vsub.f32 %v2352, 1.0
        %v2439 = vsub.f32 %v2354, 1.0
        %v2440 = vsub.f32 %v2356, 1.0
        %v2441 = vsub.f32 %v2358, 1.0
        %v2442 = vsub.f32 %v2360, 1.0
        %v2443 = vsub.f32 %v2362, 1.0
        %v2444 = vsub.f32 %v2364, 1.0
        %v2445 = vsub.f32 %v2366, 1.0
        %v2446 = vsub.f32 %v2368, 1.0
        %v2447 = vsub.f32 %v2370, 1.0
        %v2448 = vsub.f32 %v2372, 1.0
        %v2449 = vsub.f32 %v2374, 1.0
        %v2450 = vsub.f32 %v2376, 1.0
        %v2451 = vsub.f32 %v2378, 1.0
        %v2452 = vsub.f32 %v2380, 1.0
        %v2453 = vsub.f32 %v2382, 1.0
        %v2454 = vsub.f32 %v2384, 1.0
        %v2455 = vsub.f32 %v2386, 1.0
        %v2456 = vsub.f32 %v2388, 1.0
        %v2457 = vsub.f32 %v2390, 1.0
        %v2458 = vsub.f32 %v2392, 1.0
        %v2459 = vsub.f32 %v2394, 1.0
        %v2460 = vsub.f32 %v2396, 1.0
        loop: start=0, step=1, limit=12
        $region97: #{tpu_custom_call.1} parent=71 // loop_pre_header
          _
        $region98: #{tpu_custom_call.1} parent=71 // loop_header
          %s2462 = sphi 0, %s2466
          %p2463 = scmp.ge.s32.totalorder %s2462, 12
          %v2467 = vphi %v2397, %v3556
          %v2468 = vphi %v2398, %v3557
          %v2469 = vphi %v2399, %v3558
          %v2470 = vphi %v2400, %v3559
          %v2471 = vphi %v2401, %v3560
          %v2472 = vphi %v2402, %v3561
          %v2473 = vphi %v2403, %v3562
          %v2474 = vphi %v2404, %v3563
          %v2475 = vphi %v2405, %v3564
          %v2476 = vphi %v2406, %v3565
          %v2477 = vphi %v2407, %v3566
          %v2478 = vphi %v2408, %v3567
          %v2479 = vphi %v2409, %v3568
          %v2480 = vphi %v2410, %v3569
          %v2481 = vphi %v2411, %v3570
          %v2482 = vphi %v2412, %v3571
          %v2483 = vphi %v2413, %v3572
          %v2484 = vphi %v2414, %v3573
          %v2485 = vphi %v2415, %v3574
          %v2486 = vphi %v2416, %v3575
          %v2487 = vphi %v2417, %v3576
          %v2488 = vphi %v2418, %v3577
          %v2489 = vphi %v2419, %v3578
          %v2490 = vphi %v2420, %v3579
          %v2491 = vphi %v2421, %v3580
          %v2492 = vphi %v2422, %v3581
          %v2493 = vphi %v2423, %v3582
          %v2494 = vphi %v2424, %v3583
          %v2495 = vphi %v2425, %v3584
          %v2496 = vphi %v2426, %v3585
          %v2497 = vphi %v2427, %v3586
          %v2498 = vphi %v2428, %v3587
          %v2499 = vphi %v2429, %v3588
          %v2500 = vphi %v2430, %v3589
          %v2501 = vphi %v2431, %v3590
          %v2502 = vphi %v2432, %v3591
          %v2503 = vphi %v2433, %v3592
          %v2504 = vphi %v2434, %v3593
          %v2505 = vphi %v2435, %v3594
          %v2506 = vphi %v2436, %v3595
          %v2507 = vphi %v2437, %v3596
          %v2508 = vphi %v2438, %v3597
          %v2509 = vphi %v2439, %v3598
          %v2510 = vphi %v2440, %v3599
          %v2511 = vphi %v2441, %v3600
          %v2512 = vphi %v2442, %v3601
          %v2513 = vphi %v2443, %v3602
          %v2514 = vphi %v2444, %v3603
          %v2515 = vphi %v2445, %v3604
          %v2516 = vphi %v2446, %v3605
          %v2517 = vphi %v2447, %v3606
          %v2518 = vphi %v2448, %v3607
          %v2519 = vphi %v2449, %v3608
          %v2520 = vphi %v2450, %v3609
          %v2521 = vphi %v2451, %v3610
          %v2522 = vphi %v2452, %v3611
          %v2523 = vphi %v2453, %v3612
          %v2524 = vphi %v2454, %v3613
          %v2525 = vphi %v2455, %v3614
          %v2526 = vphi %v2456, %v3615
          %v2527 = vphi %v2457, %v3616
          %v2528 = vphi %v2458, %v3617
          %v2529 = vphi %v2459, %v3618
          %v2530 = vphi %v2460, %v3619
          %v2531 = vphi %v2270, %v3620
          %v2532 = vphi %v2272, %v3621
          %v2533 = vphi %v2274, %v3622
          %v2534 = vphi %v2276, %v3623
          %v2535 = vphi %v2278, %v3624
          %v2536 = vphi %v2280, %v3625
          %v2537 = vphi %v2282, %v3626
          %v2538 = vphi %v2284, %v3627
          %v2539 = vphi %v2286, %v3628
          %v2540 = vphi %v2288, %v3629
          %v2541 = vphi %v2290, %v3630
          %v2542 = vphi %v2292, %v3631
          %v2543 = vphi %v2294, %v3632
          %v2544 = vphi %v2296, %v3633
          %v2545 = vphi %v2298, %v3634
          %v2546 = vphi %v2300, %v3635
          %v2547 = vphi %v2302, %v3636
          %v2548 = vphi %v2304, %v3637
          %v2549 = vphi %v2306, %v3638
          %v2550 = vphi %v2308, %v3639
          %v2551 = vphi %v2310, %v3640
          %v2552 = vphi %v2312, %v3641
          %v2553 = vphi %v2314, %v3642
          %v2554 = vphi %v2316, %v3643
          %v2555 = vphi %v2318, %v3644
          %v2556 = vphi %v2320, %v3645
          %v2557 = vphi %v2322, %v3646
          %v2558 = vphi %v2324, %v3647
          %v2559 = vphi %v2326, %v3648
          %v2560 = vphi %v2328, %v3649
          %v2561 = vphi %v2330, %v3650
          %v2562 = vphi %v2332, %v3651
          %v2563 = vphi %v2334, %v3652
          %v2564 = vphi %v2336, %v3653
          %v2565 = vphi %v2338, %v3654
          %v2566 = vphi %v2340, %v3655
          %v2567 = vphi %v2342, %v3656
          %v2568 = vphi %v2344, %v3657
          %v2569 = vphi %v2346, %v3658
          %v2570 = vphi %v2348, %v3659
          %v2571 = vphi %v2350, %v3660
          %v2572 = vphi %v2352, %v3661
          %v2573 = vphi %v2354, %v3662
          %v2574 = vphi %v2356, %v3663
          %v2575 = vphi %v2358, %v3664
          %v2576 = vphi %v2360, %v3665
          %v2577 = vphi %v2362, %v3666
          %v2578 = vphi %v2364, %v3667
          %v2579 = vphi %v2366, %v3668
          %v2580 = vphi %v2368, %v3669
          %v2581 = vphi %v2370, %v3670
          %v2582 = vphi %v2372, %v3671
          %v2583 = vphi %v2374, %v3672
          %v2584 = vphi %v2376, %v3673
          %v2585 = vphi %v2378, %v3674
          %v2586 = vphi %v2380, %v3675
          %v2587 = vphi %v2382, %v3676
          %v2588 = vphi %v2384, %v3677
          %v2589 = vphi %v2386, %v3678
          %v2590 = vphi %v2388, %v3679
          %v2591 = vphi %v2390, %v3680
          %v2592 = vphi %v2392, %v3681
          %v2593 = vphi %v2394, %v3682
          %v2594 = vphi %v2396, %v3683
        $region99: #{tpu_custom_call.1} parent=71 // loop_header_branch
          %2465 = sbr.rel (%p2463) target = $region103
        $region100: #{tpu_custom_call.1} parent=71 // loop_body
          %v2595 = vadd.f32 %v2467, %v2531
          %v2596 = vadd.f32 %v2468, %v2532
          %v2597 = vadd.f32 %v2469, %v2533
          %v2598 = vadd.f32 %v2470, %v2534
          %v2599 = vadd.f32 %v2471, %v2535
          %v2600 = vadd.f32 %v2472, %v2536
          %v2601 = vadd.f32 %v2473, %v2537
          %v2602 = vadd.f32 %v2474, %v2538
          %v2603 = vadd.f32 %v2475, %v2539
          %v2604 = vadd.f32 %v2476, %v2540
          %v2605 = vadd.f32 %v2477, %v2541
          %v2606 = vadd.f32 %v2478, %v2542
          %v2607 = vadd.f32 %v2479, %v2543
          %v2608 = vadd.f32 %v2480, %v2544
          %v2609 = vadd.f32 %v2481, %v2545
          %v2610 = vadd.f32 %v2482, %v2546
          %v2611 = vadd.f32 %v2483, %v2547
          %v2612 = vadd.f32 %v2484, %v2548
          %v2613 = vadd.f32 %v2485, %v2549
          %v2614 = vadd.f32 %v2486, %v2550
          %v2615 = vadd.f32 %v2487, %v2551
          %v2616 = vadd.f32 %v2488, %v2552
          %v2617 = vadd.f32 %v2489, %v2553
          %v2618 = vadd.f32 %v2490, %v2554
          %v2619 = vadd.f32 %v2491, %v2555
          %v2620 = vadd.f32 %v2492, %v2556
          %v2621 = vadd.f32 %v2493, %v2557
          %v2622 = vadd.f32 %v2494, %v2558
          %v2623 = vadd.f32 %v2495, %v2559
          %v2624 = vadd.f32 %v2496, %v2560
          %v2625 = vadd.f32 %v2497, %v2561
          %v2626 = vadd.f32 %v2498, %v2562
          %v2627 = vadd.f32 %v2499, %v2563
          %v2628 = vadd.f32 %v2500, %v2564
          %v2629 = vadd.f32 %v2501, %v2565
          %v2630 = vadd.f32 %v2502, %v2566
          %v2631 = vadd.f32 %v2503, %v2567
          %v2632 = vadd.f32 %v2504, %v2568
          %v2633 = vadd.f32 %v2505, %v2569
          %v2634 = vadd.f32 %v2506, %v2570
          %v2635 = vadd.f32 %v2507, %v2571
          %v2636 = vadd.f32 %v2508, %v2572
          %v2637 = vadd.f32 %v2509, %v2573
          %v2638 = vadd.f32 %v2510, %v2574
          %v2639 = vadd.f32 %v2511, %v2575
          %v2640 = vadd.f32 %v2512, %v2576
          %v2641 = vadd.f32 %v2513, %v2577
          %v2642 = vadd.f32 %v2514, %v2578
          %v2643 = vadd.f32 %v2515, %v2579
          %v2644 = vadd.f32 %v2516, %v2580
          %v2645 = vadd.f32 %v2517, %v2581
          %v2646 = vadd.f32 %v2518, %v2582
          %v2647 = vadd.f32 %v2519, %v2583
          %v2648 = vadd.f32 %v2520, %v2584
          %v2649 = vadd.f32 %v2521, %v2585
          %v2650 = vadd.f32 %v2522, %v2586
          %v2651 = vadd.f32 %v2523, %v2587
          %v2652 = vadd.f32 %v2524, %v2588
          %v2653 = vadd.f32 %v2525, %v2589
          %v2654 = vadd.f32 %v2526, %v2590
          %v2655 = vadd.f32 %v2527, %v2591
          %v2656 = vadd.f32 %v2528, %v2592
          %v2657 = vadd.f32 %v2529, %v2593
          %v2658 = vadd.f32 %v2530, %v2594
          %v2659 = vmul.f32 %v2595, 0.5
          %v2660 = vmul.f32 %v2596, 0.5
          %v2661 = vmul.f32 %v2597, 0.5
          %v2662 = vmul.f32 %v2598, 0.5
          %v2663 = vmul.f32 %v2599, 0.5
          %v2664 = vmul.f32 %v2600, 0.5
          %v2665 = vmul.f32 %v2601, 0.5
          %v2666 = vmul.f32 %v2602, 0.5
          %v2667 = vmul.f32 %v2603, 0.5
          %v2668 = vmul.f32 %v2604, 0.5
          %v2669 = vmul.f32 %v2605, 0.5
          %v2670 = vmul.f32 %v2606, 0.5
          %v2671 = vmul.f32 %v2607, 0.5
          %v2672 = vmul.f32 %v2608, 0.5
          %v2673 = vmul.f32 %v2609, 0.5
          %v2674 = vmul.f32 %v2610, 0.5
          %v2675 = vmul.f32 %v2611, 0.5
          %v2676 = vmul.f32 %v2612, 0.5
          %v2677 = vmul.f32 %v2613, 0.5
          %v2678 = vmul.f32 %v2614, 0.5
          %v2679 = vmul.f32 %v2615, 0.5
          %v2680 = vmul.f32 %v2616, 0.5
          %v2681 = vmul.f32 %v2617, 0.5
          %v2682 = vmul.f32 %v2618, 0.5
          %v2683 = vmul.f32 %v2619, 0.5
          %v2684 = vmul.f32 %v2620, 0.5
          %v2685 = vmul.f32 %v2621, 0.5
          %v2686 = vmul.f32 %v2622, 0.5
          %v2687 = vmul.f32 %v2623, 0.5
          %v2688 = vmul.f32 %v2624, 0.5
          %v2689 = vmul.f32 %v2625, 0.5
          %v2690 = vmul.f32 %v2626, 0.5
          %v2691 = vmul.f32 %v2627, 0.5
          %v2692 = vmul.f32 %v2628, 0.5
          %v2693 = vmul.f32 %v2629, 0.5
          %v2694 = vmul.f32 %v2630, 0.5
          %v2695 = vmul.f32 %v2631, 0.5
          %v2696 = vmul.f32 %v2632, 0.5
          %v2697 = vmul.f32 %v2633, 0.5
          %v2698 = vmul.f32 %v2634, 0.5
          %v2699 = vmul.f32 %v2635, 0.5
          %v2700 = vmul.f32 %v2636, 0.5
          %v2701 = vmul.f32 %v2637, 0.5
          %v2702 = vmul.f32 %v2638, 0.5
          %v2703 = vmul.f32 %v2639, 0.5
          %v2704 = vmul.f32 %v2640, 0.5
          %v2705 = vmul.f32 %v2641, 0.5
          %v2706 = vmul.f32 %v2642, 0.5
          %v2707 = vmul.f32 %v2643, 0.5
          %v2708 = vmul.f32 %v2644, 0.5
          %v2709 = vmul.f32 %v2645, 0.5
          %v2710 = vmul.f32 %v2646, 0.5
          %v2711 = vmul.f32 %v2647, 0.5
          %v2712 = vmul.f32 %v2648, 0.5
          %v2713 = vmul.f32 %v2649, 0.5
          %v2714 = vmul.f32 %v2650, 0.5
          %v2715 = vmul.f32 %v2651, 0.5
          %v2716 = vmul.f32 %v2652, 0.5
          %v2717 = vmul.f32 %v2653, 0.5
          %v2718 = vmul.f32 %v2654, 0.5
          %v2719 = vmul.f32 %v2655, 0.5
          %v2720 = vmul.f32 %v2656, 0.5
          %v2721 = vmul.f32 %v2657, 0.5
          %v2722 = vmul.f32 %v2658, 0.5
          %2724 = vset.pattern.permute.xlu0 0
          %2725 = vperm.xlu0 %2724, %v2659
          %v2726 = vpop.permute.xlu0 %2725
          %2729 = vset.pattern.permute.xlu0 0
          %2730 = vperm.xlu0 %2729, %v2660
          %v2731 = vpop.permute.xlu0 %2730
          %2734 = vset.pattern.permute.xlu0 0
          %2735 = vperm.xlu0 %2734, %v2661
          %v2736 = vpop.permute.xlu0 %2735
          %2739 = vset.pattern.permute.xlu0 0
          %2740 = vperm.xlu0 %2739, %v2662
          %v2741 = vpop.permute.xlu0 %2740
          %2744 = vset.pattern.permute.xlu0 0
          %2745 = vperm.xlu0 %2744, %v2663
          %v2746 = vpop.permute.xlu0 %2745
          %2749 = vset.pattern.permute.xlu0 0
          %2750 = vperm.xlu0 %2749, %v2664
          %v2751 = vpop.permute.xlu0 %2750
          %2754 = vset.pattern.permute.xlu0 0
          %2755 = vperm.xlu0 %2754, %v2665
          %v2756 = vpop.permute.xlu0 %2755
          %2759 = vset.pattern.permute.xlu0 0
          %2760 = vperm.xlu0 %2759, %v2666
          %v2761 = vpop.permute.xlu0 %2760
          %2764 = vset.pattern.permute.xlu0 0
          %2765 = vperm.xlu0 %2764, %v2667
          %v2766 = vpop.permute.xlu0 %2765
          %2769 = vset.pattern.permute.xlu0 0
          %2770 = vperm.xlu0 %2769, %v2668
          %v2771 = vpop.permute.xlu0 %2770
          %2774 = vset.pattern.permute.xlu0 0
          %2775 = vperm.xlu0 %2774, %v2669
          %v2776 = vpop.permute.xlu0 %2775
          %2779 = vset.pattern.permute.xlu0 0
          %2780 = vperm.xlu0 %2779, %v2670
          %v2781 = vpop.permute.xlu0 %2780
          %2784 = vset.pattern.permute.xlu0 0
          %2785 = vperm.xlu0 %2784, %v2671
          %v2786 = vpop.permute.xlu0 %2785
          %2789 = vset.pattern.permute.xlu0 0
          %2790 = vperm.xlu0 %2789, %v2672
          %v2791 = vpop.permute.xlu0 %2790
          %2794 = vset.pattern.permute.xlu0 0
          %2795 = vperm.xlu0 %2794, %v2673
          %v2796 = vpop.permute.xlu0 %2795
          %2799 = vset.pattern.permute.xlu0 0
          %2800 = vperm.xlu0 %2799, %v2674
          %v2801 = vpop.permute.xlu0 %2800
          %2804 = vset.pattern.permute.xlu0 0
          %2805 = vperm.xlu0 %2804, %v2675
          %v2806 = vpop.permute.xlu0 %2805
          %2809 = vset.pattern.permute.xlu0 0
          %2810 = vperm.xlu0 %2809, %v2676
          %v2811 = vpop.permute.xlu0 %2810
          %2814 = vset.pattern.permute.xlu0 0
          %2815 = vperm.xlu0 %2814, %v2677
          %v2816 = vpop.permute.xlu0 %2815
          %2819 = vset.pattern.permute.xlu0 0
          %2820 = vperm.xlu0 %2819, %v2678
          %v2821 = vpop.permute.xlu0 %2820
          %2824 = vset.pattern.permute.xlu0 0
          %2825 = vperm.xlu0 %2824, %v2679
          %v2826 = vpop.permute.xlu0 %2825
          %2829 = vset.pattern.permute.xlu0 0
          %2830 = vperm.xlu0 %2829, %v2680
          %v2831 = vpop.permute.xlu0 %2830
          %2834 = vset.pattern.permute.xlu0 0
          %2835 = vperm.xlu0 %2834, %v2681
          %v2836 = vpop.permute.xlu0 %2835
          %2839 = vset.pattern.permute.xlu0 0
          %2840 = vperm.xlu0 %2839, %v2682
          %v2841 = vpop.permute.xlu0 %2840
          %2844 = vset.pattern.permute.xlu0 0
          %2845 = vperm.xlu0 %2844, %v2683
          %v2846 = vpop.permute.xlu0 %2845
          %2849 = vset.pattern.permute.xlu0 0
          %2850 = vperm.xlu0 %2849, %v2684
          %v2851 = vpop.permute.xlu0 %2850
          %2854 = vset.pattern.permute.xlu0 0
          %2855 = vperm.xlu0 %2854, %v2685
          %v2856 = vpop.permute.xlu0 %2855
          %2859 = vset.pattern.permute.xlu0 0
          %2860 = vperm.xlu0 %2859, %v2686
          %v2861 = vpop.permute.xlu0 %2860
          %2864 = vset.pattern.permute.xlu0 0
          %2865 = vperm.xlu0 %2864, %v2687
          %v2866 = vpop.permute.xlu0 %2865
          %2869 = vset.pattern.permute.xlu0 0
          %2870 = vperm.xlu0 %2869, %v2688
          %v2871 = vpop.permute.xlu0 %2870
          %2874 = vset.pattern.permute.xlu0 0
          %2875 = vperm.xlu0 %2874, %v2689
          %v2876 = vpop.permute.xlu0 %2875
          %2879 = vset.pattern.permute.xlu0 0
          %2880 = vperm.xlu0 %2879, %v2690
          %v2881 = vpop.permute.xlu0 %2880
          %2884 = vset.pattern.permute.xlu0 0
          %2885 = vperm.xlu0 %2884, %v2691
          %v2886 = vpop.permute.xlu0 %2885
          %2889 = vset.pattern.permute.xlu0 0
          %2890 = vperm.xlu0 %2889, %v2692
          %v2891 = vpop.permute.xlu0 %2890
          %2894 = vset.pattern.permute.xlu0 0
          %2895 = vperm.xlu0 %2894, %v2693
          %v2896 = vpop.permute.xlu0 %2895
          %2899 = vset.pattern.permute.xlu0 0
          %2900 = vperm.xlu0 %2899, %v2694
          %v2901 = vpop.permute.xlu0 %2900
          %2904 = vset.pattern.permute.xlu0 0
          %2905 = vperm.xlu0 %2904, %v2695
          %v2906 = vpop.permute.xlu0 %2905
          %2909 = vset.pattern.permute.xlu0 0
          %2910 = vperm.xlu0 %2909, %v2696
          %v2911 = vpop.permute.xlu0 %2910
          %2914 = vset.pattern.permute.xlu0 0
          %2915 = vperm.xlu0 %2914, %v2697
          %v2916 = vpop.permute.xlu0 %2915
          %2919 = vset.pattern.permute.xlu0 0
          %2920 = vperm.xlu0 %2919, %v2698
          %v2921 = vpop.permute.xlu0 %2920
          %2924 = vset.pattern.permute.xlu0 0
          %2925 = vperm.xlu0 %2924, %v2699
          %v2926 = vpop.permute.xlu0 %2925
          %2929 = vset.pattern.permute.xlu0 0
          %2930 = vperm.xlu0 %2929, %v2700
          %v2931 = vpop.permute.xlu0 %2930
          %2934 = vset.pattern.permute.xlu0 0
          %2935 = vperm.xlu0 %2934, %v2701
          %v2936 = vpop.permute.xlu0 %2935
          %2939 = vset.pattern.permute.xlu0 0
          %2940 = vperm.xlu0 %2939, %v2702
          %v2941 = vpop.permute.xlu0 %2940
          %2944 = vset.pattern.permute.xlu0 0
          %2945 = vperm.xlu0 %2944, %v2703
          %v2946 = vpop.permute.xlu0 %2945
          %2949 = vset.pattern.permute.xlu0 0
          %2950 = vperm.xlu0 %2949, %v2704
          %v2951 = vpop.permute.xlu0 %2950
          %2954 = vset.pattern.permute.xlu0 0
          %2955 = vperm.xlu0 %2954, %v2705
          %v2956 = vpop.permute.xlu0 %2955
          %2959 = vset.pattern.permute.xlu0 0
          %2960 = vperm.xlu0 %2959, %v2706
          %v2961 = vpop.permute.xlu0 %2960
          %2964 = vset.pattern.permute.xlu0 0
          %2965 = vperm.xlu0 %2964, %v2707
          %v2966 = vpop.permute.xlu0 %2965
          %2969 = vset.pattern.permute.xlu0 0
          %2970 = vperm.xlu0 %2969, %v2708
          %v2971 = vpop.permute.xlu0 %2970
          %2974 = vset.pattern.permute.xlu0 0
          %2975 = vperm.xlu0 %2974, %v2709
          %v2976 = vpop.permute.xlu0 %2975
          %2979 = vset.pattern.permute.xlu0 0
          %2980 = vperm.xlu0 %2979, %v2710
          %v2981 = vpop.permute.xlu0 %2980
          %2984 = vset.pattern.permute.xlu0 0
          %2985 = vperm.xlu0 %2984, %v2711
          %v2986 = vpop.permute.xlu0 %2985
          %2989 = vset.pattern.permute.xlu0 0
          %2990 = vperm.xlu0 %2989, %v2712
          %v2991 = vpop.permute.xlu0 %2990
          %2994 = vset.pattern.permute.xlu0 0
          %2995 = vperm.xlu0 %2994, %v2713
          %v2996 = vpop.permute.xlu0 %2995
          %2999 = vset.pattern.permute.xlu0 0
          %3000 = vperm.xlu0 %2999, %v2714
          %v3001 = vpop.permute.xlu0 %3000
          %3004 = vset.pattern.permute.xlu0 0
          %3005 = vperm.xlu0 %3004, %v2715
          %v3006 = vpop.permute.xlu0 %3005
          %3009 = vset.pattern.permute.xlu0 0
          %3010 = vperm.xlu0 %3009, %v2716
          %v3011 = vpop.permute.xlu0 %3010
          %3014 = vset.pattern.permute.xlu0 0
          %3015 = vperm.xlu0 %3014, %v2717
          %v3016 = vpop.permute.xlu0 %3015
          %3019 = vset.pattern.permute.xlu0 0
          %3020 = vperm.xlu0 %3019, %v2718
          %v3021 = vpop.permute.xlu0 %3020
          %3024 = vset.pattern.permute.xlu0 0
          %3025 = vperm.xlu0 %3024, %v2719
          %v3026 = vpop.permute.xlu0 %3025
          %3029 = vset.pattern.permute.xlu0 0
          %3030 = vperm.xlu0 %3029, %v2720
          %v3031 = vpop.permute.xlu0 %3030
          %3034 = vset.pattern.permute.xlu0 0
          %3035 = vperm.xlu0 %3034, %v2721
          %v3036 = vpop.permute.xlu0 %3035
          %3039 = vset.pattern.permute.xlu0 0
          %3040 = vperm.xlu0 %3039, %v2722
          %v3041 = vpop.permute.xlu0 %3040
          %v3043 = vsub.f32 %v1772, %v2726
          %v3044 = vsub.f32 %v1775, %v2731
          %v3045 = vsub.f32 %v1780, %v2736
          %v3046 = vsub.f32 %v1783, %v2741
          %v3047 = vsub.f32 %v1788, %v2746
          %v3048 = vsub.f32 %v1791, %v2751
          %v3049 = vsub.f32 %v1796, %v2756
          %v3050 = vsub.f32 %v1799, %v2761
          %v3051 = vsub.f32 %v1804, %v2766
          %v3052 = vsub.f32 %v1807, %v2771
          %v3053 = vsub.f32 %v1812, %v2776
          %v3054 = vsub.f32 %v1815, %v2781
          %v3055 = vsub.f32 %v1820, %v2786
          %v3056 = vsub.f32 %v1823, %v2791
          %v3057 = vsub.f32 %v1828, %v2796
          %v3058 = vsub.f32 %v1831, %v2801
          %v3059 = vsub.f32 %v1917, %v2806
          %v3060 = vsub.f32 %v1920, %v2811
          %v3061 = vsub.f32 %v1925, %v2816
          %v3062 = vsub.f32 %v1928, %v2821
          %v3063 = vsub.f32 %v1933, %v2826
          %v3064 = vsub.f32 %v1936, %v2831
          %v3065 = vsub.f32 %v1941, %v2836
          %v3066 = vsub.f32 %v1944, %v2841
          %v3067 = vsub.f32 %v1949, %v2846
          %v3068 = vsub.f32 %v1952, %v2851
          %v3069 = vsub.f32 %v1957, %v2856
          %v3070 = vsub.f32 %v1960, %v2861
          %v3071 = vsub.f32 %v1965, %v2866
          %v3072 = vsub.f32 %v1968, %v2871
          %v3073 = vsub.f32 %v1973, %v2876
          %v3074 = vsub.f32 %v1976, %v2881
          %v3075 = vsub.f32 %v2062, %v2886
          %v3076 = vsub.f32 %v2065, %v2891
          %v3077 = vsub.f32 %v2070, %v2896
          %v3078 = vsub.f32 %v2073, %v2901
          %v3079 = vsub.f32 %v2078, %v2906
          %v3080 = vsub.f32 %v2081, %v2911
          %v3081 = vsub.f32 %v2086, %v2916
          %v3082 = vsub.f32 %v2089, %v2921
          %v3083 = vsub.f32 %v2094, %v2926
          %v3084 = vsub.f32 %v2097, %v2931
          %v3085 = vsub.f32 %v2102, %v2936
          %v3086 = vsub.f32 %v2105, %v2941
          %v3087 = vsub.f32 %v2110, %v2946
          %v3088 = vsub.f32 %v2113, %v2951
          %v3089 = vsub.f32 %v2118, %v2956
          %v3090 = vsub.f32 %v2121, %v2961
          %v3091 = vsub.f32 %v2207, %v2966
          %v3092 = vsub.f32 %v2210, %v2971
          %v3093 = vsub.f32 %v2215, %v2976
          %v3094 = vsub.f32 %v2218, %v2981
          %v3095 = vsub.f32 %v2223, %v2986
          %v3096 = vsub.f32 %v2226, %v2991
          %v3097 = vsub.f32 %v2231, %v2996
          %v3098 = vsub.f32 %v2234, %v3001
          %v3099 = vsub.f32 %v2239, %v3006
          %v3100 = vsub.f32 %v2242, %v3011
          %v3101 = vsub.f32 %v2247, %v3016
          %v3102 = vsub.f32 %v2250, %v3021
          %v3103 = vsub.f32 %v2255, %v3026
          %v3104 = vsub.f32 %v2258, %v3031
          %v3105 = vsub.f32 %v2263, %v3036
          %v3106 = vsub.f32 %v2266, %v3041
          %v3107 = vmax.f32 %v3043, 0.0
          %v3108 = vmax.f32 %v3044, 0.0
          %v3109 = vmax.f32 %v3045, 0.0
          %v3110 = vmax.f32 %v3046, 0.0
          %v3111 = vmax.f32 %v3047, 0.0
          %v3112 = vmax.f32 %v3048, 0.0
          %v3113 = vmax.f32 %v3049, 0.0
          %v3114 = vmax.f32 %v3050, 0.0
          %v3115 = vmax.f32 %v3051, 0.0
          %v3116 = vmax.f32 %v3052, 0.0
          %v3117 = vmax.f32 %v3053, 0.0
          %v3118 = vmax.f32 %v3054, 0.0
          %v3119 = vmax.f32 %v3055, 0.0
          %v3120 = vmax.f32 %v3056, 0.0
          %v3121 = vmax.f32 %v3057, 0.0
          %v3122 = vmax.f32 %v3058, 0.0
          %v3123 = vmax.f32 %v3059, 0.0
          %v3124 = vmax.f32 %v3060, 0.0
          %v3125 = vmax.f32 %v3061, 0.0
          %v3126 = vmax.f32 %v3062, 0.0
          %v3127 = vmax.f32 %v3063, 0.0
          %v3128 = vmax.f32 %v3064, 0.0
          %v3129 = vmax.f32 %v3065, 0.0
          %v3130 = vmax.f32 %v3066, 0.0
          %v3131 = vmax.f32 %v3067, 0.0
          %v3132 = vmax.f32 %v3068, 0.0
          %v3133 = vmax.f32 %v3069, 0.0
          %v3134 = vmax.f32 %v3070, 0.0
          %v3135 = vmax.f32 %v3071, 0.0
          %v3136 = vmax.f32 %v3072, 0.0
          %v3137 = vmax.f32 %v3073, 0.0
          %v3138 = vmax.f32 %v3074, 0.0
          %v3139 = vmax.f32 %v3075, 0.0
          %v3140 = vmax.f32 %v3076, 0.0
          %v3141 = vmax.f32 %v3077, 0.0
          %v3142 = vmax.f32 %v3078, 0.0
          %v3143 = vmax.f32 %v3079, 0.0
          %v3144 = vmax.f32 %v3080, 0.0
          %v3145 = vmax.f32 %v3081, 0.0
          %v3146 = vmax.f32 %v3082, 0.0
          %v3147 = vmax.f32 %v3083, 0.0
          %v3148 = vmax.f32 %v3084, 0.0
          %v3149 = vmax.f32 %v3085, 0.0
          %v3150 = vmax.f32 %v3086, 0.0
          %v3151 = vmax.f32 %v3087, 0.0
          %v3152 = vmax.f32 %v3088, 0.0
          %v3153 = vmax.f32 %v3089, 0.0
          %v3154 = vmax.f32 %v3090, 0.0
          %v3155 = vmax.f32 %v3091, 0.0
          %v3156 = vmax.f32 %v3092, 0.0
          %v3157 = vmax.f32 %v3093, 0.0
          %v3158 = vmax.f32 %v3094, 0.0
          %v3159 = vmax.f32 %v3095, 0.0
          %v3160 = vmax.f32 %v3096, 0.0
          %v3161 = vmax.f32 %v3097, 0.0
          %v3162 = vmax.f32 %v3098, 0.0
          %v3163 = vmax.f32 %v3099, 0.0
          %v3164 = vmax.f32 %v3100, 0.0
          %v3165 = vmax.f32 %v3101, 0.0
          %v3166 = vmax.f32 %v3102, 0.0
          %v3167 = vmax.f32 %v3103, 0.0
          %v3168 = vmax.f32 %v3104, 0.0
          %v3169 = vmax.f32 %v3105, 0.0
          %v3170 = vmax.f32 %v3106, 0.0
          %v3171 = vpack.c.bf16 %v3108, %v3107
          %v3172 = vpack.c.bf16 %v3110, %v3109
          %v3173 = vpack.c.bf16 %v3112, %v3111
          %v3174 = vpack.c.bf16 %v3114, %v3113
          %v3175 = vpack.c.bf16 %v3116, %v3115
          %v3176 = vpack.c.bf16 %v3118, %v3117
          %v3177 = vpack.c.bf16 %v3120, %v3119
          %v3178 = vpack.c.bf16 %v3122, %v3121
          %v3179 = vpack.c.bf16 %v3124, %v3123
          %v3180 = vpack.c.bf16 %v3126, %v3125
          %v3181 = vpack.c.bf16 %v3128, %v3127
          %v3182 = vpack.c.bf16 %v3130, %v3129
          %v3183 = vpack.c.bf16 %v3132, %v3131
          %v3184 = vpack.c.bf16 %v3134, %v3133
          %v3185 = vpack.c.bf16 %v3136, %v3135
          %v3186 = vpack.c.bf16 %v3138, %v3137
          %v3187 = vpack.c.bf16 %v3140, %v3139
          %v3188 = vpack.c.bf16 %v3142, %v3141
          %v3189 = vpack.c.bf16 %v3144, %v3143
          %v3190 = vpack.c.bf16 %v3146, %v3145
          %v3191 = vpack.c.bf16 %v3148, %v3147
          %v3192 = vpack.c.bf16 %v3150, %v3149
          %v3193 = vpack.c.bf16 %v3152, %v3151
          %v3194 = vpack.c.bf16 %v3154, %v3153
          %v3195 = vpack.c.bf16 %v3156, %v3155
          %v3196 = vpack.c.bf16 %v3158, %v3157
          %v3197 = vpack.c.bf16 %v3160, %v3159
          %v3198 = vpack.c.bf16 %v3162, %v3161
          %v3199 = vpack.c.bf16 %v3164, %v3163
          %v3200 = vpack.c.bf16 %v3166, %v3165
          %v3201 = vpack.c.bf16 %v3168, %v3167
          %v3202 = vpack.c.bf16 %v3170, %v3169
          %3203 = vmatprep.subr.bf16.mxu0 0
          %3204 = vmatpush1.bf16.msra.mxu0 1065369472
          %3205 = vmatprep.subr.bf16.mxu0 0
          %3206 = vmatpush1.bf16.msra.mxu0 1065369472
          %3207 = vmatprep.subr.bf16.mxu0 0
          %3208 = vmatpush1.bf16.msra.mxu0 1065369472
          %3209 = vmatprep.subr.bf16.mxu0 0
          %3210 = vmatpush1.bf16.msra.mxu0 1065369472
          %3211 = vmatprep.subr.bf16.mxu0 0
          %3212 = vmatpush1.bf16.msra.mxu0 1065369472
          %3213 = vmatprep.subr.bf16.mxu0 0
          %3214 = vmatpush1.bf16.msra.mxu0 1065369472
          %3215 = vmatprep.subr.bf16.mxu0 0
          %3216 = vmatpush1.bf16.msra.mxu0 1065369472
          %3217 = vmatprep.subr.bf16.mxu0 0
          %3218 = vmatpush1.bf16.msra.mxu0 1065369472
          %3219 = vmatprep.subr.bf16.mxu0 0
          %3220 = vmatpush1.bf16.msra.mxu0 0
          %3221 = vmatprep.subr.bf16.mxu0 0
          %3222 = vmatpush1.bf16.msra.mxu0 0
          %3223 = vmatprep.subr.bf16.mxu0 0
          %3224 = vmatpush1.bf16.msra.mxu0 0
          %3225 = vmatprep.subr.bf16.mxu0 0
          %3226 = vmatpush1.bf16.msra.mxu0 0
          %3227 = vmatprep.subr.bf16.mxu0 0
          %3228 = vmatpush1.bf16.msra.mxu0 0
          %3229 = vmatprep.subr.bf16.mxu0 0
          %3230 = vmatpush1.bf16.msra.mxu0 0
          %3231 = vmatprep.subr.bf16.mxu0 0
          %3232 = vmatpush1.bf16.msra.mxu0 0
          %3233 = vmatprep.subr.bf16.mxu0 0
          %3234 = vmatpush1.bf16.msra.mxu0 0
          %3235 = vmatprep.mubr.bf16.mxu0 0
          %3236 = vmatmul.mubr.bf16.gmra.mrb[0].mxu0 %v3171
          %v3237 = vpop.f32.mrb[0].mxu0
          %v3238 = vadd.f32 0.0, %v3237
          %v3239 = vpop.f32.mrb[0].mxu0
          %v3240 = vpop.f32.mrb[0].mxu0
          %v3241 = vadd.f32 0.0, %v3240
          %v3242 = vpop.f32.mrb[0].mxu0
          %3243 = vmatprep.mubr.bf16.mxu0 0
          %3244 = vmatmul.mubr.bf16.gmra.mrb[0].mxu0 %v3172
          %v3245 = vpop.f32.mrb[0].mxu0
          %v3246 = vadd.f32 0.0, %v3245
          %v3247 = vpop.f32.mrb[0].mxu0
          %v3248 = vpop.f32.mrb[0].mxu0
          %v3249 = vadd.f32 0.0, %v3248
          %v3250 = vpop.f32.mrb[0].mxu0
          %3251 = vmatprep.mubr.bf16.mxu0 0
          %3252 = vmatmul.mubr.bf16.gmra.mrb[0].mxu0 %v3173
          %v3253 = vpop.f32.mrb[0].mxu0
          %v3254 = vadd.f32 0.0, %v3253
          %v3255 = vpop.f32.mrb[0].mxu0
          %v3256 = vpop.f32.mrb[0].mxu0
          %v3257 = vadd.f32 0.0, %v3256
          %v3258 = vpop.f32.mrb[0].mxu0
          %3259 = vmatprep.mubr.bf16.mxu0 0
          %3260 = vmatmul.mubr.bf16.gmra.mrb[0].mxu0 %v3174
          %v3261 = vpop.f32.mrb[0].mxu0
          %v3262 = vadd.f32 0.0, %v3261
          %v3263 = vpop.f32.mrb[0].mxu0
          %v3264 = vpop.f32.mrb[0].mxu0
          %v3265 = vadd.f32 0.0, %v3264
          %v3266 = vpop.f32.mrb[0].mxu0
          %3267 = vmatprep.mubr.bf16.mxu0 0
          %3268 = vmatmul.mubr.bf16.gmra.mrb[0].mxu0 %v3175
          %v3269 = vpop.f32.mrb[0].mxu0
          %v3270 = vadd.f32 0.0, %v3269
          %v3271 = vpop.f32.mrb[0].mxu0
          %v3272 = vpop.f32.mrb[0].mxu0
          %v3273 = vadd.f32 0.0, %v3272
          %v3274 = vpop.f32.mrb[0].mxu0
          %3275 = vmatprep.mubr.bf16.mxu0 0
          %3276 = vmatmul.mubr.bf16.gmra.mrb[0].mxu0 %v3176
          %v3277 = vpop.f32.mrb[0].mxu0
          %v3278 = vadd.f32 0.0, %v3277
          %v3279 = vpop.f32.mrb[0].mxu0
          %v3280 = vpop.f32.mrb[0].mxu0
          %v3281 = vadd.f32 0.0, %v3280
          %v3282 = vpop.f32.mrb[0].mxu0
          %3283 = vmatprep.mubr.bf16.mxu0 0
          %3284 = vmatmul.mubr.bf16.gmra.mrb[0].mxu0 %v3177
          %v3285 = vpop.f32.mrb[0].mxu0
          %v3286 = vadd.f32 0.0, %v3285
          %v3287 = vpop.f32.mrb[0].mxu0
          %v3288 = vpop.f32.mrb[0].mxu0
          %v3289 = vadd.f32 0.0, %v3288
          %v3290 = vpop.f32.mrb[0].mxu0
          %3291 = vmatprep.mubr.bf16.mxu0 0
          %3292 = vmatmul.mubr.bf16.gmra.mrb[0].mxu0 %v3178
          %v3293 = vpop.f32.mrb[0].mxu0
          %v3294 = vadd.f32 0.0, %v3293
          %v3295 = vpop.f32.mrb[0].mxu0
          %v3296 = vpop.f32.mrb[0].mxu0
          %v3297 = vadd.f32 0.0, %v3296
          %v3298 = vpop.f32.mrb[0].mxu0
          %3299 = vmatprep.mubr.bf16.mxu0 0
          %3300 = vmatmul.mubr.bf16.gmra.mrb[0].mxu0 %v3179
          %v3301 = vpop.f32.mrb[0].mxu0
          %v3302 = vadd.f32 0.0, %v3301
          %v3303 = vpop.f32.mrb[0].mxu0
          %v3304 = vpop.f32.mrb[0].mxu0
          %v3305 = vadd.f32 0.0, %v3304
          %v3306 = vpop.f32.mrb[0].mxu0
          %3307 = vmatprep.mubr.bf16.mxu0 0
          %3308 = vmatmul.mubr.bf16.gmra.mrb[0].mxu0 %v3180
          %v3309 = vpop.f32.mrb[0].mxu0
          %v3310 = vadd.f32 0.0, %v3309
          %v3311 = vpop.f32.mrb[0].mxu0
          %v3312 = vpop.f32.mrb[0].mxu0
          %v3313 = vadd.f32 0.0, %v3312
          %v3314 = vpop.f32.mrb[0].mxu0
          %3315 = vmatprep.mubr.bf16.mxu0 0
          %3316 = vmatmul.mubr.bf16.gmra.mrb[0].mxu0 %v3181
          %v3317 = vpop.f32.mrb[0].mxu0
          %v3318 = vadd.f32 0.0, %v3317
          %v3319 = vpop.f32.mrb[0].mxu0
          %v3320 = vpop.f32.mrb[0].mxu0
          %v3321 = vadd.f32 0.0, %v3320
          %v3322 = vpop.f32.mrb[0].mxu0
          %3323 = vmatprep.mubr.bf16.mxu0 0
          %3324 = vmatmul.mubr.bf16.gmra.mrb[0].mxu0 %v3182
          %v3325 = vpop.f32.mrb[0].mxu0
          %v3326 = vadd.f32 0.0, %v3325
          %v3327 = vpop.f32.mrb[0].mxu0
          %v3328 = vpop.f32.mrb[0].mxu0
          %v3329 = vadd.f32 0.0, %v3328
          %v3330 = vpop.f32.mrb[0].mxu0
          %3331 = vmatprep.mubr.bf16.mxu0 0
          %3332 = vmatmul.mubr.bf16.gmra.mrb[0].mxu0 %v3183
          %v3333 = vpop.f32.mrb[0].mxu0
          %v3334 = vadd.f32 0.0, %v3333
          %v3335 = vpop.f32.mrb[0].mxu0
          %v3336 = vpop.f32.mrb[0].mxu0
          %v3337 = vadd.f32 0.0, %v3336
          %v3338 = vpop.f32.mrb[0].mxu0
          %3339 = vmatprep.mubr.bf16.mxu0 0
          %3340 = vmatmul.mubr.bf16.gmra.mrb[0].mxu0 %v3184
          %v3341 = vpop.f32.mrb[0].mxu0
          %v3342 = vadd.f32 0.0, %v3341
          %v3343 = vpop.f32.mrb[0].mxu0
          %v3344 = vpop.f32.mrb[0].mxu0
          %v3345 = vadd.f32 0.0, %v3344
          %v3346 = vpop.f32.mrb[0].mxu0
          %3347 = vmatprep.mubr.bf16.mxu0 0
          %3348 = vmatmul.mubr.bf16.gmra.mrb[0].mxu0 %v3185
          %v3349 = vpop.f32.mrb[0].mxu0
          %v3350 = vadd.f32 0.0, %v3349
          %v3351 = vpop.f32.mrb[0].mxu0
          %v3352 = vpop.f32.mrb[0].mxu0
          %v3353 = vadd.f32 0.0, %v3352
          %v3354 = vpop.f32.mrb[0].mxu0
          %3355 = vmatprep.mubr.bf16.mxu0 0
          %3356 = vmatmul.mubr.bf16.gmra.mrb[0].mxu0 %v3186
          %v3357 = vpop.f32.mrb[0].mxu0
          %v3358 = vadd.f32 0.0, %v3357
          %v3359 = vpop.f32.mrb[0].mxu0
          %v3360 = vpop.f32.mrb[0].mxu0
          %v3361 = vadd.f32 0.0, %v3360
          %v3362 = vpop.f32.mrb[0].mxu0
          %3363 = vmatprep.mubr.bf16.mxu0 0
          %3364 = vmatmul.mubr.bf16.gmra.mrb[0].mxu0 %v3187
          %v3365 = vpop.f32.mrb[0].mxu0
          %v3366 = vadd.f32 0.0, %v3365
          %v3367 = vpop.f32.mrb[0].mxu0
          %v3368 = vpop.f32.mrb[0].mxu0
          %v3369 = vadd.f32 0.0, %v3368
          %v3370 = vpop.f32.mrb[0].mxu0
          %3371 = vmatprep.mubr.bf16.mxu0 0
          %3372 = vmatmul.mubr.bf16.gmra.mrb[0].mxu0 %v3188
          %v3373 = vpop.f32.mrb[0].mxu0
          %v3374 = vadd.f32 0.0, %v3373
          %v3375 = vpop.f32.mrb[0].mxu0
          %v3376 = vpop.f32.mrb[0].mxu0
          %v3377 = vadd.f32 0.0, %v3376
          %v3378 = vpop.f32.mrb[0].mxu0
          %3379 = vmatprep.mubr.bf16.mxu0 0
          %3380 = vmatmul.mubr.bf16.gmra.mrb[0].mxu0 %v3189
          %v3381 = vpop.f32.mrb[0].mxu0
          %v3382 = vadd.f32 0.0, %v3381
          %v3383 = vpop.f32.mrb[0].mxu0
          %v3384 = vpop.f32.mrb[0].mxu0
          %v3385 = vadd.f32 0.0, %v3384
          %v3386 = vpop.f32.mrb[0].mxu0
          %3387 = vmatprep.mubr.bf16.mxu0 0
          %3388 = vmatmul.mubr.bf16.gmra.mrb[0].mxu0 %v3190
          %v3389 = vpop.f32.mrb[0].mxu0
          %v3390 = vadd.f32 0.0, %v3389
          %v3391 = vpop.f32.mrb[0].mxu0
          %v3392 = vpop.f32.mrb[0].mxu0
          %v3393 = vadd.f32 0.0, %v3392
          %v3394 = vpop.f32.mrb[0].mxu0
          %3395 = vmatprep.mubr.bf16.mxu0 0
          %3396 = vmatmul.mubr.bf16.gmra.mrb[0].mxu0 %v3191
          %v3397 = vpop.f32.mrb[0].mxu0
          %v3398 = vadd.f32 0.0, %v3397
          %v3399 = vpop.f32.mrb[0].mxu0
          %v3400 = vpop.f32.mrb[0].mxu0
          %v3401 = vadd.f32 0.0, %v3400
          %v3402 = vpop.f32.mrb[0].mxu0
          %3403 = vmatprep.mubr.bf16.mxu0 0
          %3404 = vmatmul.mubr.bf16.gmra.mrb[0].mxu0 %v3192
          %v3405 = vpop.f32.mrb[0].mxu0
          %v3406 = vadd.f32 0.0, %v3405
          %v3407 = vpop.f32.mrb[0].mxu0
          %v3408 = vpop.f32.mrb[0].mxu0
          %v3409 = vadd.f32 0.0, %v3408
          %v3410 = vpop.f32.mrb[0].mxu0
          %3411 = vmatprep.mubr.bf16.mxu0 0
          %3412 = vmatmul.mubr.bf16.gmra.mrb[0].mxu0 %v3193
          %v3413 = vpop.f32.mrb[0].mxu0
          %v3414 = vadd.f32 0.0, %v3413
          %v3415 = vpop.f32.mrb[0].mxu0
          %v3416 = vpop.f32.mrb[0].mxu0
          %v3417 = vadd.f32 0.0, %v3416
          %v3418 = vpop.f32.mrb[0].mxu0
          %3419 = vmatprep.mubr.bf16.mxu0 0
          %3420 = vmatmul.mubr.bf16.gmra.mrb[0].mxu0 %v3194
          %v3421 = vpop.f32.mrb[0].mxu0
          %v3422 = vadd.f32 0.0, %v3421
          %v3423 = vpop.f32.mrb[0].mxu0
          %v3424 = vpop.f32.mrb[0].mxu0
          %v3425 = vadd.f32 0.0, %v3424
          %v3426 = vpop.f32.mrb[0].mxu0
          %3427 = vmatprep.mubr.bf16.mxu0 0
          %3428 = vmatmul.mubr.bf16.gmra.mrb[0].mxu0 %v3195
          %v3429 = vpop.f32.mrb[0].mxu0
          %v3430 = vadd.f32 0.0, %v3429
          %v3431 = vpop.f32.mrb[0].mxu0
          %v3432 = vpop.f32.mrb[0].mxu0
          %v3433 = vadd.f32 0.0, %v3432
          %v3434 = vpop.f32.mrb[0].mxu0
          %3435 = vmatprep.mubr.bf16.mxu0 0
          %3436 = vmatmul.mubr.bf16.gmra.mrb[0].mxu0 %v3196
          %v3437 = vpop.f32.mrb[0].mxu0
          %v3438 = vadd.f32 0.0, %v3437
          %v3439 = vpop.f32.mrb[0].mxu0
          %v3440 = vpop.f32.mrb[0].mxu0
          %v3441 = vadd.f32 0.0, %v3440
          %v3442 = vpop.f32.mrb[0].mxu0
          %3443 = vmatprep.mubr.bf16.mxu0 0
          %3444 = vmatmul.mubr.bf16.gmra.mrb[0].mxu0 %v3197
          %v3445 = vpop.f32.mrb[0].mxu0
          %v3446 = vadd.f32 0.0, %v3445
          %v3447 = vpop.f32.mrb[0].mxu0
          %v3448 = vpop.f32.mrb[0].mxu0
          %v3449 = vadd.f32 0.0, %v3448
          %v3450 = vpop.f32.mrb[0].mxu0
          %3451 = vmatprep.mubr.bf16.mxu0 0
          %3452 = vmatmul.mubr.bf16.gmra.mrb[0].mxu0 %v3198
          %v3453 = vpop.f32.mrb[0].mxu0
          %v3454 = vadd.f32 0.0, %v3453
          %v3455 = vpop.f32.mrb[0].mxu0
          %v3456 = vpop.f32.mrb[0].mxu0
          %v3457 = vadd.f32 0.0, %v3456
          %v3458 = vpop.f32.mrb[0].mxu0
          %3459 = vmatprep.mubr.bf16.mxu0 0
          %3460 = vmatmul.mubr.bf16.gmra.mrb[0].mxu0 %v3199
          %v3461 = vpop.f32.mrb[0].mxu0
          %v3462 = vadd.f32 0.0, %v3461
          %v3463 = vpop.f32.mrb[0].mxu0
          %v3464 = vpop.f32.mrb[0].mxu0
          %v3465 = vadd.f32 0.0, %v3464
          %v3466 = vpop.f32.mrb[0].mxu0
          %3467 = vmatprep.mubr.bf16.mxu0 0
          %3468 = vmatmul.mubr.bf16.gmra.mrb[0].mxu0 %v3200
          %v3469 = vpop.f32.mrb[0].mxu0
          %v3470 = vadd.f32 0.0, %v3469
          %v3471 = vpop.f32.mrb[0].mxu0
          %v3472 = vpop.f32.mrb[0].mxu0
          %v3473 = vadd.f32 0.0, %v3472
          %v3474 = vpop.f32.mrb[0].mxu0
          %3475 = vmatprep.mubr.bf16.mxu0 0
          %3476 = vmatmul.mubr.bf16.gmra.mrb[0].mxu0 %v3201
          %v3477 = vpop.f32.mrb[0].mxu0
          %v3478 = vadd.f32 0.0, %v3477
          %v3479 = vpop.f32.mrb[0].mxu0
          %v3480 = vpop.f32.mrb[0].mxu0
          %v3481 = vadd.f32 0.0, %v3480
          %v3482 = vpop.f32.mrb[0].mxu0
          %3483 = vmatprep.mubr.bf16.mxu0 0
          %3484 = vmatmul.mubr.bf16.gmra.mrb[0].mxu0 %v3202
          %v3485 = vpop.f32.mrb[0].mxu0
          %v3486 = vadd.f32 0.0, %v3485
          %v3487 = vpop.f32.mrb[0].mxu0
          %v3488 = vpop.f32.mrb[0].mxu0
          %v3489 = vadd.f32 0.0, %v3488
          %v3490 = vpop.f32.mrb[0].mxu0
          %3491 = vdwg.mxu0
          %vm3492 = vcmp.ge.f32.partialorder %v3238, 1.0
          %vm3493 = vcmp.ge.f32.partialorder %v3241, 1.0
          %vm3494 = vcmp.ge.f32.partialorder %v3246, 1.0
          %vm3495 = vcmp.ge.f32.partialorder %v3249, 1.0
          %vm3496 = vcmp.ge.f32.partialorder %v3254, 1.0
          %vm3497 = vcmp.ge.f32.partialorder %v3257, 1.0
          %vm3498 = vcmp.ge.f32.partialorder %v3262, 1.0
          %vm3499 = vcmp.ge.f32.partialorder %v3265, 1.0
          %vm3500 = vcmp.ge.f32.partialorder %v3270, 1.0
          %vm3501 = vcmp.ge.f32.partialorder %v3273, 1.0
          %vm3502 = vcmp.ge.f32.partialorder %v3278, 1.0
          %vm3503 = vcmp.ge.f32.partialorder %v3281, 1.0
          %vm3504 = vcmp.ge.f32.partialorder %v3286, 1.0
          %vm3505 = vcmp.ge.f32.partialorder %v3289, 1.0
          %vm3506 = vcmp.ge.f32.partialorder %v3294, 1.0
          %vm3507 = vcmp.ge.f32.partialorder %v3297, 1.0
          %vm3508 = vcmp.ge.f32.partialorder %v3302, 1.0
          %vm3509 = vcmp.ge.f32.partialorder %v3305, 1.0
          %vm3510 = vcmp.ge.f32.partialorder %v3310, 1.0
          %vm3511 = vcmp.ge.f32.partialorder %v3313, 1.0
          %vm3512 = vcmp.ge.f32.partialorder %v3318, 1.0
          %vm3513 = vcmp.ge.f32.partialorder %v3321, 1.0
          %vm3514 = vcmp.ge.f32.partialorder %v3326, 1.0
          %vm3515 = vcmp.ge.f32.partialorder %v3329, 1.0
          %vm3516 = vcmp.ge.f32.partialorder %v3334, 1.0
          %vm3517 = vcmp.ge.f32.partialorder %v3337, 1.0
          %vm3518 = vcmp.ge.f32.partialorder %v3342, 1.0
          %vm3519 = vcmp.ge.f32.partialorder %v3345, 1.0
          %vm3520 = vcmp.ge.f32.partialorder %v3350, 1.0
          %vm3521 = vcmp.ge.f32.partialorder %v3353, 1.0
          %vm3522 = vcmp.ge.f32.partialorder %v3358, 1.0
          %vm3523 = vcmp.ge.f32.partialorder %v3361, 1.0
          %vm3524 = vcmp.ge.f32.partialorder %v3366, 1.0
          %vm3525 = vcmp.ge.f32.partialorder %v3369, 1.0
          %vm3526 = vcmp.ge.f32.partialorder %v3374, 1.0
          %vm3527 = vcmp.ge.f32.partialorder %v3377, 1.0
          %vm3528 = vcmp.ge.f32.partialorder %v3382, 1.0
          %vm3529 = vcmp.ge.f32.partialorder %v3385, 1.0
          %vm3530 = vcmp.ge.f32.partialorder %v3390, 1.0
          %vm3531 = vcmp.ge.f32.partialorder %v3393, 1.0
          %vm3532 = vcmp.ge.f32.partialorder %v3398, 1.0
          %vm3533 = vcmp.ge.f32.partialorder %v3401, 1.0
          %vm3534 = vcmp.ge.f32.partialorder %v3406, 1.0
          %vm3535 = vcmp.ge.f32.partialorder %v3409, 1.0
          %vm3536 = vcmp.ge.f32.partialorder %v3414, 1.0
          %vm3537 = vcmp.ge.f32.partialorder %v3417, 1.0
          %vm3538 = vcmp.ge.f32.partialorder %v3422, 1.0
          %vm3539 = vcmp.ge.f32.partialorder %v3425, 1.0
          %vm3540 = vcmp.ge.f32.partialorder %v3430, 1.0
          %vm3541 = vcmp.ge.f32.partialorder %v3433, 1.0
          %vm3542 = vcmp.ge.f32.partialorder %v3438, 1.0
          %vm3543 = vcmp.ge.f32.partialorder %v3441, 1.0
          %vm3544 = vcmp.ge.f32.partialorder %v3446, 1.0
          %vm3545 = vcmp.ge.f32.partialorder %v3449, 1.0
          %vm3546 = vcmp.ge.f32.partialorder %v3454, 1.0
          %vm3547 = vcmp.ge.f32.partialorder %v3457, 1.0
          %vm3548 = vcmp.ge.f32.partialorder %v3462, 1.0
          %vm3549 = vcmp.ge.f32.partialorder %v3465, 1.0
          %vm3550 = vcmp.ge.f32.partialorder %v3470, 1.0
          %vm3551 = vcmp.ge.f32.partialorder %v3473, 1.0
          %vm3552 = vcmp.ge.f32.partialorder %v3478, 1.0
          %vm3553 = vcmp.ge.f32.partialorder %v3481, 1.0
          %vm3554 = vcmp.ge.f32.partialorder %v3486, 1.0
          %vm3555 = vcmp.ge.f32.partialorder %v3489, 1.0
          %v3556 = vsel %vm3492, %v2659, %v2467
          %v3557 = vsel %vm3493, %v2660, %v2468
          %v3558 = vsel %vm3494, %v2661, %v2469
          %v3559 = vsel %vm3495, %v2662, %v2470
          %v3560 = vsel %vm3496, %v2663, %v2471
          %v3561 = vsel %vm3497, %v2664, %v2472
          %v3562 = vsel %vm3498, %v2665, %v2473
          %v3563 = vsel %vm3499, %v2666, %v2474
          %v3564 = vsel %vm3500, %v2667, %v2475
          %v3565 = vsel %vm3501, %v2668, %v2476
          %v3566 = vsel %vm3502, %v2669, %v2477
          %v3567 = vsel %vm3503, %v2670, %v2478
          %v3568 = vsel %vm3504, %v2671, %v2479
          %v3569 = vsel %vm3505, %v2672, %v2480
          %v3570 = vsel %vm3506, %v2673, %v2481
          %v3571 = vsel %vm3507, %v2674, %v2482
          %v3572 = vsel %vm3508, %v2675, %v2483
          %v3573 = vsel %vm3509, %v2676, %v2484
          %v3574 = vsel %vm3510, %v2677, %v2485
          %v3575 = vsel %vm3511, %v2678, %v2486
          %v3576 = vsel %vm3512, %v2679, %v2487
          %v3577 = vsel %vm3513, %v2680, %v2488
          %v3578 = vsel %vm3514, %v2681, %v2489
          %v3579 = vsel %vm3515, %v2682, %v2490
          %v3580 = vsel %vm3516, %v2683, %v2491
          %v3581 = vsel %vm3517, %v2684, %v2492
          %v3582 = vsel %vm3518, %v2685, %v2493
          %v3583 = vsel %vm3519, %v2686, %v2494
          %v3584 = vsel %vm3520, %v2687, %v2495
          %v3585 = vsel %vm3521, %v2688, %v2496
          %v3586 = vsel %vm3522, %v2689, %v2497
          %v3587 = vsel %vm3523, %v2690, %v2498
          %v3588 = vsel %vm3524, %v2691, %v2499
          %v3589 = vsel %vm3525, %v2692, %v2500
          %v3590 = vsel %vm3526, %v2693, %v2501
          %v3591 = vsel %vm3527, %v2694, %v2502
          %v3592 = vsel %vm3528, %v2695, %v2503
          %v3593 = vsel %vm3529, %v2696, %v2504
          %v3594 = vsel %vm3530, %v2697, %v2505
          %v3595 = vsel %vm3531, %v2698, %v2506
          %v3596 = vsel %vm3532, %v2699, %v2507
          %v3597 = vsel %vm3533, %v2700, %v2508
          %v3598 = vsel %vm3534, %v2701, %v2509
          %v3599 = vsel %vm3535, %v2702, %v2510
          %v3600 = vsel %vm3536, %v2703, %v2511
          %v3601 = vsel %vm3537, %v2704, %v2512
          %v3602 = vsel %vm3538, %v2705, %v2513
          %v3603 = vsel %vm3539, %v2706, %v2514
          %v3604 = vsel %vm3540, %v2707, %v2515
          %v3605 = vsel %vm3541, %v2708, %v2516
          %v3606 = vsel %vm3542, %v2709, %v2517
          %v3607 = vsel %vm3543, %v2710, %v2518
          %v3608 = vsel %vm3544, %v2711, %v2519
          %v3609 = vsel %vm3545, %v2712, %v2520
          %v3610 = vsel %vm3546, %v2713, %v2521
          %v3611 = vsel %vm3547, %v2714, %v2522
          %v3612 = vsel %vm3548, %v2715, %v2523
          %v3613 = vsel %vm3549, %v2716, %v2524
          %v3614 = vsel %vm3550, %v2717, %v2525
          %v3615 = vsel %vm3551, %v2718, %v2526
          %v3616 = vsel %vm3552, %v2719, %v2527
          %v3617 = vsel %vm3553, %v2720, %v2528
          %v3618 = vsel %vm3554, %v2721, %v2529
          %v3619 = vsel %vm3555, %v2722, %v2530
          %v3620 = vsel %vm3492, %v2531, %v2659
          %v3621 = vsel %vm3493, %v2532, %v2660
          %v3622 = vsel %vm3494, %v2533, %v2661
          %v3623 = vsel %vm3495, %v2534, %v2662
          %v3624 = vsel %vm3496, %v2535, %v2663
          %v3625 = vsel %vm3497, %v2536, %v2664
          %v3626 = vsel %vm3498, %v2537, %v2665
          %v3627 = vsel %vm3499, %v2538, %v2666
          %v3628 = vsel %vm3500, %v2539, %v2667
          %v3629 = vsel %vm3501, %v2540, %v2668
          %v3630 = vsel %vm3502, %v2541, %v2669
          %v3631 = vsel %vm3503, %v2542, %v2670
          %v3632 = vsel %vm3504, %v2543, %v2671
          %v3633 = vsel %vm3505, %v2544, %v2672
          %v3634 = vsel %vm3506, %v2545, %v2673
          %v3635 = vsel %vm3507, %v2546, %v2674
          %v3636 = vsel %vm3508, %v2547, %v2675
          %v3637 = vsel %vm3509, %v2548, %v2676
          %v3638 = vsel %vm3510, %v2549, %v2677
          %v3639 = vsel %vm3511, %v2550, %v2678
          %v3640 = vsel %vm3512, %v2551, %v2679
          %v3641 = vsel %vm3513, %v2552, %v2680
          %v3642 = vsel %vm3514, %v2553, %v2681
          %v3643 = vsel %vm3515, %v2554, %v2682
          %v3644 = vsel %vm3516, %v2555, %v2683
          %v3645 = vsel %vm3517, %v2556, %v2684
          %v3646 = vsel %vm3518, %v2557, %v2685
          %v3647 = vsel %vm3519, %v2558, %v2686
          %v3648 = vsel %vm3520, %v2559, %v2687
          %v3649 = vsel %vm3521, %v2560, %v2688
          %v3650 = vsel %vm3522, %v2561, %v2689
          %v3651 = vsel %vm3523, %v2562, %v2690
          %v3652 = vsel %vm3524, %v2563, %v2691
          %v3653 = vsel %vm3525, %v2564, %v2692
          %v3654 = vsel %vm3526, %v2565, %v2693
          %v3655 = vsel %vm3527, %v2566, %v2694
          %v3656 = vsel %vm3528, %v2567, %v2695
          %v3657 = vsel %vm3529, %v2568, %v2696
          %v3658 = vsel %vm3530, %v2569, %v2697
          %v3659 = vsel %vm3531, %v2570, %v2698
          %v3660 = vsel %vm3532, %v2571, %v2699
          %v3661 = vsel %vm3533, %v2572, %v2700
          %v3662 = vsel %vm3534, %v2573, %v2701
          %v3663 = vsel %vm3535, %v2574, %v2702
          %v3664 = vsel %vm3536, %v2575, %v2703
          %v3665 = vsel %vm3537, %v2576, %v2704
          %v3666 = vsel %vm3538, %v2577, %v2705
          %v3667 = vsel %vm3539, %v2578, %v2706
          %v3668 = vsel %vm3540, %v2579, %v2707
          %v3669 = vsel %vm3541, %v2580, %v2708
          %v3670 = vsel %vm3542, %v2581, %v2709
          %v3671 = vsel %vm3543, %v2582, %v2710
          %v3672 = vsel %vm3544, %v2583, %v2711
          %v3673 = vsel %vm3545, %v2584, %v2712
          %v3674 = vsel %vm3546, %v2585, %v2713
          %v3675 = vsel %vm3547, %v2586, %v2714
          %v3676 = vsel %vm3548, %v2587, %v2715
          %v3677 = vsel %vm3549, %v2588, %v2716
          %v3678 = vsel %vm3550, %v2589, %v2717
          %v3679 = vsel %vm3551, %v2590, %v2718
          %v3680 = vsel %vm3552, %v2591, %v2719
          %v3681 = vsel %vm3553, %v2592, %v2720
          %v3682 = vsel %vm3554, %v2593, %v2721
          %v3683 = vsel %vm3555, %v2594, %v2722
        $region101: #{tpu_custom_call.1} parent=71 // loop_footer
          %s2466 = sadd.s32 1, %s2462
        $region102: #{tpu_custom_call.1} parent=71 // loop_footer_branch
          %2461 = sbr.rel target = $region98
        $region103: #{tpu_custom_call.1} parent=71 // loop_exit
          _
        %v3684 = vadd.f32 %v2467, %v2531
        %v3685 = vadd.f32 %v2468, %v2532
        %v3686 = vadd.f32 %v2469, %v2533
        %v3687 = vadd.f32 %v2470, %v2534
        %v3688 = vadd.f32 %v2471, %v2535
        %v3689 = vadd.f32 %v2472, %v2536
        %v3690 = vadd.f32 %v2473, %v2537
        %v3691 = vadd.f32 %v2474, %v2538
        %v3692 = vadd.f32 %v2475, %v2539
        %v3693 = vadd.f32 %v2476, %v2540
        %v3694 = vadd.f32 %v2477, %v2541
        %v3695 = vadd.f32 %v2478, %v2542
        %v3696 = vadd.f32 %v2479, %v2543
        %v3697 = vadd.f32 %v2480, %v2544
        %v3698 = vadd.f32 %v2481, %v2545
        %v3699 = vadd.f32 %v2482, %v2546
        %v3700 = vadd.f32 %v2483, %v2547
        %v3701 = vadd.f32 %v2484, %v2548
        %v3702 = vadd.f32 %v2485, %v2549
        %v3703 = vadd.f32 %v2486, %v2550
        %v3704 = vadd.f32 %v2487, %v2551
        %v3705 = vadd.f32 %v2488, %v2552
        %v3706 = vadd.f32 %v2489, %v2553
        %v3707 = vadd.f32 %v2490, %v2554
        %v3708 = vadd.f32 %v2491, %v2555
        %v3709 = vadd.f32 %v2492, %v2556
        %v3710 = vadd.f32 %v2493, %v2557
        %v3711 = vadd.f32 %v2494, %v2558
        %v3712 = vadd.f32 %v2495, %v2559
        %v3713 = vadd.f32 %v2496, %v2560
        %v3714 = vadd.f32 %v2497, %v2561
        %v3715 = vadd.f32 %v2498, %v2562
        %v3716 = vadd.f32 %v2499, %v2563
        %v3717 = vadd.f32 %v2500, %v2564
        %v3718 = vadd.f32 %v2501, %v2565
        %v3719 = vadd.f32 %v2502, %v2566
        %v3720 = vadd.f32 %v2503, %v2567
        %v3721 = vadd.f32 %v2504, %v2568
        %v3722 = vadd.f32 %v2505, %v2569
        %v3723 = vadd.f32 %v2506, %v2570
        %v3724 = vadd.f32 %v2507, %v2571
        %v3725 = vadd.f32 %v2508, %v2572
        %v3726 = vadd.f32 %v2509, %v2573
        %v3727 = vadd.f32 %v2510, %v2574
        %v3728 = vadd.f32 %v2511, %v2575
        %v3729 = vadd.f32 %v2512, %v2576
        %v3730 = vadd.f32 %v2513, %v2577
        %v3731 = vadd.f32 %v2514, %v2578
        %v3732 = vadd.f32 %v2515, %v2579
        %v3733 = vadd.f32 %v2516, %v2580
        %v3734 = vadd.f32 %v2517, %v2581
        %v3735 = vadd.f32 %v2518, %v2582
        %v3736 = vadd.f32 %v2519, %v2583
        %v3737 = vadd.f32 %v2520, %v2584
        %v3738 = vadd.f32 %v2521, %v2585
        %v3739 = vadd.f32 %v2522, %v2586
        %v3740 = vadd.f32 %v2523, %v2587
        %v3741 = vadd.f32 %v2524, %v2588
        %v3742 = vadd.f32 %v2525, %v2589
        %v3743 = vadd.f32 %v2526, %v2590
        %v3744 = vadd.f32 %v2527, %v2591
        %v3745 = vadd.f32 %v2528, %v2592
        %v3746 = vadd.f32 %v2529, %v2593
        %v3747 = vadd.f32 %v2530, %v2594
        %v3748 = vmul.f32 %v3684, 0.5
        %v3749 = vmul.f32 %v3685, 0.5
        %v3750 = vmul.f32 %v3686, 0.5
        %v3751 = vmul.f32 %v3687, 0.5
        %v3752 = vmul.f32 %v3688, 0.5
        %v3753 = vmul.f32 %v3689, 0.5
        %v3754 = vmul.f32 %v3690, 0.5
        %v3755 = vmul.f32 %v3691, 0.5
        %v3756 = vmul.f32 %v3692, 0.5
        %v3757 = vmul.f32 %v3693, 0.5
        %v3758 = vmul.f32 %v3694, 0.5
        %v3759 = vmul.f32 %v3695, 0.5
        %v3760 = vmul.f32 %v3696, 0.5
        %v3761 = vmul.f32 %v3697, 0.5
        %v3762 = vmul.f32 %v3698, 0.5
        %v3763 = vmul.f32 %v3699, 0.5
        %v3764 = vmul.f32 %v3700, 0.5
        %v3765 = vmul.f32 %v3701, 0.5
        %v3766 = vmul.f32 %v3702, 0.5
        %v3767 = vmul.f32 %v3703, 0.5
        %v3768 = vmul.f32 %v3704, 0.5
        %v3769 = vmul.f32 %v3705, 0.5
        %v3770 = vmul.f32 %v3706, 0.5
        %v3771 = vmul.f32 %v3707, 0.5
        %v3772 = vmul.f32 %v3708, 0.5
        %v3773 = vmul.f32 %v3709, 0.5
        %v3774 = vmul.f32 %v3710, 0.5
        %v3775 = vmul.f32 %v3711, 0.5
        %v3776 = vmul.f32 %v3712, 0.5
        %v3777 = vmul.f32 %v3713, 0.5
        %v3778 = vmul.f32 %v3714, 0.5
        %v3779 = vmul.f32 %v3715, 0.5
        %v3780 = vmul.f32 %v3716, 0.5
        %v3781 = vmul.f32 %v3717, 0.5
        %v3782 = vmul.f32 %v3718, 0.5
        %v3783 = vmul.f32 %v3719, 0.5
        %v3784 = vmul.f32 %v3720, 0.5
        %v3785 = vmul.f32 %v3721, 0.5
        %v3786 = vmul.f32 %v3722, 0.5
        %v3787 = vmul.f32 %v3723, 0.5
        %v3788 = vmul.f32 %v3724, 0.5
        %v3789 = vmul.f32 %v3725, 0.5
        %v3790 = vmul.f32 %v3726, 0.5
        %v3791 = vmul.f32 %v3727, 0.5
        %v3792 = vmul.f32 %v3728, 0.5
        %v3793 = vmul.f32 %v3729, 0.5
        %v3794 = vmul.f32 %v3730, 0.5
        %v3795 = vmul.f32 %v3731, 0.5
        %v3796 = vmul.f32 %v3732, 0.5
        %v3797 = vmul.f32 %v3733, 0.5
        %v3798 = vmul.f32 %v3734, 0.5
        %v3799 = vmul.f32 %v3735, 0.5
        %v3800 = vmul.f32 %v3736, 0.5
        %v3801 = vmul.f32 %v3737, 0.5
        %v3802 = vmul.f32 %v3738, 0.5
        %v3803 = vmul.f32 %v3739, 0.5
        %v3804 = vmul.f32 %v3740, 0.5
        %v3805 = vmul.f32 %v3741, 0.5
        %v3806 = vmul.f32 %v3742, 0.5
        %v3807 = vmul.f32 %v3743, 0.5
        %v3808 = vmul.f32 %v3744, 0.5
        %v3809 = vmul.f32 %v3745, 0.5
        %v3810 = vmul.f32 %v3746, 0.5
        %v3811 = vmul.f32 %v3747, 0.5
        loop: start=0, step=1, limit=3
        $region104: #{tpu_custom_call.1} parent=71 // loop_pre_header
          _
        $region105: #{tpu_custom_call.1} parent=71 // loop_header
          %s3813 = sphi 0, %s3817
          %p3814 = scmp.ge.s32.totalorder %s3813, 3
          %v3818 = vphi %v3748, %v4843
          %v3819 = vphi %v3749, %v4845
          %v3820 = vphi %v3750, %v4847
          %v3821 = vphi %v3751, %v4849
          %v3822 = vphi %v3752, %v4851
          %v3823 = vphi %v3753, %v4853
          %v3824 = vphi %v3754, %v4855
          %v3825 = vphi %v3755, %v4857
          %v3826 = vphi %v3756, %v4859
          %v3827 = vphi %v3757, %v4861
          %v3828 = vphi %v3758, %v4863
          %v3829 = vphi %v3759, %v4865
          %v3830 = vphi %v3760, %v4867
          %v3831 = vphi %v3761, %v4869
          %v3832 = vphi %v3762, %v4871
          %v3833 = vphi %v3763, %v4873
          %v3834 = vphi %v3764, %v4875
          %v3835 = vphi %v3765, %v4877
          %v3836 = vphi %v3766, %v4879
          %v3837 = vphi %v3767, %v4881
          %v3838 = vphi %v3768, %v4883
          %v3839 = vphi %v3769, %v4885
          %v3840 = vphi %v3770, %v4887
          %v3841 = vphi %v3771, %v4889
          %v3842 = vphi %v3772, %v4891
          %v3843 = vphi %v3773, %v4893
          %v3844 = vphi %v3774, %v4895
          %v3845 = vphi %v3775, %v4897
          %v3846 = vphi %v3776, %v4899
          %v3847 = vphi %v3777, %v4901
          %v3848 = vphi %v3778, %v4903
          %v3849 = vphi %v3779, %v4905
          %v3850 = vphi %v3780, %v4907
          %v3851 = vphi %v3781, %v4909
          %v3852 = vphi %v3782, %v4911
          %v3853 = vphi %v3783, %v4913
          %v3854 = vphi %v3784, %v4915
          %v3855 = vphi %v3785, %v4917
          %v3856 = vphi %v3786, %v4919
          %v3857 = vphi %v3787, %v4921
          %v3858 = vphi %v3788, %v4923
          %v3859 = vphi %v3789, %v4925
          %v3860 = vphi %v3790, %v4927
          %v3861 = vphi %v3791, %v4929
          %v3862 = vphi %v3792, %v4931
          %v3863 = vphi %v3793, %v4933
          %v3864 = vphi %v3794, %v4935
          %v3865 = vphi %v3795, %v4937
          %v3866 = vphi %v3796, %v4939
          %v3867 = vphi %v3797, %v4941
          %v3868 = vphi %v3798, %v4943
          %v3869 = vphi %v3799, %v4945
          %v3870 = vphi %v3800, %v4947
          %v3871 = vphi %v3801, %v4949
          %v3872 = vphi %v3802, %v4951
          %v3873 = vphi %v3803, %v4953
          %v3874 = vphi %v3804, %v4955
          %v3875 = vphi %v3805, %v4957
          %v3876 = vphi %v3806, %v4959
          %v3877 = vphi %v3807, %v4961
          %v3878 = vphi %v3808, %v4963
          %v3879 = vphi %v3809, %v4965
          %v3880 = vphi %v3810, %v4967
          %v3881 = vphi %v3811, %v4969
        $region106: #{tpu_custom_call.1} parent=71 // loop_header_branch
          %3816 = sbr.rel (%p3814) target = $region110
        $region107: #{tpu_custom_call.1} parent=71 // loop_body
          %3883 = vset.pattern.permute.xlu0 0
          %3884 = vperm.xlu0 %3883, %v3818
          %v3885 = vpop.permute.xlu0 %3884
          %3888 = vset.pattern.permute.xlu0 0
          %3889 = vperm.xlu0 %3888, %v3819
          %v3890 = vpop.permute.xlu0 %3889
          %3893 = vset.pattern.permute.xlu0 0
          %3894 = vperm.xlu0 %3893, %v3820
          %v3895 = vpop.permute.xlu0 %3894
          %3898 = vset.pattern.permute.xlu0 0
          %3899 = vperm.xlu0 %3898, %v3821
          %v3900 = vpop.permute.xlu0 %3899
          %3903 = vset.pattern.permute.xlu0 0
          %3904 = vperm.xlu0 %3903, %v3822
          %v3905 = vpop.permute.xlu0 %3904
          %3908 = vset.pattern.permute.xlu0 0
          %3909 = vperm.xlu0 %3908, %v3823
          %v3910 = vpop.permute.xlu0 %3909
          %3913 = vset.pattern.permute.xlu0 0
          %3914 = vperm.xlu0 %3913, %v3824
          %v3915 = vpop.permute.xlu0 %3914
          %3918 = vset.pattern.permute.xlu0 0
          %3919 = vperm.xlu0 %3918, %v3825
          %v3920 = vpop.permute.xlu0 %3919
          %3923 = vset.pattern.permute.xlu0 0
          %3924 = vperm.xlu0 %3923, %v3826
          %v3925 = vpop.permute.xlu0 %3924
          %3928 = vset.pattern.permute.xlu0 0
          %3929 = vperm.xlu0 %3928, %v3827
          %v3930 = vpop.permute.xlu0 %3929
          %3933 = vset.pattern.permute.xlu0 0
          %3934 = vperm.xlu0 %3933, %v3828
          %v3935 = vpop.permute.xlu0 %3934
          %3938 = vset.pattern.permute.xlu0 0
          %3939 = vperm.xlu0 %3938, %v3829
          %v3940 = vpop.permute.xlu0 %3939
          %3943 = vset.pattern.permute.xlu0 0
          %3944 = vperm.xlu0 %3943, %v3830
          %v3945 = vpop.permute.xlu0 %3944
          %3948 = vset.pattern.permute.xlu0 0
          %3949 = vperm.xlu0 %3948, %v3831
          %v3950 = vpop.permute.xlu0 %3949
          %3953 = vset.pattern.permute.xlu0 0
          %3954 = vperm.xlu0 %3953, %v3832
          %v3955 = vpop.permute.xlu0 %3954
          %3958 = vset.pattern.permute.xlu0 0
          %3959 = vperm.xlu0 %3958, %v3833
          %v3960 = vpop.permute.xlu0 %3959
          %3963 = vset.pattern.permute.xlu0 0
          %3964 = vperm.xlu0 %3963, %v3834
          %v3965 = vpop.permute.xlu0 %3964
          %3968 = vset.pattern.permute.xlu0 0
          %3969 = vperm.xlu0 %3968, %v3835
          %v3970 = vpop.permute.xlu0 %3969
          %3973 = vset.pattern.permute.xlu0 0
          %3974 = vperm.xlu0 %3973, %v3836
          %v3975 = vpop.permute.xlu0 %3974
          %3978 = vset.pattern.permute.xlu0 0
          %3979 = vperm.xlu0 %3978, %v3837
          %v3980 = vpop.permute.xlu0 %3979
          %3983 = vset.pattern.permute.xlu0 0
          %3984 = vperm.xlu0 %3983, %v3838
          %v3985 = vpop.permute.xlu0 %3984
          %3988 = vset.pattern.permute.xlu0 0
          %3989 = vperm.xlu0 %3988, %v3839
          %v3990 = vpop.permute.xlu0 %3989
          %3993 = vset.pattern.permute.xlu0 0
          %3994 = vperm.xlu0 %3993, %v3840
          %v3995 = vpop.permute.xlu0 %3994
          %3998 = vset.pattern.permute.xlu0 0
          %3999 = vperm.xlu0 %3998, %v3841
          %v4000 = vpop.permute.xlu0 %3999
          %4003 = vset.pattern.permute.xlu0 0
          %4004 = vperm.xlu0 %4003, %v3842
          %v4005 = vpop.permute.xlu0 %4004
          %4008 = vset.pattern.permute.xlu0 0
          %4009 = vperm.xlu0 %4008, %v3843
          %v4010 = vpop.permute.xlu0 %4009
          %4013 = vset.pattern.permute.xlu0 0
          %4014 = vperm.xlu0 %4013, %v3844
          %v4015 = vpop.permute.xlu0 %4014
          %4018 = vset.pattern.permute.xlu0 0
          %4019 = vperm.xlu0 %4018, %v3845
          %v4020 = vpop.permute.xlu0 %4019
          %4023 = vset.pattern.permute.xlu0 0
          %4024 = vperm.xlu0 %4023, %v3846
          %v4025 = vpop.permute.xlu0 %4024
          %4028 = vset.pattern.permute.xlu0 0
          %4029 = vperm.xlu0 %4028, %v3847
          %v4030 = vpop.permute.xlu0 %4029
          %4033 = vset.pattern.permute.xlu0 0
          %4034 = vperm.xlu0 %4033, %v3848
          %v4035 = vpop.permute.xlu0 %4034
          %4038 = vset.pattern.permute.xlu0 0
          %4039 = vperm.xlu0 %4038, %v3849
          %v4040 = vpop.permute.xlu0 %4039
          %4043 = vset.pattern.permute.xlu0 0
          %4044 = vperm.xlu0 %4043, %v3850
          %v4045 = vpop.permute.xlu0 %4044
          %4048 = vset.pattern.permute.xlu0 0
          %4049 = vperm.xlu0 %4048, %v3851
          %v4050 = vpop.permute.xlu0 %4049
          %4053 = vset.pattern.permute.xlu0 0
          %4054 = vperm.xlu0 %4053, %v3852
          %v4055 = vpop.permute.xlu0 %4054
          %4058 = vset.pattern.permute.xlu0 0
          %4059 = vperm.xlu0 %4058, %v3853
          %v4060 = vpop.permute.xlu0 %4059
          %4063 = vset.pattern.permute.xlu0 0
          %4064 = vperm.xlu0 %4063, %v3854
          %v4065 = vpop.permute.xlu0 %4064
          %4068 = vset.pattern.permute.xlu0 0
          %4069 = vperm.xlu0 %4068, %v3855
          %v4070 = vpop.permute.xlu0 %4069
          %4073 = vset.pattern.permute.xlu0 0
          %4074 = vperm.xlu0 %4073, %v3856
          %v4075 = vpop.permute.xlu0 %4074
          %4078 = vset.pattern.permute.xlu0 0
          %4079 = vperm.xlu0 %4078, %v3857
          %v4080 = vpop.permute.xlu0 %4079
          %4083 = vset.pattern.permute.xlu0 0
          %4084 = vperm.xlu0 %4083, %v3858
          %v4085 = vpop.permute.xlu0 %4084
          %4088 = vset.pattern.permute.xlu0 0
          %4089 = vperm.xlu0 %4088, %v3859
          %v4090 = vpop.permute.xlu0 %4089
          %4093 = vset.pattern.permute.xlu0 0
          %4094 = vperm.xlu0 %4093, %v3860
          %v4095 = vpop.permute.xlu0 %4094
          %4098 = vset.pattern.permute.xlu0 0
          %4099 = vperm.xlu0 %4098, %v3861
          %v4100 = vpop.permute.xlu0 %4099
          %4103 = vset.pattern.permute.xlu0 0
          %4104 = vperm.xlu0 %4103, %v3862
          %v4105 = vpop.permute.xlu0 %4104
          %4108 = vset.pattern.permute.xlu0 0
          %4109 = vperm.xlu0 %4108, %v3863
          %v4110 = vpop.permute.xlu0 %4109
          %4113 = vset.pattern.permute.xlu0 0
          %4114 = vperm.xlu0 %4113, %v3864
          %v4115 = vpop.permute.xlu0 %4114
          %4118 = vset.pattern.permute.xlu0 0
          %4119 = vperm.xlu0 %4118, %v3865
          %v4120 = vpop.permute.xlu0 %4119
          %4123 = vset.pattern.permute.xlu0 0
          %4124 = vperm.xlu0 %4123, %v3866
          %v4125 = vpop.permute.xlu0 %4124
          %4128 = vset.pattern.permute.xlu0 0
          %4129 = vperm.xlu0 %4128, %v3867
          %v4130 = vpop.permute.xlu0 %4129
          %4133 = vset.pattern.permute.xlu0 0
          %4134 = vperm.xlu0 %4133, %v3868
          %v4135 = vpop.permute.xlu0 %4134
          %4138 = vset.pattern.permute.xlu0 0
          %4139 = vperm.xlu0 %4138, %v3869
          %v4140 = vpop.permute.xlu0 %4139
          %4143 = vset.pattern.permute.xlu0 0
          %4144 = vperm.xlu0 %4143, %v3870
          %v4145 = vpop.permute.xlu0 %4144
          %4148 = vset.pattern.permute.xlu0 0
          %4149 = vperm.xlu0 %4148, %v3871
          %v4150 = vpop.permute.xlu0 %4149
          %4153 = vset.pattern.permute.xlu0 0
          %4154 = vperm.xlu0 %4153, %v3872
          %v4155 = vpop.permute.xlu0 %4154
          %4158 = vset.pattern.permute.xlu0 0
          %4159 = vperm.xlu0 %4158, %v3873
          %v4160 = vpop.permute.xlu0 %4159
          %4163 = vset.pattern.permute.xlu0 0
          %4164 = vperm.xlu0 %4163, %v3874
          %v4165 = vpop.permute.xlu0 %4164
          %4168 = vset.pattern.permute.xlu0 0
          %4169 = vperm.xlu0 %4168, %v3875
          %v4170 = vpop.permute.xlu0 %4169
          %4173 = vset.pattern.permute.xlu0 0
          %4174 = vperm.xlu0 %4173, %v3876
          %v4175 = vpop.permute.xlu0 %4174
          %4178 = vset.pattern.permute.xlu0 0
          %4179 = vperm.xlu0 %4178, %v3877
          %v4180 = vpop.permute.xlu0 %4179
          %4183 = vset.pattern.permute.xlu0 0
          %4184 = vperm.xlu0 %4183, %v3878
          %v4185 = vpop.permute.xlu0 %4184
          %4188 = vset.pattern.permute.xlu0 0
          %4189 = vperm.xlu0 %4188, %v3879
          %v4190 = vpop.permute.xlu0 %4189
          %4193 = vset.pattern.permute.xlu0 0
          %4194 = vperm.xlu0 %4193, %v3880
          %v4195 = vpop.permute.xlu0 %4194
          %4198 = vset.pattern.permute.xlu0 0
          %4199 = vperm.xlu0 %4198, %v3881
          %v4200 = vpop.permute.xlu0 %4199
          %vm4202 = vcmp.gt.f32.partialorder %v1772, %v3885
          %vm4203 = vcmp.gt.f32.partialorder %v1775, %v3890
          %vm4204 = vcmp.gt.f32.partialorder %v1780, %v3895
          %vm4205 = vcmp.gt.f32.partialorder %v1783, %v3900
          %vm4206 = vcmp.gt.f32.partialorder %v1788, %v3905
          %vm4207 = vcmp.gt.f32.partialorder %v1791, %v3910
          %vm4208 = vcmp.gt.f32.partialorder %v1796, %v3915
          %vm4209 = vcmp.gt.f32.partialorder %v1799, %v3920
          %vm4210 = vcmp.gt.f32.partialorder %v1804, %v3925
          %vm4211 = vcmp.gt.f32.partialorder %v1807, %v3930
          %vm4212 = vcmp.gt.f32.partialorder %v1812, %v3935
          %vm4213 = vcmp.gt.f32.partialorder %v1815, %v3940
          %vm4214 = vcmp.gt.f32.partialorder %v1820, %v3945
          %vm4215 = vcmp.gt.f32.partialorder %v1823, %v3950
          %vm4216 = vcmp.gt.f32.partialorder %v1828, %v3955
          %vm4217 = vcmp.gt.f32.partialorder %v1831, %v3960
          %vm4218 = vcmp.gt.f32.partialorder %v1917, %v3965
          %vm4219 = vcmp.gt.f32.partialorder %v1920, %v3970
          %vm4220 = vcmp.gt.f32.partialorder %v1925, %v3975
          %vm4221 = vcmp.gt.f32.partialorder %v1928, %v3980
          %vm4222 = vcmp.gt.f32.partialorder %v1933, %v3985
          %vm4223 = vcmp.gt.f32.partialorder %v1936, %v3990
          %vm4224 = vcmp.gt.f32.partialorder %v1941, %v3995
          %vm4225 = vcmp.gt.f32.partialorder %v1944, %v4000
          %vm4226 = vcmp.gt.f32.partialorder %v1949, %v4005
          %vm4227 = vcmp.gt.f32.partialorder %v1952, %v4010
          %vm4228 = vcmp.gt.f32.partialorder %v1957, %v4015
          %vm4229 = vcmp.gt.f32.partialorder %v1960, %v4020
          %vm4230 = vcmp.gt.f32.partialorder %v1965, %v4025
          %vm4231 = vcmp.gt.f32.partialorder %v1968, %v4030
          %vm4232 = vcmp.gt.f32.partialorder %v1973, %v4035
          %vm4233 = vcmp.gt.f32.partialorder %v1976, %v4040
          %vm4234 = vcmp.gt.f32.partialorder %v2062, %v4045
          %vm4235 = vcmp.gt.f32.partialorder %v2065, %v4050
          %vm4236 = vcmp.gt.f32.partialorder %v2070, %v4055
          %vm4237 = vcmp.gt.f32.partialorder %v2073, %v4060
          %vm4238 = vcmp.gt.f32.partialorder %v2078, %v4065
          %vm4239 = vcmp.gt.f32.partialorder %v2081, %v4070
          %vm4240 = vcmp.gt.f32.partialorder %v2086, %v4075
          %vm4241 = vcmp.gt.f32.partialorder %v2089, %v4080
          %vm4242 = vcmp.gt.f32.partialorder %v2094, %v4085
          %vm4243 = vcmp.gt.f32.partialorder %v2097, %v4090
          %vm4244 = vcmp.gt.f32.partialorder %v2102, %v4095
          %vm4245 = vcmp.gt.f32.partialorder %v2105, %v4100
          %vm4246 = vcmp.gt.f32.partialorder %v2110, %v4105
          %vm4247 = vcmp.gt.f32.partialorder %v2113, %v4110
          %vm4248 = vcmp.gt.f32.partialorder %v2118, %v4115
          %vm4249 = vcmp.gt.f32.partialorder %v2121, %v4120
          %vm4250 = vcmp.gt.f32.partialorder %v2207, %v4125
          %vm4251 = vcmp.gt.f32.partialorder %v2210, %v4130
          %vm4252 = vcmp.gt.f32.partialorder %v2215, %v4135
          %vm4253 = vcmp.gt.f32.partialorder %v2218, %v4140
          %vm4254 = vcmp.gt.f32.partialorder %v2223, %v4145
          %vm4255 = vcmp.gt.f32.partialorder %v2226, %v4150
          %vm4256 = vcmp.gt.f32.partialorder %v2231, %v4155
          %vm4257 = vcmp.gt.f32.partialorder %v2234, %v4160
          %vm4258 = vcmp.gt.f32.partialorder %v2239, %v4165
          %vm4259 = vcmp.gt.f32.partialorder %v2242, %v4170
          %vm4260 = vcmp.gt.f32.partialorder %v2247, %v4175
          %vm4261 = vcmp.gt.f32.partialorder %v2250, %v4180
          %vm4262 = vcmp.gt.f32.partialorder %v2255, %v4185
          %vm4263 = vcmp.gt.f32.partialorder %v2258, %v4190
          %vm4264 = vcmp.gt.f32.partialorder %v2263, %v4195
          %vm4265 = vcmp.gt.f32.partialorder %v2266, %v4200
          %v4266 = vsel %vm4202, 1, 0
          %v4267 = vsel %vm4203, 1, 0
          %v4268 = vsel %vm4204, 1, 0
          %v4269 = vsel %vm4205, 1, 0
          %v4270 = vsel %vm4206, 1, 0
          %v4271 = vsel %vm4207, 1, 0
          %v4272 = vsel %vm4208, 1, 0
          %v4273 = vsel %vm4209, 1, 0
          %v4274 = vsel %vm4210, 1, 0
          %v4275 = vsel %vm4211, 1, 0
          %v4276 = vsel %vm4212, 1, 0
          %v4277 = vsel %vm4213, 1, 0
          %v4278 = vsel %vm4214, 1, 0
          %v4279 = vsel %vm4215, 1, 0
          %v4280 = vsel %vm4216, 1, 0
          %v4281 = vsel %vm4217, 1, 0
          %v4282 = vsel %vm4218, 1, 0
          %v4283 = vsel %vm4219, 1, 0
          %v4284 = vsel %vm4220, 1, 0
          %v4285 = vsel %vm4221, 1, 0
          %v4286 = vsel %vm4222, 1, 0
          %v4287 = vsel %vm4223, 1, 0
          %v4288 = vsel %vm4224, 1, 0
          %v4289 = vsel %vm4225, 1, 0
          %v4290 = vsel %vm4226, 1, 0
          %v4291 = vsel %vm4227, 1, 0
          %v4292 = vsel %vm4228, 1, 0
          %v4293 = vsel %vm4229, 1, 0
          %v4294 = vsel %vm4230, 1, 0
          %v4295 = vsel %vm4231, 1, 0
          %v4296 = vsel %vm4232, 1, 0
          %v4297 = vsel %vm4233, 1, 0
          %v4298 = vsel %vm4234, 1, 0
          %v4299 = vsel %vm4235, 1, 0
          %v4300 = vsel %vm4236, 1, 0
          %v4301 = vsel %vm4237, 1, 0
          %v4302 = vsel %vm4238, 1, 0
          %v4303 = vsel %vm4239, 1, 0
          %v4304 = vsel %vm4240, 1, 0
          %v4305 = vsel %vm4241, 1, 0
          %v4306 = vsel %vm4242, 1, 0
          %v4307 = vsel %vm4243, 1, 0
          %v4308 = vsel %vm4244, 1, 0
          %v4309 = vsel %vm4245, 1, 0
          %v4310 = vsel %vm4246, 1, 0
          %v4311 = vsel %vm4247, 1, 0
          %v4312 = vsel %vm4248, 1, 0
          %v4313 = vsel %vm4249, 1, 0
          %v4314 = vsel %vm4250, 1, 0
          %v4315 = vsel %vm4251, 1, 0
          %v4316 = vsel %vm4252, 1, 0
          %v4317 = vsel %vm4253, 1, 0
          %v4318 = vsel %vm4254, 1, 0
          %v4319 = vsel %vm4255, 1, 0
          %v4320 = vsel %vm4256, 1, 0
          %v4321 = vsel %vm4257, 1, 0
          %v4322 = vsel %vm4258, 1, 0
          %v4323 = vsel %vm4259, 1, 0
          %v4324 = vsel %vm4260, 1, 0
          %v4325 = vsel %vm4261, 1, 0
          %v4326 = vsel %vm4262, 1, 0
          %v4327 = vsel %vm4263, 1, 0
          %v4328 = vsel %vm4264, 1, 0
          %v4329 = vsel %vm4265, 1, 0
          %v4330 = vcvt.s32.f32 %v4266
          %v4331 = vcvt.s32.f32 %v4267
          %v4332 = vcvt.s32.f32 %v4268
          %v4333 = vcvt.s32.f32 %v4269
          %v4334 = vcvt.s32.f32 %v4270
          %v4335 = vcvt.s32.f32 %v4271
          %v4336 = vcvt.s32.f32 %v4272
          %v4337 = vcvt.s32.f32 %v4273
          %v4338 = vcvt.s32.f32 %v4274
          %v4339 = vcvt.s32.f32 %v4275
          %v4340 = vcvt.s32.f32 %v4276
          %v4341 = vcvt.s32.f32 %v4277
          %v4342 = vcvt.s32.f32 %v4278
          %v4343 = vcvt.s32.f32 %v4279
          %v4344 = vcvt.s32.f32 %v4280
          %v4345 = vcvt.s32.f32 %v4281
          %v4346 = vcvt.s32.f32 %v4282
          %v4347 = vcvt.s32.f32 %v4283
          %v4348 = vcvt.s32.f32 %v4284
          %v4349 = vcvt.s32.f32 %v4285
          %v4350 = vcvt.s32.f32 %v4286
          %v4351 = vcvt.s32.f32 %v4287
          %v4352 = vcvt.s32.f32 %v4288
          %v4353 = vcvt.s32.f32 %v4289
          %v4354 = vcvt.s32.f32 %v4290
          %v4355 = vcvt.s32.f32 %v4291
          %v4356 = vcvt.s32.f32 %v4292
          %v4357 = vcvt.s32.f32 %v4293
          %v4358 = vcvt.s32.f32 %v4294
          %v4359 = vcvt.s32.f32 %v4295
          %v4360 = vcvt.s32.f32 %v4296
          %v4361 = vcvt.s32.f32 %v4297
          %v4362 = vcvt.s32.f32 %v4298
          %v4363 = vcvt.s32.f32 %v4299
          %v4364 = vcvt.s32.f32 %v4300
          %v4365 = vcvt.s32.f32 %v4301
          %v4366 = vcvt.s32.f32 %v4302
          %v4367 = vcvt.s32.f32 %v4303
          %v4368 = vcvt.s32.f32 %v4304
          %v4369 = vcvt.s32.f32 %v4305
          %v4370 = vcvt.s32.f32 %v4306
          %v4371 = vcvt.s32.f32 %v4307
          %v4372 = vcvt.s32.f32 %v4308
          %v4373 = vcvt.s32.f32 %v4309
          %v4374 = vcvt.s32.f32 %v4310
          %v4375 = vcvt.s32.f32 %v4311
          %v4376 = vcvt.s32.f32 %v4312
          %v4377 = vcvt.s32.f32 %v4313
          %v4378 = vcvt.s32.f32 %v4314
          %v4379 = vcvt.s32.f32 %v4315
          %v4380 = vcvt.s32.f32 %v4316
          %v4381 = vcvt.s32.f32 %v4317
          %v4382 = vcvt.s32.f32 %v4318
          %v4383 = vcvt.s32.f32 %v4319
          %v4384 = vcvt.s32.f32 %v4320
          %v4385 = vcvt.s32.f32 %v4321
          %v4386 = vcvt.s32.f32 %v4322
          %v4387 = vcvt.s32.f32 %v4323
          %v4388 = vcvt.s32.f32 %v4324
          %v4389 = vcvt.s32.f32 %v4325
          %v4390 = vcvt.s32.f32 %v4326
          %v4391 = vcvt.s32.f32 %v4327
          %v4392 = vcvt.s32.f32 %v4328
          %v4393 = vcvt.s32.f32 %v4329
          %4394 = vadd.xlane.f32.xlu0 %v4330
          %v4395 = vpop.xlane.xlu0 %4394
          %4396 = vadd.xlane.f32.xlu0 %v4331
          %v4397 = vpop.xlane.xlu0 %4396
          %4398 = vadd.xlane.f32.xlu0 %v4332
          %v4399 = vpop.xlane.xlu0 %4398
          %4400 = vadd.xlane.f32.xlu0 %v4333
          %v4401 = vpop.xlane.xlu0 %4400
          %4402 = vadd.xlane.f32.xlu0 %v4334
          %v4403 = vpop.xlane.xlu0 %4402
          %4404 = vadd.xlane.f32.xlu0 %v4335
          %v4405 = vpop.xlane.xlu0 %4404
          %4406 = vadd.xlane.f32.xlu0 %v4336
          %v4407 = vpop.xlane.xlu0 %4406
          %4408 = vadd.xlane.f32.xlu0 %v4337
          %v4409 = vpop.xlane.xlu0 %4408
          %4410 = vadd.xlane.f32.xlu0 %v4338
          %v4411 = vpop.xlane.xlu0 %4410
          %4412 = vadd.xlane.f32.xlu0 %v4339
          %v4413 = vpop.xlane.xlu0 %4412
          %4414 = vadd.xlane.f32.xlu0 %v4340
          %v4415 = vpop.xlane.xlu0 %4414
          %4416 = vadd.xlane.f32.xlu0 %v4341
          %v4417 = vpop.xlane.xlu0 %4416
          %4418 = vadd.xlane.f32.xlu0 %v4342
          %v4419 = vpop.xlane.xlu0 %4418
          %4420 = vadd.xlane.f32.xlu0 %v4343
          %v4421 = vpop.xlane.xlu0 %4420
          %4422 = vadd.xlane.f32.xlu0 %v4344
          %v4423 = vpop.xlane.xlu0 %4422
          %4424 = vadd.xlane.f32.xlu0 %v4345
          %v4425 = vpop.xlane.xlu0 %4424
          %4426 = vadd.xlane.f32.xlu0 %v4346
          %v4427 = vpop.xlane.xlu0 %4426
          %4428 = vadd.xlane.f32.xlu0 %v4347
          %v4429 = vpop.xlane.xlu0 %4428
          %4430 = vadd.xlane.f32.xlu0 %v4348
          %v4431 = vpop.xlane.xlu0 %4430
          %4432 = vadd.xlane.f32.xlu0 %v4349
          %v4433 = vpop.xlane.xlu0 %4432
          %4434 = vadd.xlane.f32.xlu0 %v4350
          %v4435 = vpop.xlane.xlu0 %4434
          %4436 = vadd.xlane.f32.xlu0 %v4351
          %v4437 = vpop.xlane.xlu0 %4436
          %4438 = vadd.xlane.f32.xlu0 %v4352
          %v4439 = vpop.xlane.xlu0 %4438
          %4440 = vadd.xlane.f32.xlu0 %v4353
          %v4441 = vpop.xlane.xlu0 %4440
          %4442 = vadd.xlane.f32.xlu0 %v4354
          %v4443 = vpop.xlane.xlu0 %4442
          %4444 = vadd.xlane.f32.xlu0 %v4355
          %v4445 = vpop.xlane.xlu0 %4444
          %4446 = vadd.xlane.f32.xlu0 %v4356
          %v4447 = vpop.xlane.xlu0 %4446
          %4448 = vadd.xlane.f32.xlu0 %v4357
          %v4449 = vpop.xlane.xlu0 %4448
          %4450 = vadd.xlane.f32.xlu0 %v4358
          %v4451 = vpop.xlane.xlu0 %4450
          %4452 = vadd.xlane.f32.xlu0 %v4359
          %v4453 = vpop.xlane.xlu0 %4452
          %4454 = vadd.xlane.f32.xlu0 %v4360
          %v4455 = vpop.xlane.xlu0 %4454
          %4456 = vadd.xlane.f32.xlu0 %v4361
          %v4457 = vpop.xlane.xlu0 %4456
          %4458 = vadd.xlane.f32.xlu0 %v4362
          %v4459 = vpop.xlane.xlu0 %4458
          %4460 = vadd.xlane.f32.xlu0 %v4363
          %v4461 = vpop.xlane.xlu0 %4460
          %4462 = vadd.xlane.f32.xlu0 %v4364
          %v4463 = vpop.xlane.xlu0 %4462
          %4464 = vadd.xlane.f32.xlu0 %v4365
          %v4465 = vpop.xlane.xlu0 %4464
          %4466 = vadd.xlane.f32.xlu0 %v4366
          %v4467 = vpop.xlane.xlu0 %4466
          %4468 = vadd.xlane.f32.xlu0 %v4367
          %v4469 = vpop.xlane.xlu0 %4468
          %4470 = vadd.xlane.f32.xlu0 %v4368
          %v4471 = vpop.xlane.xlu0 %4470
          %4472 = vadd.xlane.f32.xlu0 %v4369
          %v4473 = vpop.xlane.xlu0 %4472
          %4474 = vadd.xlane.f32.xlu0 %v4370
          %v4475 = vpop.xlane.xlu0 %4474
          %4476 = vadd.xlane.f32.xlu0 %v4371
          %v4477 = vpop.xlane.xlu0 %4476
          %4478 = vadd.xlane.f32.xlu0 %v4372
          %v4479 = vpop.xlane.xlu0 %4478
          %4480 = vadd.xlane.f32.xlu0 %v4373
          %v4481 = vpop.xlane.xlu0 %4480
          %4482 = vadd.xlane.f32.xlu0 %v4374
          %v4483 = vpop.xlane.xlu0 %4482
          %4484 = vadd.xlane.f32.xlu0 %v4375
          %v4485 = vpop.xlane.xlu0 %4484
          %4486 = vadd.xlane.f32.xlu0 %v4376
          %v4487 = vpop.xlane.xlu0 %4486
          %4488 = vadd.xlane.f32.xlu0 %v4377
          %v4489 = vpop.xlane.xlu0 %4488
          %4490 = vadd.xlane.f32.xlu0 %v4378
          %v4491 = vpop.xlane.xlu0 %4490
          %4492 = vadd.xlane.f32.xlu0 %v4379
          %v4493 = vpop.xlane.xlu0 %4492
          %4494 = vadd.xlane.f32.xlu0 %v4380
          %v4495 = vpop.xlane.xlu0 %4494
          %4496 = vadd.xlane.f32.xlu0 %v4381
          %v4497 = vpop.xlane.xlu0 %4496
          %4498 = vadd.xlane.f32.xlu0 %v4382
          %v4499 = vpop.xlane.xlu0 %4498
          %4500 = vadd.xlane.f32.xlu0 %v4383
          %v4501 = vpop.xlane.xlu0 %4500
          %4502 = vadd.xlane.f32.xlu0 %v4384
          %v4503 = vpop.xlane.xlu0 %4502
          %4504 = vadd.xlane.f32.xlu0 %v4385
          %v4505 = vpop.xlane.xlu0 %4504
          %4506 = vadd.xlane.f32.xlu0 %v4386
          %v4507 = vpop.xlane.xlu0 %4506
          %4508 = vadd.xlane.f32.xlu0 %v4387
          %v4509 = vpop.xlane.xlu0 %4508
          %4510 = vadd.xlane.f32.xlu0 %v4388
          %v4511 = vpop.xlane.xlu0 %4510
          %4512 = vadd.xlane.f32.xlu0 %v4389
          %v4513 = vpop.xlane.xlu0 %4512
          %4514 = vadd.xlane.f32.xlu0 %v4390
          %v4515 = vpop.xlane.xlu0 %4514
          %4516 = vadd.xlane.f32.xlu0 %v4391
          %v4517 = vpop.xlane.xlu0 %4516
          %4518 = vadd.xlane.f32.xlu0 %v4392
          %v4519 = vpop.xlane.xlu0 %4518
          %4520 = vadd.xlane.f32.xlu0 %v4393
          %v4521 = vpop.xlane.xlu0 %4520
          %v4522 = vmax.f32 %v4395, 1.0
          %v4523 = vmax.f32 %v4397, 1.0
          %v4524 = vmax.f32 %v4399, 1.0
          %v4525 = vmax.f32 %v4401, 1.0
          %v4526 = vmax.f32 %v4403, 1.0
          %v4527 = vmax.f32 %v4405, 1.0
          %v4528 = vmax.f32 %v4407, 1.0
          %v4529 = vmax.f32 %v4409, 1.0
          %v4530 = vmax.f32 %v4411, 1.0
          %v4531 = vmax.f32 %v4413, 1.0
          %v4532 = vmax.f32 %v4415, 1.0
          %v4533 = vmax.f32 %v4417, 1.0
          %v4534 = vmax.f32 %v4419, 1.0
          %v4535 = vmax.f32 %v4421, 1.0
          %v4536 = vmax.f32 %v4423, 1.0
          %v4537 = vmax.f32 %v4425, 1.0
          %v4538 = vmax.f32 %v4427, 1.0
          %v4539 = vmax.f32 %v4429, 1.0
          %v4540 = vmax.f32 %v4431, 1.0
          %v4541 = vmax.f32 %v4433, 1.0
          %v4542 = vmax.f32 %v4435, 1.0
          %v4543 = vmax.f32 %v4437, 1.0
          %v4544 = vmax.f32 %v4439, 1.0
          %v4545 = vmax.f32 %v4441, 1.0
          %v4546 = vmax.f32 %v4443, 1.0
          %v4547 = vmax.f32 %v4445, 1.0
          %v4548 = vmax.f32 %v4447, 1.0
          %v4549 = vmax.f32 %v4449, 1.0
          %v4550 = vmax.f32 %v4451, 1.0
          %v4551 = vmax.f32 %v4453, 1.0
          %v4552 = vmax.f32 %v4455, 1.0
          %v4553 = vmax.f32 %v4457, 1.0
          %v4554 = vmax.f32 %v4459, 1.0
          %v4555 = vmax.f32 %v4461, 1.0
          %v4556 = vmax.f32 %v4463, 1.0
          %v4557 = vmax.f32 %v4465, 1.0
          %v4558 = vmax.f32 %v4467, 1.0
          %v4559 = vmax.f32 %v4469, 1.0
          %v4560 = vmax.f32 %v4471, 1.0
          %v4561 = vmax.f32 %v4473, 1.0
          %v4562 = vmax.f32 %v4475, 1.0
          %v4563 = vmax.f32 %v4477, 1.0
          %v4564 = vmax.f32 %v4479, 1.0
          %v4565 = vmax.f32 %v4481, 1.0
          %v4566 = vmax.f32 %v4483, 1.0
          %v4567 = vmax.f32 %v4485, 1.0
          %v4568 = vmax.f32 %v4487, 1.0
          %v4569 = vmax.f32 %v4489, 1.0
          %v4570 = vmax.f32 %v4491, 1.0
          %v4571 = vmax.f32 %v4493, 1.0
          %v4572 = vmax.f32 %v4495, 1.0
          %v4573 = vmax.f32 %v4497, 1.0
          %v4574 = vmax.f32 %v4499, 1.0
          %v4575 = vmax.f32 %v4501, 1.0
          %v4576 = vmax.f32 %v4503, 1.0
          %v4577 = vmax.f32 %v4505, 1.0
          %v4578 = vmax.f32 %v4507, 1.0
          %v4579 = vmax.f32 %v4509, 1.0
          %v4580 = vmax.f32 %v4511, 1.0
          %v4581 = vmax.f32 %v4513, 1.0
          %v4582 = vmax.f32 %v4515, 1.0
          %v4583 = vmax.f32 %v4517, 1.0
          %v4584 = vmax.f32 %v4519, 1.0
          %v4585 = vmax.f32 %v4521, 1.0
          %v4586 = vmul.f32 %v4330, %v1772
          %v4587 = vmul.f32 %v4331, %v1775
          %v4588 = vmul.f32 %v4332, %v1780
          %v4589 = vmul.f32 %v4333, %v1783
          %v4590 = vmul.f32 %v4334, %v1788
          %v4591 = vmul.f32 %v4335, %v1791
          %v4592 = vmul.f32 %v4336, %v1796
          %v4593 = vmul.f32 %v4337, %v1799
          %v4594 = vmul.f32 %v4338, %v1804
          %v4595 = vmul.f32 %v4339, %v1807
          %v4596 = vmul.f32 %v4340, %v1812
          %v4597 = vmul.f32 %v4341, %v1815
          %v4598 = vmul.f32 %v4342, %v1820
          %v4599 = vmul.f32 %v4343, %v1823
          %v4600 = vmul.f32 %v4344, %v1828
          %v4601 = vmul.f32 %v4345, %v1831
          %v4602 = vmul.f32 %v4346, %v1917
          %v4603 = vmul.f32 %v4347, %v1920
          %v4604 = vmul.f32 %v4348, %v1925
          %v4605 = vmul.f32 %v4349, %v1928
          %v4606 = vmul.f32 %v4350, %v1933
          %v4607 = vmul.f32 %v4351, %v1936
          %v4608 = vmul.f32 %v4352, %v1941
          %v4609 = vmul.f32 %v4353, %v1944
          %v4610 = vmul.f32 %v4354, %v1949
          %v4611 = vmul.f32 %v4355, %v1952
          %v4612 = vmul.f32 %v4356, %v1957
          %v4613 = vmul.f32 %v4357, %v1960
          %v4614 = vmul.f32 %v4358, %v1965
          %v4615 = vmul.f32 %v4359, %v1968
          %v4616 = vmul.f32 %v4360, %v1973
          %v4617 = vmul.f32 %v4361, %v1976
          %v4618 = vmul.f32 %v4362, %v2062
          %v4619 = vmul.f32 %v4363, %v2065
          %v4620 = vmul.f32 %v4364, %v2070
          %v4621 = vmul.f32 %v4365, %v2073
          %v4622 = vmul.f32 %v4366, %v2078
          %v4623 = vmul.f32 %v4367, %v2081
          %v4624 = vmul.f32 %v4368, %v2086
          %v4625 = vmul.f32 %v4369, %v2089
          %v4626 = vmul.f32 %v4370, %v2094
          %v4627 = vmul.f32 %v4371, %v2097
          %v4628 = vmul.f32 %v4372, %v2102
          %v4629 = vmul.f32 %v4373, %v2105
          %v4630 = vmul.f32 %v4374, %v2110
          %v4631 = vmul.f32 %v4375, %v2113
          %v4632 = vmul.f32 %v4376, %v2118
          %v4633 = vmul.f32 %v4377, %v2121
          %v4634 = vmul.f32 %v4378, %v2207
          %v4635 = vmul.f32 %v4379, %v2210
          %v4636 = vmul.f32 %v4380, %v2215
          %v4637 = vmul.f32 %v4381, %v2218
          %v4638 = vmul.f32 %v4382, %v2223
          %v4639 = vmul.f32 %v4383, %v2226
          %v4640 = vmul.f32 %v4384, %v2231
          %v4641 = vmul.f32 %v4385, %v2234
          %v4642 = vmul.f32 %v4386, %v2239
          %v4643 = vmul.f32 %v4387, %v2242
          %v4644 = vmul.f32 %v4388, %v2247
          %v4645 = vmul.f32 %v4389, %v2250
          %v4646 = vmul.f32 %v4390, %v2255
          %v4647 = vmul.f32 %v4391, %v2258
          %v4648 = vmul.f32 %v4392, %v2263
          %v4649 = vmul.f32 %v4393, %v2266
          %4650 = vadd.xlane.f32.xlu0 %v4586
          %v4651 = vpop.xlane.xlu0 %4650
          %4652 = vadd.xlane.f32.xlu0 %v4587
          %v4653 = vpop.xlane.xlu0 %4652
          %4654 = vadd.xlane.f32.xlu0 %v4588
          %v4655 = vpop.xlane.xlu0 %4654
          %4656 = vadd.xlane.f32.xlu0 %v4589
          %v4657 = vpop.xlane.xlu0 %4656
          %4658 = vadd.xlane.f32.xlu0 %v4590
          %v4659 = vpop.xlane.xlu0 %4658
          %4660 = vadd.xlane.f32.xlu0 %v4591
          %v4661 = vpop.xlane.xlu0 %4660
          %4662 = vadd.xlane.f32.xlu0 %v4592
          %v4663 = vpop.xlane.xlu0 %4662
          %4664 = vadd.xlane.f32.xlu0 %v4593
          %v4665 = vpop.xlane.xlu0 %4664
          %4666 = vadd.xlane.f32.xlu0 %v4594
          %v4667 = vpop.xlane.xlu0 %4666
          %4668 = vadd.xlane.f32.xlu0 %v4595
          %v4669 = vpop.xlane.xlu0 %4668
          %4670 = vadd.xlane.f32.xlu0 %v4596
          %v4671 = vpop.xlane.xlu0 %4670
          %4672 = vadd.xlane.f32.xlu0 %v4597
          %v4673 = vpop.xlane.xlu0 %4672
          %4674 = vadd.xlane.f32.xlu0 %v4598
          %v4675 = vpop.xlane.xlu0 %4674
          %4676 = vadd.xlane.f32.xlu0 %v4599
          %v4677 = vpop.xlane.xlu0 %4676
          %4678 = vadd.xlane.f32.xlu0 %v4600
          %v4679 = vpop.xlane.xlu0 %4678
          %4680 = vadd.xlane.f32.xlu0 %v4601
          %v4681 = vpop.xlane.xlu0 %4680
          %4682 = vadd.xlane.f32.xlu0 %v4602
          %v4683 = vpop.xlane.xlu0 %4682
          %4684 = vadd.xlane.f32.xlu0 %v4603
          %v4685 = vpop.xlane.xlu0 %4684
          %4686 = vadd.xlane.f32.xlu0 %v4604
          %v4687 = vpop.xlane.xlu0 %4686
          %4688 = vadd.xlane.f32.xlu0 %v4605
          %v4689 = vpop.xlane.xlu0 %4688
          %4690 = vadd.xlane.f32.xlu0 %v4606
          %v4691 = vpop.xlane.xlu0 %4690
          %4692 = vadd.xlane.f32.xlu0 %v4607
          %v4693 = vpop.xlane.xlu0 %4692
          %4694 = vadd.xlane.f32.xlu0 %v4608
          %v4695 = vpop.xlane.xlu0 %4694
          %4696 = vadd.xlane.f32.xlu0 %v4609
          %v4697 = vpop.xlane.xlu0 %4696
          %4698 = vadd.xlane.f32.xlu0 %v4610
          %v4699 = vpop.xlane.xlu0 %4698
          %4700 = vadd.xlane.f32.xlu0 %v4611
          %v4701 = vpop.xlane.xlu0 %4700
          %4702 = vadd.xlane.f32.xlu0 %v4612
          %v4703 = vpop.xlane.xlu0 %4702
          %4704 = vadd.xlane.f32.xlu0 %v4613
          %v4705 = vpop.xlane.xlu0 %4704
          %4706 = vadd.xlane.f32.xlu0 %v4614
          %v4707 = vpop.xlane.xlu0 %4706
          %4708 = vadd.xlane.f32.xlu0 %v4615
          %v4709 = vpop.xlane.xlu0 %4708
          %4710 = vadd.xlane.f32.xlu0 %v4616
          %v4711 = vpop.xlane.xlu0 %4710
          %4712 = vadd.xlane.f32.xlu0 %v4617
          %v4713 = vpop.xlane.xlu0 %4712
          %4714 = vadd.xlane.f32.xlu0 %v4618
          %v4715 = vpop.xlane.xlu0 %4714
          %4716 = vadd.xlane.f32.xlu0 %v4619
          %v4717 = vpop.xlane.xlu0 %4716
          %4718 = vadd.xlane.f32.xlu0 %v4620
          %v4719 = vpop.xlane.xlu0 %4718
          %4720 = vadd.xlane.f32.xlu0 %v4621
          %v4721 = vpop.xlane.xlu0 %4720
          %4722 = vadd.xlane.f32.xlu0 %v4622
          %v4723 = vpop.xlane.xlu0 %4722
          %4724 = vadd.xlane.f32.xlu0 %v4623
          %v4725 = vpop.xlane.xlu0 %4724
          %4726 = vadd.xlane.f32.xlu0 %v4624
          %v4727 = vpop.xlane.xlu0 %4726
          %4728 = vadd.xlane.f32.xlu0 %v4625
          %v4729 = vpop.xlane.xlu0 %4728
          %4730 = vadd.xlane.f32.xlu0 %v4626
          %v4731 = vpop.xlane.xlu0 %4730
          %4732 = vadd.xlane.f32.xlu0 %v4627
          %v4733 = vpop.xlane.xlu0 %4732
          %4734 = vadd.xlane.f32.xlu0 %v4628
          %v4735 = vpop.xlane.xlu0 %4734
          %4736 = vadd.xlane.f32.xlu0 %v4629
          %v4737 = vpop.xlane.xlu0 %4736
          %4738 = vadd.xlane.f32.xlu0 %v4630
          %v4739 = vpop.xlane.xlu0 %4738
          %4740 = vadd.xlane.f32.xlu0 %v4631
          %v4741 = vpop.xlane.xlu0 %4740
          %4742 = vadd.xlane.f32.xlu0 %v4632
          %v4743 = vpop.xlane.xlu0 %4742
          %4744 = vadd.xlane.f32.xlu0 %v4633
          %v4745 = vpop.xlane.xlu0 %4744
          %4746 = vadd.xlane.f32.xlu0 %v4634
          %v4747 = vpop.xlane.xlu0 %4746
          %4748 = vadd.xlane.f32.xlu0 %v4635
          %v4749 = vpop.xlane.xlu0 %4748
          %4750 = vadd.xlane.f32.xlu0 %v4636
          %v4751 = vpop.xlane.xlu0 %4750
          %4752 = vadd.xlane.f32.xlu0 %v4637
          %v4753 = vpop.xlane.xlu0 %4752
          %4754 = vadd.xlane.f32.xlu0 %v4638
          %v4755 = vpop.xlane.xlu0 %4754
          %4756 = vadd.xlane.f32.xlu0 %v4639
          %v4757 = vpop.xlane.xlu0 %4756
          %4758 = vadd.xlane.f32.xlu0 %v4640
          %v4759 = vpop.xlane.xlu0 %4758
          %4760 = vadd.xlane.f32.xlu0 %v4641
          %v4761 = vpop.xlane.xlu0 %4760
          %4762 = vadd.xlane.f32.xlu0 %v4642
          %v4763 = vpop.xlane.xlu0 %4762
          %4764 = vadd.xlane.f32.xlu0 %v4643
          %v4765 = vpop.xlane.xlu0 %4764
          %4766 = vadd.xlane.f32.xlu0 %v4644
          %v4767 = vpop.xlane.xlu0 %4766
          %4768 = vadd.xlane.f32.xlu0 %v4645
          %v4769 = vpop.xlane.xlu0 %4768
          %4770 = vadd.xlane.f32.xlu0 %v4646
          %v4771 = vpop.xlane.xlu0 %4770
          %4772 = vadd.xlane.f32.xlu0 %v4647
          %v4773 = vpop.xlane.xlu0 %4772
          %4774 = vadd.xlane.f32.xlu0 %v4648
          %v4775 = vpop.xlane.xlu0 %4774
          %4776 = vadd.xlane.f32.xlu0 %v4649
          %v4777 = vpop.xlane.xlu0 %4776
          %v4778 = vsub.f32 %v4651, 1.0
          %v4779 = vsub.f32 %v4653, 1.0
          %v4780 = vsub.f32 %v4655, 1.0
          %v4781 = vsub.f32 %v4657, 1.0
          %v4782 = vsub.f32 %v4659, 1.0
          %v4783 = vsub.f32 %v4661, 1.0
          %v4784 = vsub.f32 %v4663, 1.0
          %v4785 = vsub.f32 %v4665, 1.0
          %v4786 = vsub.f32 %v4667, 1.0
          %v4787 = vsub.f32 %v4669, 1.0
          %v4788 = vsub.f32 %v4671, 1.0
          %v4789 = vsub.f32 %v4673, 1.0
          %v4790 = vsub.f32 %v4675, 1.0
          %v4791 = vsub.f32 %v4677, 1.0
          %v4792 = vsub.f32 %v4679, 1.0
          %v4793 = vsub.f32 %v4681, 1.0
          %v4794 = vsub.f32 %v4683, 1.0
          %v4795 = vsub.f32 %v4685, 1.0
          %v4796 = vsub.f32 %v4687, 1.0
          %v4797 = vsub.f32 %v4689, 1.0
          %v4798 = vsub.f32 %v4691, 1.0
          %v4799 = vsub.f32 %v4693, 1.0
          %v4800 = vsub.f32 %v4695, 1.0
          %v4801 = vsub.f32 %v4697, 1.0
          %v4802 = vsub.f32 %v4699, 1.0
          %v4803 = vsub.f32 %v4701, 1.0
          %v4804 = vsub.f32 %v4703, 1.0
          %v4805 = vsub.f32 %v4705, 1.0
          %v4806 = vsub.f32 %v4707, 1.0
          %v4807 = vsub.f32 %v4709, 1.0
          %v4808 = vsub.f32 %v4711, 1.0
          %v4809 = vsub.f32 %v4713, 1.0
          %v4810 = vsub.f32 %v4715, 1.0
          %v4811 = vsub.f32 %v4717, 1.0
          %v4812 = vsub.f32 %v4719, 1.0
          %v4813 = vsub.f32 %v4721, 1.0
          %v4814 = vsub.f32 %v4723, 1.0
          %v4815 = vsub.f32 %v4725, 1.0
          %v4816 = vsub.f32 %v4727, 1.0
          %v4817 = vsub.f32 %v4729, 1.0
          %v4818 = vsub.f32 %v4731, 1.0
          %v4819 = vsub.f32 %v4733, 1.0
          %v4820 = vsub.f32 %v4735, 1.0
          %v4821 = vsub.f32 %v4737, 1.0
          %v4822 = vsub.f32 %v4739, 1.0
          %v4823 = vsub.f32 %v4741, 1.0
          %v4824 = vsub.f32 %v4743, 1.0
          %v4825 = vsub.f32 %v4745, 1.0
          %v4826 = vsub.f32 %v4747, 1.0
          %v4827 = vsub.f32 %v4749, 1.0
          %v4828 = vsub.f32 %v4751, 1.0
          %v4829 = vsub.f32 %v4753, 1.0
          %v4830 = vsub.f32 %v4755, 1.0
          %v4831 = vsub.f32 %v4757, 1.0
          %v4832 = vsub.f32 %v4759, 1.0
          %v4833 = vsub.f32 %v4761, 1.0
          %v4834 = vsub.f32 %v4763, 1.0
          %v4835 = vsub.f32 %v4765, 1.0
          %v4836 = vsub.f32 %v4767, 1.0
          %v4837 = vsub.f32 %v4769, 1.0
          %v4838 = vsub.f32 %v4771, 1.0
          %v4839 = vsub.f32 %v4773, 1.0
          %v4840 = vsub.f32 %v4775, 1.0
          %v4841 = vsub.f32 %v4777, 1.0
          %v4842 = vrcp.pop %v4522
          %v4843 = vmul.f32 %v4778, %v4842
          %v4844 = vrcp.pop %v4523
          %v4845 = vmul.f32 %v4779, %v4844
          %v4846 = vrcp.pop %v4524
          %v4847 = vmul.f32 %v4780, %v4846
          %v4848 = vrcp.pop %v4525
          %v4849 = vmul.f32 %v4781, %v4848
          %v4850 = vrcp.pop %v4526
          %v4851 = vmul.f32 %v4782, %v4850
          %v4852 = vrcp.pop %v4527
          %v4853 = vmul.f32 %v4783, %v4852
          %v4854 = vrcp.pop %v4528
          %v4855 = vmul.f32 %v4784, %v4854
          %v4856 = vrcp.pop %v4529
          %v4857 = vmul.f32 %v4785, %v4856
          %v4858 = vrcp.pop %v4530
          %v4859 = vmul.f32 %v4786, %v4858
          %v4860 = vrcp.pop %v4531
          %v4861 = vmul.f32 %v4787, %v4860
          %v4862 = vrcp.pop %v4532
          %v4863 = vmul.f32 %v4788, %v4862
          %v4864 = vrcp.pop %v4533
          %v4865 = vmul.f32 %v4789, %v4864
          %v4866 = vrcp.pop %v4534
          %v4867 = vmul.f32 %v4790, %v4866
          %v4868 = vrcp.pop %v4535
          %v4869 = vmul.f32 %v4791, %v4868
          %v4870 = vrcp.pop %v4536
          %v4871 = vmul.f32 %v4792, %v4870
          %v4872 = vrcp.pop %v4537
          %v4873 = vmul.f32 %v4793, %v4872
          %v4874 = vrcp.pop %v4538
          %v4875 = vmul.f32 %v4794, %v4874
          %v4876 = vrcp.pop %v4539
          %v4877 = vmul.f32 %v4795, %v4876
          %v4878 = vrcp.pop %v4540
          %v4879 = vmul.f32 %v4796, %v4878
          %v4880 = vrcp.pop %v4541
          %v4881 = vmul.f32 %v4797, %v4880
          %v4882 = vrcp.pop %v4542
          %v4883 = vmul.f32 %v4798, %v4882
          %v4884 = vrcp.pop %v4543
          %v4885 = vmul.f32 %v4799, %v4884
          %v4886 = vrcp.pop %v4544
          %v4887 = vmul.f32 %v4800, %v4886
          %v4888 = vrcp.pop %v4545
          %v4889 = vmul.f32 %v4801, %v4888
          %v4890 = vrcp.pop %v4546
          %v4891 = vmul.f32 %v4802, %v4890
          %v4892 = vrcp.pop %v4547
          %v4893 = vmul.f32 %v4803, %v4892
          %v4894 = vrcp.pop %v4548
          %v4895 = vmul.f32 %v4804, %v4894
          %v4896 = vrcp.pop %v4549
          %v4897 = vmul.f32 %v4805, %v4896
          %v4898 = vrcp.pop %v4550
          %v4899 = vmul.f32 %v4806, %v4898
          %v4900 = vrcp.pop %v4551
          %v4901 = vmul.f32 %v4807, %v4900
          %v4902 = vrcp.pop %v4552
          %v4903 = vmul.f32 %v4808, %v4902
          %v4904 = vrcp.pop %v4553
          %v4905 = vmul.f32 %v4809, %v4904
          %v4906 = vrcp.pop %v4554
          %v4907 = vmul.f32 %v4810, %v4906
          %v4908 = vrcp.pop %v4555
          %v4909 = vmul.f32 %v4811, %v4908
          %v4910 = vrcp.pop %v4556
          %v4911 = vmul.f32 %v4812, %v4910
          %v4912 = vrcp.pop %v4557
          %v4913 = vmul.f32 %v4813, %v4912
          %v4914 = vrcp.pop %v4558
          %v4915 = vmul.f32 %v4814, %v4914
          %v4916 = vrcp.pop %v4559
          %v4917 = vmul.f32 %v4815, %v4916
          %v4918 = vrcp.pop %v4560
          %v4919 = vmul.f32 %v4816, %v4918
          %v4920 = vrcp.pop %v4561
          %v4921 = vmul.f32 %v4817, %v4920
          %v4922 = vrcp.pop %v4562
          %v4923 = vmul.f32 %v4818, %v4922
          %v4924 = vrcp.pop %v4563
          %v4925 = vmul.f32 %v4819, %v4924
          %v4926 = vrcp.pop %v4564
          %v4927 = vmul.f32 %v4820, %v4926
          %v4928 = vrcp.pop %v4565
          %v4929 = vmul.f32 %v4821, %v4928
          %v4930 = vrcp.pop %v4566
          %v4931 = vmul.f32 %v4822, %v4930
          %v4932 = vrcp.pop %v4567
          %v4933 = vmul.f32 %v4823, %v4932
          %v4934 = vrcp.pop %v4568
          %v4935 = vmul.f32 %v4824, %v4934
          %v4936 = vrcp.pop %v4569
          %v4937 = vmul.f32 %v4825, %v4936
          %v4938 = vrcp.pop %v4570
          %v4939 = vmul.f32 %v4826, %v4938
          %v4940 = vrcp.pop %v4571
          %v4941 = vmul.f32 %v4827, %v4940
          %v4942 = vrcp.pop %v4572
          %v4943 = vmul.f32 %v4828, %v4942
          %v4944 = vrcp.pop %v4573
          %v4945 = vmul.f32 %v4829, %v4944
          %v4946 = vrcp.pop %v4574
          %v4947 = vmul.f32 %v4830, %v4946
          %v4948 = vrcp.pop %v4575
          %v4949 = vmul.f32 %v4831, %v4948
          %v4950 = vrcp.pop %v4576
          %v4951 = vmul.f32 %v4832, %v4950
          %v4952 = vrcp.pop %v4577
          %v4953 = vmul.f32 %v4833, %v4952
          %v4954 = vrcp.pop %v4578
          %v4955 = vmul.f32 %v4834, %v4954
          %v4956 = vrcp.pop %v4579
          %v4957 = vmul.f32 %v4835, %v4956
          %v4958 = vrcp.pop %v4580
          %v4959 = vmul.f32 %v4836, %v4958
          %v4960 = vrcp.pop %v4581
          %v4961 = vmul.f32 %v4837, %v4960
          %v4962 = vrcp.pop %v4582
          %v4963 = vmul.f32 %v4838, %v4962
          %v4964 = vrcp.pop %v4583
          %v4965 = vmul.f32 %v4839, %v4964
          %v4966 = vrcp.pop %v4584
          %v4967 = vmul.f32 %v4840, %v4966
          %v4968 = vrcp.pop %v4585
          %v4969 = vmul.f32 %v4841, %v4968
        $region108: #{tpu_custom_call.1} parent=71 // loop_footer
          %s3817 = sadd.s32 1, %s3813
        $region109: #{tpu_custom_call.1} parent=71 // loop_footer_branch
          %3812 = sbr.rel target = $region105
        $region110: #{tpu_custom_call.1} parent=71 // loop_exit
          _
        %4971 = vset.pattern.permute.xlu0 0
        %4972 = vperm.xlu0 %4971, %v3818
        %v4973 = vpop.permute.xlu0 %4972
        %4976 = vset.pattern.permute.xlu0 0
        %4977 = vperm.xlu0 %4976, %v3819
        %v4978 = vpop.permute.xlu0 %4977
        %4981 = vset.pattern.permute.xlu0 0
        %4982 = vperm.xlu0 %4981, %v3820
        %v4983 = vpop.permute.xlu0 %4982
        %4986 = vset.pattern.permute.xlu0 0
        %4987 = vperm.xlu0 %4986, %v3821
        %v4988 = vpop.permute.xlu0 %4987
        %4991 = vset.pattern.permute.xlu0 0
        %4992 = vperm.xlu0 %4991, %v3822
        %v4993 = vpop.permute.xlu0 %4992
        %4996 = vset.pattern.permute.xlu0 0
        %4997 = vperm.xlu0 %4996, %v3823
        %v4998 = vpop.permute.xlu0 %4997
        %5001 = vset.pattern.permute.xlu0 0
        %5002 = vperm.xlu0 %5001, %v3824
        %v5003 = vpop.permute.xlu0 %5002
        %5006 = vset.pattern.permute.xlu0 0
        %5007 = vperm.xlu0 %5006, %v3825
        %v5008 = vpop.permute.xlu0 %5007
        %5011 = vset.pattern.permute.xlu0 0
        %5012 = vperm.xlu0 %5011, %v3826
        %v5013 = vpop.permute.xlu0 %5012
        %5016 = vset.pattern.permute.xlu0 0
        %5017 = vperm.xlu0 %5016, %v3827
        %v5018 = vpop.permute.xlu0 %5017
        %5021 = vset.pattern.permute.xlu0 0
        %5022 = vperm.xlu0 %5021, %v3828
        %v5023 = vpop.permute.xlu0 %5022
        %5026 = vset.pattern.permute.xlu0 0
        %5027 = vperm.xlu0 %5026, %v3829
        %v5028 = vpop.permute.xlu0 %5027
        %5031 = vset.pattern.permute.xlu0 0
        %5032 = vperm.xlu0 %5031, %v3830
        %v5033 = vpop.permute.xlu0 %5032
        %5036 = vset.pattern.permute.xlu0 0
        %5037 = vperm.xlu0 %5036, %v3831
        %v5038 = vpop.permute.xlu0 %5037
        %5041 = vset.pattern.permute.xlu0 0
        %5042 = vperm.xlu0 %5041, %v3832
        %v5043 = vpop.permute.xlu0 %5042
        %5046 = vset.pattern.permute.xlu0 0
        %5047 = vperm.xlu0 %5046, %v3833
        %v5048 = vpop.permute.xlu0 %5047
        %5051 = vset.pattern.permute.xlu0 0
        %5052 = vperm.xlu0 %5051, %v3834
        %v5053 = vpop.permute.xlu0 %5052
        %5056 = vset.pattern.permute.xlu0 0
        %5057 = vperm.xlu0 %5056, %v3835
        %v5058 = vpop.permute.xlu0 %5057
        %5061 = vset.pattern.permute.xlu0 0
        %5062 = vperm.xlu0 %5061, %v3836
        %v5063 = vpop.permute.xlu0 %5062
        %5066 = vset.pattern.permute.xlu0 0
        %5067 = vperm.xlu0 %5066, %v3837
        %v5068 = vpop.permute.xlu0 %5067
        %5071 = vset.pattern.permute.xlu0 0
        %5072 = vperm.xlu0 %5071, %v3838
        %v5073 = vpop.permute.xlu0 %5072
        %5076 = vset.pattern.permute.xlu0 0
        %5077 = vperm.xlu0 %5076, %v3839
        %v5078 = vpop.permute.xlu0 %5077
        %5081 = vset.pattern.permute.xlu0 0
        %5082 = vperm.xlu0 %5081, %v3840
        %v5083 = vpop.permute.xlu0 %5082
        %5086 = vset.pattern.permute.xlu0 0
        %5087 = vperm.xlu0 %5086, %v3841
        %v5088 = vpop.permute.xlu0 %5087
        %5091 = vset.pattern.permute.xlu0 0
        %5092 = vperm.xlu0 %5091, %v3842
        %v5093 = vpop.permute.xlu0 %5092
        %5096 = vset.pattern.permute.xlu0 0
        %5097 = vperm.xlu0 %5096, %v3843
        %v5098 = vpop.permute.xlu0 %5097
        %5101 = vset.pattern.permute.xlu0 0
        %5102 = vperm.xlu0 %5101, %v3844
        %v5103 = vpop.permute.xlu0 %5102
        %5106 = vset.pattern.permute.xlu0 0
        %5107 = vperm.xlu0 %5106, %v3845
        %v5108 = vpop.permute.xlu0 %5107
        %5111 = vset.pattern.permute.xlu0 0
        %5112 = vperm.xlu0 %5111, %v3846
        %v5113 = vpop.permute.xlu0 %5112
        %5116 = vset.pattern.permute.xlu0 0
        %5117 = vperm.xlu0 %5116, %v3847
        %v5118 = vpop.permute.xlu0 %5117
        %5121 = vset.pattern.permute.xlu0 0
        %5122 = vperm.xlu0 %5121, %v3848
        %v5123 = vpop.permute.xlu0 %5122
        %5126 = vset.pattern.permute.xlu0 0
        %5127 = vperm.xlu0 %5126, %v3849
        %v5128 = vpop.permute.xlu0 %5127
        %5131 = vset.pattern.permute.xlu0 0
        %5132 = vperm.xlu0 %5131, %v3850
        %v5133 = vpop.permute.xlu0 %5132
        %5136 = vset.pattern.permute.xlu0 0
        %5137 = vperm.xlu0 %5136, %v3851
        %v5138 = vpop.permute.xlu0 %5137
        %5141 = vset.pattern.permute.xlu0 0
        %5142 = vperm.xlu0 %5141, %v3852
        %v5143 = vpop.permute.xlu0 %5142
        %5146 = vset.pattern.permute.xlu0 0
        %5147 = vperm.xlu0 %5146, %v3853
        %v5148 = vpop.permute.xlu0 %5147
        %5151 = vset.pattern.permute.xlu0 0
        %5152 = vperm.xlu0 %5151, %v3854
        %v5153 = vpop.permute.xlu0 %5152
        %5156 = vset.pattern.permute.xlu0 0
        %5157 = vperm.xlu0 %5156, %v3855
        %v5158 = vpop.permute.xlu0 %5157
        %5161 = vset.pattern.permute.xlu0 0
        %5162 = vperm.xlu0 %5161, %v3856
        %v5163 = vpop.permute.xlu0 %5162
        %5166 = vset.pattern.permute.xlu0 0
        %5167 = vperm.xlu0 %5166, %v3857
        %v5168 = vpop.permute.xlu0 %5167
        %5171 = vset.pattern.permute.xlu0 0
        %5172 = vperm.xlu0 %5171, %v3858
        %v5173 = vpop.permute.xlu0 %5172
        %5176 = vset.pattern.permute.xlu0 0
        %5177 = vperm.xlu0 %5176, %v3859
        %v5178 = vpop.permute.xlu0 %5177
        %5181 = vset.pattern.permute.xlu0 0
        %5182 = vperm.xlu0 %5181, %v3860
        %v5183 = vpop.permute.xlu0 %5182
        %5186 = vset.pattern.permute.xlu0 0
        %5187 = vperm.xlu0 %5186, %v3861
        %v5188 = vpop.permute.xlu0 %5187
        %5191 = vset.pattern.permute.xlu0 0
        %5192 = vperm.xlu0 %5191, %v3862
        %v5193 = vpop.permute.xlu0 %5192
        %5196 = vset.pattern.permute.xlu0 0
        %5197 = vperm.xlu0 %5196, %v3863
        %v5198 = vpop.permute.xlu0 %5197
        %5201 = vset.pattern.permute.xlu0 0
        %5202 = vperm.xlu0 %5201, %v3864
        %v5203 = vpop.permute.xlu0 %5202
        %5206 = vset.pattern.permute.xlu0 0
        %5207 = vperm.xlu0 %5206, %v3865
        %v5208 = vpop.permute.xlu0 %5207
        %5211 = vset.pattern.permute.xlu0 0
        %5212 = vperm.xlu0 %5211, %v3866
        %v5213 = vpop.permute.xlu0 %5212
        %5216 = vset.pattern.permute.xlu0 0
        %5217 = vperm.xlu0 %5216, %v3867
        %v5218 = vpop.permute.xlu0 %5217
        %5221 = vset.pattern.permute.xlu0 0
        %5222 = vperm.xlu0 %5221, %v3868
        %v5223 = vpop.permute.xlu0 %5222
        %5226 = vset.pattern.permute.xlu0 0
        %5227 = vperm.xlu0 %5226, %v3869
        %v5228 = vpop.permute.xlu0 %5227
        %5231 = vset.pattern.permute.xlu0 0
        %5232 = vperm.xlu0 %5231, %v3870
        %v5233 = vpop.permute.xlu0 %5232
        %5236 = vset.pattern.permute.xlu0 0
        %5237 = vperm.xlu0 %5236, %v3871
        %v5238 = vpop.permute.xlu0 %5237
        %5241 = vset.pattern.permute.xlu0 0
        %5242 = vperm.xlu0 %5241, %v3872
        %v5243 = vpop.permute.xlu0 %5242
        %5246 = vset.pattern.permute.xlu0 0
        %5247 = vperm.xlu0 %5246, %v3873
        %v5248 = vpop.permute.xlu0 %5247
        %5251 = vset.pattern.permute.xlu0 0
        %5252 = vperm.xlu0 %5251, %v3874
        %v5253 = vpop.permute.xlu0 %5252
        %5256 = vset.pattern.permute.xlu0 0
        %5257 = vperm.xlu0 %5256, %v3875
        %v5258 = vpop.permute.xlu0 %5257
        %5261 = vset.pattern.permute.xlu0 0
        %5262 = vperm.xlu0 %5261, %v3876
        %v5263 = vpop.permute.xlu0 %5262
        %5266 = vset.pattern.permute.xlu0 0
        %5267 = vperm.xlu0 %5266, %v3877
        %v5268 = vpop.permute.xlu0 %5267
        %5271 = vset.pattern.permute.xlu0 0
        %5272 = vperm.xlu0 %5271, %v3878
        %v5273 = vpop.permute.xlu0 %5272
        %5276 = vset.pattern.permute.xlu0 0
        %5277 = vperm.xlu0 %5276, %v3879
        %v5278 = vpop.permute.xlu0 %5277
        %5281 = vset.pattern.permute.xlu0 0
        %5282 = vperm.xlu0 %5281, %v3880
        %v5283 = vpop.permute.xlu0 %5282
        %5286 = vset.pattern.permute.xlu0 0
        %5287 = vperm.xlu0 %5286, %v3881
        %v5288 = vpop.permute.xlu0 %5287
        %v5290 = vsub.f32 %v1772, %v4973
        %v5291 = vsub.f32 %v1775, %v4978
        %v5292 = vsub.f32 %v1780, %v4983
        %v5293 = vsub.f32 %v1783, %v4988
        %v5294 = vsub.f32 %v1788, %v4993
        %v5295 = vsub.f32 %v1791, %v4998
        %v5296 = vsub.f32 %v1796, %v5003
        %v5297 = vsub.f32 %v1799, %v5008
        %v5298 = vsub.f32 %v1804, %v5013
        %v5299 = vsub.f32 %v1807, %v5018
        %v5300 = vsub.f32 %v1812, %v5023
        %v5301 = vsub.f32 %v1815, %v5028
        %v5302 = vsub.f32 %v1820, %v5033
        %v5303 = vsub.f32 %v1823, %v5038
        %v5304 = vsub.f32 %v1828, %v5043
        %v5305 = vsub.f32 %v1831, %v5048
        %v5306 = vsub.f32 %v1917, %v5053
        %v5307 = vsub.f32 %v1920, %v5058
        %v5308 = vsub.f32 %v1925, %v5063
        %v5309 = vsub.f32 %v1928, %v5068
        %v5310 = vsub.f32 %v1933, %v5073
        %v5311 = vsub.f32 %v1936, %v5078
        %v5312 = vsub.f32 %v1941, %v5083
        %v5313 = vsub.f32 %v1944, %v5088
        %v5314 = vsub.f32 %v1949, %v5093
        %v5315 = vsub.f32 %v1952, %v5098
        %v5316 = vsub.f32 %v1957, %v5103
        %v5317 = vsub.f32 %v1960, %v5108
        %v5318 = vsub.f32 %v1965, %v5113
        %v5319 = vsub.f32 %v1968, %v5118
        %v5320 = vsub.f32 %v1973, %v5123
        %v5321 = vsub.f32 %v1976, %v5128
        %v5322 = vsub.f32 %v2062, %v5133
        %v5323 = vsub.f32 %v2065, %v5138
        %v5324 = vsub.f32 %v2070, %v5143
        %v5325 = vsub.f32 %v2073, %v5148
        %v5326 = vsub.f32 %v2078, %v5153
        %v5327 = vsub.f32 %v2081, %v5158
        %v5328 = vsub.f32 %v2086, %v5163
        %v5329 = vsub.f32 %v2089, %v5168
        %v5330 = vsub.f32 %v2094, %v5173
        %v5331 = vsub.f32 %v2097, %v5178
        %v5332 = vsub.f32 %v2102, %v5183
        %v5333 = vsub.f32 %v2105, %v5188
        %v5334 = vsub.f32 %v2110, %v5193
        %v5335 = vsub.f32 %v2113, %v5198
        %v5336 = vsub.f32 %v2118, %v5203
        %v5337 = vsub.f32 %v2121, %v5208
        %v5338 = vsub.f32 %v2207, %v5213
        %v5339 = vsub.f32 %v2210, %v5218
        %v5340 = vsub.f32 %v2215, %v5223
        %v5341 = vsub.f32 %v2218, %v5228
        %v5342 = vsub.f32 %v2223, %v5233
        %v5343 = vsub.f32 %v2226, %v5238
        %v5344 = vsub.f32 %v2231, %v5243
        %v5345 = vsub.f32 %v2234, %v5248
        %v5346 = vsub.f32 %v2239, %v5253
        %v5347 = vsub.f32 %v2242, %v5258
        %v5348 = vsub.f32 %v2247, %v5263
        %v5349 = vsub.f32 %v2250, %v5268
        %v5350 = vsub.f32 %v2255, %v5273
        %v5351 = vsub.f32 %v2258, %v5278
        %v5352 = vsub.f32 %v2263, %v5283
        %v5353 = vsub.f32 %v2266, %v5288
        %v5354 = vmax.f32 %v5290, 0.0
        %v5355 = vmax.f32 %v5291, 0.0
        %v5356 = vmax.f32 %v5292, 0.0
        %v5357 = vmax.f32 %v5293, 0.0
        %v5358 = vmax.f32 %v5294, 0.0
        %v5359 = vmax.f32 %v5295, 0.0
        %v5360 = vmax.f32 %v5296, 0.0
        %v5361 = vmax.f32 %v5297, 0.0
        %v5362 = vmax.f32 %v5298, 0.0
        %v5363 = vmax.f32 %v5299, 0.0
        %v5364 = vmax.f32 %v5300, 0.0
        %v5365 = vmax.f32 %v5301, 0.0
        %v5366 = vmax.f32 %v5302, 0.0
        %v5367 = vmax.f32 %v5303, 0.0
        %v5368 = vmax.f32 %v5304, 0.0
        %v5369 = vmax.f32 %v5305, 0.0
        %v5370 = vmax.f32 %v5306, 0.0
        %v5371 = vmax.f32 %v5307, 0.0
        %v5372 = vmax.f32 %v5308, 0.0
        %v5373 = vmax.f32 %v5309, 0.0
        %v5374 = vmax.f32 %v5310, 0.0
        %v5375 = vmax.f32 %v5311, 0.0
        %v5376 = vmax.f32 %v5312, 0.0
        %v5377 = vmax.f32 %v5313, 0.0
        %v5378 = vmax.f32 %v5314, 0.0
        %v5379 = vmax.f32 %v5315, 0.0
        %v5380 = vmax.f32 %v5316, 0.0
        %v5381 = vmax.f32 %v5317, 0.0
        %v5382 = vmax.f32 %v5318, 0.0
        %v5383 = vmax.f32 %v5319, 0.0
        %v5384 = vmax.f32 %v5320, 0.0
        %v5385 = vmax.f32 %v5321, 0.0
        %v5386 = vmax.f32 %v5322, 0.0
        %v5387 = vmax.f32 %v5323, 0.0
        %v5388 = vmax.f32 %v5324, 0.0
        %v5389 = vmax.f32 %v5325, 0.0
        %v5390 = vmax.f32 %v5326, 0.0
        %v5391 = vmax.f32 %v5327, 0.0
        %v5392 = vmax.f32 %v5328, 0.0
        %v5393 = vmax.f32 %v5329, 0.0
        %v5394 = vmax.f32 %v5330, 0.0
        %v5395 = vmax.f32 %v5331, 0.0
        %v5396 = vmax.f32 %v5332, 0.0
        %v5397 = vmax.f32 %v5333, 0.0
        %v5398 = vmax.f32 %v5334, 0.0
        %v5399 = vmax.f32 %v5335, 0.0
        %v5400 = vmax.f32 %v5336, 0.0
        %v5401 = vmax.f32 %v5337, 0.0
        %v5402 = vmax.f32 %v5338, 0.0
        %v5403 = vmax.f32 %v5339, 0.0
        %v5404 = vmax.f32 %v5340, 0.0
        %v5405 = vmax.f32 %v5341, 0.0
        %v5406 = vmax.f32 %v5342, 0.0
        %v5407 = vmax.f32 %v5343, 0.0
        %v5408 = vmax.f32 %v5344, 0.0
        %v5409 = vmax.f32 %v5345, 0.0
        %v5410 = vmax.f32 %v5346, 0.0
        %v5411 = vmax.f32 %v5347, 0.0
        %v5412 = vmax.f32 %v5348, 0.0
        %v5413 = vmax.f32 %v5349, 0.0
        %v5414 = vmax.f32 %v5350, 0.0
        %v5415 = vmax.f32 %v5351, 0.0
        %v5416 = vmax.f32 %v5352, 0.0
        %v5417 = vmax.f32 %v5353, 0.0
        %v5418 = vpack.c.bf16 %v5355, %v5354
        %v5419 = vpack.c.bf16 %v5357, %v5356
        %v5420 = vpack.c.bf16 %v5359, %v5358
        %v5421 = vpack.c.bf16 %v5361, %v5360
        %v5422 = vpack.c.bf16 %v5363, %v5362
        %v5423 = vpack.c.bf16 %v5365, %v5364
        %v5424 = vpack.c.bf16 %v5367, %v5366
        %v5425 = vpack.c.bf16 %v5369, %v5368
        %v5426 = vpack.c.bf16 %v5371, %v5370
        %v5427 = vpack.c.bf16 %v5373, %v5372
        %v5428 = vpack.c.bf16 %v5375, %v5374
        %v5429 = vpack.c.bf16 %v5377, %v5376
        %v5430 = vpack.c.bf16 %v5379, %v5378
        %v5431 = vpack.c.bf16 %v5381, %v5380
        %v5432 = vpack.c.bf16 %v5383, %v5382
        %v5433 = vpack.c.bf16 %v5385, %v5384
        %v5434 = vpack.c.bf16 %v5387, %v5386
        %v5435 = vpack.c.bf16 %v5389, %v5388
        %v5436 = vpack.c.bf16 %v5391, %v5390
        %v5437 = vpack.c.bf16 %v5393, %v5392
        %v5438 = vpack.c.bf16 %v5395, %v5394
        %v5439 = vpack.c.bf16 %v5397, %v5396
        %v5440 = vpack.c.bf16 %v5399, %v5398
        %v5441 = vpack.c.bf16 %v5401, %v5400
        %v5442 = vpack.c.bf16 %v5403, %v5402
        %v5443 = vpack.c.bf16 %v5405, %v5404
        %v5444 = vpack.c.bf16 %v5407, %v5406
        %v5445 = vpack.c.bf16 %v5409, %v5408
        %v5446 = vpack.c.bf16 %v5411, %v5410
        %v5447 = vpack.c.bf16 %v5413, %v5412
        %v5448 = vpack.c.bf16 %v5415, %v5414
        %v5449 = vpack.c.bf16 %v5417, %v5416
        %v5482 = vunpack.c.l.b16 %v5418
        %v5483 = vunpack.c.h.b16 %v5418
        %v5484 = vunpack.c.l.b16 %v5419
        %v5485 = vunpack.c.h.b16 %v5419
        %v5486 = vunpack.c.l.b16 %v5420
        %v5487 = vunpack.c.h.b16 %v5420
        %v5488 = vunpack.c.l.b16 %v5421
        %v5489 = vunpack.c.h.b16 %v5421
        %v5490 = vunpack.c.l.b16 %v5422
        %v5491 = vunpack.c.h.b16 %v5422
        %v5492 = vunpack.c.l.b16 %v5423
        %v5493 = vunpack.c.h.b16 %v5423
        %v5494 = vunpack.c.l.b16 %v5424
        %v5495 = vunpack.c.h.b16 %v5424
        %v5496 = vunpack.c.l.b16 %v5425
        %v5497 = vunpack.c.h.b16 %v5425
        %v5498 = vunpack.c.l.b16 %v5426
        %v5499 = vunpack.c.h.b16 %v5426
        %v5500 = vunpack.c.l.b16 %v5427
        %v5501 = vunpack.c.h.b16 %v5427
        %v5502 = vunpack.c.l.b16 %v5428
        %v5503 = vunpack.c.h.b16 %v5428
        %v5504 = vunpack.c.l.b16 %v5429
        %v5505 = vunpack.c.h.b16 %v5429
        %v5506 = vunpack.c.l.b16 %v5430
        %v5507 = vunpack.c.h.b16 %v5430
        %v5508 = vunpack.c.l.b16 %v5431
        %v5509 = vunpack.c.h.b16 %v5431
        %v5510 = vunpack.c.l.b16 %v5432
        %v5511 = vunpack.c.h.b16 %v5432
        %v5512 = vunpack.c.l.b16 %v5433
        %v5513 = vunpack.c.h.b16 %v5433
        %v5514 = vunpack.c.l.b16 %v5434
        %v5515 = vunpack.c.h.b16 %v5434
        %v5516 = vunpack.c.l.b16 %v5435
        %v5517 = vunpack.c.h.b16 %v5435
        %v5518 = vunpack.c.l.b16 %v5436
        %v5519 = vunpack.c.h.b16 %v5436
        %v5520 = vunpack.c.l.b16 %v5437
        %v5521 = vunpack.c.h.b16 %v5437
        %v5522 = vunpack.c.l.b16 %v5438
        %v5523 = vunpack.c.h.b16 %v5438
        %v5524 = vunpack.c.l.b16 %v5439
        %v5525 = vunpack.c.h.b16 %v5439
        %v5526 = vunpack.c.l.b16 %v5440
        %v5527 = vunpack.c.h.b16 %v5440
        %v5528 = vunpack.c.l.b16 %v5441
        %v5529 = vunpack.c.h.b16 %v5441
        %v5530 = vunpack.c.l.b16 %v5442
        %v5531 = vunpack.c.h.b16 %v5442
        %v5532 = vunpack.c.l.b16 %v5443
        %v5533 = vunpack.c.h.b16 %v5443
        %v5534 = vunpack.c.l.b16 %v5444
        %v5535 = vunpack.c.h.b16 %v5444
        %v5536 = vunpack.c.l.b16 %v5445
        %v5537 = vunpack.c.h.b16 %v5445
        %v5538 = vunpack.c.l.b16 %v5446
        %v5539 = vunpack.c.h.b16 %v5446
        %v5540 = vunpack.c.l.b16 %v5447
        %v5541 = vunpack.c.h.b16 %v5447
        %v5542 = vunpack.c.l.b16 %v5448
        %v5543 = vunpack.c.h.b16 %v5448
        %v5544 = vunpack.c.l.b16 %v5449
        %v5545 = vunpack.c.h.b16 %v5449
        %v5546 = vpack.c.b16 %v5482, %v5482
        %v5547 = vpack.c.b16 %v5483, %v5483
        %v5548 = vpack.c.b16 %v5484, %v5484
        %v5549 = vpack.c.b16 %v5485, %v5485
        %v5550 = vpack.c.b16 %v5486, %v5486
        %v5551 = vpack.c.b16 %v5487, %v5487
        %v5552 = vpack.c.b16 %v5488, %v5488
        %v5553 = vpack.c.b16 %v5489, %v5489
        %v5554 = vpack.c.b16 %v5490, %v5490
        %v5555 = vpack.c.b16 %v5491, %v5491
        %v5556 = vpack.c.b16 %v5492, %v5492
        %v5557 = vpack.c.b16 %v5493, %v5493
        %v5558 = vpack.c.b16 %v5494, %v5494
        %v5559 = vpack.c.b16 %v5495, %v5495
        %v5560 = vpack.c.b16 %v5496, %v5496
        %v5561 = vpack.c.b16 %v5497, %v5497
        %v5562 = vpack.c.b16 %v5498, %v5498
        %v5563 = vpack.c.b16 %v5499, %v5499
        %v5564 = vpack.c.b16 %v5500, %v5500
        %v5565 = vpack.c.b16 %v5501, %v5501
        %v5566 = vpack.c.b16 %v5502, %v5502
        %v5567 = vpack.c.b16 %v5503, %v5503
        %v5568 = vpack.c.b16 %v5504, %v5504
        %v5569 = vpack.c.b16 %v5505, %v5505
        %v5570 = vpack.c.b16 %v5506, %v5506
        %v5571 = vpack.c.b16 %v5507, %v5507
        %v5572 = vpack.c.b16 %v5508, %v5508
        %v5573 = vpack.c.b16 %v5509, %v5509
        %v5574 = vpack.c.b16 %v5510, %v5510
        %v5575 = vpack.c.b16 %v5511, %v5511
        %v5576 = vpack.c.b16 %v5512, %v5512
        %v5577 = vpack.c.b16 %v5513, %v5513
        %v5578 = vpack.c.b16 %v5514, %v5514
        %v5579 = vpack.c.b16 %v5515, %v5515
        %v5580 = vpack.c.b16 %v5516, %v5516
        %v5581 = vpack.c.b16 %v5517, %v5517
        %v5582 = vpack.c.b16 %v5518, %v5518
        %v5583 = vpack.c.b16 %v5519, %v5519
        %v5584 = vpack.c.b16 %v5520, %v5520
        %v5585 = vpack.c.b16 %v5521, %v5521
        %v5586 = vpack.c.b16 %v5522, %v5522
        %v5587 = vpack.c.b16 %v5523, %v5523
        %v5588 = vpack.c.b16 %v5524, %v5524
        %v5589 = vpack.c.b16 %v5525, %v5525
        %v5590 = vpack.c.b16 %v5526, %v5526
        %v5591 = vpack.c.b16 %v5527, %v5527
        %v5592 = vpack.c.b16 %v5528, %v5528
        %v5593 = vpack.c.b16 %v5529, %v5529
        %v5594 = vpack.c.b16 %v5530, %v5530
        %v5595 = vpack.c.b16 %v5531, %v5531
        %v5596 = vpack.c.b16 %v5532, %v5532
        %v5597 = vpack.c.b16 %v5533, %v5533
        %v5598 = vpack.c.b16 %v5534, %v5534
        %v5599 = vpack.c.b16 %v5535, %v5535
        %v5600 = vpack.c.b16 %v5536, %v5536
        %v5601 = vpack.c.b16 %v5537, %v5537
        %v5602 = vpack.c.b16 %v5538, %v5538
        %v5603 = vpack.c.b16 %v5539, %v5539
        %v5604 = vpack.c.b16 %v5540, %v5540
        %v5605 = vpack.c.b16 %v5541, %v5541
        %v5606 = vpack.c.b16 %v5542, %v5542
        %v5607 = vpack.c.b16 %v5543, %v5543
        %v5608 = vpack.c.b16 %v5544, %v5544
        %v5609 = vpack.c.b16 %v5545, %v5545
        %5674 = vst [vmem:[%s756] sm:$0xf] %v5546
        %5675 = vst [vmem:[%s756 + $0x4] sm:$0xf] %v5547
        %5676 = vst [vmem:[%s756 + $0x8] sm:$0xf] %v5548
        %5677 = vst [vmem:[%s756 + $0xc] sm:$0xf] %v5549
        %5678 = vst [vmem:[%s756 + $0x10] sm:$0xf] %v5550
        %5679 = vst [vmem:[%s756 + $0x14] sm:$0xf] %v5551
        %5680 = vst [vmem:[%s756 + $0x18] sm:$0xf] %v5552
        %5681 = vst [vmem:[%s756 + $0x1c] sm:$0xf] %v5553
        %5682 = vst [vmem:[%s756 + $0x20] sm:$0xf] %v5554
        %5683 = vst [vmem:[%s756 + $0x24] sm:$0xf] %v5555
        %5684 = vst [vmem:[%s756 + $0x28] sm:$0xf] %v5556
        %5685 = vst [vmem:[%s756 + $0x2c] sm:$0xf] %v5557
        %5686 = vst [vmem:[%s756 + $0x30] sm:$0xf] %v5558
        %5687 = vst [vmem:[%s756 + $0x34] sm:$0xf] %v5559
        %5688 = vst [vmem:[%s756 + $0x38] sm:$0xf] %v5560
        %5689 = vst [vmem:[%s756 + $0x3c] sm:$0xf] %v5561
        %5690 = vst [vmem:[%s756 + $0x40] sm:$0xf] %v5562
        %5691 = vst [vmem:[%s756 + $0x44] sm:$0xf] %v5563
        %5692 = vst [vmem:[%s756 + $0x48] sm:$0xf] %v5564
        %5693 = vst [vmem:[%s756 + $0x4c] sm:$0xf] %v5565
        %5694 = vst [vmem:[%s756 + $0x50] sm:$0xf] %v5566
        %5695 = vst [vmem:[%s756 + $0x54] sm:$0xf] %v5567
        %5696 = vst [vmem:[%s756 + $0x58] sm:$0xf] %v5568
        %5697 = vst [vmem:[%s756 + $0x5c] sm:$0xf] %v5569
        %5698 = vst [vmem:[%s756 + $0x60] sm:$0xf] %v5570
        %5699 = vst [vmem:[%s756 + $0x64] sm:$0xf] %v5571
        %5700 = vst [vmem:[%s756 + $0x68] sm:$0xf] %v5572
        %5701 = vst [vmem:[%s756 + $0x6c] sm:$0xf] %v5573
        %5702 = vst [vmem:[%s756 + $0x70] sm:$0xf] %v5574
        %5703 = vst [vmem:[%s756 + $0x74] sm:$0xf] %v5575
        %5704 = vst [vmem:[%s756 + $0x78] sm:$0xf] %v5576
        %5705 = vst [vmem:[%s756 + $0x7c] sm:$0xf] %v5577
        %5706 = vst [vmem:[%s756 + $0x80] sm:$0xf] %v5578
        %5707 = vst [vmem:[%s756 + $0x84] sm:$0xf] %v5579
        %5708 = vst [vmem:[%s756 + $0x88] sm:$0xf] %v5580
        %5709 = vst [vmem:[%s756 + $0x8c] sm:$0xf] %v5581
        %5710 = vst [vmem:[%s756 + $0x90] sm:$0xf] %v5582
        %5711 = vst [vmem:[%s756 + $0x94] sm:$0xf] %v5583
        %5712 = vst [vmem:[%s756 + $0x98] sm:$0xf] %v5584
        %5713 = vst [vmem:[%s756 + $0x9c] sm:$0xf] %v5585
        %5714 = vst [vmem:[%s756 + $0xa0] sm:$0xf] %v5586
        %5715 = vst [vmem:[%s756 + $0xa4] sm:$0xf] %v5587
        %5716 = vst [vmem:[%s756 + $0xa8] sm:$0xf] %v5588
        %5717 = vst [vmem:[%s756 + $0xac] sm:$0xf] %v5589
        %5718 = vst [vmem:[%s756 + $0xb0] sm:$0xf] %v5590
        %5719 = vst [vmem:[%s756 + $0xb4] sm:$0xf] %v5591
        %5720 = vst [vmem:[%s756 + $0xb8] sm:$0xf] %v5592
        %5721 = vst [vmem:[%s756 + $0xbc] sm:$0xf] %v5593
        %5722 = vst [vmem:[%s756 + $0xc0] sm:$0xf] %v5594
        %5723 = vst [vmem:[%s756 + $0xc4] sm:$0xf] %v5595
        %5724 = vst [vmem:[%s756 + $0xc8] sm:$0xf] %v5596
        %5725 = vst [vmem:[%s756 + $0xcc] sm:$0xf] %v5597
        %5726 = vst [vmem:[%s756 + $0xd0] sm:$0xf] %v5598
        %5727 = vst [vmem:[%s756 + $0xd4] sm:$0xf] %v5599
        %5728 = vst [vmem:[%s756 + $0xd8] sm:$0xf] %v5600
        %5729 = vst [vmem:[%s756 + $0xdc] sm:$0xf] %v5601
        %5730 = vst [vmem:[%s756 + $0xe0] sm:$0xf] %v5602
        %5731 = vst [vmem:[%s756 + $0xe4] sm:$0xf] %v5603
        %5732 = vst [vmem:[%s756 + $0xe8] sm:$0xf] %v5604
        %5733 = vst [vmem:[%s756 + $0xec] sm:$0xf] %v5605
        %5734 = vst [vmem:[%s756 + $0xf0] sm:$0xf] %v5606
        %5735 = vst [vmem:[%s756 + $0xf4] sm:$0xf] %v5607
        %5736 = vst [vmem:[%s756 + $0xf8] sm:$0xf] %v5608
        %5737 = vst [vmem:[%s756 + $0xfc] sm:$0xf] %v5609
        %v5738 = vpack.c.bf16 %v1085, %v1082
        %v5739 = vpack.c.bf16 %v1093, %v1090
        %v5740 = vpack.c.bf16 %v1101, %v1098
        %v5741 = vpack.c.bf16 %v1109, %v1106
        %v5742 = vpack.c.bf16 %v1117, %v1114
        %v5743 = vpack.c.bf16 %v1125, %v1122
        %v5744 = vpack.c.bf16 %v1133, %v1130
        %v5745 = vpack.c.bf16 %v1141, %v1138
        %v5746 = vpack.c.bf16 %v1483, %v1481
        %v5747 = vpack.c.bf16 %v1487, %v1485
        %v5748 = vpack.c.bf16 %v1491, %v1489
        %v5749 = vpack.c.bf16 %v1495, %v1493
        %v5750 = vpack.c.bf16 %v1499, %v1497
        %v5751 = vpack.c.bf16 %v1503, %v1501
        %v5752 = vpack.c.bf16 %v1507, %v1505
        %v5753 = vpack.c.bf16 %v1511, %v1509
        %v5754 = vpack.c.bf16 %v1531, %v1529
        %v5755 = vpack.c.bf16 %v1535, %v1533
        %v5756 = vpack.c.bf16 %v1539, %v1537
        %v5757 = vpack.c.bf16 %v1543, %v1541
        %v5758 = vpack.c.bf16 %v1547, %v1545
        %v5759 = vpack.c.bf16 %v1551, %v1549
        %v5760 = vpack.c.bf16 %v1555, %v1553
        %v5761 = vpack.c.bf16 %v1559, %v1557
        %v5762 = vpack.c.bf16 %v1579, %v1577
        %v5763 = vpack.c.bf16 %v1583, %v1581
        %v5764 = vpack.c.bf16 %v1587, %v1585
        %v5765 = vpack.c.bf16 %v1591, %v1589
        %v5766 = vpack.c.bf16 %v1595, %v1593
        %v5767 = vpack.c.bf16 %v1599, %v1597
        %v5768 = vpack.c.bf16 %v1603, %v1601
        %v5769 = vpack.c.bf16 %v1607, %v1605
        %5770 = vmatprep.subr.bf16.mxu0 0
        %5771 = vmatpush1.bf16.msra.mxu0 %v5738
        %5772 = vmatprep.subr.bf16.mxu0 0
        %5773 = vmatpush1.bf16.msra.mxu0 %v5739
        %5774 = vmatprep.subr.bf16.mxu0 0
        %5775 = vmatpush1.bf16.msra.mxu0 %v5740
        %5776 = vmatprep.subr.bf16.mxu0 0
        %5777 = vmatpush1.bf16.msra.mxu0 %v5741
        %5778 = vmatprep.subr.bf16.mxu0 0
        %5779 = vmatpush1.bf16.msra.mxu0 %v5742
        %5780 = vmatprep.subr.bf16.mxu0 0
        %5781 = vmatpush1.bf16.msra.mxu0 %v5743
        %5782 = vmatprep.subr.bf16.mxu0 0
        %5783 = vmatpush1.bf16.msra.mxu0 %v5744
        %5784 = vmatprep.subr.bf16.mxu0 0
        %5785 = vmatpush1.bf16.msra.mxu0 %v5745
        %5786 = vmatprep.subr.bf16.mxu0 0
        %5787 = vmatpush1.bf16.msra.mxu0 0
        %5788 = vmatprep.subr.bf16.mxu0 0
        %5789 = vmatpush1.bf16.msra.mxu0 0
        %5790 = vmatprep.subr.bf16.mxu0 0
        %5791 = vmatpush1.bf16.msra.mxu0 0
        %5792 = vmatprep.subr.bf16.mxu0 0
        %5793 = vmatpush1.bf16.msra.mxu0 0
        %5794 = vmatprep.subr.bf16.mxu0 0
        %5795 = vmatpush1.bf16.msra.mxu0 0
        %5796 = vmatprep.subr.bf16.mxu0 0
        %5797 = vmatpush1.bf16.msra.mxu0 0
        %5798 = vmatprep.subr.bf16.mxu0 0
        %5799 = vmatpush1.bf16.msra.mxu0 0
        %5800 = vmatprep.subr.bf16.mxu0 0
        %5801 = vmatpush1.bf16.msra.mxu0 0
        %5802 = vmatprep.mubr.bf16.mxu0 0
        %5803 = vmatmul.mubr.bf16.gmra.mrb[0].mxu0 %v5418
        %v5804 = vpop.f32.mrb[0].mxu0
        %v5805 = vadd.f32 0.0, %v5804
        %v5806 = vpop.f32.mrb[0].mxu0
        %v5807 = vpop.f32.mrb[0].mxu0
        %v5808 = vadd.f32 0.0, %v5807
        %v5809 = vpop.f32.mrb[0].mxu0
        %5810 = vmatprep.mubr.bf16.mxu0 0
        %5811 = vmatmul.mubr.bf16.gmra.mrb[0].mxu0 %v5419
        %v5812 = vpop.f32.mrb[0].mxu0
        %v5813 = vadd.f32 0.0, %v5812
        %v5814 = vpop.f32.mrb[0].mxu0
        %v5815 = vpop.f32.mrb[0].mxu0
        %v5816 = vadd.f32 0.0, %v5815
        %v5817 = vpop.f32.mrb[0].mxu0
        %5818 = vmatprep.mubr.bf16.mxu0 0
        %5819 = vmatmul.mubr.bf16.gmra.mrb[0].mxu0 %v5420
        %v5820 = vpop.f32.mrb[0].mxu0
        %v5821 = vadd.f32 0.0, %v5820
        %v5822 = vpop.f32.mrb[0].mxu0
        %v5823 = vpop.f32.mrb[0].mxu0
        %v5824 = vadd.f32 0.0, %v5823
        %v5825 = vpop.f32.mrb[0].mxu0
        %5826 = vmatprep.mubr.bf16.mxu0 0
        %5827 = vmatmul.mubr.bf16.gmra.mrb[0].mxu0 %v5421
        %v5828 = vpop.f32.mrb[0].mxu0
        %v5829 = vadd.f32 0.0, %v5828
        %v5830 = vpop.f32.mrb[0].mxu0
        %v5831 = vpop.f32.mrb[0].mxu0
        %v5832 = vadd.f32 0.0, %v5831
        %v5833 = vpop.f32.mrb[0].mxu0
        %5834 = vmatprep.mubr.bf16.mxu0 0
        %5835 = vmatmul.mubr.bf16.gmra.mrb[0].mxu0 %v5422
        %v5836 = vpop.f32.mrb[0].mxu0
        %v5837 = vadd.f32 0.0, %v5836
        %v5838 = vpop.f32.mrb[0].mxu0
        %v5839 = vpop.f32.mrb[0].mxu0
        %v5840 = vadd.f32 0.0, %v5839
        %v5841 = vpop.f32.mrb[0].mxu0
        %5842 = vmatprep.mubr.bf16.mxu0 0
        %5843 = vmatmul.mubr.bf16.gmra.mrb[0].mxu0 %v5423
        %v5844 = vpop.f32.mrb[0].mxu0
        %v5845 = vadd.f32 0.0, %v5844
        %v5846 = vpop.f32.mrb[0].mxu0
        %v5847 = vpop.f32.mrb[0].mxu0
        %v5848 = vadd.f32 0.0, %v5847
        %v5849 = vpop.f32.mrb[0].mxu0
        %5850 = vmatprep.mubr.bf16.mxu0 0
        %5851 = vmatmul.mubr.bf16.gmra.mrb[0].mxu0 %v5424
        %v5852 = vpop.f32.mrb[0].mxu0
        %v5853 = vadd.f32 0.0, %v5852
        %v5854 = vpop.f32.mrb[0].mxu0
        %v5855 = vpop.f32.mrb[0].mxu0
        %v5856 = vadd.f32 0.0, %v5855
        %v5857 = vpop.f32.mrb[0].mxu0
        %5858 = vmatprep.mubr.bf16.mxu0 0
        %5859 = vmatmul.mubr.bf16.gmra.mrb[0].mxu0 %v5425
        %v5860 = vpop.f32.mrb[0].mxu0
        %v5861 = vadd.f32 0.0, %v5860
        %v5862 = vpop.f32.mrb[0].mxu0
        %v5863 = vpop.f32.mrb[0].mxu0
        %v5864 = vadd.f32 0.0, %v5863
        %v5865 = vpop.f32.mrb[0].mxu0
        %5866 = vdwg.mxu0
        %5867 = vmatprep.subr.bf16.mxu0 0
        %5868 = vmatpush1.bf16.msra.mxu0 %v5746
        %5869 = vmatprep.subr.bf16.mxu0 0
        %5870 = vmatpush1.bf16.msra.mxu0 %v5747
        %5871 = vmatprep.subr.bf16.mxu0 0
        %5872 = vmatpush1.bf16.msra.mxu0 %v5748
        %5873 = vmatprep.subr.bf16.mxu0 0
        %5874 = vmatpush1.bf16.msra.mxu0 %v5749
        %5875 = vmatprep.subr.bf16.mxu0 0
        %5876 = vmatpush1.bf16.msra.mxu0 %v5750
        %5877 = vmatprep.subr.bf16.mxu0 0
        %5878 = vmatpush1.bf16.msra.mxu0 %v5751
        %5879 = vmatprep.subr.bf16.mxu0 0
        %5880 = vmatpush1.bf16.msra.mxu0 %v5752
        %5881 = vmatprep.subr.bf16.mxu0 0
        %5882 = vmatpush1.bf16.msra.mxu0 %v5753
        %5883 = vmatprep.subr.bf16.mxu0 0
        %5884 = vmatpush1.bf16.msra.mxu0 0
        %5885 = vmatprep.subr.bf16.mxu0 0
        %5886 = vmatpush1.bf16.msra.mxu0 0
        %5887 = vmatprep.subr.bf16.mxu0 0
        %5888 = vmatpush1.bf16.msra.mxu0 0
        %5889 = vmatprep.subr.bf16.mxu0 0
        %5890 = vmatpush1.bf16.msra.mxu0 0
        %5891 = vmatprep.subr.bf16.mxu0 0
        %5892 = vmatpush1.bf16.msra.mxu0 0
        %5893 = vmatprep.subr.bf16.mxu0 0
        %5894 = vmatpush1.bf16.msra.mxu0 0
        %5895 = vmatprep.subr.bf16.mxu0 0
        %5896 = vmatpush1.bf16.msra.mxu0 0
        %5897 = vmatprep.subr.bf16.mxu0 0
        %5898 = vmatpush1.bf16.msra.mxu0 0
        %5899 = vmatprep.mubr.bf16.mxu0 0
        %5900 = vmatmul.mubr.bf16.gmra.mrb[0].mxu0 %v5426
        %v5901 = vpop.f32.mrb[0].mxu0
        %v5902 = vadd.f32 0.0, %v5901
        %v5903 = vpop.f32.mrb[0].mxu0
        %v5904 = vpop.f32.mrb[0].mxu0
        %v5905 = vadd.f32 0.0, %v5904
        %v5906 = vpop.f32.mrb[0].mxu0
        %5907 = vmatprep.mubr.bf16.mxu0 0
        %5908 = vmatmul.mubr.bf16.gmra.mrb[0].mxu0 %v5427
        %v5909 = vpop.f32.mrb[0].mxu0
        %v5910 = vadd.f32 0.0, %v5909
        %v5911 = vpop.f32.mrb[0].mxu0
        %v5912 = vpop.f32.mrb[0].mxu0
        %v5913 = vadd.f32 0.0, %v5912
        %v5914 = vpop.f32.mrb[0].mxu0
        %5915 = vmatprep.mubr.bf16.mxu0 0
        %5916 = vmatmul.mubr.bf16.gmra.mrb[0].mxu0 %v5428
        %v5917 = vpop.f32.mrb[0].mxu0
        %v5918 = vadd.f32 0.0, %v5917
        %v5919 = vpop.f32.mrb[0].mxu0
        %v5920 = vpop.f32.mrb[0].mxu0
        %v5921 = vadd.f32 0.0, %v5920
        %v5922 = vpop.f32.mrb[0].mxu0
        %5923 = vmatprep.mubr.bf16.mxu0 0
        %5924 = vmatmul.mubr.bf16.gmra.mrb[0].mxu0 %v5429
        %v5925 = vpop.f32.mrb[0].mxu0
        %v5926 = vadd.f32 0.0, %v5925
        %v5927 = vpop.f32.mrb[0].mxu0
        %v5928 = vpop.f32.mrb[0].mxu0
        %v5929 = vadd.f32 0.0, %v5928
        %v5930 = vpop.f32.mrb[0].mxu0
        %5931 = vmatprep.mubr.bf16.mxu0 0
        %5932 = vmatmul.mubr.bf16.gmra.mrb[0].mxu0 %v5430
        %v5933 = vpop.f32.mrb[0].mxu0
        %v5934 = vadd.f32 0.0, %v5933
        %v5935 = vpop.f32.mrb[0].mxu0
        %v5936 = vpop.f32.mrb[0].mxu0
        %v5937 = vadd.f32 0.0, %v5936
        %v5938 = vpop.f32.mrb[0].mxu0
        %5939 = vmatprep.mubr.bf16.mxu0 0
        %5940 = vmatmul.mubr.bf16.gmra.mrb[0].mxu0 %v5431
        %v5941 = vpop.f32.mrb[0].mxu0
        %v5942 = vadd.f32 0.0, %v5941
        %v5943 = vpop.f32.mrb[0].mxu0
        %v5944 = vpop.f32.mrb[0].mxu0
        %v5945 = vadd.f32 0.0, %v5944
        %v5946 = vpop.f32.mrb[0].mxu0
        %5947 = vmatprep.mubr.bf16.mxu0 0
        %5948 = vmatmul.mubr.bf16.gmra.mrb[0].mxu0 %v5432
        %v5949 = vpop.f32.mrb[0].mxu0
        %v5950 = vadd.f32 0.0, %v5949
        %v5951 = vpop.f32.mrb[0].mxu0
        %v5952 = vpop.f32.mrb[0].mxu0
        %v5953 = vadd.f32 0.0, %v5952
        %v5954 = vpop.f32.mrb[0].mxu0
        %5955 = vmatprep.mubr.bf16.mxu0 0
        %5956 = vmatmul.mubr.bf16.gmra.mrb[0].mxu0 %v5433
        %v5957 = vpop.f32.mrb[0].mxu0
        %v5958 = vadd.f32 0.0, %v5957
        %v5959 = vpop.f32.mrb[0].mxu0
        %v5960 = vpop.f32.mrb[0].mxu0
        %v5961 = vadd.f32 0.0, %v5960
        %v5962 = vpop.f32.mrb[0].mxu0
        %5963 = vdwg.mxu0
        %5964 = vmatprep.subr.bf16.mxu0 0
        %5965 = vmatpush1.bf16.msra.mxu0 %v5754
        %5966 = vmatprep.subr.bf16.mxu0 0
        %5967 = vmatpush1.bf16.msra.mxu0 %v5755
        %5968 = vmatprep.subr.bf16.mxu0 0
        %5969 = vmatpush1.bf16.msra.mxu0 %v5756
        %5970 = vmatprep.subr.bf16.mxu0 0
        %5971 = vmatpush1.bf16.msra.mxu0 %v5757
        %5972 = vmatprep.subr.bf16.mxu0 0
        %5973 = vmatpush1.bf16.msra.mxu0 %v5758
        %5974 = vmatprep.subr.bf16.mxu0 0
        %5975 = vmatpush1.bf16.msra.mxu0 %v5759
        %5976 = vmatprep.subr.bf16.mxu0 0
        %5977 = vmatpush1.bf16.msra.mxu0 %v5760
        %5978 = vmatprep.subr.bf16.mxu0 0
        %5979 = vmatpush1.bf16.msra.mxu0 %v5761
        %5980 = vmatprep.subr.bf16.mxu0 0
        %5981 = vmatpush1.bf16.msra.mxu0 0
        %5982 = vmatprep.subr.bf16.mxu0 0
        %5983 = vmatpush1.bf16.msra.mxu0 0
        %5984 = vmatprep.subr.bf16.mxu0 0
        %5985 = vmatpush1.bf16.msra.mxu0 0
        %5986 = vmatprep.subr.bf16.mxu0 0
        %5987 = vmatpush1.bf16.msra.mxu0 0
        %5988 = vmatprep.subr.bf16.mxu0 0
        %5989 = vmatpush1.bf16.msra.mxu0 0
        %5990 = vmatprep.subr.bf16.mxu0 0
        %5991 = vmatpush1.bf16.msra.mxu0 0
        %5992 = vmatprep.subr.bf16.mxu0 0
        %5993 = vmatpush1.bf16.msra.mxu0 0
        %5994 = vmatprep.subr.bf16.mxu0 0
        %5995 = vmatpush1.bf16.msra.mxu0 0
        %5996 = vmatprep.mubr.bf16.mxu0 0
        %5997 = vmatmul.mubr.bf16.gmra.mrb[0].mxu0 %v5434
        %v5998 = vpop.f32.mrb[0].mxu0
        %v5999 = vadd.f32 0.0, %v5998
        %v6000 = vpop.f32.mrb[0].mxu0
        %v6001 = vpop.f32.mrb[0].mxu0
        %v6002 = vadd.f32 0.0, %v6001
        %v6003 = vpop.f32.mrb[0].mxu0
        %6004 = vmatprep.mubr.bf16.mxu0 0
        %6005 = vmatmul.mubr.bf16.gmra.mrb[0].mxu0 %v5435
        %v6006 = vpop.f32.mrb[0].mxu0
        %v6007 = vadd.f32 0.0, %v6006
        %v6008 = vpop.f32.mrb[0].mxu0
        %v6009 = vpop.f32.mrb[0].mxu0
        %v6010 = vadd.f32 0.0, %v6009
        %v6011 = vpop.f32.mrb[0].mxu0
        %6012 = vmatprep.mubr.bf16.mxu0 0
        %6013 = vmatmul.mubr.bf16.gmra.mrb[0].mxu0 %v5436
        %v6014 = vpop.f32.mrb[0].mxu0
        %v6015 = vadd.f32 0.0, %v6014
        %v6016 = vpop.f32.mrb[0].mxu0
        %v6017 = vpop.f32.mrb[0].mxu0
        %v6018 = vadd.f32 0.0, %v6017
        %v6019 = vpop.f32.mrb[0].mxu0
        %6020 = vmatprep.mubr.bf16.mxu0 0
        %6021 = vmatmul.mubr.bf16.gmra.mrb[0].mxu0 %v5437
        %v6022 = vpop.f32.mrb[0].mxu0
        %v6023 = vadd.f32 0.0, %v6022
        %v6024 = vpop.f32.mrb[0].mxu0
        %v6025 = vpop.f32.mrb[0].mxu0
        %v6026 = vadd.f32 0.0, %v6025
        %v6027 = vpop.f32.mrb[0].mxu0
        %6028 = vmatprep.mubr.bf16.mxu0 0
        %6029 = vmatmul.mubr.bf16.gmra.mrb[0].mxu0 %v5438
        %v6030 = vpop.f32.mrb[0].mxu0
        %v6031 = vadd.f32 0.0, %v6030
        %v6032 = vpop.f32.mrb[0].mxu0
        %v6033 = vpop.f32.mrb[0].mxu0
        %v6034 = vadd.f32 0.0, %v6033
        %v6035 = vpop.f32.mrb[0].mxu0
        %6036 = vmatprep.mubr.bf16.mxu0 0
        %6037 = vmatmul.mubr.bf16.gmra.mrb[0].mxu0 %v5439
        %v6038 = vpop.f32.mrb[0].mxu0
        %v6039 = vadd.f32 0.0, %v6038
        %v6040 = vpop.f32.mrb[0].mxu0
        %v6041 = vpop.f32.mrb[0].mxu0
        %v6042 = vadd.f32 0.0, %v6041
        %v6043 = vpop.f32.mrb[0].mxu0
        %6044 = vmatprep.mubr.bf16.mxu0 0
        %6045 = vmatmul.mubr.bf16.gmra.mrb[0].mxu0 %v5440
        %v6046 = vpop.f32.mrb[0].mxu0
        %v6047 = vadd.f32 0.0, %v6046
        %v6048 = vpop.f32.mrb[0].mxu0
        %v6049 = vpop.f32.mrb[0].mxu0
        %v6050 = vadd.f32 0.0, %v6049
        %v6051 = vpop.f32.mrb[0].mxu0
        %6052 = vmatprep.mubr.bf16.mxu0 0
        %6053 = vmatmul.mubr.bf16.gmra.mrb[0].mxu0 %v5441
        %v6054 = vpop.f32.mrb[0].mxu0
        %v6055 = vadd.f32 0.0, %v6054
        %v6056 = vpop.f32.mrb[0].mxu0
        %v6057 = vpop.f32.mrb[0].mxu0
        %v6058 = vadd.f32 0.0, %v6057
        %v6059 = vpop.f32.mrb[0].mxu0
        %6060 = vdwg.mxu0
        %6061 = vmatprep.subr.bf16.mxu0 0
        %6062 = vmatpush1.bf16.msra.mxu0 %v5762
        %6063 = vmatprep.subr.bf16.mxu0 0
        %6064 = vmatpush1.bf16.msra.mxu0 %v5763
        %6065 = vmatprep.subr.bf16.mxu0 0
        %6066 = vmatpush1.bf16.msra.mxu0 %v5764
        %6067 = vmatprep.subr.bf16.mxu0 0
        %6068 = vmatpush1.bf16.msra.mxu0 %v5765
        %6069 = vmatprep.subr.bf16.mxu0 0
        %6070 = vmatpush1.bf16.msra.mxu0 %v5766
        %6071 = vmatprep.subr.bf16.mxu0 0
        %6072 = vmatpush1.bf16.msra.mxu0 %v5767
        %6073 = vmatprep.subr.bf16.mxu0 0
        %6074 = vmatpush1.bf16.msra.mxu0 %v5768
        %6075 = vmatprep.subr.bf16.mxu0 0
        %6076 = vmatpush1.bf16.msra.mxu0 %v5769
        %6077 = vmatprep.subr.bf16.mxu0 0
        %6078 = vmatpush1.bf16.msra.mxu0 0
        %6079 = vmatprep.subr.bf16.mxu0 0
        %6080 = vmatpush1.bf16.msra.mxu0 0
        %6081 = vmatprep.subr.bf16.mxu0 0
        %6082 = vmatpush1.bf16.msra.mxu0 0
        %6083 = vmatprep.subr.bf16.mxu0 0
        %6084 = vmatpush1.bf16.msra.mxu0 0
        %6085 = vmatprep.subr.bf16.mxu0 0
        %6086 = vmatpush1.bf16.msra.mxu0 0
        %6087 = vmatprep.subr.bf16.mxu0 0
        %6088 = vmatpush1.bf16.msra.mxu0 0
        %6089 = vmatprep.subr.bf16.mxu0 0
        %6090 = vmatpush1.bf16.msra.mxu0 0
        %6091 = vmatprep.subr.bf16.mxu0 0
        %6092 = vmatpush1.bf16.msra.mxu0 0
        %6093 = vmatprep.mubr.bf16.mxu0 0
        %6094 = vmatmul.mubr.bf16.gmra.mrb[0].mxu0 %v5442
        %v6095 = vpop.f32.mrb[0].mxu0
        %v6096 = vadd.f32 0.0, %v6095
        %v6097 = vpop.f32.mrb[0].mxu0
        %v6098 = vpop.f32.mrb[0].mxu0
        %v6099 = vadd.f32 0.0, %v6098
        %v6100 = vpop.f32.mrb[0].mxu0
        %6101 = vmatprep.mubr.bf16.mxu0 0
        %6102 = vmatmul.mubr.bf16.gmra.mrb[0].mxu0 %v5443
        %v6103 = vpop.f32.mrb[0].mxu0
        %v6104 = vadd.f32 0.0, %v6103
        %v6105 = vpop.f32.mrb[0].mxu0
        %v6106 = vpop.f32.mrb[0].mxu0
        %v6107 = vadd.f32 0.0, %v6106
        %v6108 = vpop.f32.mrb[0].mxu0
        %6109 = vmatprep.mubr.bf16.mxu0 0
        %6110 = vmatmul.mubr.bf16.gmra.mrb[0].mxu0 %v5444
        %v6111 = vpop.f32.mrb[0].mxu0
        %v6112 = vadd.f32 0.0, %v6111
        %v6113 = vpop.f32.mrb[0].mxu0
        %v6114 = vpop.f32.mrb[0].mxu0
        %v6115 = vadd.f32 0.0, %v6114
        %v6116 = vpop.f32.mrb[0].mxu0
        %6117 = vmatprep.mubr.bf16.mxu0 0
        %6118 = vmatmul.mubr.bf16.gmra.mrb[0].mxu0 %v5445
        %v6119 = vpop.f32.mrb[0].mxu0
        %v6120 = vadd.f32 0.0, %v6119
        %v6121 = vpop.f32.mrb[0].mxu0
        %v6122 = vpop.f32.mrb[0].mxu0
        %v6123 = vadd.f32 0.0, %v6122
        %v6124 = vpop.f32.mrb[0].mxu0
        %6125 = vmatprep.mubr.bf16.mxu0 0
        %6126 = vmatmul.mubr.bf16.gmra.mrb[0].mxu0 %v5446
        %v6127 = vpop.f32.mrb[0].mxu0
        %v6128 = vadd.f32 0.0, %v6127
        %v6129 = vpop.f32.mrb[0].mxu0
        %v6130 = vpop.f32.mrb[0].mxu0
        %v6131 = vadd.f32 0.0, %v6130
        %v6132 = vpop.f32.mrb[0].mxu0
        %6133 = vmatprep.mubr.bf16.mxu0 0
        %6134 = vmatmul.mubr.bf16.gmra.mrb[0].mxu0 %v5447
        %v6135 = vpop.f32.mrb[0].mxu0
        %v6136 = vadd.f32 0.0, %v6135
        %v6137 = vpop.f32.mrb[0].mxu0
        %v6138 = vpop.f32.mrb[0].mxu0
        %v6139 = vadd.f32 0.0, %v6138
        %v6140 = vpop.f32.mrb[0].mxu0
        %6141 = vmatprep.mubr.bf16.mxu0 0
        %6142 = vmatmul.mubr.bf16.gmra.mrb[0].mxu0 %v5448
        %v6143 = vpop.f32.mrb[0].mxu0
        %v6144 = vadd.f32 0.0, %v6143
        %v6145 = vpop.f32.mrb[0].mxu0
        %v6146 = vpop.f32.mrb[0].mxu0
        %v6147 = vadd.f32 0.0, %v6146
        %v6148 = vpop.f32.mrb[0].mxu0
        %6149 = vmatprep.mubr.bf16.mxu0 0
        %6150 = vmatmul.mubr.bf16.gmra.mrb[0].mxu0 %v5449
        %v6151 = vpop.f32.mrb[0].mxu0
        %v6152 = vadd.f32 0.0, %v6151
        %v6153 = vpop.f32.mrb[0].mxu0
        %v6154 = vpop.f32.mrb[0].mxu0
        %v6155 = vadd.f32 0.0, %v6154
        %v6156 = vpop.f32.mrb[0].mxu0
        %6157 = vdwg.mxu0
        %v6158 = vpack.c.bf16 %v5808, %v5805
        %v6159 = vpack.c.bf16 %v5816, %v5813
        %v6160 = vpack.c.bf16 %v5824, %v5821
        %v6161 = vpack.c.bf16 %v5832, %v5829
        %v6162 = vpack.c.bf16 %v5840, %v5837
        %v6163 = vpack.c.bf16 %v5848, %v5845
        %v6164 = vpack.c.bf16 %v5856, %v5853
        %v6165 = vpack.c.bf16 %v5864, %v5861
        %v6166 = vpack.c.bf16 %v5905, %v5902
        %v6167 = vpack.c.bf16 %v5913, %v5910
        %v6168 = vpack.c.bf16 %v5921, %v5918
        %v6169 = vpack.c.bf16 %v5929, %v5926
        %v6170 = vpack.c.bf16 %v5937, %v5934
        %v6171 = vpack.c.bf16 %v5945, %v5942
        %v6172 = vpack.c.bf16 %v5953, %v5950
        %v6173 = vpack.c.bf16 %v5961, %v5958
        %v6174 = vpack.c.bf16 %v6002, %v5999
        %v6175 = vpack.c.bf16 %v6010, %v6007
        %v6176 = vpack.c.bf16 %v6018, %v6015
        %v6177 = vpack.c.bf16 %v6026, %v6023
        %v6178 = vpack.c.bf16 %v6034, %v6031
        %v6179 = vpack.c.bf16 %v6042, %v6039
        %v6180 = vpack.c.bf16 %v6050, %v6047
        %v6181 = vpack.c.bf16 %v6058, %v6055
        %v6182 = vpack.c.bf16 %v6099, %v6096
        %v6183 = vpack.c.bf16 %v6107, %v6104
        %v6184 = vpack.c.bf16 %v6115, %v6112
        %v6185 = vpack.c.bf16 %v6123, %v6120
        %v6186 = vpack.c.bf16 %v6131, %v6128
        %v6187 = vpack.c.bf16 %v6139, %v6136
        %v6188 = vpack.c.bf16 %v6147, %v6144
        %v6189 = vpack.c.bf16 %v6155, %v6152
        %v6190 = vld [vmem:[%s643] sm:$0xff]
        %v6191 = vld [vmem:[%s643 + $0x8] sm:$0xff]
        %v6192 = vld [vmem:[%s643 + $0x10] sm:$0xff]
        %v6193 = vld [vmem:[%s643 + $0x18] sm:$0xff]
        %v6194 = vld [vmem:[%s643 + $0x20] sm:$0xff]
        %v6195 = vld [vmem:[%s643 + $0x28] sm:$0xff]
        %v6196 = vld [vmem:[%s643 + $0x30] sm:$0xff]
        %v6197 = vld [vmem:[%s643 + $0x38] sm:$0xff]
        %v6198 = vld [vmem:[%s643 + $0x40] sm:$0xff]
        %v6199 = vld [vmem:[%s643 + $0x48] sm:$0xff]
        %v6200 = vld [vmem:[%s643 + $0x50] sm:$0xff]
        %v6201 = vld [vmem:[%s643 + $0x58] sm:$0xff]
        %v6202 = vld [vmem:[%s643 + $0x60] sm:$0xff]
        %v6203 = vld [vmem:[%s643 + $0x68] sm:$0xff]
        %v6204 = vld [vmem:[%s643 + $0x70] sm:$0xff]
        %v6205 = vld [vmem:[%s643 + $0x78] sm:$0xff]
        %v6206 = vpack.c.bf16 %v6191, %v6190
        %v6207 = vpack.c.bf16 %v6193, %v6192
        %v6208 = vpack.c.bf16 %v6195, %v6194
        %v6209 = vpack.c.bf16 %v6197, %v6196
        %v6210 = vpack.c.bf16 %v6199, %v6198
        %v6211 = vpack.c.bf16 %v6201, %v6200
        %v6212 = vpack.c.bf16 %v6203, %v6202
        %v6213 = vpack.c.bf16 %v6205, %v6204
        %v6215 = vsel %vm1688, %v6158, 0
        %v6218 = vsel %vm1688, %v6159, 0
        %v6221 = vsel %vm1688, %v6160, 0
        %v6224 = vsel %vm1688, %v6161, 0
        %v6227 = vsel %vm1688, %v6162, 0
        %v6230 = vsel %vm1688, %v6163, 0
        %v6233 = vsel %vm1688, %v6164, 0
        %v6236 = vsel %vm1688, %v6165, 0
        %6238 = vmatprep.subr.bf16.mxu0 0
        %6239 = vmatpush1.bf16.msra.mxu0 %v6206
        %6240 = vmatprep.subr.bf16.mxu0 0
        %6241 = vmatpush1.bf16.msra.mxu0 %v6207
        %6242 = vmatprep.subr.bf16.mxu0 0
        %6243 = vmatpush1.bf16.msra.mxu0 0
        %6244 = vmatprep.subr.bf16.mxu0 0
        %6245 = vmatpush1.bf16.msra.mxu0 0
        %6246 = vmatprep.subr.bf16.mxu0 0
        %6247 = vmatpush1.bf16.msra.mxu0 0
        %6248 = vmatprep.subr.bf16.mxu0 0
        %6249 = vmatpush1.bf16.msra.mxu0 0
        %6250 = vmatprep.subr.bf16.mxu0 0
        %6251 = vmatpush1.bf16.msra.mxu0 0
        %6252 = vmatprep.subr.bf16.mxu0 0
        %6253 = vmatpush1.bf16.msra.mxu0 0
        %6254 = vmatprep.subr.bf16.mxu0 0
        %6255 = vmatpush1.bf16.msra.mxu0 0
        %6256 = vmatprep.subr.bf16.mxu0 0
        %6257 = vmatpush1.bf16.msra.mxu0 0
        %6258 = vmatprep.subr.bf16.mxu0 0
        %6259 = vmatpush1.bf16.msra.mxu0 0
        %6260 = vmatprep.subr.bf16.mxu0 0
        %6261 = vmatpush1.bf16.msra.mxu0 0
        %6262 = vmatprep.subr.bf16.mxu0 0
        %6263 = vmatpush1.bf16.msra.mxu0 0
        %6264 = vmatprep.subr.bf16.mxu0 0
        %6265 = vmatpush1.bf16.msra.mxu0 0
        %6266 = vmatprep.subr.bf16.mxu0 0
        %6267 = vmatpush1.bf16.msra.mxu0 0
        %6268 = vmatprep.subr.bf16.mxu0 0
        %6269 = vmatpush1.bf16.msra.mxu0 0
        %6270 = vmatprep.mubr.bf16.mxu0 0
        %6271 = vmatmul.mubr.bf16.gmra.mrb[0].mxu0 %v6215
        %v6272 = vpop.f32.mrb[0].mxu0
        %v6273 = vadd.f32 0.0, %v6272
        %v6274 = vpop.f32.mrb[0].mxu0
        %v6275 = vpop.f32.mrb[0].mxu0
        %v6276 = vadd.f32 0.0, %v6275
        %v6277 = vpop.f32.mrb[0].mxu0
        %6278 = vmatprep.mubr.bf16.mxu0 0
        %6279 = vmatmul.mubr.bf16.gmra.mrb[0].mxu0 %v6218
        %v6280 = vpop.f32.mrb[0].mxu0
        %v6281 = vadd.f32 0.0, %v6280
        %v6282 = vpop.f32.mrb[0].mxu0
        %v6283 = vpop.f32.mrb[0].mxu0
        %v6284 = vadd.f32 0.0, %v6283
        %v6285 = vpop.f32.mrb[0].mxu0
        %6286 = vmatprep.mubr.bf16.mxu0 0
        %6287 = vmatmul.mubr.bf16.gmra.mrb[0].mxu0 %v6221
        %v6288 = vpop.f32.mrb[0].mxu0
        %v6289 = vadd.f32 0.0, %v6288
        %v6290 = vpop.f32.mrb[0].mxu0
        %v6291 = vpop.f32.mrb[0].mxu0
        %v6292 = vadd.f32 0.0, %v6291
        %v6293 = vpop.f32.mrb[0].mxu0
        %6294 = vmatprep.mubr.bf16.mxu0 0
        %6295 = vmatmul.mubr.bf16.gmra.mrb[0].mxu0 %v6224
        %v6296 = vpop.f32.mrb[0].mxu0
        %v6297 = vadd.f32 0.0, %v6296
        %v6298 = vpop.f32.mrb[0].mxu0
        %v6299 = vpop.f32.mrb[0].mxu0
        %v6300 = vadd.f32 0.0, %v6299
        %v6301 = vpop.f32.mrb[0].mxu0
        %6302 = vmatprep.mubr.bf16.mxu0 0
        %6303 = vmatmul.mubr.bf16.gmra.mrb[0].mxu0 %v6227
        %v6304 = vpop.f32.mrb[0].mxu0
        %v6305 = vadd.f32 0.0, %v6304
        %v6306 = vpop.f32.mrb[0].mxu0
        %v6307 = vpop.f32.mrb[0].mxu0
        %v6308 = vadd.f32 0.0, %v6307
        %v6309 = vpop.f32.mrb[0].mxu0
        %6310 = vmatprep.mubr.bf16.mxu0 0
        %6311 = vmatmul.mubr.bf16.gmra.mrb[0].mxu0 %v6230
        %v6312 = vpop.f32.mrb[0].mxu0
        %v6313 = vadd.f32 0.0, %v6312
        %v6314 = vpop.f32.mrb[0].mxu0
        %v6315 = vpop.f32.mrb[0].mxu0
        %v6316 = vadd.f32 0.0, %v6315
        %v6317 = vpop.f32.mrb[0].mxu0
        %6318 = vmatprep.mubr.bf16.mxu0 0
        %6319 = vmatmul.mubr.bf16.gmra.mrb[0].mxu0 %v6233
        %v6320 = vpop.f32.mrb[0].mxu0
        %v6321 = vadd.f32 0.0, %v6320
        %v6322 = vpop.f32.mrb[0].mxu0
        %v6323 = vpop.f32.mrb[0].mxu0
        %v6324 = vadd.f32 0.0, %v6323
        %v6325 = vpop.f32.mrb[0].mxu0
        %6326 = vmatprep.mubr.bf16.mxu0 0
        %6327 = vmatmul.mubr.bf16.gmra.mrb[0].mxu0 %v6236
        %v6328 = vpop.f32.mrb[0].mxu0
        %v6329 = vadd.f32 0.0, %v6328
        %v6330 = vpop.f32.mrb[0].mxu0
        %v6331 = vpop.f32.mrb[0].mxu0
        %v6332 = vadd.f32 0.0, %v6331
        %v6333 = vpop.f32.mrb[0].mxu0
        %6334 = vdwg.mxu0
        %v6336 = vsel %vm1688, %v6166, 0
        %v6339 = vsel %vm1688, %v6167, 0
        %v6342 = vsel %vm1688, %v6168, 0
        %v6345 = vsel %vm1688, %v6169, 0
        %v6348 = vsel %vm1688, %v6170, 0
        %v6351 = vsel %vm1688, %v6171, 0
        %v6354 = vsel %vm1688, %v6172, 0
        %v6357 = vsel %vm1688, %v6173, 0
        %6359 = vmatprep.subr.bf16.mxu0 0
        %6360 = vmatpush1.bf16.msra.mxu0 %v6208
        %6361 = vmatprep.subr.bf16.mxu0 0
        %6362 = vmatpush1.bf16.msra.mxu0 %v6209
        %6363 = vmatprep.subr.bf16.mxu0 0
        %6364 = vmatpush1.bf16.msra.mxu0 0
        %6365 = vmatprep.subr.bf16.mxu0 0
        %6366 = vmatpush1.bf16.msra.mxu0 0
        %6367 = vmatprep.subr.bf16.mxu0 0
        %6368 = vmatpush1.bf16.msra.mxu0 0
        %6369 = vmatprep.subr.bf16.mxu0 0
        %6370 = vmatpush1.bf16.msra.mxu0 0
        %6371 = vmatprep.subr.bf16.mxu0 0
        %6372 = vmatpush1.bf16.msra.mxu0 0
        %6373 = vmatprep.subr.bf16.mxu0 0
        %6374 = vmatpush1.bf16.msra.mxu0 0
        %6375 = vmatprep.subr.bf16.mxu0 0
        %6376 = vmatpush1.bf16.msra.mxu0 0
        %6377 = vmatprep.subr.bf16.mxu0 0
        %6378 = vmatpush1.bf16.msra.mxu0 0
        %6379 = vmatprep.subr.bf16.mxu0 0
        %6380 = vmatpush1.bf16.msra.mxu0 0
        %6381 = vmatprep.subr.bf16.mxu0 0
        %6382 = vmatpush1.bf16.msra.mxu0 0
        %6383 = vmatprep.subr.bf16.mxu0 0
        %6384 = vmatpush1.bf16.msra.mxu0 0
        %6385 = vmatprep.subr.bf16.mxu0 0
        %6386 = vmatpush1.bf16.msra.mxu0 0
        %6387 = vmatprep.subr.bf16.mxu0 0
        %6388 = vmatpush1.bf16.msra.mxu0 0
        %6389 = vmatprep.subr.bf16.mxu0 0
        %6390 = vmatpush1.bf16.msra.mxu0 0
        %6391 = vmatprep.mubr.bf16.mxu0 0
        %6392 = vmatmul.mubr.bf16.gmra.mrb[0].mxu0 %v6336
        %v6393 = vpop.f32.mrb[0].mxu0
        %v6394 = vadd.f32 0.0, %v6393
        %v6395 = vpop.f32.mrb[0].mxu0
        %v6396 = vpop.f32.mrb[0].mxu0
        %v6397 = vadd.f32 0.0, %v6396
        %v6398 = vpop.f32.mrb[0].mxu0
        %6399 = vmatprep.mubr.bf16.mxu0 0
        %6400 = vmatmul.mubr.bf16.gmra.mrb[0].mxu0 %v6339
        %v6401 = vpop.f32.mrb[0].mxu0
        %v6402 = vadd.f32 0.0, %v6401
        %v6403 = vpop.f32.mrb[0].mxu0
        %v6404 = vpop.f32.mrb[0].mxu0
        %v6405 = vadd.f32 0.0, %v6404
        %v6406 = vpop.f32.mrb[0].mxu0
        %6407 = vmatprep.mubr.bf16.mxu0 0
        %6408 = vmatmul.mubr.bf16.gmra.mrb[0].mxu0 %v6342
        %v6409 = vpop.f32.mrb[0].mxu0
        %v6410 = vadd.f32 0.0, %v6409
        %v6411 = vpop.f32.mrb[0].mxu0
        %v6412 = vpop.f32.mrb[0].mxu0
        %v6413 = vadd.f32 0.0, %v6412
        %v6414 = vpop.f32.mrb[0].mxu0
        %6415 = vmatprep.mubr.bf16.mxu0 0
        %6416 = vmatmul.mubr.bf16.gmra.mrb[0].mxu0 %v6345
        %v6417 = vpop.f32.mrb[0].mxu0
        %v6418 = vadd.f32 0.0, %v6417
        %v6419 = vpop.f32.mrb[0].mxu0
        %v6420 = vpop.f32.mrb[0].mxu0
        %v6421 = vadd.f32 0.0, %v6420
        %v6422 = vpop.f32.mrb[0].mxu0
        %6423 = vmatprep.mubr.bf16.mxu0 0
        %6424 = vmatmul.mubr.bf16.gmra.mrb[0].mxu0 %v6348
        %v6425 = vpop.f32.mrb[0].mxu0
        %v6426 = vadd.f32 0.0, %v6425
        %v6427 = vpop.f32.mrb[0].mxu0
        %v6428 = vpop.f32.mrb[0].mxu0
        %v6429 = vadd.f32 0.0, %v6428
        %v6430 = vpop.f32.mrb[0].mxu0
        %6431 = vmatprep.mubr.bf16.mxu0 0
        %6432 = vmatmul.mubr.bf16.gmra.mrb[0].mxu0 %v6351
        %v6433 = vpop.f32.mrb[0].mxu0
        %v6434 = vadd.f32 0.0, %v6433
        %v6435 = vpop.f32.mrb[0].mxu0
        %v6436 = vpop.f32.mrb[0].mxu0
        %v6437 = vadd.f32 0.0, %v6436
        %v6438 = vpop.f32.mrb[0].mxu0
        %6439 = vmatprep.mubr.bf16.mxu0 0
        %6440 = vmatmul.mubr.bf16.gmra.mrb[0].mxu0 %v6354
        %v6441 = vpop.f32.mrb[0].mxu0
        %v6442 = vadd.f32 0.0, %v6441
        %v6443 = vpop.f32.mrb[0].mxu0
        %v6444 = vpop.f32.mrb[0].mxu0
        %v6445 = vadd.f32 0.0, %v6444
        %v6446 = vpop.f32.mrb[0].mxu0
        %6447 = vmatprep.mubr.bf16.mxu0 0
        %6448 = vmatmul.mubr.bf16.gmra.mrb[0].mxu0 %v6357
        %v6449 = vpop.f32.mrb[0].mxu0
        %v6450 = vadd.f32 0.0, %v6449
        %v6451 = vpop.f32.mrb[0].mxu0
        %v6452 = vpop.f32.mrb[0].mxu0
        %v6453 = vadd.f32 0.0, %v6452
        %v6454 = vpop.f32.mrb[0].mxu0
        %6455 = vdwg.mxu0
        %v6457 = vsel %vm1688, %v6174, 0
        %v6460 = vsel %vm1688, %v6175, 0
        %v6463 = vsel %vm1688, %v6176, 0
        %v6466 = vsel %vm1688, %v6177, 0
        %v6469 = vsel %vm1688, %v6178, 0
        %v6472 = vsel %vm1688, %v6179, 0
        %v6475 = vsel %vm1688, %v6180, 0
        %v6478 = vsel %vm1688, %v6181, 0
        %6480 = vmatprep.subr.bf16.mxu0 0
        %6481 = vmatpush1.bf16.msra.mxu0 %v6210
        %6482 = vmatprep.subr.bf16.mxu0 0
        %6483 = vmatpush1.bf16.msra.mxu0 %v6211
        %6484 = vmatprep.subr.bf16.mxu0 0
        %6485 = vmatpush1.bf16.msra.mxu0 0
        %6486 = vmatprep.subr.bf16.mxu0 0
        %6487 = vmatpush1.bf16.msra.mxu0 0
        %6488 = vmatprep.subr.bf16.mxu0 0
        %6489 = vmatpush1.bf16.msra.mxu0 0
        %6490 = vmatprep.subr.bf16.mxu0 0
        %6491 = vmatpush1.bf16.msra.mxu0 0
        %6492 = vmatprep.subr.bf16.mxu0 0
        %6493 = vmatpush1.bf16.msra.mxu0 0
        %6494 = vmatprep.subr.bf16.mxu0 0
        %6495 = vmatpush1.bf16.msra.mxu0 0
        %6496 = vmatprep.subr.bf16.mxu0 0
        %6497 = vmatpush1.bf16.msra.mxu0 0
        %6498 = vmatprep.subr.bf16.mxu0 0
        %6499 = vmatpush1.bf16.msra.mxu0 0
        %6500 = vmatprep.subr.bf16.mxu0 0
        %6501 = vmatpush1.bf16.msra.mxu0 0
        %6502 = vmatprep.subr.bf16.mxu0 0
        %6503 = vmatpush1.bf16.msra.mxu0 0
        %6504 = vmatprep.subr.bf16.mxu0 0
        %6505 = vmatpush1.bf16.msra.mxu0 0
        %6506 = vmatprep.subr.bf16.mxu0 0
        %6507 = vmatpush1.bf16.msra.mxu0 0
        %6508 = vmatprep.subr.bf16.mxu0 0
        %6509 = vmatpush1.bf16.msra.mxu0 0
        %6510 = vmatprep.subr.bf16.mxu0 0
        %6511 = vmatpush1.bf16.msra.mxu0 0
        %6512 = vmatprep.mubr.bf16.mxu0 0
        %6513 = vmatmul.mubr.bf16.gmra.mrb[0].mxu0 %v6457
        %v6514 = vpop.f32.mrb[0].mxu0
        %v6515 = vadd.f32 0.0, %v6514
        %v6516 = vpop.f32.mrb[0].mxu0
        %v6517 = vpop.f32.mrb[0].mxu0
        %v6518 = vadd.f32 0.0, %v6517
        %v6519 = vpop.f32.mrb[0].mxu0
        %6520 = vmatprep.mubr.bf16.mxu0 0
        %6521 = vmatmul.mubr.bf16.gmra.mrb[0].mxu0 %v6460
        %v6522 = vpop.f32.mrb[0].mxu0
        %v6523 = vadd.f32 0.0, %v6522
        %v6524 = vpop.f32.mrb[0].mxu0
        %v6525 = vpop.f32.mrb[0].mxu0
        %v6526 = vadd.f32 0.0, %v6525
        %v6527 = vpop.f32.mrb[0].mxu0
        %6528 = vmatprep.mubr.bf16.mxu0 0
        %6529 = vmatmul.mubr.bf16.gmra.mrb[0].mxu0 %v6463
        %v6530 = vpop.f32.mrb[0].mxu0
        %v6531 = vadd.f32 0.0, %v6530
        %v6532 = vpop.f32.mrb[0].mxu0
        %v6533 = vpop.f32.mrb[0].mxu0
        %v6534 = vadd.f32 0.0, %v6533
        %v6535 = vpop.f32.mrb[0].mxu0
        %6536 = vmatprep.mubr.bf16.mxu0 0
        %6537 = vmatmul.mubr.bf16.gmra.mrb[0].mxu0 %v6466
        %v6538 = vpop.f32.mrb[0].mxu0
        %v6539 = vadd.f32 0.0, %v6538
        %v6540 = vpop.f32.mrb[0].mxu0
        %v6541 = vpop.f32.mrb[0].mxu0
        %v6542 = vadd.f32 0.0, %v6541
        %v6543 = vpop.f32.mrb[0].mxu0
        %6544 = vmatprep.mubr.bf16.mxu0 0
        %6545 = vmatmul.mubr.bf16.gmra.mrb[0].mxu0 %v6469
        %v6546 = vpop.f32.mrb[0].mxu0
        %v6547 = vadd.f32 0.0, %v6546
        %v6548 = vpop.f32.mrb[0].mxu0
        %v6549 = vpop.f32.mrb[0].mxu0
        %v6550 = vadd.f32 0.0, %v6549
        %v6551 = vpop.f32.mrb[0].mxu0
        %6552 = vmatprep.mubr.bf16.mxu0 0
        %6553 = vmatmul.mubr.bf16.gmra.mrb[0].mxu0 %v6472
        %v6554 = vpop.f32.mrb[0].mxu0
        %v6555 = vadd.f32 0.0, %v6554
        %v6556 = vpop.f32.mrb[0].mxu0
        %v6557 = vpop.f32.mrb[0].mxu0
        %v6558 = vadd.f32 0.0, %v6557
        %v6559 = vpop.f32.mrb[0].mxu0
        %6560 = vmatprep.mubr.bf16.mxu0 0
        %6561 = vmatmul.mubr.bf16.gmra.mrb[0].mxu0 %v6475
        %v6562 = vpop.f32.mrb[0].mxu0
        %v6563 = vadd.f32 0.0, %v6562
        %v6564 = vpop.f32.mrb[0].mxu0
        %v6565 = vpop.f32.mrb[0].mxu0
        %v6566 = vadd.f32 0.0, %v6565
        %v6567 = vpop.f32.mrb[0].mxu0
        %6568 = vmatprep.mubr.bf16.mxu0 0
        %6569 = vmatmul.mubr.bf16.gmra.mrb[0].mxu0 %v6478
        %v6570 = vpop.f32.mrb[0].mxu0
        %v6571 = vadd.f32 0.0, %v6570
        %v6572 = vpop.f32.mrb[0].mxu0
        %v6573 = vpop.f32.mrb[0].mxu0
        %v6574 = vadd.f32 0.0, %v6573
        %v6575 = vpop.f32.mrb[0].mxu0
        %6576 = vdwg.mxu0
        %v6578 = vsel %vm1688, %v6182, 0
        %v6581 = vsel %vm1688, %v6183, 0
        %v6584 = vsel %vm1688, %v6184, 0
        %v6587 = vsel %vm1688, %v6185, 0
        %v6590 = vsel %vm1688, %v6186, 0
        %v6593 = vsel %vm1688, %v6187, 0
        %v6596 = vsel %vm1688, %v6188, 0
        %v6599 = vsel %vm1688, %v6189, 0
        %6601 = vmatprep.subr.bf16.mxu0 0
        %6602 = vmatpush1.bf16.msra.mxu0 %v6212
        %6603 = vmatprep.subr.bf16.mxu0 0
        %6604 = vmatpush1.bf16.msra.mxu0 %v6213
        %6605 = vmatprep.subr.bf16.mxu0 0
        %6606 = vmatpush1.bf16.msra.mxu0 0
        %6607 = vmatprep.subr.bf16.mxu0 0
        %6608 = vmatpush1.bf16.msra.mxu0 0
        %6609 = vmatprep.subr.bf16.mxu0 0
        %6610 = vmatpush1.bf16.msra.mxu0 0
        %6611 = vmatprep.subr.bf16.mxu0 0
        %6612 = vmatpush1.bf16.msra.mxu0 0
        %6613 = vmatprep.subr.bf16.mxu0 0
        %6614 = vmatpush1.bf16.msra.mxu0 0
        %6615 = vmatprep.subr.bf16.mxu0 0
        %6616 = vmatpush1.bf16.msra.mxu0 0
        %6617 = vmatprep.subr.bf16.mxu0 0
        %6618 = vmatpush1.bf16.msra.mxu0 0
        %6619 = vmatprep.subr.bf16.mxu0 0
        %6620 = vmatpush1.bf16.msra.mxu0 0
        %6621 = vmatprep.subr.bf16.mxu0 0
        %6622 = vmatpush1.bf16.msra.mxu0 0
        %6623 = vmatprep.subr.bf16.mxu0 0
        %6624 = vmatpush1.bf16.msra.mxu0 0
        %6625 = vmatprep.subr.bf16.mxu0 0
        %6626 = vmatpush1.bf16.msra.mxu0 0
        %6627 = vmatprep.subr.bf16.mxu0 0
        %6628 = vmatpush1.bf16.msra.mxu0 0
        %6629 = vmatprep.subr.bf16.mxu0 0
        %6630 = vmatpush1.bf16.msra.mxu0 0
        %6631 = vmatprep.subr.bf16.mxu0 0
        %6632 = vmatpush1.bf16.msra.mxu0 0
        %6633 = vmatprep.mubr.bf16.mxu0 0
        %6634 = vmatmul.mubr.bf16.gmra.mrb[0].mxu0 %v6578
        %v6635 = vpop.f32.mrb[0].mxu0
        %v6636 = vadd.f32 0.0, %v6635
        %v6637 = vpop.f32.mrb[0].mxu0
        %v6638 = vpop.f32.mrb[0].mxu0
        %v6639 = vadd.f32 0.0, %v6638
        %v6640 = vpop.f32.mrb[0].mxu0
        %6641 = vmatprep.mubr.bf16.mxu0 0
        %6642 = vmatmul.mubr.bf16.gmra.mrb[0].mxu0 %v6581
        %v6643 = vpop.f32.mrb[0].mxu0
        %v6644 = vadd.f32 0.0, %v6643
        %v6645 = vpop.f32.mrb[0].mxu0
        %v6646 = vpop.f32.mrb[0].mxu0
        %v6647 = vadd.f32 0.0, %v6646
        %v6648 = vpop.f32.mrb[0].mxu0
        %6649 = vmatprep.mubr.bf16.mxu0 0
        %6650 = vmatmul.mubr.bf16.gmra.mrb[0].mxu0 %v6584
        %v6651 = vpop.f32.mrb[0].mxu0
        %v6652 = vadd.f32 0.0, %v6651
        %v6653 = vpop.f32.mrb[0].mxu0
        %v6654 = vpop.f32.mrb[0].mxu0
        %v6655 = vadd.f32 0.0, %v6654
        %v6656 = vpop.f32.mrb[0].mxu0
        %6657 = vmatprep.mubr.bf16.mxu0 0
        %6658 = vmatmul.mubr.bf16.gmra.mrb[0].mxu0 %v6587
        %v6659 = vpop.f32.mrb[0].mxu0
        %v6660 = vadd.f32 0.0, %v6659
        %v6661 = vpop.f32.mrb[0].mxu0
        %v6662 = vpop.f32.mrb[0].mxu0
        %v6663 = vadd.f32 0.0, %v6662
        %v6664 = vpop.f32.mrb[0].mxu0
        %6665 = vmatprep.mubr.bf16.mxu0 0
        %6666 = vmatmul.mubr.bf16.gmra.mrb[0].mxu0 %v6590
        %v6667 = vpop.f32.mrb[0].mxu0
        %v6668 = vadd.f32 0.0, %v6667
        %v6669 = vpop.f32.mrb[0].mxu0
        %v6670 = vpop.f32.mrb[0].mxu0
        %v6671 = vadd.f32 0.0, %v6670
        %v6672 = vpop.f32.mrb[0].mxu0
        %6673 = vmatprep.mubr.bf16.mxu0 0
        %6674 = vmatmul.mubr.bf16.gmra.mrb[0].mxu0 %v6593
        %v6675 = vpop.f32.mrb[0].mxu0
        %v6676 = vadd.f32 0.0, %v6675
        %v6677 = vpop.f32.mrb[0].mxu0
        %v6678 = vpop.f32.mrb[0].mxu0
        %v6679 = vadd.f32 0.0, %v6678
        %v6680 = vpop.f32.mrb[0].mxu0
        %6681 = vmatprep.mubr.bf16.mxu0 0
        %6682 = vmatmul.mubr.bf16.gmra.mrb[0].mxu0 %v6596
        %v6683 = vpop.f32.mrb[0].mxu0
        %v6684 = vadd.f32 0.0, %v6683
        %v6685 = vpop.f32.mrb[0].mxu0
        %v6686 = vpop.f32.mrb[0].mxu0
        %v6687 = vadd.f32 0.0, %v6686
        %v6688 = vpop.f32.mrb[0].mxu0
        %6689 = vmatprep.mubr.bf16.mxu0 0
        %6690 = vmatmul.mubr.bf16.gmra.mrb[0].mxu0 %v6599
        %v6691 = vpop.f32.mrb[0].mxu0
        %v6692 = vadd.f32 0.0, %v6691
        %v6693 = vpop.f32.mrb[0].mxu0
        %v6694 = vpop.f32.mrb[0].mxu0
        %v6695 = vadd.f32 0.0, %v6694
        %v6696 = vpop.f32.mrb[0].mxu0
        %6697 = vdwg.mxu0
        %v6698 = vadd.f32 %v6273, %v6394
        %v6699 = vadd.f32 %v6698, %v6515
        %v6700 = vadd.f32 %v6699, %v6636
        %v6701 = vadd.f32 %v6276, %v6397
        %v6702 = vadd.f32 %v6701, %v6518
        %v6703 = vadd.f32 %v6702, %v6639
        %v6704 = vadd.f32 %v6281, %v6402
        %v6705 = vadd.f32 %v6704, %v6523
        %v6706 = vadd.f32 %v6705, %v6644
        %v6707 = vadd.f32 %v6284, %v6405
        %v6708 = vadd.f32 %v6707, %v6526
        %v6709 = vadd.f32 %v6708, %v6647
        %v6710 = vadd.f32 %v6289, %v6410
        %v6711 = vadd.f32 %v6710, %v6531
        %v6712 = vadd.f32 %v6711, %v6652
        %v6713 = vadd.f32 %v6292, %v6413
        %v6714 = vadd.f32 %v6713, %v6534
        %v6715 = vadd.f32 %v6714, %v6655
        %v6716 = vadd.f32 %v6297, %v6418
        %v6717 = vadd.f32 %v6716, %v6539
        %v6718 = vadd.f32 %v6717, %v6660
        %v6719 = vadd.f32 %v6300, %v6421
        %v6720 = vadd.f32 %v6719, %v6542
        %v6721 = vadd.f32 %v6720, %v6663
        %v6722 = vadd.f32 %v6305, %v6426
        %v6723 = vadd.f32 %v6722, %v6547
        %v6724 = vadd.f32 %v6723, %v6668
        %v6725 = vadd.f32 %v6308, %v6429
        %v6726 = vadd.f32 %v6725, %v6550
        %v6727 = vadd.f32 %v6726, %v6671
        %v6728 = vadd.f32 %v6313, %v6434
        %v6729 = vadd.f32 %v6728, %v6555
        %v6730 = vadd.f32 %v6729, %v6676
        %v6731 = vadd.f32 %v6316, %v6437
        %v6732 = vadd.f32 %v6731, %v6558
        %v6733 = vadd.f32 %v6732, %v6679
        %v6734 = vadd.f32 %v6321, %v6442
        %v6735 = vadd.f32 %v6734, %v6563
        %v6736 = vadd.f32 %v6735, %v6684
        %v6737 = vadd.f32 %v6324, %v6445
        %v6738 = vadd.f32 %v6737, %v6566
        %v6739 = vadd.f32 %v6738, %v6687
        %v6740 = vadd.f32 %v6329, %v6450
        %v6741 = vadd.f32 %v6740, %v6571
        %v6742 = vadd.f32 %v6741, %v6692
        %v6743 = vadd.f32 %v6332, %v6453
        %v6744 = vadd.f32 %v6743, %v6574
        %v6745 = vadd.f32 %v6744, %v6695
        %v6746 = vld [vmem:[%s763] sm:$0x1]
        %v6748 = vlaneseq
        %v6749 = vshrl.u32 %v6748, 7
        %v6750 = vsub.s32 0, %v6749
        %v6751 = vrot.slane %v6746, %v6750
        %v6753 = vadd.f32 %v6700, %v6751
        %v6754 = vadd.f32 %v6703, %v6751
        %v6755 = vadd.f32 %v6706, %v6751
        %v6756 = vadd.f32 %v6709, %v6751
        %v6757 = vadd.f32 %v6712, %v6751
        %v6758 = vadd.f32 %v6715, %v6751
        %v6759 = vadd.f32 %v6718, %v6751
        %v6760 = vadd.f32 %v6721, %v6751
        %v6761 = vadd.f32 %v6724, %v6751
        %v6762 = vadd.f32 %v6727, %v6751
        %v6763 = vadd.f32 %v6730, %v6751
        %v6764 = vadd.f32 %v6733, %v6751
        %v6765 = vadd.f32 %v6736, %v6751
        %v6766 = vadd.f32 %v6739, %v6751
        %v6767 = vadd.f32 %v6742, %v6751
        %v6768 = vadd.f32 %v6745, %v6751
        %v6769 = vadd.f32 %v821, %v6753
        %v6770 = vadd.f32 %v822, %v6754
        %v6771 = vadd.f32 %v823, %v6755
        %v6772 = vadd.f32 %v824, %v6756
        %v6773 = vadd.f32 %v825, %v6757
        %v6774 = vadd.f32 %v826, %v6758
        %v6775 = vadd.f32 %v827, %v6759
        %v6776 = vadd.f32 %v828, %v6760
        %v6777 = vadd.f32 %v829, %v6761
        %v6778 = vadd.f32 %v830, %v6762
        %v6779 = vadd.f32 %v831, %v6763
        %v6780 = vadd.f32 %v832, %v6764
        %v6781 = vadd.f32 %v833, %v6765
        %v6782 = vadd.f32 %v834, %v6766
        %v6783 = vadd.f32 %v835, %v6767
        %v6784 = vadd.f32 %v836, %v6768
        %v6785 = vld [vmem:[%s773] sm:$0x1]
        %v6786 = vld [vmem:[%s776] sm:$0x1]
        %6787 = vadd.xlane.f32.xlu0 %v6769
        %v6788 = vpop.xlane.xlu0 %6787
        %6789 = vadd.xlane.f32.xlu0 %v6770
        %v6790 = vpop.xlane.xlu0 %6789
        %6791 = vadd.xlane.f32.xlu0 %v6771
        %v6792 = vpop.xlane.xlu0 %6791
        %6793 = vadd.xlane.f32.xlu0 %v6772
        %v6794 = vpop.xlane.xlu0 %6793
        %6795 = vadd.xlane.f32.xlu0 %v6773
        %v6796 = vpop.xlane.xlu0 %6795
        %6797 = vadd.xlane.f32.xlu0 %v6774
        %v6798 = vpop.xlane.xlu0 %6797
        %6799 = vadd.xlane.f32.xlu0 %v6775
        %v6800 = vpop.xlane.xlu0 %6799
        %6801 = vadd.xlane.f32.xlu0 %v6776
        %v6802 = vpop.xlane.xlu0 %6801
        %6803 = vadd.xlane.f32.xlu0 %v6777
        %v6804 = vpop.xlane.xlu0 %6803
        %6805 = vadd.xlane.f32.xlu0 %v6778
        %v6806 = vpop.xlane.xlu0 %6805
        %6807 = vadd.xlane.f32.xlu0 %v6779
        %v6808 = vpop.xlane.xlu0 %6807
        %6809 = vadd.xlane.f32.xlu0 %v6780
        %v6810 = vpop.xlane.xlu0 %6809
        %6811 = vadd.xlane.f32.xlu0 %v6781
        %v6812 = vpop.xlane.xlu0 %6811
        %6813 = vadd.xlane.f32.xlu0 %v6782
        %v6814 = vpop.xlane.xlu0 %6813
        %6815 = vadd.xlane.f32.xlu0 %v6783
        %v6816 = vpop.xlane.xlu0 %6815
        %6817 = vadd.xlane.f32.xlu0 %v6784
        %v6818 = vpop.xlane.xlu0 %6817
        %v6819 = vrcp.pop 128.0
        %v6820 = vmul.f32 %v6788, %v6819
        %v6821 = vmul.f32 %v6790, %v6819
        %v6822 = vmul.f32 %v6792, %v6819
        %v6823 = vmul.f32 %v6794, %v6819
        %v6824 = vmul.f32 %v6796, %v6819
        %v6825 = vmul.f32 %v6798, %v6819
        %v6826 = vmul.f32 %v6800, %v6819
        %v6827 = vmul.f32 %v6802, %v6819
        %v6828 = vmul.f32 %v6804, %v6819
        %v6829 = vmul.f32 %v6806, %v6819
        %v6830 = vmul.f32 %v6808, %v6819
        %v6831 = vmul.f32 %v6810, %v6819
        %v6832 = vmul.f32 %v6812, %v6819
        %v6833 = vmul.f32 %v6814, %v6819
        %v6834 = vmul.f32 %v6816, %v6819
        %v6835 = vmul.f32 %v6818, %v6819
        %v6836 = vsub.f32 %v6769, %v6820
        %v6837 = vsub.f32 %v6770, %v6821
        %v6838 = vsub.f32 %v6771, %v6822
        %v6839 = vsub.f32 %v6772, %v6823
        %v6840 = vsub.f32 %v6773, %v6824
        %v6841 = vsub.f32 %v6774, %v6825
        %v6842 = vsub.f32 %v6775, %v6826
        %v6843 = vsub.f32 %v6776, %v6827
        %v6844 = vsub.f32 %v6777, %v6828
        %v6845 = vsub.f32 %v6778, %v6829
        %v6846 = vsub.f32 %v6779, %v6830
        %v6847 = vsub.f32 %v6780, %v6831
        %v6848 = vsub.f32 %v6781, %v6832
        %v6849 = vsub.f32 %v6782, %v6833
        %v6850 = vsub.f32 %v6783, %v6834
        %v6851 = vsub.f32 %v6784, %v6835
        %v6852 = vmul.f32 %v6836, %v6836
        %v6853 = vmul.f32 %v6837, %v6837
        %v6854 = vmul.f32 %v6838, %v6838
        %v6855 = vmul.f32 %v6839, %v6839
        %v6856 = vmul.f32 %v6840, %v6840
        %v6857 = vmul.f32 %v6841, %v6841
        %v6858 = vmul.f32 %v6842, %v6842
        %v6859 = vmul.f32 %v6843, %v6843
        %v6860 = vmul.f32 %v6844, %v6844
        %v6861 = vmul.f32 %v6845, %v6845
        %v6862 = vmul.f32 %v6846, %v6846
        %v6863 = vmul.f32 %v6847, %v6847
        %v6864 = vmul.f32 %v6848, %v6848
        %v6865 = vmul.f32 %v6849, %v6849
        %v6866 = vmul.f32 %v6850, %v6850
        %v6867 = vmul.f32 %v6851, %v6851
        %6868 = vadd.xlane.f32.xlu0 %v6852
        %v6869 = vpop.xlane.xlu0 %6868
        %6870 = vadd.xlane.f32.xlu0 %v6853
        %v6871 = vpop.xlane.xlu0 %6870
        %6872 = vadd.xlane.f32.xlu0 %v6854
        %v6873 = vpop.xlane.xlu0 %6872
        %6874 = vadd.xlane.f32.xlu0 %v6855
        %v6875 = vpop.xlane.xlu0 %6874
        %6876 = vadd.xlane.f32.xlu0 %v6856
        %v6877 = vpop.xlane.xlu0 %6876
        %6878 = vadd.xlane.f32.xlu0 %v6857
        %v6879 = vpop.xlane.xlu0 %6878
        %6880 = vadd.xlane.f32.xlu0 %v6858
        %v6881 = vpop.xlane.xlu0 %6880
        %6882 = vadd.xlane.f32.xlu0 %v6859
        %v6883 = vpop.xlane.xlu0 %6882
        %6884 = vadd.xlane.f32.xlu0 %v6860
        %v6885 = vpop.xlane.xlu0 %6884
        %6886 = vadd.xlane.f32.xlu0 %v6861
        %v6887 = vpop.xlane.xlu0 %6886
        %6888 = vadd.xlane.f32.xlu0 %v6862
        %v6889 = vpop.xlane.xlu0 %6888
        %6890 = vadd.xlane.f32.xlu0 %v6863
        %v6891 = vpop.xlane.xlu0 %6890
        %6892 = vadd.xlane.f32.xlu0 %v6864
        %v6893 = vpop.xlane.xlu0 %6892
        %6894 = vadd.xlane.f32.xlu0 %v6865
        %v6895 = vpop.xlane.xlu0 %6894
        %6896 = vadd.xlane.f32.xlu0 %v6866
        %v6897 = vpop.xlane.xlu0 %6896
        %6898 = vadd.xlane.f32.xlu0 %v6867
        %v6899 = vpop.xlane.xlu0 %6898
        %v6900 = vmul.f32 %v6869, %v6819
        %v6901 = vmul.f32 %v6871, %v6819
        %v6902 = vmul.f32 %v6873, %v6819
        %v6903 = vmul.f32 %v6875, %v6819
        %v6904 = vmul.f32 %v6877, %v6819
        %v6905 = vmul.f32 %v6879, %v6819
        %v6906 = vmul.f32 %v6881, %v6819
        %v6907 = vmul.f32 %v6883, %v6819
        %v6908 = vmul.f32 %v6885, %v6819
        %v6909 = vmul.f32 %v6887, %v6819
        %v6910 = vmul.f32 %v6889, %v6819
        %v6911 = vmul.f32 %v6891, %v6819
        %v6912 = vmul.f32 %v6893, %v6819
        %v6913 = vmul.f32 %v6895, %v6819
        %v6914 = vmul.f32 %v6897, %v6819
        %v6915 = vmul.f32 %v6899, %v6819
        %v6916 = vadd.f32 %v6900, 1e-05
        %v6917 = vadd.f32 %v6901, 1e-05
        %v6918 = vadd.f32 %v6902, 1e-05
        %v6919 = vadd.f32 %v6903, 1e-05
        %v6920 = vadd.f32 %v6904, 1e-05
        %v6921 = vadd.f32 %v6905, 1e-05
        %v6922 = vadd.f32 %v6906, 1e-05
        %v6923 = vadd.f32 %v6907, 1e-05
        %v6924 = vadd.f32 %v6908, 1e-05
        %v6925 = vadd.f32 %v6909, 1e-05
        %v6926 = vadd.f32 %v6910, 1e-05
        %v6927 = vadd.f32 %v6911, 1e-05
        %v6928 = vadd.f32 %v6912, 1e-05
        %v6929 = vadd.f32 %v6913, 1e-05
        %v6930 = vadd.f32 %v6914, 1e-05
        %v6931 = vadd.f32 %v6915, 1e-05
        %v6932 = vrsqrt.pop %v6916
        %v6933 = vrsqrt.pop %v6917
        %v6934 = vrsqrt.pop %v6918
        %v6935 = vrsqrt.pop %v6919
        %v6936 = vrsqrt.pop %v6920
        %v6937 = vrsqrt.pop %v6921
        %v6938 = vrsqrt.pop %v6922
        %v6939 = vrsqrt.pop %v6923
        %v6940 = vrsqrt.pop %v6924
        %v6941 = vrsqrt.pop %v6925
        %v6942 = vrsqrt.pop %v6926
        %v6943 = vrsqrt.pop %v6927
        %v6944 = vrsqrt.pop %v6928
        %v6945 = vrsqrt.pop %v6929
        %v6946 = vrsqrt.pop %v6930
        %v6947 = vrsqrt.pop %v6931
        %v6948 = vmul.f32 %v6836, %v6932
        %v6949 = vmul.f32 %v6837, %v6933
        %v6950 = vmul.f32 %v6838, %v6934
        %v6951 = vmul.f32 %v6839, %v6935
        %v6952 = vmul.f32 %v6840, %v6936
        %v6953 = vmul.f32 %v6841, %v6937
        %v6954 = vmul.f32 %v6842, %v6938
        %v6955 = vmul.f32 %v6843, %v6939
        %v6956 = vmul.f32 %v6844, %v6940
        %v6957 = vmul.f32 %v6845, %v6941
        %v6958 = vmul.f32 %v6846, %v6942
        %v6959 = vmul.f32 %v6847, %v6943
        %v6960 = vmul.f32 %v6848, %v6944
        %v6961 = vmul.f32 %v6849, %v6945
        %v6962 = vmul.f32 %v6850, %v6946
        %v6963 = vmul.f32 %v6851, %v6947
        %v6965 = vlaneseq
        %v6966 = vshrl.u32 %v6965, 7
        %v6967 = vsub.s32 0, %v6966
        %v6968 = vrot.slane %v6785, %v6967
        %v6970 = vmul.f32 %v6948, %v6968
        %v6971 = vmul.f32 %v6949, %v6968
        %v6972 = vmul.f32 %v6950, %v6968
        %v6973 = vmul.f32 %v6951, %v6968
        %v6974 = vmul.f32 %v6952, %v6968
        %v6975 = vmul.f32 %v6953, %v6968
        %v6976 = vmul.f32 %v6954, %v6968
        %v6977 = vmul.f32 %v6955, %v6968
        %v6978 = vmul.f32 %v6956, %v6968
        %v6979 = vmul.f32 %v6957, %v6968
        %v6980 = vmul.f32 %v6958, %v6968
        %v6981 = vmul.f32 %v6959, %v6968
        %v6982 = vmul.f32 %v6960, %v6968
        %v6983 = vmul.f32 %v6961, %v6968
        %v6984 = vmul.f32 %v6962, %v6968
        %v6985 = vmul.f32 %v6963, %v6968
        %v6987 = vlaneseq
        %v6988 = vshrl.u32 %v6987, 7
        %v6989 = vsub.s32 0, %v6988
        %v6990 = vrot.slane %v6786, %v6989
        %v6992 = vadd.f32 %v6970, %v6990
        %v6993 = vadd.f32 %v6971, %v6990
        %v6994 = vadd.f32 %v6972, %v6990
        %v6995 = vadd.f32 %v6973, %v6990
        %v6996 = vadd.f32 %v6974, %v6990
        %v6997 = vadd.f32 %v6975, %v6990
        %v6998 = vadd.f32 %v6976, %v6990
        %v6999 = vadd.f32 %v6977, %v6990
        %v7000 = vadd.f32 %v6978, %v6990
        %v7001 = vadd.f32 %v6979, %v6990
        %v7002 = vadd.f32 %v6980, %v6990
        %v7003 = vadd.f32 %v6981, %v6990
        %v7004 = vadd.f32 %v6982, %v6990
        %v7005 = vadd.f32 %v6983, %v6990
        %v7006 = vadd.f32 %v6984, %v6990
        %v7007 = vadd.f32 %v6985, %v6990
        %v7008 = vpack.c.bf16 %v6993, %v6992
        %v7009 = vpack.c.bf16 %v6995, %v6994
        %v7010 = vpack.c.bf16 %v6997, %v6996
        %v7011 = vpack.c.bf16 %v6999, %v6998
        %v7012 = vpack.c.bf16 %v7001, %v7000
        %v7013 = vpack.c.bf16 %v7003, %v7002
        %v7014 = vpack.c.bf16 %v7005, %v7004
        %v7015 = vpack.c.bf16 %v7007, %v7006
        %v7016 = vld [vmem:[%s652] sm:$0xff]
        %v7017 = vld [vmem:[%s652 + $0x8] sm:$0xff]
        %v7018 = vld [vmem:[%s652 + $0x10] sm:$0xff]
        %v7019 = vld [vmem:[%s652 + $0x18] sm:$0xff]
        %v7020 = vld [vmem:[%s652 + $0x20] sm:$0xff]
        %v7021 = vld [vmem:[%s652 + $0x28] sm:$0xff]
        %v7022 = vld [vmem:[%s652 + $0x30] sm:$0xff]
        %v7023 = vld [vmem:[%s652 + $0x38] sm:$0xff]
        %v7024 = vld [vmem:[%s652 + $0x40] sm:$0xff]
        %v7025 = vld [vmem:[%s652 + $0x48] sm:$0xff]
        %v7026 = vld [vmem:[%s652 + $0x50] sm:$0xff]
        %v7027 = vld [vmem:[%s652 + $0x58] sm:$0xff]
        %v7028 = vld [vmem:[%s652 + $0x60] sm:$0xff]
        %v7029 = vld [vmem:[%s652 + $0x68] sm:$0xff]
        %v7030 = vld [vmem:[%s652 + $0x70] sm:$0xff]
        %v7031 = vld [vmem:[%s652 + $0x78] sm:$0xff]
        %v7032 = vld [vmem:[%s652 + $0x80] sm:$0xff]
        %v7033 = vld [vmem:[%s652 + $0x88] sm:$0xff]
        %v7034 = vld [vmem:[%s652 + $0x90] sm:$0xff]
        %v7035 = vld [vmem:[%s652 + $0x98] sm:$0xff]
        %v7036 = vld [vmem:[%s652 + $0xa0] sm:$0xff]
        %v7037 = vld [vmem:[%s652 + $0xa8] sm:$0xff]
        %v7038 = vld [vmem:[%s652 + $0xb0] sm:$0xff]
        %v7039 = vld [vmem:[%s652 + $0xb8] sm:$0xff]
        %v7040 = vld [vmem:[%s652 + $0xc0] sm:$0xff]
        %v7041 = vld [vmem:[%s652 + $0xc8] sm:$0xff]
        %v7042 = vld [vmem:[%s652 + $0xd0] sm:$0xff]
        %v7043 = vld [vmem:[%s652 + $0xd8] sm:$0xff]
        %v7044 = vld [vmem:[%s652 + $0xe0] sm:$0xff]
        %v7045 = vld [vmem:[%s652 + $0xe8] sm:$0xff]
        %v7046 = vld [vmem:[%s652 + $0xf0] sm:$0xff]
        %v7047 = vld [vmem:[%s652 + $0xf8] sm:$0xff]
        %v7048 = vpack.c.bf16 %v7018, %v7016
        %v7049 = vpack.c.bf16 %v7019, %v7017
        %v7050 = vpack.c.bf16 %v7022, %v7020
        %v7051 = vpack.c.bf16 %v7023, %v7021
        %v7052 = vpack.c.bf16 %v7026, %v7024
        %v7053 = vpack.c.bf16 %v7027, %v7025
        %v7054 = vpack.c.bf16 %v7030, %v7028
        %v7055 = vpack.c.bf16 %v7031, %v7029
        %v7056 = vpack.c.bf16 %v7034, %v7032
        %v7057 = vpack.c.bf16 %v7035, %v7033
        %v7058 = vpack.c.bf16 %v7038, %v7036
        %v7059 = vpack.c.bf16 %v7039, %v7037
        %v7060 = vpack.c.bf16 %v7042, %v7040
        %v7061 = vpack.c.bf16 %v7043, %v7041
        %v7062 = vpack.c.bf16 %v7046, %v7044
        %v7063 = vpack.c.bf16 %v7047, %v7045
        %v7064 = vld [vmem:[%s767] sm:$0x3]
        %v7066 = vlaneseq
        %v7067 = vshrl.u32 %v7066, 7
        %v7068 = vsub.s32 0, %v7067
        %v7069 = vrot.slane %v7064, %v7068
        %v7070 = vlaneseq
        %v7071 = vshrl.u32 %v7070, 7
        %v7072 = vsub.s32 1, %v7071
        %v7073 = vrot.slane %v7064, %v7072
        %7076 = vmatprep.subr.bf16.mxu0 %v7049
        %7077 = vmatpush1.bf16.msra.mxu0 %v7048
        %7078 = vmatprep.subr.bf16.mxu0 %v7051
        %7079 = vmatpush1.bf16.msra.mxu0 %v7050
        %7080 = vmatprep.subr.bf16.mxu0 %v7053
        %7081 = vmatpush1.bf16.msra.mxu0 %v7052
        %7082 = vmatprep.subr.bf16.mxu0 %v7055
        %7083 = vmatpush1.bf16.msra.mxu0 %v7054
        %7084 = vmatprep.subr.bf16.mxu0 %v7057
        %7085 = vmatpush1.bf16.msra.mxu0 %v7056
        %7086 = vmatprep.subr.bf16.mxu0 %v7059
        %7087 = vmatpush1.bf16.msra.mxu0 %v7058
        %7088 = vmatprep.subr.bf16.mxu0 %v7061
        %7089 = vmatpush1.bf16.msra.mxu0 %v7060
        %7090 = vmatprep.subr.bf16.mxu0 %v7063
        %7091 = vmatpush1.bf16.msra.mxu0 %v7062
        %7092 = vmatprep.subr.bf16.mxu0 0
        %7093 = vmatpush1.bf16.msra.mxu0 0
        %7094 = vmatprep.subr.bf16.mxu0 0
        %7095 = vmatpush1.bf16.msra.mxu0 0
        %7096 = vmatprep.subr.bf16.mxu0 0
        %7097 = vmatpush1.bf16.msra.mxu0 0
        %7098 = vmatprep.subr.bf16.mxu0 0
        %7099 = vmatpush1.bf16.msra.mxu0 0
        %7100 = vmatprep.subr.bf16.mxu0 0
        %7101 = vmatpush1.bf16.msra.mxu0 0
        %7102 = vmatprep.subr.bf16.mxu0 0
        %7103 = vmatpush1.bf16.msra.mxu0 0
        %7104 = vmatprep.subr.bf16.mxu0 0
        %7105 = vmatpush1.bf16.msra.mxu0 0
        %7106 = vmatprep.subr.bf16.mxu0 0
        %7107 = vmatpush1.bf16.msra.mxu0 0
        %7108 = vmatprep.mubr.bf16.mxu0 0
        %7109 = vmatmul.mubr.bf16.gmra.mrb[0].mxu0 %v7008
        %v7110 = vpop.f32.mrb[0].mxu0
        %v7111 = vadd.f32 %v7069, %v7110
        %v7112 = vpop.f32.mrb[0].mxu0
        %v7113 = vadd.f32 %v7073, %v7112
        %v7114 = vpop.f32.mrb[0].mxu0
        %v7115 = vadd.f32 %v7069, %v7114
        %v7116 = vpop.f32.mrb[0].mxu0
        %v7117 = vadd.f32 %v7073, %v7116
        %7118 = vmatprep.mubr.bf16.mxu0 0
        %7119 = vmatmul.mubr.bf16.gmra.mrb[0].mxu0 %v7009
        %v7120 = vpop.f32.mrb[0].mxu0
        %v7121 = vadd.f32 %v7069, %v7120
        %v7122 = vpop.f32.mrb[0].mxu0
        %v7123 = vadd.f32 %v7073, %v7122
        %v7124 = vpop.f32.mrb[0].mxu0
        %v7125 = vadd.f32 %v7069, %v7124
        %v7126 = vpop.f32.mrb[0].mxu0
        %v7127 = vadd.f32 %v7073, %v7126
        %7128 = vmatprep.mubr.bf16.mxu0 0
        %7129 = vmatmul.mubr.bf16.gmra.mrb[0].mxu0 %v7010
        %v7130 = vpop.f32.mrb[0].mxu0
        %v7131 = vadd.f32 %v7069, %v7130
        %v7132 = vpop.f32.mrb[0].mxu0
        %v7133 = vadd.f32 %v7073, %v7132
        %v7134 = vpop.f32.mrb[0].mxu0
        %v7135 = vadd.f32 %v7069, %v7134
        %v7136 = vpop.f32.mrb[0].mxu0
        %v7137 = vadd.f32 %v7073, %v7136
        %7138 = vmatprep.mubr.bf16.mxu0 0
        %7139 = vmatmul.mubr.bf16.gmra.mrb[0].mxu0 %v7011
        %v7140 = vpop.f32.mrb[0].mxu0
        %v7141 = vadd.f32 %v7069, %v7140
        %v7142 = vpop.f32.mrb[0].mxu0
        %v7143 = vadd.f32 %v7073, %v7142
        %v7144 = vpop.f32.mrb[0].mxu0
        %v7145 = vadd.f32 %v7069, %v7144
        %v7146 = vpop.f32.mrb[0].mxu0
        %v7147 = vadd.f32 %v7073, %v7146
        %7148 = vmatprep.mubr.bf16.mxu0 0
        %7149 = vmatmul.mubr.bf16.gmra.mrb[0].mxu0 %v7012
        %v7150 = vpop.f32.mrb[0].mxu0
        %v7151 = vadd.f32 %v7069, %v7150
        %v7152 = vpop.f32.mrb[0].mxu0
        %v7153 = vadd.f32 %v7073, %v7152
        %v7154 = vpop.f32.mrb[0].mxu0
        %v7155 = vadd.f32 %v7069, %v7154
        %v7156 = vpop.f32.mrb[0].mxu0
        %v7157 = vadd.f32 %v7073, %v7156
        %7158 = vmatprep.mubr.bf16.mxu0 0
        %7159 = vmatmul.mubr.bf16.gmra.mrb[0].mxu0 %v7013
        %v7160 = vpop.f32.mrb[0].mxu0
        %v7161 = vadd.f32 %v7069, %v7160
        %v7162 = vpop.f32.mrb[0].mxu0
        %v7163 = vadd.f32 %v7073, %v7162
        %v7164 = vpop.f32.mrb[0].mxu0
        %v7165 = vadd.f32 %v7069, %v7164
        %v7166 = vpop.f32.mrb[0].mxu0
        %v7167 = vadd.f32 %v7073, %v7166
        %7168 = vmatprep.mubr.bf16.mxu0 0
        %7169 = vmatmul.mubr.bf16.gmra.mrb[0].mxu0 %v7014
        %v7170 = vpop.f32.mrb[0].mxu0
        %v7171 = vadd.f32 %v7069, %v7170
        %v7172 = vpop.f32.mrb[0].mxu0
        %v7173 = vadd.f32 %v7073, %v7172
        %v7174 = vpop.f32.mrb[0].mxu0
        %v7175 = vadd.f32 %v7069, %v7174
        %v7176 = vpop.f32.mrb[0].mxu0
        %v7177 = vadd.f32 %v7073, %v7176
        %7178 = vmatprep.mubr.bf16.mxu0 0
        %7179 = vmatmul.mubr.bf16.gmra.mrb[0].mxu0 %v7015
        %v7180 = vpop.f32.mrb[0].mxu0
        %v7181 = vadd.f32 %v7069, %v7180
        %v7182 = vpop.f32.mrb[0].mxu0
        %v7183 = vadd.f32 %v7073, %v7182
        %v7184 = vpop.f32.mrb[0].mxu0
        %v7185 = vadd.f32 %v7069, %v7184
        %v7186 = vpop.f32.mrb[0].mxu0
        %v7187 = vadd.f32 %v7073, %v7186
        %7188 = vdwg.mxu0
        %v7189 = vmax.f32 %v7111, 0.0
        %v7190 = vmax.f32 %v7113, 0.0
        %v7191 = vmax.f32 %v7115, 0.0
        %v7192 = vmax.f32 %v7117, 0.0
        %v7193 = vmax.f32 %v7121, 0.0
        %v7194 = vmax.f32 %v7123, 0.0
        %v7195 = vmax.f32 %v7125, 0.0
        %v7196 = vmax.f32 %v7127, 0.0
        %v7197 = vmax.f32 %v7131, 0.0
        %v7198 = vmax.f32 %v7133, 0.0
        %v7199 = vmax.f32 %v7135, 0.0
        %v7200 = vmax.f32 %v7137, 0.0
        %v7201 = vmax.f32 %v7141, 0.0
        %v7202 = vmax.f32 %v7143, 0.0
        %v7203 = vmax.f32 %v7145, 0.0
        %v7204 = vmax.f32 %v7147, 0.0
        %v7205 = vmax.f32 %v7151, 0.0
        %v7206 = vmax.f32 %v7153, 0.0
        %v7207 = vmax.f32 %v7155, 0.0
        %v7208 = vmax.f32 %v7157, 0.0
        %v7209 = vmax.f32 %v7161, 0.0
        %v7210 = vmax.f32 %v7163, 0.0
        %v7211 = vmax.f32 %v7165, 0.0
        %v7212 = vmax.f32 %v7167, 0.0
        %v7213 = vmax.f32 %v7171, 0.0
        %v7214 = vmax.f32 %v7173, 0.0
        %v7215 = vmax.f32 %v7175, 0.0
        %v7216 = vmax.f32 %v7177, 0.0
        %v7217 = vmax.f32 %v7181, 0.0
        %v7218 = vmax.f32 %v7183, 0.0
        %v7219 = vmax.f32 %v7185, 0.0
        %v7220 = vmax.f32 %v7187, 0.0
        %v7221 = vpack.c.bf16 %v7191, %v7189
        %v7222 = vpack.c.bf16 %v7192, %v7190
        %v7223 = vpack.c.bf16 %v7195, %v7193
        %v7224 = vpack.c.bf16 %v7196, %v7194
        %v7225 = vpack.c.bf16 %v7199, %v7197
        %v7226 = vpack.c.bf16 %v7200, %v7198
        %v7227 = vpack.c.bf16 %v7203, %v7201
        %v7228 = vpack.c.bf16 %v7204, %v7202
        %v7229 = vpack.c.bf16 %v7207, %v7205
        %v7230 = vpack.c.bf16 %v7208, %v7206
        %v7231 = vpack.c.bf16 %v7211, %v7209
        %v7232 = vpack.c.bf16 %v7212, %v7210
        %v7233 = vpack.c.bf16 %v7215, %v7213
        %v7234 = vpack.c.bf16 %v7216, %v7214
        %v7235 = vpack.c.bf16 %v7219, %v7217
        %v7236 = vpack.c.bf16 %v7220, %v7218
        %v7237 = vld [vmem:[%s661] sm:$0xff]
        %v7238 = vld [vmem:[%s661 + $0x8] sm:$0xff]
        %v7239 = vld [vmem:[%s661 + $0x10] sm:$0xff]
        %v7240 = vld [vmem:[%s661 + $0x18] sm:$0xff]
        %v7241 = vld [vmem:[%s661 + $0x20] sm:$0xff]
        %v7242 = vld [vmem:[%s661 + $0x28] sm:$0xff]
        %v7243 = vld [vmem:[%s661 + $0x30] sm:$0xff]
        %v7244 = vld [vmem:[%s661 + $0x38] sm:$0xff]
        %v7245 = vld [vmem:[%s661 + $0x40] sm:$0xff]
        %v7246 = vld [vmem:[%s661 + $0x48] sm:$0xff]
        %v7247 = vld [vmem:[%s661 + $0x50] sm:$0xff]
        %v7248 = vld [vmem:[%s661 + $0x58] sm:$0xff]
        %v7249 = vld [vmem:[%s661 + $0x60] sm:$0xff]
        %v7250 = vld [vmem:[%s661 + $0x68] sm:$0xff]
        %v7251 = vld [vmem:[%s661 + $0x70] sm:$0xff]
        %v7252 = vld [vmem:[%s661 + $0x78] sm:$0xff]
        %v7253 = vld [vmem:[%s661 + $0x80] sm:$0xff]
        %v7254 = vld [vmem:[%s661 + $0x88] sm:$0xff]
        %v7255 = vld [vmem:[%s661 + $0x90] sm:$0xff]
        %v7256 = vld [vmem:[%s661 + $0x98] sm:$0xff]
        %v7257 = vld [vmem:[%s661 + $0xa0] sm:$0xff]
        %v7258 = vld [vmem:[%s661 + $0xa8] sm:$0xff]
        %v7259 = vld [vmem:[%s661 + $0xb0] sm:$0xff]
        %v7260 = vld [vmem:[%s661 + $0xb8] sm:$0xff]
        %v7261 = vld [vmem:[%s661 + $0xc0] sm:$0xff]
        %v7262 = vld [vmem:[%s661 + $0xc8] sm:$0xff]
        %v7263 = vld [vmem:[%s661 + $0xd0] sm:$0xff]
        %v7264 = vld [vmem:[%s661 + $0xd8] sm:$0xff]
        %v7265 = vld [vmem:[%s661 + $0xe0] sm:$0xff]
        %v7266 = vld [vmem:[%s661 + $0xe8] sm:$0xff]
        %v7267 = vld [vmem:[%s661 + $0xf0] sm:$0xff]
        %v7268 = vld [vmem:[%s661 + $0xf8] sm:$0xff]
        %v7269 = vpack.c.bf16 %v7238, %v7237
        %v7270 = vpack.c.bf16 %v7240, %v7239
        %v7271 = vpack.c.bf16 %v7242, %v7241
        %v7272 = vpack.c.bf16 %v7244, %v7243
        %v7273 = vpack.c.bf16 %v7246, %v7245
        %v7274 = vpack.c.bf16 %v7248, %v7247
        %v7275 = vpack.c.bf16 %v7250, %v7249
        %v7276 = vpack.c.bf16 %v7252, %v7251
        %v7277 = vpack.c.bf16 %v7254, %v7253
        %v7278 = vpack.c.bf16 %v7256, %v7255
        %v7279 = vpack.c.bf16 %v7258, %v7257
        %v7280 = vpack.c.bf16 %v7260, %v7259
        %v7281 = vpack.c.bf16 %v7262, %v7261
        %v7282 = vpack.c.bf16 %v7264, %v7263
        %v7283 = vpack.c.bf16 %v7266, %v7265
        %v7284 = vpack.c.bf16 %v7268, %v7267
        %v7285 = vld [vmem:[%s770] sm:$0x1]
        %v7287 = vlaneseq
        %v7288 = vshrl.u32 %v7287, 7
        %v7289 = vsub.s32 0, %v7288
        %v7290 = vrot.slane %v7285, %v7289
        %7292 = vmatprep.subr.bf16.mxu0 0
        %7293 = vmatpush1.bf16.msra.mxu0 %v7269
        %7294 = vmatprep.subr.bf16.mxu0 0
        %7295 = vmatpush1.bf16.msra.mxu0 %v7270
        %7296 = vmatprep.subr.bf16.mxu0 0
        %7297 = vmatpush1.bf16.msra.mxu0 %v7271
        %7298 = vmatprep.subr.bf16.mxu0 0
        %7299 = vmatpush1.bf16.msra.mxu0 %v7272
        %7300 = vmatprep.subr.bf16.mxu0 0
        %7301 = vmatpush1.bf16.msra.mxu0 %v7273
        %7302 = vmatprep.subr.bf16.mxu0 0
        %7303 = vmatpush1.bf16.msra.mxu0 %v7274
        %7304 = vmatprep.subr.bf16.mxu0 0
        %7305 = vmatpush1.bf16.msra.mxu0 %v7275
        %7306 = vmatprep.subr.bf16.mxu0 0
        %7307 = vmatpush1.bf16.msra.mxu0 %v7276
        %7308 = vmatprep.subr.bf16.mxu0 0
        %7309 = vmatpush1.bf16.msra.mxu0 %v7277
        %7310 = vmatprep.subr.bf16.mxu0 0
        %7311 = vmatpush1.bf16.msra.mxu0 %v7278
        %7312 = vmatprep.subr.bf16.mxu0 0
        %7313 = vmatpush1.bf16.msra.mxu0 %v7279
        %7314 = vmatprep.subr.bf16.mxu0 0
        %7315 = vmatpush1.bf16.msra.mxu0 %v7280
        %7316 = vmatprep.subr.bf16.mxu0 0
        %7317 = vmatpush1.bf16.msra.mxu0 %v7281
        %7318 = vmatprep.subr.bf16.mxu0 0
        %7319 = vmatpush1.bf16.msra.mxu0 %v7282
        %7320 = vmatprep.subr.bf16.mxu0 0
        %7321 = vmatpush1.bf16.msra.mxu0 %v7283
        %7322 = vmatprep.subr.bf16.mxu0 0
        %7323 = vmatpush1.bf16.msra.mxu0 %v7284
        %7324 = vmatprep.mubr.bf16.mxu0 %v7222
        %7325 = vmatmul.mubr.bf16.gmra.mrb[0].mxu0 %v7221
        %v7326 = vpop.f32.mrb[0].mxu0
        %v7327 = vadd.f32 %v7290, %v7326
        %v7328 = vpop.f32.mrb[0].mxu0
        %v7329 = vpop.f32.mrb[0].mxu0
        %v7330 = vadd.f32 %v7290, %v7329
        %v7331 = vpop.f32.mrb[0].mxu0
        %7332 = vmatprep.mubr.bf16.mxu0 %v7224
        %7333 = vmatmul.mubr.bf16.gmra.mrb[0].mxu0 %v7223
        %v7334 = vpop.f32.mrb[0].mxu0
        %v7335 = vadd.f32 %v7290, %v7334
        %v7336 = vpop.f32.mrb[0].mxu0
        %v7337 = vpop.f32.mrb[0].mxu0
        %v7338 = vadd.f32 %v7290, %v7337
        %v7339 = vpop.f32.mrb[0].mxu0
        %7340 = vmatprep.mubr.bf16.mxu0 %v7226
        %7341 = vmatmul.mubr.bf16.gmra.mrb[0].mxu0 %v7225
        %v7342 = vpop.f32.mrb[0].mxu0
        %v7343 = vadd.f32 %v7290, %v7342
        %v7344 = vpop.f32.mrb[0].mxu0
        %v7345 = vpop.f32.mrb[0].mxu0
        %v7346 = vadd.f32 %v7290, %v7345
        %v7347 = vpop.f32.mrb[0].mxu0
        %7348 = vmatprep.mubr.bf16.mxu0 %v7228
        %7349 = vmatmul.mubr.bf16.gmra.mrb[0].mxu0 %v7227
        %v7350 = vpop.f32.mrb[0].mxu0
        %v7351 = vadd.f32 %v7290, %v7350
        %v7352 = vpop.f32.mrb[0].mxu0
        %v7353 = vpop.f32.mrb[0].mxu0
        %v7354 = vadd.f32 %v7290, %v7353
        %v7355 = vpop.f32.mrb[0].mxu0
        %7356 = vmatprep.mubr.bf16.mxu0 %v7230
        %7357 = vmatmul.mubr.bf16.gmra.mrb[0].mxu0 %v7229
        %v7358 = vpop.f32.mrb[0].mxu0
        %v7359 = vadd.f32 %v7290, %v7358
        %v7360 = vpop.f32.mrb[0].mxu0
        %v7361 = vpop.f32.mrb[0].mxu0
        %v7362 = vadd.f32 %v7290, %v7361
        %v7363 = vpop.f32.mrb[0].mxu0
        %7364 = vmatprep.mubr.bf16.mxu0 %v7232
        %7365 = vmatmul.mubr.bf16.gmra.mrb[0].mxu0 %v7231
        %v7366 = vpop.f32.mrb[0].mxu0
        %v7367 = vadd.f32 %v7290, %v7366
        %v7368 = vpop.f32.mrb[0].mxu0
        %v7369 = vpop.f32.mrb[0].mxu0
        %v7370 = vadd.f32 %v7290, %v7369
        %v7371 = vpop.f32.mrb[0].mxu0
        %7372 = vmatprep.mubr.bf16.mxu0 %v7234
        %7373 = vmatmul.mubr.bf16.gmra.mrb[0].mxu0 %v7233
        %v7374 = vpop.f32.mrb[0].mxu0
        %v7375 = vadd.f32 %v7290, %v7374
        %v7376 = vpop.f32.mrb[0].mxu0
        %v7377 = vpop.f32.mrb[0].mxu0
        %v7378 = vadd.f32 %v7290, %v7377
        %v7379 = vpop.f32.mrb[0].mxu0
        %7380 = vmatprep.mubr.bf16.mxu0 %v7236
        %7381 = vmatmul.mubr.bf16.gmra.mrb[0].mxu0 %v7235
        %v7382 = vpop.f32.mrb[0].mxu0
        %v7383 = vadd.f32 %v7290, %v7382
        %v7384 = vpop.f32.mrb[0].mxu0
        %v7385 = vpop.f32.mrb[0].mxu0
        %v7386 = vadd.f32 %v7290, %v7385
        %v7387 = vpop.f32.mrb[0].mxu0
        %7388 = vdwg.mxu0
        %v7389 = vadd.f32 %v6992, %v7327
        %v7390 = vadd.f32 %v6993, %v7330
        %v7391 = vadd.f32 %v6994, %v7335
        %v7392 = vadd.f32 %v6995, %v7338
        %v7393 = vadd.f32 %v6996, %v7343
        %v7394 = vadd.f32 %v6997, %v7346
        %v7395 = vadd.f32 %v6998, %v7351
        %v7396 = vadd.f32 %v6999, %v7354
        %v7397 = vadd.f32 %v7000, %v7359
        %v7398 = vadd.f32 %v7001, %v7362
        %v7399 = vadd.f32 %v7002, %v7367
        %v7400 = vadd.f32 %v7003, %v7370
        %v7401 = vadd.f32 %v7004, %v7375
        %v7402 = vadd.f32 %v7005, %v7378
        %v7403 = vadd.f32 %v7006, %v7383
        %v7404 = vadd.f32 %v7007, %v7386
        %v7405 = vld [vmem:[%s779] sm:$0x1]
        %v7406 = vld [vmem:[%s782] sm:$0x1]
        %7407 = vadd.xlane.f32.xlu0 %v7389
        %v7408 = vpop.xlane.xlu0 %7407
        %7409 = vadd.xlane.f32.xlu0 %v7390
        %v7410 = vpop.xlane.xlu0 %7409
        %7411 = vadd.xlane.f32.xlu0 %v7391
        %v7412 = vpop.xlane.xlu0 %7411
        %7413 = vadd.xlane.f32.xlu0 %v7392
        %v7414 = vpop.xlane.xlu0 %7413
        %7415 = vadd.xlane.f32.xlu0 %v7393
        %v7416 = vpop.xlane.xlu0 %7415
        %7417 = vadd.xlane.f32.xlu0 %v7394
        %v7418 = vpop.xlane.xlu0 %7417
        %7419 = vadd.xlane.f32.xlu0 %v7395
        %v7420 = vpop.xlane.xlu0 %7419
        %7421 = vadd.xlane.f32.xlu0 %v7396
        %v7422 = vpop.xlane.xlu0 %7421
        %7423 = vadd.xlane.f32.xlu0 %v7397
        %v7424 = vpop.xlane.xlu0 %7423
        %7425 = vadd.xlane.f32.xlu0 %v7398
        %v7426 = vpop.xlane.xlu0 %7425
        %7427 = vadd.xlane.f32.xlu0 %v7399
        %v7428 = vpop.xlane.xlu0 %7427
        %7429 = vadd.xlane.f32.xlu0 %v7400
        %v7430 = vpop.xlane.xlu0 %7429
        %7431 = vadd.xlane.f32.xlu0 %v7401
        %v7432 = vpop.xlane.xlu0 %7431
        %7433 = vadd.xlane.f32.xlu0 %v7402
        %v7434 = vpop.xlane.xlu0 %7433
        %7435 = vadd.xlane.f32.xlu0 %v7403
        %v7436 = vpop.xlane.xlu0 %7435
        %7437 = vadd.xlane.f32.xlu0 %v7404
        %v7438 = vpop.xlane.xlu0 %7437
        %v7439 = vmul.f32 %v7408, %v6819
        %v7440 = vmul.f32 %v7410, %v6819
        %v7441 = vmul.f32 %v7412, %v6819
        %v7442 = vmul.f32 %v7414, %v6819
        %v7443 = vmul.f32 %v7416, %v6819
        %v7444 = vmul.f32 %v7418, %v6819
        %v7445 = vmul.f32 %v7420, %v6819
        %v7446 = vmul.f32 %v7422, %v6819
        %v7447 = vmul.f32 %v7424, %v6819
        %v7448 = vmul.f32 %v7426, %v6819
        %v7449 = vmul.f32 %v7428, %v6819
        %v7450 = vmul.f32 %v7430, %v6819
        %v7451 = vmul.f32 %v7432, %v6819
        %v7452 = vmul.f32 %v7434, %v6819
        %v7453 = vmul.f32 %v7436, %v6819
        %v7454 = vmul.f32 %v7438, %v6819
        %v7455 = vsub.f32 %v7389, %v7439
        %v7456 = vsub.f32 %v7390, %v7440
        %v7457 = vsub.f32 %v7391, %v7441
        %v7458 = vsub.f32 %v7392, %v7442
        %v7459 = vsub.f32 %v7393, %v7443
        %v7460 = vsub.f32 %v7394, %v7444
        %v7461 = vsub.f32 %v7395, %v7445
        %v7462 = vsub.f32 %v7396, %v7446
        %v7463 = vsub.f32 %v7397, %v7447
        %v7464 = vsub.f32 %v7398, %v7448
        %v7465 = vsub.f32 %v7399, %v7449
        %v7466 = vsub.f32 %v7400, %v7450
        %v7467 = vsub.f32 %v7401, %v7451
        %v7468 = vsub.f32 %v7402, %v7452
        %v7469 = vsub.f32 %v7403, %v7453
        %v7470 = vsub.f32 %v7404, %v7454
        %v7471 = vmul.f32 %v7455, %v7455
        %v7472 = vmul.f32 %v7456, %v7456
        %v7473 = vmul.f32 %v7457, %v7457
        %v7474 = vmul.f32 %v7458, %v7458
        %v7475 = vmul.f32 %v7459, %v7459
        %v7476 = vmul.f32 %v7460, %v7460
        %v7477 = vmul.f32 %v7461, %v7461
        %v7478 = vmul.f32 %v7462, %v7462
        %v7479 = vmul.f32 %v7463, %v7463
        %v7480 = vmul.f32 %v7464, %v7464
        %v7481 = vmul.f32 %v7465, %v7465
        %v7482 = vmul.f32 %v7466, %v7466
        %v7483 = vmul.f32 %v7467, %v7467
        %v7484 = vmul.f32 %v7468, %v7468
        %v7485 = vmul.f32 %v7469, %v7469
        %v7486 = vmul.f32 %v7470, %v7470
        %7487 = vadd.xlane.f32.xlu0 %v7471
        %v7488 = vpop.xlane.xlu0 %7487
        %7489 = vadd.xlane.f32.xlu0 %v7472
        %v7490 = vpop.xlane.xlu0 %7489
        %7491 = vadd.xlane.f32.xlu0 %v7473
        %v7492 = vpop.xlane.xlu0 %7491
        %7493 = vadd.xlane.f32.xlu0 %v7474
        %v7494 = vpop.xlane.xlu0 %7493
        %7495 = vadd.xlane.f32.xlu0 %v7475
        %v7496 = vpop.xlane.xlu0 %7495
        %7497 = vadd.xlane.f32.xlu0 %v7476
        %v7498 = vpop.xlane.xlu0 %7497
        %7499 = vadd.xlane.f32.xlu0 %v7477
        %v7500 = vpop.xlane.xlu0 %7499
        %7501 = vadd.xlane.f32.xlu0 %v7478
        %v7502 = vpop.xlane.xlu0 %7501
        %7503 = vadd.xlane.f32.xlu0 %v7479
        %v7504 = vpop.xlane.xlu0 %7503
        %7505 = vadd.xlane.f32.xlu0 %v7480
        %v7506 = vpop.xlane.xlu0 %7505
        %7507 = vadd.xlane.f32.xlu0 %v7481
        %v7508 = vpop.xlane.xlu0 %7507
        %7509 = vadd.xlane.f32.xlu0 %v7482
        %v7510 = vpop.xlane.xlu0 %7509
        %7511 = vadd.xlane.f32.xlu0 %v7483
        %v7512 = vpop.xlane.xlu0 %7511
        %7513 = vadd.xlane.f32.xlu0 %v7484
        %v7514 = vpop.xlane.xlu0 %7513
        %7515 = vadd.xlane.f32.xlu0 %v7485
        %v7516 = vpop.xlane.xlu0 %7515
        %7517 = vadd.xlane.f32.xlu0 %v7486
        %v7518 = vpop.xlane.xlu0 %7517
        %v7519 = vmul.f32 %v7488, %v6819
        %v7520 = vmul.f32 %v7490, %v6819
        %v7521 = vmul.f32 %v7492, %v6819
        %v7522 = vmul.f32 %v7494, %v6819
        %v7523 = vmul.f32 %v7496, %v6819
        %v7524 = vmul.f32 %v7498, %v6819
        %v7525 = vmul.f32 %v7500, %v6819
        %v7526 = vmul.f32 %v7502, %v6819
        %v7527 = vmul.f32 %v7504, %v6819
        %v7528 = vmul.f32 %v7506, %v6819
        %v7529 = vmul.f32 %v7508, %v6819
        %v7530 = vmul.f32 %v7510, %v6819
        %v7531 = vmul.f32 %v7512, %v6819
        %v7532 = vmul.f32 %v7514, %v6819
        %v7533 = vmul.f32 %v7516, %v6819
        %v7534 = vmul.f32 %v7518, %v6819
        %v7535 = vadd.f32 %v7519, 1e-05
        %v7536 = vadd.f32 %v7520, 1e-05
        %v7537 = vadd.f32 %v7521, 1e-05
        %v7538 = vadd.f32 %v7522, 1e-05
        %v7539 = vadd.f32 %v7523, 1e-05
        %v7540 = vadd.f32 %v7524, 1e-05
        %v7541 = vadd.f32 %v7525, 1e-05
        %v7542 = vadd.f32 %v7526, 1e-05
        %v7543 = vadd.f32 %v7527, 1e-05
        %v7544 = vadd.f32 %v7528, 1e-05
        %v7545 = vadd.f32 %v7529, 1e-05
        %v7546 = vadd.f32 %v7530, 1e-05
        %v7547 = vadd.f32 %v7531, 1e-05
        %v7548 = vadd.f32 %v7532, 1e-05
        %v7549 = vadd.f32 %v7533, 1e-05
        %v7550 = vadd.f32 %v7534, 1e-05
        %v7551 = vrsqrt.pop %v7535
        %v7552 = vrsqrt.pop %v7536
        %v7553 = vrsqrt.pop %v7537
        %v7554 = vrsqrt.pop %v7538
        %v7555 = vrsqrt.pop %v7539
        %v7556 = vrsqrt.pop %v7540
        %v7557 = vrsqrt.pop %v7541
        %v7558 = vrsqrt.pop %v7542
        %v7559 = vrsqrt.pop %v7543
        %v7560 = vrsqrt.pop %v7544
        %v7561 = vrsqrt.pop %v7545
        %v7562 = vrsqrt.pop %v7546
        %v7563 = vrsqrt.pop %v7547
        %v7564 = vrsqrt.pop %v7548
        %v7565 = vrsqrt.pop %v7549
        %v7566 = vrsqrt.pop %v7550
        %v7567 = vmul.f32 %v7455, %v7551
        %v7568 = vmul.f32 %v7456, %v7552
        %v7569 = vmul.f32 %v7457, %v7553
        %v7570 = vmul.f32 %v7458, %v7554
        %v7571 = vmul.f32 %v7459, %v7555
        %v7572 = vmul.f32 %v7460, %v7556
        %v7573 = vmul.f32 %v7461, %v7557
        %v7574 = vmul.f32 %v7462, %v7558
        %v7575 = vmul.f32 %v7463, %v7559
        %v7576 = vmul.f32 %v7464, %v7560
        %v7577 = vmul.f32 %v7465, %v7561
        %v7578 = vmul.f32 %v7466, %v7562
        %v7579 = vmul.f32 %v7467, %v7563
        %v7580 = vmul.f32 %v7468, %v7564
        %v7581 = vmul.f32 %v7469, %v7565
        %v7582 = vmul.f32 %v7470, %v7566
        %v7584 = vlaneseq
        %v7585 = vshrl.u32 %v7584, 7
        %v7586 = vsub.s32 0, %v7585
        %v7587 = vrot.slane %v7405, %v7586
        %v7589 = vmul.f32 %v7567, %v7587
        %v7590 = vmul.f32 %v7568, %v7587
        %v7591 = vmul.f32 %v7569, %v7587
        %v7592 = vmul.f32 %v7570, %v7587
        %v7593 = vmul.f32 %v7571, %v7587
        %v7594 = vmul.f32 %v7572, %v7587
        %v7595 = vmul.f32 %v7573, %v7587
        %v7596 = vmul.f32 %v7574, %v7587
        %v7597 = vmul.f32 %v7575, %v7587
        %v7598 = vmul.f32 %v7576, %v7587
        %v7599 = vmul.f32 %v7577, %v7587
        %v7600 = vmul.f32 %v7578, %v7587
        %v7601 = vmul.f32 %v7579, %v7587
        %v7602 = vmul.f32 %v7580, %v7587
        %v7603 = vmul.f32 %v7581, %v7587
        %v7604 = vmul.f32 %v7582, %v7587
        %v7606 = vlaneseq
        %v7607 = vshrl.u32 %v7606, 7
        %v7608 = vsub.s32 0, %v7607
        %v7609 = vrot.slane %v7406, %v7608
        %v7611 = vadd.f32 %v7589, %v7609
        %v7612 = vadd.f32 %v7590, %v7609
        %v7613 = vadd.f32 %v7591, %v7609
        %v7614 = vadd.f32 %v7592, %v7609
        %v7615 = vadd.f32 %v7593, %v7609
        %v7616 = vadd.f32 %v7594, %v7609
        %v7617 = vadd.f32 %v7595, %v7609
        %v7618 = vadd.f32 %v7596, %v7609
        %v7619 = vadd.f32 %v7597, %v7609
        %v7620 = vadd.f32 %v7598, %v7609
        %v7621 = vadd.f32 %v7599, %v7609
        %v7622 = vadd.f32 %v7600, %v7609
        %v7623 = vadd.f32 %v7601, %v7609
        %v7624 = vadd.f32 %v7602, %v7609
        %v7625 = vadd.f32 %v7603, %v7609
        %v7626 = vadd.f32 %v7604, %v7609
        %7627 = vst [vmem:[%s749] sm:$0xff] %v7611
        %7628 = vst [vmem:[%s749 + $0x8] sm:$0xff] %v7612
        %7629 = vst [vmem:[%s749 + $0x10] sm:$0xff] %v7613
        %7630 = vst [vmem:[%s749 + $0x18] sm:$0xff] %v7614
        %7631 = vst [vmem:[%s749 + $0x20] sm:$0xff] %v7615
        %7632 = vst [vmem:[%s749 + $0x28] sm:$0xff] %v7616
        %7633 = vst [vmem:[%s749 + $0x30] sm:$0xff] %v7617
        %7634 = vst [vmem:[%s749 + $0x38] sm:$0xff] %v7618
        %7635 = vst [vmem:[%s749 + $0x40] sm:$0xff] %v7619
        %7636 = vst [vmem:[%s749 + $0x48] sm:$0xff] %v7620
        %7637 = vst [vmem:[%s749 + $0x50] sm:$0xff] %v7621
        %7638 = vst [vmem:[%s749 + $0x58] sm:$0xff] %v7622
        %7639 = vst [vmem:[%s749 + $0x60] sm:$0xff] %v7623
        %7640 = vst [vmem:[%s749 + $0x68] sm:$0xff] %v7624
        %7641 = vst [vmem:[%s749 + $0x70] sm:$0xff] %v7625
        %7642 = vst [vmem:[%s749 + $0x78] sm:$0xff] %v7626
        %s7643 = sand.u32 %s399, 1
        %s7644 = scalar_lea.sflag [#allocation4], %s7643
        %s7645 = sand.u32 %s399, 1
        %s7646 = smul.addr %s7645, 128
        %s7647 = scalar_lea.vmem [#allocation11], %s7646
        %s7648 = sand.u32 %s427, 1
        %s7649 = scalar_lea.sflag [#allocation13], %s7648
        %s7650 = sand.u32 %s427, 1
        %s7651 = smul.addr %s7650, 256
        %s7652 = scalar_lea.vmem [#allocation12], %s7651
        // Predicated region
        $region111: #{tpu_custom_call.1} parent=71 // pred_check
          %p7653 = pneg %p409
        $region112: #{tpu_custom_call.1} parent=71 // pred_check_branch
          %7655 = sbr.rel (%p7653) target = $region114
        $region113: #{tpu_custom_call.1} parent=71 // pred_region
          %s7657 = ssub.s32 2048, 2048
          %7658 = vsyncadd %s7644, %s7657
          %s7659 = smul.addr %s45, 16
          %s7660 = smul.addr %s7659, 128
          %s7661 = scalar_lea.hbm %s13, %s7660
          %s7662 = sshll.u32 %s7647, 4
          %s7663 = int_to_ptr.vmem [resolvable:$true] %s7662
          %7668 = dma.vmem_to_hbm [thread:$0]  %s7663, 2048, %s7661, %s7644, 128, 128, 8
        $region114: #{tpu_custom_call.1} parent=71 // pred_fallthru
          _
        // Predicated region
        $region115: #{tpu_custom_call.1} parent=71 // pred_check
          %p7669 = pneg %p437
        $region116: #{tpu_custom_call.1} parent=71 // pred_check_branch
          %7671 = sbr.rel (%p7669) target = $region118
        $region117: #{tpu_custom_call.1} parent=71 // pred_region
          %s7673 = ssub.s32 4096, 4096
          %7674 = vsyncadd %s7649, %s7673
          %s7675 = smul.addr %s46, 64
          %s7676 = smul.addr %s45, 128
          %s7677 = sadd.s32 %s7675, %s7676
          %s7678 = smul.addr %s7677, 64
          %s7679 = scalar_lea.hbm %s14, %s7678
          %s7680 = sshll.u32 %s7652, 4
          %s7681 = int_to_ptr.vmem [resolvable:$true] %s7680
          %7686 = dma.vmem_to_hbm [thread:$0]  %s7681, 4096, %s7679, %s7649, 64, 64, 4
        $region118: #{tpu_custom_call.1} parent=71 // pred_fallthru
          _
      $region72: #{tpu_custom_call.1} parent=5 // pred_fallthru
        _
      %p7687 = scmp.le.s32.totalorder 2, %s36
      // Predicated region
      $region119: #{tpu_custom_call.1} parent=5 // pred_check
        %p7688 = pneg %p7687
      $region120: #{tpu_custom_call.1} parent=5 // pred_check_branch
        %7690 = sbr.rel (%p7688) target = $region122
      $region121: #{tpu_custom_call.1} parent=5 // pred_region
        %s7691 = ssub.s32 %s36, 2
        // Predicated region
        $region123: #{tpu_custom_call.1} parent=121 // pred_check
          %p7692 = pneg %p415
        $region124: #{tpu_custom_call.1} parent=121 // pred_check_branch
          %7694 = sbr.rel (%p7692) target = $region126
        $region125: #{tpu_custom_call.1} parent=121 // pred_region
          %s7695 = sand.u32 %s400, 1
          %s7696 = scalar_lea.sflag [#allocation4], %s7695
          %s7697 = sand.u32 %s400, 1
          %s7698 = smul.addr %s7697, 128
          %s7699 = scalar_lea.vmem [#allocation11], %s7698
          %7700 = dma.done %s7696, 2048
        $region126: #{tpu_custom_call.1} parent=121 // pred_fallthru
          _
        // Predicated region
        $region127: #{tpu_custom_call.1} parent=121 // pred_check
          %p7701 = pneg %p443
        $region128: #{tpu_custom_call.1} parent=121 // pred_check_branch
          %7703 = sbr.rel (%p7701) target = $region130
        $region129: #{tpu_custom_call.1} parent=121 // pred_region
          %s7704 = sand.u32 %s428, 1
          %s7705 = scalar_lea.sflag [#allocation13], %s7704
          %s7706 = sand.u32 %s428, 1
          %s7707 = smul.addr %s7706, 256
          %s7708 = scalar_lea.vmem [#allocation12], %s7707
          %7709 = dma.done %s7705, 4096
        $region130: #{tpu_custom_call.1} parent=121 // pred_fallthru
          _
      $region122: #{tpu_custom_call.1} parent=5 // pred_fallthru
        _
    $region6: #{tpu_custom_call.1} parent=1 // loop_footer
      %s40 = sadd.s32 1, %s36
    $region7: #{tpu_custom_call.1} parent=1 // loop_footer_branch
      %35 = sbr.rel target = $region3
    $region8: #{tpu_custom_call.1} parent=1 // loop_exit
      _
    %7710 = vsyncpa [#allocation3], 1
    %s7711 = scalar_lea.sflag [#allocation3], 1
    %7712 = vsyncpa %s7711, 1
    %7713 = vsyncpa [#allocation6], 1
    %s7714 = scalar_lea.sflag [#allocation6], 1
    %7715 = vsyncpa %s7714, 1
    %7716 = vsyncpa [#allocation9], 1
    %s7717 = scalar_lea.sflag [#allocation9], 1
    %7718 = vsyncpa %s7717, 1
    %7719 = vsyncpa [#allocation4], 1
    %s7720 = scalar_lea.sflag [#allocation4], 1
    %7721 = vsyncpa %s7720, 1
    %7722 = vsyncpa [#allocation13], 1
    %s7723 = scalar_lea.sflag [#allocation13], 1
    %7724 = vsyncpa %s7723, 1

</llo_original>
